<compile_context>
chip_gen: v6e
topology: v6e:2x2x1
jax: 0.10.0
libtpu: 0.0.40
codegen_flags: <defaults>
</compile_context>

<pallas_src>
import functools
import numpy as np

import jax
import jax.numpy as jnp
from jax.experimental import pallas as pl
from jax.experimental.pallas import tpu as pltpu

# ---------------- configuration (small, consistent with the module) ----------
B = 2                      # batch
H = W = 8                  # input_resolution
C = 32                     # dim
DEPTH = 2                  # depth (block 0: shift=0, block 1: shift=window//2)
NUM_HEADS = 4
HEAD_DIM = C // NUM_HEADS
WINDOW = 4                 # window_size
N_TOK = WINDOW * WINDOW    # tokens per window
N_IMG = H * W              # tokens per image
NUM_WINDOWS = (H // WINDOW) * (W // WINDOW)
MLP_HIDDEN = 4 * C         # mlp_ratio = 4
SCALE = HEAD_DIM ** -0.5   # qk_scale=0 (falsy) -> head_dim ** -0.5
LN_EPS = 1e-5
NEG_INF = -1e30            # cross-window structural mask (exp underflows to 0)


# ---------------- chip-dependent kernel configuration -------------------------
def _device_kind():
    try:
        return jax.devices()[0].device_kind.lower()
    except Exception:
        return ""


_KIND = _device_kind()
_TWO_TC = "v7" in _KIND                                  # v7x: 2 TensorCores/chip
USE_BF16_EXP = ("v6" in _KIND) or ("v7" in _KIND)        # bf16 EUP/VPU chips only
IMGS_PER_STEP = 1 if (_TWO_TC and B > 1) else B          # merge batch on 1-TC chips
NUM_STEPS = B // IMGS_PER_STEP
M_TOK = IMGS_PER_STEP * N_IMG                            # tokens per grid step


# ---------------- fused Pallas kernel -----------------------------------------
def basic_layer_kernel(x_ref, bias_ref, hmask_ref,
                       ln1g_ref, ln1b_ref, ln2g_ref, ln2b_ref,
                       qkvw_ref, projw_ref, projb_ref,
                       fc1w_ref, fc1b_ref, fc2w_ref, fc2b_ref,
                       o_ref, *, m_tok, use_bf16_exp):
    """One grid step = IMGS_PER_STEP images; both depth blocks statically unrolled."""
    x = x_ref[0]                          # (m_tok, C) f32
    hmask = hmask_ref[...]                # (NUM_HEADS*m_tok, C) f32 0/1 head selector

    def layer_norm(v, g, b):
        mu = jnp.mean(v, axis=-1, keepdims=True)
        var = jnp.mean(jnp.square(v - mu), axis=-1, keepdims=True)
        return (v - mu) * jax.lax.rsqrt(var + LN_EPS) * g + b

    for d in range(DEPTH):                # static unroll over the depth blocks
        # ------------------ (S)W-MSA ------------------
        xn = layer_norm(x, ln1g_ref[d], ln1b_ref[d])                     # f32
        qkv = jnp.dot(xn.astype(jnp.bfloat16), qkvw_ref[d],
                      preferred_element_type=jnp.float32)                # (m_tok, 3C)
        q = qkv[:, :C]                    # qk scale already folded into W_q host-side
        k = qkv[:, C:2 * C]
        v = qkv[:, 2 * C:]

        # Head-batched scores without per-head lane slicing: rows of q_exp are
        # (head, token); the 0/1 head mask zeroes other heads' channels, so one
        # (NH*M,C)@(C,M) matmul yields all per-head score blocks.
        q_exp = jnp.concatenate([q] * NUM_HEADS, axis=0) * hmask         # (NH*m, C)
        s = jax.lax.dot_general(q_exp.astype(jnp.bfloat16), k.astype(jnp.bfloat16),
                                (((1,), (1,)), ((), ())),
                                preferred_element_type=jnp.float32)      # (NH*m, m)
        # bias (bf16) contains rel-pos bias + shift mask (-100) and -1e30 for
        # token pairs in different (shifted) windows / different images.
        s = s + bias_ref[d].astype(jnp.float32)

        m = jnp.max(s, axis=-1, keepdims=True)
        if use_bf16_exp:                  # v6e / v7x: bf16 EUP/VPU numerator
            p = jnp.exp((s - m).astype(jnp.bfloat16))
            l = jnp.sum(p.astype(jnp.float32), axis=-1, keepdims=True)
            pv = jnp.dot(p, v.astype(jnp.bfloat16),
                         preferred_element_type=jnp.float32)             # (NH*m, C)
        else:                             # v5e / unknown: keep f32 elementwise
            p = jnp.exp(s - m)
            l = jnp.sum(p, axis=-1, keepdims=True)
            pv = jnp.dot(p.astype(jnp.bfloat16), v.astype(jnp.bfloat16),
                         preferred_element_type=jnp.float32)             # (NH*m, C)
        inv_l = pl.reciprocal(l, approx=True)                            # (NH*m, 1)

        # Normalize AFTER p@v (smaller tensor), keep only each head's own
        # channel block and sum the head row-blocks: reproduces the
        # transpose(1,2).reshape(N, C) head concatenation.
        pvm = pv * hmask * inv_l
        attn = pvm[0:m_tok]
        for hh in range(1, NUM_HEADS):
            attn = attn + pvm[hh * m_tok:(hh + 1) * m_tok]               # (m_tok, C)

        attn = jnp.dot(attn.astype(jnp.bfloat16), projw_ref[d],
                       preferred_element_type=jnp.float32) + projb_ref[d]
        x = x + attn                                                     # residual 1

        # ------------------ MLP ------------------
        xn2 = layer_norm(x, ln2g_ref[d], ln2b_ref[d])
        hmid = jnp.dot(xn2.astype(jnp.bfloat16), fc1w_ref[d],
                       preferred_element_type=jnp.float32) + fc1b_ref[d]  # (m_tok, HID)
        # TODO(synk): nn.GELU() default is the exact erf form; tanh approximation
        # used here for robust Mosaic lowering (numeric difference ~1e-3).
        hmid = 0.5 * hmid * (1.0 + jnp.tanh(
            0.7978845608028654 * (hmid + 0.044715 * hmid * hmid * hmid)))
        y = jnp.dot(hmid.astype(jnp.bfloat16), fc2w_ref[d],
                    preferred_element_type=jnp.float32) + fc2b_ref[d]
        x = x + y                                                        # residual 2

    # TODO(synk): a lane-dense (rows,128) output relayout was evaluated but not
    # kept; at 8 KiB/step the masked-store cost is negligible vs. relayout risk.
    o_ref[0] = x


# ---------------- wrapper -------------------------------------------------------
def basic_layer_forward(x, p):
    m = M_TOK
    x_steps = x.reshape(NUM_STEPS, m, C)          # contiguous row-major reshape
    out = pl.pallas_call(
        functools.partial(basic_layer_kernel, m_tok=m, use_bf16_exp=USE_BF16_EXP),
        out_shape=jax.ShapeDtypeStruct((NUM_STEPS, m, C), jnp.float32),
        grid=(NUM_STEPS,),
        in_specs=[
            pl.BlockSpec((1, m, C), lambda b: (b, 0, 0)),                       # x
            pl.BlockSpec((DEPTH, NUM_HEADS * m, m), lambda b: (0, 0, 0)),       # fused bias (bf16)
            pl.BlockSpec((NUM_HEADS * m, C), lambda b: (0, 0)),                 # head mask
            pl.BlockSpec((DEPTH, 1, C), lambda b: (0, 0, 0)),                   # ln1 gamma
            pl.BlockSpec((DEPTH, 1, C), lambda b: (0, 0, 0)),                   # ln1 beta
            pl.BlockSpec((DEPTH, 1, C), lambda b: (0, 0, 0)),                   # ln2 gamma
            pl.BlockSpec((DEPTH, 1, C), lambda b: (0, 0, 0)),                   # ln2 beta
            pl.BlockSpec((DEPTH, C, 3 * C), lambda b: (0, 0, 0)),               # qkv W^T (bf16, scale folded)
            pl.BlockSpec((DEPTH, C, C), lambda b: (0, 0, 0)),                   # proj W^T (bf16)
            pl.BlockSpec((DEPTH, 1, C), lambda b: (0, 0, 0)),                   # proj bias
            pl.BlockSpec((DEPTH, C, MLP_HIDDEN), lambda b: (0, 0, 0)),          # fc1 W^T (bf16)
            pl.BlockSpec((DEPTH, 1, MLP_HIDDEN), lambda b: (0, 0, 0)),          # fc1 bias
            pl.BlockSpec((DEPTH, MLP_HIDDEN, C), lambda b: (0, 0, 0)),          # fc2 W^T (bf16)
            pl.BlockSpec((DEPTH, 1, C), lambda b: (0, 0, 0)),                   # fc2 bias
        ],
        out_specs=pl.BlockSpec((1, m, C), lambda b: (b, 0, 0)),
        compiler_params=pltpu.CompilerParams(
            dimension_semantics=("parallel",),   # v7x: one image per TensorCore
            vmem_limit_bytes=32 * 1024 * 1024),
    )(x_steps, p["bias"], p["head_mask"],
      p["ln1_g"], p["ln1_b"], p["ln2_g"], p["ln2_b"],
      p["qkv_wT"], p["proj_wT"], p["proj_b"],
      p["fc1_wT"], p["fc1_b"], p["fc2_wT"], p["fc2_b"])
    return out.reshape(B, N_IMG, C)


# ---------------- host-side static structure (shift / windows / bias) -----------
def relative_position_index(ws):
    # follows the reference code exactly (offsets both coords then multiplies
    # coordinate 1 by 2*ws-1); indices stay within the (2ws-1)^2 table.
    coords = np.stack(np.meshgrid(np.arange(ws), np.arange(ws), indexing="ij"))
    cf = coords.reshape(2, -1)
    rel = (cf[:, :, None] - cf[:, None, :]).transpose(1, 2, 0).copy()
    rel[:, :, 0] += ws - 1
    rel[:, :, 1] += ws - 1
    rel[:, :, 1] *= 2 * ws - 1
    return rel.sum(-1)                                   # (N_TOK, N_TOK)


def _token_layout(shift):
    """Per global token: shifted-window id, local index, shifted coords."""
    rr, cc = np.meshgrid(np.arange(H), np.arange(W), indexing="ij")
    rs = (rr - shift) % H
    cs = (cc - shift) % W
    win = (rs // WINDOW) * (W // WINDOW) + (cs // WINDOW)
    loc = (rs % WINDOW) * WINDOW + (cs % WINDOW)
    return win.reshape(-1), loc.reshape(-1), rs.reshape(-1), cs.reshape(-1)


def _region_labels(shift):
    img = np.zeros((H, W), np.int32)
    sl = (slice(0, -WINDOW), slice(-WINDOW, -shift), slice(-shift, None))
    cnt = 0
    for hs in sl:
        for wsl in sl:
            img[hs, wsl] = cnt
            cnt += 1
    return img


def build_flat_bias(rel_bias, shift, imgs):
    """Fold shift + window partition + attn mask + rel-pos bias (+ cross-image
    masking) into one (NUM_HEADS*imgs*N_IMG, imgs*N_IMG) additive bias (bf16)."""
    win, loc, rs, cs = _token_layout(shift)
    m = imgs * N_IMG
    win_all = np.concatenate([win + im * NUM_WINDOWS for im in range(imgs)])
    loc_all = np.tile(loc, imgs)
    same = jnp.asarray(win_all[:, None] == win_all[None, :])             # (m, m)
    pair = rel_bias[:, loc_all[:, None], loc_all[None, :]]               # (NH, m, m)
    if shift > 0:
        reg = _region_labels(shift)[np.tile(rs, imgs), np.tile(cs, imgs)]
        smask = np.where(reg[:, None] != reg[None, :], -100.0, 0.0).astype(np.float32)
        pair = pair + jnp.asarray(smask)[None]
    bias = jnp.where(same[None], pair, jnp.float32(NEG_INF))
    return bias.reshape(NUM_HEADS * m, m).astype(jnp.bfloat16)


def _head_mask_np(imgs):
    m = imgs * N_IMG
    hm = np.zeros((NUM_HEADS * m, C), np.float32)
    for h in range(NUM_HEADS):
        hm[h * m:(h + 1) * m, h * HEAD_DIM:(h + 1) * HEAD_DIM] = 1.0
    return hm


def init_block_params(key, shift):
    ks = jax.random.split(key, 8)
    table = 0.02 * jax.random.normal(ks[0], ((2 * WINDOW - 1) ** 2, NUM_HEADS), jnp.float32)
    idx = relative_position_index(WINDOW)
    rel = table[jnp.asarray(idx.reshape(-1))].reshape(N_TOK, N_TOK, NUM_HEADS)
    rel = jnp.transpose(rel, (2, 0, 1))                               # (NH, N_TOK, N_TOK)
    bias_flat = build_flat_bias(rel, shift, IMGS_PER_STEP)            # (NH*M, M) bf16

    qkv_w = 0.02 * jax.random.normal(ks[1], (3 * C, C), jnp.float32)
    qkv_wT = qkv_w.T                                                   # (C, 3C)
    qkv_wT = qkv_wT.at[:, :C].multiply(SCALE)                          # fold qk scale into W_q
    proj_w = 0.02 * jax.random.normal(ks[2], (C, C), jnp.float32)
    proj_b = 0.02 * jax.random.normal(ks[3], (C,), jnp.float32)
    fc1_w = 0.02 * jax.random.normal(ks[4], (MLP_HIDDEN, C), jnp.float32)
    fc1_b = 0.02 * jax.random.normal(ks[5], (MLP_HIDDEN,), jnp.float32)
    fc2_w = 0.02 * jax.random.normal(ks[6], (C, MLP_HIDDEN), jnp.float32)
    fc2_b = 0.02 * jax.random.normal(ks[7], (C,), jnp.float32)

    return dict(
        bias=bias_flat,
        ln1_g=jnp.ones((1, C), jnp.float32), ln1_b=jnp.zeros((1, C), jnp.float32),
        ln2_g=jnp.ones((1, C), jnp.float32), ln2_b=jnp.zeros((1, C), jnp.float32),
        qkv_wT=qkv_wT.astype(jnp.bfloat16),
        proj_wT=proj_w.T.astype(jnp.bfloat16),
        proj_b=proj_b.reshape(1, C),
        fc1_wT=fc1_w.T.astype(jnp.bfloat16),
        fc1_b=fc1_b.reshape(1, MLP_HIDDEN),
        fc2_wT=fc2_w.T.astype(jnp.bfloat16),
        fc2_b=fc2_b.reshape(1, C),
    )


# ---------------- main ----------------------------------------------------------
if __name__ == "__main__":
    key = jax.random.PRNGKey(0)
    kx, k0, k1 = jax.random.split(key, 3)
    x = jax.random.normal(kx, (B, H * W, C), jnp.float32)

    # block 0: shift=0 (W-MSA); block 1: shift=WINDOW//2 (SW-MSA)
    blocks = [init_block_params(k0, 0), init_block_params(k1, WINDOW // 2)]
    params = {k: jnp.stack([blk[k] for blk in blocks], axis=0) for k in blocks[0]}
    params["head_mask"] = jnp.asarray(_head_mask_np(IMGS_PER_STEP))

    # TODO(synk): downsample=None in this configuration (the reference even has
    # the `self.downsample is None` missing-assignment bug); no downsample applied.
    fwd = jax.jit(functools.partial(basic_layer_forward, p=params))
    out = fwd(x)
    jax.block_until_ready(out)
    assert out.shape == (B, H * W, C) and out.dtype == jnp.float32
    assert bool(jnp.all(jnp.isfinite(out)))
    print("KERNEL_OK")
</pallas_src>

<mosaic_0001>
module attributes {stable_mosaic.version = 11 : i64} {
  func.func @basic_layer_kernel(%arg0: i32, %arg1: memref<1x128x32xf32, #tpu.memory_space<vmem>>, %arg2: memref<2x512x128xbf16, #tpu.memory_space<vmem>>, %arg3: memref<512x32xf32, #tpu.memory_space<vmem>>, %arg4: memref<2x1x32xf32, #tpu.memory_space<vmem>>, %arg5: memref<2x1x32xf32, #tpu.memory_space<vmem>>, %arg6: memref<2x1x32xf32, #tpu.memory_space<vmem>>, %arg7: memref<2x1x32xf32, #tpu.memory_space<vmem>>, %arg8: memref<2x32x96xbf16, #tpu.memory_space<vmem>>, %arg9: memref<2x32x32xbf16, #tpu.memory_space<vmem>>, %arg10: memref<2x1x32xf32, #tpu.memory_space<vmem>>, %arg11: memref<2x32x128xbf16, #tpu.memory_space<vmem>>, %arg12: memref<2x1x128xf32, #tpu.memory_space<vmem>>, %arg13: memref<2x128x32xbf16, #tpu.memory_space<vmem>>, %arg14: memref<2x1x32xf32, #tpu.memory_space<vmem>>, %arg15: memref<1x128x32xf32, #tpu.memory_space<vmem>>) attributes {dimension_semantics = [#tpu.dimension_semantics<parallel>], iteration_bounds = array<i64: 1>, scalar_prefetch = 0 : i64, scratch_operands = 0 : i64, tpu.core_type = #tpu.core_type<tc>, window_params = [{transform_indices = @transform_0, window_bounds = array<i64: 1, 128, 32>}, {pipeline_mode = #tpu.pipeline_mode<synchronous>, transform_indices = @transform_1, window_bounds = array<i64: 2, 512, 128>}, {pipeline_mode = #tpu.pipeline_mode<synchronous>, transform_indices = @transform_2, window_bounds = array<i64: 512, 32>}, {pipeline_mode = #tpu.pipeline_mode<synchronous>, transform_indices = @transform_3, window_bounds = array<i64: 2, 1, 32>}, {pipeline_mode = #tpu.pipeline_mode<synchronous>, transform_indices = @transform_4, window_bounds = array<i64: 2, 1, 32>}, {pipeline_mode = #tpu.pipeline_mode<synchronous>, transform_indices = @transform_5, window_bounds = array<i64: 2, 1, 32>}, {pipeline_mode = #tpu.pipeline_mode<synchronous>, transform_indices = @transform_6, window_bounds = array<i64: 2, 1, 32>}, {pipeline_mode = #tpu.pipeline_mode<synchronous>, transform_indices = @transform_7, window_bounds = array<i64: 2, 32, 96>}, {pipeline_mode = #tpu.pipeline_mode<synchronous>, transform_indices = @transform_8, window_bounds = array<i64: 2, 32, 32>}, {pipeline_mode = #tpu.pipeline_mode<synchronous>, transform_indices = @transform_9, window_bounds = array<i64: 2, 1, 32>}, {pipeline_mode = #tpu.pipeline_mode<synchronous>, transform_indices = @transform_10, window_bounds = array<i64: 2, 32, 128>}, {pipeline_mode = #tpu.pipeline_mode<synchronous>, transform_indices = @transform_11, window_bounds = array<i64: 2, 1, 128>}, {pipeline_mode = #tpu.pipeline_mode<synchronous>, transform_indices = @transform_12, window_bounds = array<i64: 2, 128, 32>}, {pipeline_mode = #tpu.pipeline_mode<synchronous>, transform_indices = @transform_13, window_bounds = array<i64: 2, 1, 32>}, {transform_indices = @transform_14, window_bounds = array<i64: 1, 128, 32>}]} {
    %c0 = arith.constant 0 : index
    %c0_0 = arith.constant 0 : index
    %c0_1 = arith.constant 0 : index
    %0 = vector.load %arg1[%c0, %c0_0, %c0_1] : memref<1x128x32xf32, #tpu.memory_space<vmem>>, vector<1x128x32xf32>
    %1 = vector.shape_cast %0 : vector<1x128x32xf32> to vector<128x32xf32>
    %c0_2 = arith.constant 0 : index
    %c0_3 = arith.constant 0 : index
    %2 = vector.load %arg3[%c0_2, %c0_3] : memref<512x32xf32, #tpu.memory_space<vmem>>, vector<512x32xf32>
    %c0_4 = arith.constant 0 : index
    %c0_5 = arith.constant 0 : index
    %c0_6 = arith.constant 0 : index
    %3 = vector.load %arg4[%c0_4, %c0_5, %c0_6] : memref<2x1x32xf32, #tpu.memory_space<vmem>>, vector<1x1x32xf32>
    %4 = vector.shape_cast %3 : vector<1x1x32xf32> to vector<1x32xf32>
    %c0_7 = arith.constant 0 : index
    %c0_8 = arith.constant 0 : index
    %c0_9 = arith.constant 0 : index
    %5 = vector.load %arg5[%c0_7, %c0_8, %c0_9] : memref<2x1x32xf32, #tpu.memory_space<vmem>>, vector<1x1x32xf32>
    %6 = vector.shape_cast %5 : vector<1x1x32xf32> to vector<1x32xf32>
    %cst = arith.constant dense<0.000000e+00> : vector<128xf32>
    %7 = vector.multi_reduction <add>, %1, %cst [1] : vector<128x32xf32> to vector<128xf32>
    %8 = vector.shape_cast %7 : vector<128xf32> to vector<128x1xf32>
    %cst_10 = arith.constant 3.200000e+01 : f32
    %9 = vector.broadcast %cst_10 : f32 to vector<128x1xf32>
    %10 = arith.divf %8, %9 : vector<128x1xf32>
    %11 = vector.broadcast %10 : vector<128x1xf32> to vector<128x32xf32>
    %12 = arith.subf %1, %11 : vector<128x32xf32>
    %13 = arith.mulf %12, %12 : vector<128x32xf32>
    %cst_11 = arith.constant dense<0.000000e+00> : vector<128xf32>
    %14 = vector.multi_reduction <add>, %13, %cst_11 [1] : vector<128x32xf32> to vector<128xf32>
    %15 = vector.shape_cast %14 : vector<128xf32> to vector<128x1xf32>
    %cst_12 = arith.constant 3.200000e+01 : f32
    %16 = vector.broadcast %cst_12 : f32 to vector<128x1xf32>
    %17 = arith.divf %15, %16 : vector<128x1xf32>
    %18 = vector.broadcast %10 : vector<128x1xf32> to vector<128x32xf32>
    %19 = arith.subf %1, %18 : vector<128x32xf32>
    %cst_13 = arith.constant 9.99999974E-6 : f32
    %20 = vector.broadcast %cst_13 : f32 to vector<128x1xf32>
    %21 = arith.addf %17, %20 : vector<128x1xf32>
    %22 = math.rsqrt %21 : vector<128x1xf32>
    %23 = vector.broadcast %22 : vector<128x1xf32> to vector<128x32xf32>
    %24 = arith.mulf %19, %23 : vector<128x32xf32>
    %25 = vector.broadcast %4 : vector<1x32xf32> to vector<128x32xf32>
    %26 = arith.mulf %24, %25 : vector<128x32xf32>
    %27 = vector.broadcast %6 : vector<1x32xf32> to vector<128x32xf32>
    %28 = arith.addf %26, %27 : vector<128x32xf32>
    %29 = arith.truncf %28 : vector<128x32xf32> to vector<128x32xbf16>
    %c0_14 = arith.constant 0 : index
    %c0_15 = arith.constant 0 : index
    %c0_16 = arith.constant 0 : index
    %30 = vector.load %arg8[%c0_14, %c0_15, %c0_16] : memref<2x32x96xbf16, #tpu.memory_space<vmem>>, vector<1x32x96xbf16>
    %31 = vector.shape_cast %30 : vector<1x32x96xbf16> to vector<32x96xbf16>
    %cst_17 = arith.constant dense<0.000000e+00> : vector<128x96xf32>
    %32 = tpu.matmul %29, %31, %cst_17 {dimension_numbers = #tpu.dot_dimension_numbers<[1], [0], [0], [1], [0, 0, 1, 1], [], []>} : vector<128x32xbf16>, vector<32x96xbf16>, vector<128x96xf32> -> vector<128x96xf32>
    %33 = vector.extract_strided_slice %32 {offsets = [0, 0], sizes = [128, 32], strides = [1, 1]} : vector<128x96xf32> to vector<128x32xf32>
    %34 = vector.extract_strided_slice %32 {offsets = [0, 32], sizes = [128, 32], strides = [1, 1]} : vector<128x96xf32> to vector<128x32xf32>
    %35 = vector.extract_strided_slice %32 {offsets = [0, 64], sizes = [128, 32], strides = [1, 1]} : vector<128x96xf32> to vector<128x32xf32>
    %36 = tpu.concatenate %33, %33, %33, %33 in 0 : vector<128x32xf32>, vector<128x32xf32>, vector<128x32xf32>, vector<128x32xf32> -> vector<512x32xf32>
    %37 = arith.mulf %36, %2 : vector<512x32xf32>
    %38 = arith.truncf %37 : vector<512x32xf32> to vector<512x32xbf16>
    %39 = arith.truncf %34 : vector<128x32xf32> to vector<128x32xbf16>
    %cst_18 = arith.constant dense<0.000000e+00> : vector<512x128xf32>
    %40 = tpu.matmul %38, %39, %cst_18 {dimension_numbers = #tpu.dot_dimension_numbers<[1], [1], [0], [0], [0, 0, 1, 0], [], []>} : vector<512x32xbf16>, vector<128x32xbf16>, vector<512x128xf32> -> vector<512x128xf32>
    %c0_19 = arith.constant 0 : index
    %c0_20 = arith.constant 0 : index
    %c0_21 = arith.constant 0 : index
    %41 = vector.load %arg2[%c0_19, %c0_20, %c0_21] : memref<2x512x128xbf16, #tpu.memory_space<vmem>>, vector<1x512x128xbf16>
    %42 = vector.shape_cast %41 : vector<1x512x128xbf16> to vector<512x128xbf16>
    %43 = arith.extf %42 : vector<512x128xbf16> to vector<512x128xf32>
    %44 = arith.addf %40, %43 : vector<512x128xf32>
    %cst_22 = arith.constant dense<0xFF800000> : vector<512xf32>
    %45 = vector.multi_reduction <maximumf>, %44, %cst_22 [1] : vector<512x128xf32> to vector<512xf32>
    %46 = vector.shape_cast %45 : vector<512xf32> to vector<512x1xf32>
    %47 = vector.broadcast %46 : vector<512x1xf32> to vector<512x128xf32>
    %48 = arith.subf %44, %47 : vector<512x128xf32>
    %49 = math.exp %48 : vector<512x128xf32>
    %cst_23 = arith.constant dense<0.000000e+00> : vector<512xf32>
    %50 = vector.multi_reduction <add>, %49, %cst_23 [1] : vector<512x128xf32> to vector<512xf32>
    %51 = vector.shape_cast %50 : vector<512xf32> to vector<512x1xf32>
    %52 = arith.truncf %49 : vector<512x128xf32> to vector<512x128xbf16>
    %53 = arith.truncf %35 : vector<128x32xf32> to vector<128x32xbf16>
    %cst_24 = arith.constant dense<0.000000e+00> : vector<512x32xf32>
    %54 = tpu.matmul %52, %53, %cst_24 {dimension_numbers = #tpu.dot_dimension_numbers<[1], [0], [0], [1], [0, 0, 1, 1], [], []>} : vector<512x128xbf16>, vector<128x32xbf16>, vector<512x32xf32> -> vector<512x32xf32>
    %55 = tpu.reciprocal %51 {approx = true} : vector<512x1xf32> -> vector<512x1xf32>
    %56 = arith.mulf %54, %2 : vector<512x32xf32>
    %57 = vector.broadcast %55 : vector<512x1xf32> to vector<512x32xf32>
    %58 = arith.mulf %56, %57 : vector<512x32xf32>
    %59 = vector.extract_strided_slice %58 {offsets = [0, 0], sizes = [128, 32], strides = [1, 1]} : vector<512x32xf32> to vector<128x32xf32>
    %60 = vector.extract_strided_slice %58 {offsets = [128, 0], sizes = [128, 32], strides = [1, 1]} : vector<512x32xf32> to vector<128x32xf32>
    %61 = arith.addf %59, %60 : vector<128x32xf32>
    %62 = vector.extract_strided_slice %58 {offsets = [256, 0], sizes = [128, 32], strides = [1, 1]} : vector<512x32xf32> to vector<128x32xf32>
    %63 = arith.addf %61, %62 : vector<128x32xf32>
    %64 = vector.extract_strided_slice %58 {offsets = [384, 0], sizes = [128, 32], strides = [1, 1]} : vector<512x32xf32> to vector<128x32xf32>
    %65 = arith.addf %63, %64 : vector<128x32xf32>
    %66 = arith.truncf %65 : vector<128x32xf32> to vector<128x32xbf16>
    %c0_25 = arith.constant 0 : index
    %c0_26 = arith.constant 0 : index
    %c0_27 = arith.constant 0 : index
    %67 = vector.load %arg9[%c0_25, %c0_26, %c0_27] : memref<2x32x32xbf16, #tpu.memory_space<vmem>>, vector<1x32x32xbf16>
    %68 = vector.shape_cast %67 : vector<1x32x32xbf16> to vector<32x32xbf16>
    %cst_28 = arith.constant dense<0.000000e+00> : vector<128x32xf32>
    %69 = tpu.matmul %66, %68, %cst_28 {dimension_numbers = #tpu.dot_dimension_numbers<[1], [0], [0], [1], [0, 0, 1, 1], [], []>} : vector<128x32xbf16>, vector<32x32xbf16>, vector<128x32xf32> -> vector<128x32xf32>
    %c0_29 = arith.constant 0 : index
    %c0_30 = arith.constant 0 : index
    %c0_31 = arith.constant 0 : index
    %70 = vector.load %arg10[%c0_29, %c0_30, %c0_31] : memref<2x1x32xf32, #tpu.memory_space<vmem>>, vector<1x1x32xf32>
    %71 = vector.shape_cast %70 : vector<1x1x32xf32> to vector<1x32xf32>
    %72 = vector.broadcast %71 : vector<1x32xf32> to vector<128x32xf32>
    %73 = arith.addf %69, %72 : vector<128x32xf32>
    %74 = arith.addf %1, %73 : vector<128x32xf32>
    %c0_32 = arith.constant 0 : index
    %c0_33 = arith.constant 0 : index
    %c0_34 = arith.constant 0 : index
    %75 = vector.load %arg6[%c0_32, %c0_33, %c0_34] : memref<2x1x32xf32, #tpu.memory_space<vmem>>, vector<1x1x32xf32>
    %76 = vector.shape_cast %75 : vector<1x1x32xf32> to vector<1x32xf32>
    %c0_35 = arith.constant 0 : index
    %c0_36 = arith.constant 0 : index
    %c0_37 = arith.constant 0 : index
    %77 = vector.load %arg7[%c0_35, %c0_36, %c0_37] : memref<2x1x32xf32, #tpu.memory_space<vmem>>, vector<1x1x32xf32>
    %78 = vector.shape_cast %77 : vector<1x1x32xf32> to vector<1x32xf32>
    %cst_38 = arith.constant dense<0.000000e+00> : vector<128xf32>
    %79 = vector.multi_reduction <add>, %74, %cst_38 [1] : vector<128x32xf32> to vector<128xf32>
    %80 = vector.shape_cast %79 : vector<128xf32> to vector<128x1xf32>
    %cst_39 = arith.constant 3.200000e+01 : f32
    %81 = vector.broadcast %cst_39 : f32 to vector<128x1xf32>
    %82 = arith.divf %80, %81 : vector<128x1xf32>
    %83 = vector.broadcast %82 : vector<128x1xf32> to vector<128x32xf32>
    %84 = arith.subf %74, %83 : vector<128x32xf32>
    %85 = arith.mulf %84, %84 : vector<128x32xf32>
    %cst_40 = arith.constant dense<0.000000e+00> : vector<128xf32>
    %86 = vector.multi_reduction <add>, %85, %cst_40 [1] : vector<128x32xf32> to vector<128xf32>
    %87 = vector.shape_cast %86 : vector<128xf32> to vector<128x1xf32>
    %cst_41 = arith.constant 3.200000e+01 : f32
    %88 = vector.broadcast %cst_41 : f32 to vector<128x1xf32>
    %89 = arith.divf %87, %88 : vector<128x1xf32>
    %90 = vector.broadcast %82 : vector<128x1xf32> to vector<128x32xf32>
    %91 = arith.subf %74, %90 : vector<128x32xf32>
    %cst_42 = arith.constant 9.99999974E-6 : f32
    %92 = vector.broadcast %cst_42 : f32 to vector<128x1xf32>
    %93 = arith.addf %89, %92 : vector<128x1xf32>
    %94 = math.rsqrt %93 : vector<128x1xf32>
    %95 = vector.broadcast %94 : vector<128x1xf32> to vector<128x32xf32>
    %96 = arith.mulf %91, %95 : vector<128x32xf32>
    %97 = vector.broadcast %76 : vector<1x32xf32> to vector<128x32xf32>
    %98 = arith.mulf %96, %97 : vector<128x32xf32>
    %99 = vector.broadcast %78 : vector<1x32xf32> to vector<128x32xf32>
    %100 = arith.addf %98, %99 : vector<128x32xf32>
    %101 = arith.truncf %100 : vector<128x32xf32> to vector<128x32xbf16>
    %c0_43 = arith.constant 0 : index
    %c0_44 = arith.constant 0 : index
    %c0_45 = arith.constant 0 : index
    %102 = vector.load %arg11[%c0_43, %c0_44, %c0_45] : memref<2x32x128xbf16, #tpu.memory_space<vmem>>, vector<1x32x128xbf16>
    %103 = vector.shape_cast %102 : vector<1x32x128xbf16> to vector<32x128xbf16>
    %cst_46 = arith.constant dense<0.000000e+00> : vector<128x128xf32>
    %104 = tpu.matmul %101, %103, %cst_46 {dimension_numbers = #tpu.dot_dimension_numbers<[1], [0], [0], [1], [0, 0, 1, 1], [], []>} : vector<128x32xbf16>, vector<32x128xbf16>, vector<128x128xf32> -> vector<128x128xf32>
    %c0_47 = arith.constant 0 : index
    %c0_48 = arith.constant 0 : index
    %c0_49 = arith.constant 0 : index
    %105 = vector.load %arg12[%c0_47, %c0_48, %c0_49] : memref<2x1x128xf32, #tpu.memory_space<vmem>>, vector<1x1x128xf32>
    %106 = vector.shape_cast %105 : vector<1x1x128xf32> to vector<1x128xf32>
    %107 = vector.broadcast %106 : vector<1x128xf32> to vector<128x128xf32>
    %108 = arith.addf %104, %107 : vector<128x128xf32>
    %cst_50 = arith.constant 5.000000e-01 : f32
    %109 = vector.broadcast %cst_50 : f32 to vector<128x128xf32>
    %110 = arith.mulf %109, %108 : vector<128x128xf32>
    %cst_51 = arith.constant 4.471500e-02 : f32
    %111 = vector.broadcast %cst_51 : f32 to vector<128x128xf32>
    %112 = arith.mulf %111, %108 : vector<128x128xf32>
    %113 = arith.mulf %112, %108 : vector<128x128xf32>
    %114 = arith.mulf %113, %108 : vector<128x128xf32>
    %115 = arith.addf %108, %114 : vector<128x128xf32>
    %cst_52 = arith.constant 0.797884583 : f32
    %116 = vector.broadcast %cst_52 : f32 to vector<128x128xf32>
    %117 = arith.mulf %116, %115 : vector<128x128xf32>
    %118 = math.tanh %117 : vector<128x128xf32>
    %cst_53 = arith.constant 1.000000e+00 : f32
    %119 = vector.broadcast %cst_53 : f32 to vector<128x128xf32>
    %120 = arith.addf %119, %118 : vector<128x128xf32>
    %121 = arith.mulf %110, %120 : vector<128x128xf32>
    %122 = arith.truncf %121 : vector<128x128xf32> to vector<128x128xbf16>
    %c0_54 = arith.constant 0 : index
    %c0_55 = arith.constant 0 : index
    %c0_56 = arith.constant 0 : index
    %123 = vector.load %arg13[%c0_54, %c0_55, %c0_56] : memref<2x128x32xbf16, #tpu.memory_space<vmem>>, vector<1x128x32xbf16>
    %124 = vector.shape_cast %123 : vector<1x128x32xbf16> to vector<128x32xbf16>
    %cst_57 = arith.constant dense<0.000000e+00> : vector<128x32xf32>
    %125 = tpu.matmul %122, %124, %cst_57 {dimension_numbers = #tpu.dot_dimension_numbers<[1], [0], [0], [1], [0, 0, 1, 1], [], []>} : vector<128x128xbf16>, vector<128x32xbf16>, vector<128x32xf32> -> vector<128x32xf32>
    %c0_58 = arith.constant 0 : index
    %c0_59 = arith.constant 0 : index
    %c0_60 = arith.constant 0 : index
    %126 = vector.load %arg14[%c0_58, %c0_59, %c0_60] : memref<2x1x32xf32, #tpu.memory_space<vmem>>, vector<1x1x32xf32>
    %127 = vector.shape_cast %126 : vector<1x1x32xf32> to vector<1x32xf32>
    %128 = vector.broadcast %127 : vector<1x32xf32> to vector<128x32xf32>
    %129 = arith.addf %125, %128 : vector<128x32xf32>
    %130 = arith.addf %74, %129 : vector<128x32xf32>
    %c1 = arith.constant 1 : index
    %c0_61 = arith.constant 0 : index
    %c0_62 = arith.constant 0 : index
    %131 = vector.load %arg4[%c1, %c0_61, %c0_62] : memref<2x1x32xf32, #tpu.memory_space<vmem>>, vector<1x1x32xf32>
    %132 = vector.shape_cast %131 : vector<1x1x32xf32> to vector<1x32xf32>
    %c1_63 = arith.constant 1 : index
    %c0_64 = arith.constant 0 : index
    %c0_65 = arith.constant 0 : index
    %133 = vector.load %arg5[%c1_63, %c0_64, %c0_65] : memref<2x1x32xf32, #tpu.memory_space<vmem>>, vector<1x1x32xf32>
    %134 = vector.shape_cast %133 : vector<1x1x32xf32> to vector<1x32xf32>
    %cst_66 = arith.constant dense<0.000000e+00> : vector<128xf32>
    %135 = vector.multi_reduction <add>, %130, %cst_66 [1] : vector<128x32xf32> to vector<128xf32>
    %136 = vector.shape_cast %135 : vector<128xf32> to vector<128x1xf32>
    %cst_67 = arith.constant 3.200000e+01 : f32
    %137 = vector.broadcast %cst_67 : f32 to vector<128x1xf32>
    %138 = arith.divf %136, %137 : vector<128x1xf32>
    %139 = vector.broadcast %138 : vector<128x1xf32> to vector<128x32xf32>
    %140 = arith.subf %130, %139 : vector<128x32xf32>
    %141 = arith.mulf %140, %140 : vector<128x32xf32>
    %cst_68 = arith.constant dense<0.000000e+00> : vector<128xf32>
    %142 = vector.multi_reduction <add>, %141, %cst_68 [1] : vector<128x32xf32> to vector<128xf32>
    %143 = vector.shape_cast %142 : vector<128xf32> to vector<128x1xf32>
    %cst_69 = arith.constant 3.200000e+01 : f32
    %144 = vector.broadcast %cst_69 : f32 to vector<128x1xf32>
    %145 = arith.divf %143, %144 : vector<128x1xf32>
    %146 = vector.broadcast %138 : vector<128x1xf32> to vector<128x32xf32>
    %147 = arith.subf %130, %146 : vector<128x32xf32>
    %cst_70 = arith.constant 9.99999974E-6 : f32
    %148 = vector.broadcast %cst_70 : f32 to vector<128x1xf32>
    %149 = arith.addf %145, %148 : vector<128x1xf32>
    %150 = math.rsqrt %149 : vector<128x1xf32>
    %151 = vector.broadcast %150 : vector<128x1xf32> to vector<128x32xf32>
    %152 = arith.mulf %147, %151 : vector<128x32xf32>
    %153 = vector.broadcast %132 : vector<1x32xf32> to vector<128x32xf32>
    %154 = arith.mulf %152, %153 : vector<128x32xf32>
    %155 = vector.broadcast %134 : vector<1x32xf32> to vector<128x32xf32>
    %156 = arith.addf %154, %155 : vector<128x32xf32>
    %157 = arith.truncf %156 : vector<128x32xf32> to vector<128x32xbf16>
    %c1_71 = arith.constant 1 : index
    %c0_72 = arith.constant 0 : index
    %c0_73 = arith.constant 0 : index
    %158 = vector.load %arg8[%c1_71, %c0_72, %c0_73] : memref<2x32x96xbf16, #tpu.memory_space<vmem>>, vector<1x32x96xbf16>
    %159 = vector.shape_cast %158 : vector<1x32x96xbf16> to vector<32x96xbf16>
    %cst_74 = arith.constant dense<0.000000e+00> : vector<128x96xf32>
    %160 = tpu.matmul %157, %159, %cst_74 {dimension_numbers = #tpu.dot_dimension_numbers<[1], [0], [0], [1], [0, 0, 1, 1], [], []>} : vector<128x32xbf16>, vector<32x96xbf16>, vector<128x96xf32> -> vector<128x96xf32>
    %161 = vector.extract_strided_slice %160 {offsets = [0, 0], sizes = [128, 32], strides = [1, 1]} : vector<128x96xf32> to vector<128x32xf32>
    %162 = vector.extract_strided_slice %160 {offsets = [0, 32], sizes = [128, 32], strides = [1, 1]} : vector<128x96xf32> to vector<128x32xf32>
    %163 = vector.extract_strided_slice %160 {offsets = [0, 64], sizes = [128, 32], strides = [1, 1]} : vector<128x96xf32> to vector<128x32xf32>
    %164 = tpu.concatenate %161, %161, %161, %161 in 0 : vector<128x32xf32>, vector<128x32xf32>, vector<128x32xf32>, vector<128x32xf32> -> vector<512x32xf32>
    %165 = arith.mulf %164, %2 : vector<512x32xf32>
    %166 = arith.truncf %165 : vector<512x32xf32> to vector<512x32xbf16>
    %167 = arith.truncf %162 : vector<128x32xf32> to vector<128x32xbf16>
    %cst_75 = arith.constant dense<0.000000e+00> : vector<512x128xf32>
    %168 = tpu.matmul %166, %167, %cst_75 {dimension_numbers = #tpu.dot_dimension_numbers<[1], [1], [0], [0], [0, 0, 1, 0], [], []>} : vector<512x32xbf16>, vector<128x32xbf16>, vector<512x128xf32> -> vector<512x128xf32>
    %c1_76 = arith.constant 1 : index
    %c0_77 = arith.constant 0 : index
    %c0_78 = arith.constant 0 : index
    %169 = vector.load %arg2[%c1_76, %c0_77, %c0_78] : memref<2x512x128xbf16, #tpu.memory_space<vmem>>, vector<1x512x128xbf16>
    %170 = vector.shape_cast %169 : vector<1x512x128xbf16> to vector<512x128xbf16>
    %171 = arith.extf %170 : vector<512x128xbf16> to vector<512x128xf32>
    %172 = arith.addf %168, %171 : vector<512x128xf32>
    %cst_79 = arith.constant dense<0xFF800000> : vector<512xf32>
    %173 = vector.multi_reduction <maximumf>, %172, %cst_79 [1] : vector<512x128xf32> to vector<512xf32>
    %174 = vector.shape_cast %173 : vector<512xf32> to vector<512x1xf32>
    %175 = vector.broadcast %174 : vector<512x1xf32> to vector<512x128xf32>
    %176 = arith.subf %172, %175 : vector<512x128xf32>
    %177 = math.exp %176 : vector<512x128xf32>
    %cst_80 = arith.constant dense<0.000000e+00> : vector<512xf32>
    %178 = vector.multi_reduction <add>, %177, %cst_80 [1] : vector<512x128xf32> to vector<512xf32>
    %179 = vector.shape_cast %178 : vector<512xf32> to vector<512x1xf32>
    %180 = arith.truncf %177 : vector<512x128xf32> to vector<512x128xbf16>
    %181 = arith.truncf %163 : vector<128x32xf32> to vector<128x32xbf16>
    %cst_81 = arith.constant dense<0.000000e+00> : vector<512x32xf32>
    %182 = tpu.matmul %180, %181, %cst_81 {dimension_numbers = #tpu.dot_dimension_numbers<[1], [0], [0], [1], [0, 0, 1, 1], [], []>} : vector<512x128xbf16>, vector<128x32xbf16>, vector<512x32xf32> -> vector<512x32xf32>
    %183 = tpu.reciprocal %179 {approx = true} : vector<512x1xf32> -> vector<512x1xf32>
    %184 = arith.mulf %182, %2 : vector<512x32xf32>
    %185 = vector.broadcast %183 : vector<512x1xf32> to vector<512x32xf32>
    %186 = arith.mulf %184, %185 : vector<512x32xf32>
    %187 = vector.extract_strided_slice %186 {offsets = [0, 0], sizes = [128, 32], strides = [1, 1]} : vector<512x32xf32> to vector<128x32xf32>
    %188 = vector.extract_strided_slice %186 {offsets = [128, 0], sizes = [128, 32], strides = [1, 1]} : vector<512x32xf32> to vector<128x32xf32>
    %189 = arith.addf %187, %188 : vector<128x32xf32>
    %190 = vector.extract_strided_slice %186 {offsets = [256, 0], sizes = [128, 32], strides = [1, 1]} : vector<512x32xf32> to vector<128x32xf32>
    %191 = arith.addf %189, %190 : vector<128x32xf32>
    %192 = vector.extract_strided_slice %186 {offsets = [384, 0], sizes = [128, 32], strides = [1, 1]} : vector<512x32xf32> to vector<128x32xf32>
    %193 = arith.addf %191, %192 : vector<128x32xf32>
    %194 = arith.truncf %193 : vector<128x32xf32> to vector<128x32xbf16>
    %c1_82 = arith.constant 1 : index
    %c0_83 = arith.constant 0 : index
    %c0_84 = arith.constant 0 : index
    %195 = vector.load %arg9[%c1_82, %c0_83, %c0_84] : memref<2x32x32xbf16, #tpu.memory_space<vmem>>, vector<1x32x32xbf16>
    %196 = vector.shape_cast %195 : vector<1x32x32xbf16> to vector<32x32xbf16>
    %cst_85 = arith.constant dense<0.000000e+00> : vector<128x32xf32>
    %197 = tpu.matmul %194, %196, %cst_85 {dimension_numbers = #tpu.dot_dimension_numbers<[1], [0], [0], [1], [0, 0, 1, 1], [], []>} : vector<128x32xbf16>, vector<32x32xbf16>, vector<128x32xf32> -> vector<128x32xf32>
    %c1_86 = arith.constant 1 : index
    %c0_87 = arith.constant 0 : index
    %c0_88 = arith.constant 0 : index
    %198 = vector.load %arg10[%c1_86, %c0_87, %c0_88] : memref<2x1x32xf32, #tpu.memory_space<vmem>>, vector<1x1x32xf32>
    %199 = vector.shape_cast %198 : vector<1x1x32xf32> to vector<1x32xf32>
    %200 = vector.broadcast %199 : vector<1x32xf32> to vector<128x32xf32>
    %201 = arith.addf %197, %200 : vector<128x32xf32>
    %202 = arith.addf %130, %201 : vector<128x32xf32>
    %c1_89 = arith.constant 1 : index
    %c0_90 = arith.constant 0 : index
    %c0_91 = arith.constant 0 : index
    %203 = vector.load %arg6[%c1_89, %c0_90, %c0_91] : memref<2x1x32xf32, #tpu.memory_space<vmem>>, vector<1x1x32xf32>
    %204 = vector.shape_cast %203 : vector<1x1x32xf32> to vector<1x32xf32>
    %c1_92 = arith.constant 1 : index
    %c0_93 = arith.constant 0 : index
    %c0_94 = arith.constant 0 : index
    %205 = vector.load %arg7[%c1_92, %c0_93, %c0_94] : memref<2x1x32xf32, #tpu.memory_space<vmem>>, vector<1x1x32xf32>
    %206 = vector.shape_cast %205 : vector<1x1x32xf32> to vector<1x32xf32>
    %cst_95 = arith.constant dense<0.000000e+00> : vector<128xf32>
    %207 = vector.multi_reduction <add>, %202, %cst_95 [1] : vector<128x32xf32> to vector<128xf32>
    %208 = vector.shape_cast %207 : vector<128xf32> to vector<128x1xf32>
    %cst_96 = arith.constant 3.200000e+01 : f32
    %209 = vector.broadcast %cst_96 : f32 to vector<128x1xf32>
    %210 = arith.divf %208, %209 : vector<128x1xf32>
    %211 = vector.broadcast %210 : vector<128x1xf32> to vector<128x32xf32>
    %212 = arith.subf %202, %211 : vector<128x32xf32>
    %213 = arith.mulf %212, %212 : vector<128x32xf32>
    %cst_97 = arith.constant dense<0.000000e+00> : vector<128xf32>
    %214 = vector.multi_reduction <add>, %213, %cst_97 [1] : vector<128x32xf32> to vector<128xf32>
    %215 = vector.shape_cast %214 : vector<128xf32> to vector<128x1xf32>
    %cst_98 = arith.constant 3.200000e+01 : f32
    %216 = vector.broadcast %cst_98 : f32 to vector<128x1xf32>
    %217 = arith.divf %215, %216 : vector<128x1xf32>
    %218 = vector.broadcast %210 : vector<128x1xf32> to vector<128x32xf32>
    %219 = arith.subf %202, %218 : vector<128x32xf32>
    %cst_99 = arith.constant 9.99999974E-6 : f32
    %220 = vector.broadcast %cst_99 : f32 to vector<128x1xf32>
    %221 = arith.addf %217, %220 : vector<128x1xf32>
    %222 = math.rsqrt %221 : vector<128x1xf32>
    %223 = vector.broadcast %222 : vector<128x1xf32> to vector<128x32xf32>
    %224 = arith.mulf %219, %223 : vector<128x32xf32>
    %225 = vector.broadcast %204 : vector<1x32xf32> to vector<128x32xf32>
    %226 = arith.mulf %224, %225 : vector<128x32xf32>
    %227 = vector.broadcast %206 : vector<1x32xf32> to vector<128x32xf32>
    %228 = arith.addf %226, %227 : vector<128x32xf32>
    %229 = arith.truncf %228 : vector<128x32xf32> to vector<128x32xbf16>
    %c1_100 = arith.constant 1 : index
    %c0_101 = arith.constant 0 : index
    %c0_102 = arith.constant 0 : index
    %230 = vector.load %arg11[%c1_100, %c0_101, %c0_102] : memref<2x32x128xbf16, #tpu.memory_space<vmem>>, vector<1x32x128xbf16>
    %231 = vector.shape_cast %230 : vector<1x32x128xbf16> to vector<32x128xbf16>
    %cst_103 = arith.constant dense<0.000000e+00> : vector<128x128xf32>
    %232 = tpu.matmul %229, %231, %cst_103 {dimension_numbers = #tpu.dot_dimension_numbers<[1], [0], [0], [1], [0, 0, 1, 1], [], []>} : vector<128x32xbf16>, vector<32x128xbf16>, vector<128x128xf32> -> vector<128x128xf32>
    %c1_104 = arith.constant 1 : index
    %c0_105 = arith.constant 0 : index
    %c0_106 = arith.constant 0 : index
    %233 = vector.load %arg12[%c1_104, %c0_105, %c0_106] : memref<2x1x128xf32, #tpu.memory_space<vmem>>, vector<1x1x128xf32>
    %234 = vector.shape_cast %233 : vector<1x1x128xf32> to vector<1x128xf32>
    %235 = vector.broadcast %234 : vector<1x128xf32> to vector<128x128xf32>
    %236 = arith.addf %232, %235 : vector<128x128xf32>
    %cst_107 = arith.constant 5.000000e-01 : f32
    %237 = vector.broadcast %cst_107 : f32 to vector<128x128xf32>
    %238 = arith.mulf %237, %236 : vector<128x128xf32>
    %cst_108 = arith.constant 4.471500e-02 : f32
    %239 = vector.broadcast %cst_108 : f32 to vector<128x128xf32>
    %240 = arith.mulf %239, %236 : vector<128x128xf32>
    %241 = arith.mulf %240, %236 : vector<128x128xf32>
    %242 = arith.mulf %241, %236 : vector<128x128xf32>
    %243 = arith.addf %236, %242 : vector<128x128xf32>
    %cst_109 = arith.constant 0.797884583 : f32
    %244 = vector.broadcast %cst_109 : f32 to vector<128x128xf32>
    %245 = arith.mulf %244, %243 : vector<128x128xf32>
    %246 = math.tanh %245 : vector<128x128xf32>
    %cst_110 = arith.constant 1.000000e+00 : f32
    %247 = vector.broadcast %cst_110 : f32 to vector<128x128xf32>
    %248 = arith.addf %247, %246 : vector<128x128xf32>
    %249 = arith.mulf %238, %248 : vector<128x128xf32>
    %250 = arith.truncf %249 : vector<128x128xf32> to vector<128x128xbf16>
    %c1_111 = arith.constant 1 : index
    %c0_112 = arith.constant 0 : index
    %c0_113 = arith.constant 0 : index
    %251 = vector.load %arg13[%c1_111, %c0_112, %c0_113] : memref<2x128x32xbf16, #tpu.memory_space<vmem>>, vector<1x128x32xbf16>
    %252 = vector.shape_cast %251 : vector<1x128x32xbf16> to vector<128x32xbf16>
    %cst_114 = arith.constant dense<0.000000e+00> : vector<128x32xf32>
    %253 = tpu.matmul %250, %252, %cst_114 {dimension_numbers = #tpu.dot_dimension_numbers<[1], [0], [0], [1], [0, 0, 1, 1], [], []>} : vector<128x128xbf16>, vector<128x32xbf16>, vector<128x32xf32> -> vector<128x32xf32>
    %c1_115 = arith.constant 1 : index
    %c0_116 = arith.constant 0 : index
    %c0_117 = arith.constant 0 : index
    %254 = vector.load %arg14[%c1_115, %c0_116, %c0_117] : memref<2x1x32xf32, #tpu.memory_space<vmem>>, vector<1x1x32xf32>
    %255 = vector.shape_cast %254 : vector<1x1x32xf32> to vector<1x32xf32>
    %256 = vector.broadcast %255 : vector<1x32xf32> to vector<128x32xf32>
    %257 = arith.addf %253, %256 : vector<128x32xf32>
    %258 = arith.addf %202, %257 : vector<128x32xf32>
    %c0_118 = arith.constant 0 : index
    %c0_119 = arith.constant 0 : index
    %c0_120 = arith.constant 0 : index
    %259 = vector.load %arg15[%c0_118, %c0_119, %c0_120] : memref<1x128x32xf32, #tpu.memory_space<vmem>>, vector<1x128x32xf32>
    %260 = vector.shape_cast %259 : vector<1x128x32xf32> to vector<128x32xf32>
    %261 = vector.shape_cast %258 : vector<128x32xf32> to vector<1x128x32xf32>
    tpu.vector_store %arg15[%c0_118, %c0_119, %c0_120], %261 {strides = array<i32>} : memref<1x128x32xf32, #tpu.memory_space<vmem>>, vector<1x128x32xf32>,
    return
  }
  func.func @transform_0(%arg0: i32) -> (i32, i32, i32) {
    %c0_i32 = arith.constant 0 : i32
    %c0_i32_0 = arith.constant 0 : i32
    %c0_i32_1 = arith.constant 0 : i32
    return %arg0, %c0_i32, %c0_i32_0 : i32, i32, i32
  }
  func.func @transform_1(%arg0: i32) -> (i32, i32, i32) {
    %c0_i32 = arith.constant 0 : i32
    %c0_i32_0 = arith.constant 0 : i32
    %c0_i32_1 = arith.constant 0 : i32
    %c0_i32_2 = arith.constant 0 : i32
    return %c0_i32, %c0_i32_0, %c0_i32_1 : i32, i32, i32
  }
  func.func @transform_2(%arg0: i32) -> (i32, i32) {
    %c0_i32 = arith.constant 0 : i32
    %c0_i32_0 = arith.constant 0 : i32
    %c0_i32_1 = arith.constant 0 : i32
    return %c0_i32, %c0_i32_0 : i32, i32
  }
  func.func @transform_3(%arg0: i32) -> (i32, i32, i32) {
    %c0_i32 = arith.constant 0 : i32
    %c0_i32_0 = arith.constant 0 : i32
    %c0_i32_1 = arith.constant 0 : i32
    %c0_i32_2 = arith.constant 0 : i32
    return %c0_i32, %c0_i32_0, %c0_i32_1 : i32, i32, i32
  }
  func.func @transform_4(%arg0: i32) -> (i32, i32, i32) {
    %c0_i32 = arith.constant 0 : i32
    %c0_i32_0 = arith.constant 0 : i32
    %c0_i32_1 = arith.constant 0 : i32
    %c0_i32_2 = arith.constant 0 : i32
    return %c0_i32, %c0_i32_0, %c0_i32_1 : i32, i32, i32
  }
  func.func @transform_5(%arg0: i32) -> (i32, i32, i32) {
    %c0_i32 = arith.constant 0 : i32
    %c0_i32_0 = arith.constant 0 : i32
    %c0_i32_1 = arith.constant 0 : i32
    %c0_i32_2 = arith.constant 0 : i32
    return %c0_i32, %c0_i32_0, %c0_i32_1 : i32, i32, i32
  }
  func.func @transform_6(%arg0: i32) -> (i32, i32, i32) {
    %c0_i32 = arith.constant 0 : i32
    %c0_i32_0 = arith.constant 0 : i32
    %c0_i32_1 = arith.constant 0 : i32
    %c0_i32_2 = arith.constant 0 : i32
    return %c0_i32, %c0_i32_0, %c0_i32_1 : i32, i32, i32
  }
  func.func @transform_7(%arg0: i32) -> (i32, i32, i32) {
    %c0_i32 = arith.constant 0 : i32
    %c0_i32_0 = arith.constant 0 : i32
    %c0_i32_1 = arith.constant 0 : i32
    %c0_i32_2 = arith.constant 0 : i32
    return %c0_i32, %c0_i32_0, %c0_i32_1 : i32, i32, i32
  }
  func.func @transform_8(%arg0: i32) -> (i32, i32, i32) {
    %c0_i32 = arith.constant 0 : i32
    %c0_i32_0 = arith.constant 0 : i32
    %c0_i32_1 = arith.constant 0 : i32
    %c0_i32_2 = arith.constant 0 : i32
    return %c0_i32, %c0_i32_0, %c0_i32_1 : i32, i32, i32
  }
  func.func @transform_9(%arg0: i32) -> (i32, i32, i32) {
    %c0_i32 = arith.constant 0 : i32
    %c0_i32_0 = arith.constant 0 : i32
    %c0_i32_1 = arith.constant 0 : i32
    %c0_i32_2 = arith.constant 0 : i32
    return %c0_i32, %c0_i32_0, %c0_i32_1 : i32, i32, i32
  }
  func.func @transform_10(%arg0: i32) -> (i32, i32, i32) {
    %c0_i32 = arith.constant 0 : i32
    %c0_i32_0 = arith.constant 0 : i32
    %c0_i32_1 = arith.constant 0 : i32
    %c0_i32_2 = arith.constant 0 : i32
    return %c0_i32, %c0_i32_0, %c0_i32_1 : i32, i32, i32
  }
  func.func @transform_11(%arg0: i32) -> (i32, i32, i32) {
    %c0_i32 = arith.constant 0 : i32
    %c0_i32_0 = arith.constant 0 : i32
    %c0_i32_1 = arith.constant 0 : i32
    %c0_i32_2 = arith.constant 0 : i32
    return %c0_i32, %c0_i32_0, %c0_i32_1 : i32, i32, i32
  }
  func.func @transform_12(%arg0: i32) -> (i32, i32, i32) {
    %c0_i32 = arith.constant 0 : i32
    %c0_i32_0 = arith.constant 0 : i32
    %c0_i32_1 = arith.constant 0 : i32
    %c0_i32_2 = arith.constant 0 : i32
    return %c0_i32, %c0_i32_0, %c0_i32_1 : i32, i32, i32
  }
  func.func @transform_13(%arg0: i32) -> (i32, i32, i32) {
    %c0_i32 = arith.constant 0 : i32
    %c0_i32_0 = arith.constant 0 : i32
    %c0_i32_1 = arith.constant 0 : i32
    %c0_i32_2 = arith.constant 0 : i32
    return %c0_i32, %c0_i32_0, %c0_i32_1 : i32, i32, i32
  }
  func.func @transform_14(%arg0: i32) -> (i32, i32, i32) {
    %c0_i32 = arith.constant 0 : i32
    %c0_i32_0 = arith.constant 0 : i32
    %c0_i32_1 = arith.constant 0 : i32
    return %arg0, %c0_i32, %c0_i32_0 : i32, i32, i32
  }
}

</mosaic_0001>

<llo_original>
// kernel: basic_layer_forward.1
$region0: #{basic_layer_forward.1}
  #allocation0 [shape = 'u32[]', space=smem, size = 0x4, offset = 0x4, fixed_abs, tag = 'smem constant byte address 0x4 - core index']
  #allocation1 [shape = 'u32[144,128]{1,0:T(1,128)}', space=vmem, size = 0x12000, scoped, tag = 'internal scratch']
  %s0 = inlined_call_operand.vmem [shape: f32[1,128,32], index: 0, kind: input, shape index: {}]
  %s1 = inlined_call_operand.hbm [shape: bf16[2,512,128], index: 1, kind: input, shape index: {}]
  %s2 = inlined_call_operand.hbm [shape: f32[512,32], index: 2, kind: input, shape index: {}]
  %s3 = inlined_call_operand.vmem [shape: f32[2,1,32], index: 3, kind: input, shape index: {}, may-alias: {3,5}]
  %s4 = inlined_call_operand.vmem [shape: f32[2,1,32], index: 4, kind: input, shape index: {}, may-alias: {4,6}]
  %s5 = inlined_call_operand.vmem [shape: f32[2,1,32], index: 5, kind: input, shape index: {}, may-alias: {3,5}]
  %s6 = inlined_call_operand.vmem [shape: f32[2,1,32], index: 6, kind: input, shape index: {}, may-alias: {4,6}]
  %s7 = inlined_call_operand.hbm [shape: bf16[2,32,96], index: 7, kind: input, shape index: {}]
  %s8 = inlined_call_operand.vmem [shape: bf16[2,32,32], index: 8, kind: input, shape index: {}]
  %s9 = inlined_call_operand.vmem [shape: f32[2,1,32], index: 9, kind: input, shape index: {}]
  %s10 = inlined_call_operand.vmem [shape: bf16[2,32,128], index: 10, kind: input, shape index: {}]
  %s11 = inlined_call_operand.vmem [shape: f32[2,1,128], index: 11, kind: input, shape index: {}]
  %s12 = inlined_call_operand.vmem [shape: bf16[2,128,32], index: 12, kind: input, shape index: {}]
  %s13 = inlined_call_operand.vmem [shape: f32[2,1,32], index: 13, kind: input, shape index: {}]
  %s14 = inlined_call_operand.vmem [shape: f32[1,128,32], index: 14, kind: output, shape index: {}]
  %s15 = sld [smem:[#allocation0]]
  $region78: #{basic_layer_forward.1} parent=0
    _
  %s17 = ssub.s32 1, %s15
  %s18 = scalar_select 0, %s17, %s15
  $region1: #{basic_layer_forward.1} parent=0
    #allocation2 [shape = 'u8[262144]{0}', space=vmem, size = 0x40000, scoped, tag = 'input window, operand 1, single buffered']
    #allocation3 [shape = 's32[1]{0}', space=sflag, size = 0x4, scoped, tag = 'scoped memory for basic_layer_forward.1']
    #allocation4 [shape = 'u8[262144]{0}', space=vmem, size = 0x40000, scoped, tag = 'input window, operand 2, single buffered']
    #allocation5 [shape = 's32[1]{0}', space=sflag, size = 0x4, scoped, tag = 'scoped memory for basic_layer_forward.1']
    #allocation6 [shape = 'u8[16384]{0}', space=vmem, size = 0x4000, scoped, tag = 'input window, operand 7, single buffered']
    %19 = vsyncpa [#allocation3], 0
    %20 = vsyncpa [#allocation5], 0
    // Predicated region
    $region2: #{basic_layer_forward.1} parent=1 // pred_check
      _
    $region3: #{basic_layer_forward.1} parent=1 // pred_check_branch
      %22 = sbr.rel (0) target = $region5
    $region4: #{basic_layer_forward.1} parent=1 // pred_region
      _
    $region5: #{basic_layer_forward.1} parent=1 // pred_fallthru
      _
    // Predicated region
    $region6: #{basic_layer_forward.1} parent=1 // pred_check
      _
    $region7: #{basic_layer_forward.1} parent=1 // pred_check_branch
      %24 = sbr.rel (0) target = $region9
    $region8: #{basic_layer_forward.1} parent=1 // pred_region
      %s26 = ssub.s32 8192, 8192
      %27 = vsyncadd [#allocation3], %s26
      %s28 = sshll.u32 [#allocation2], 4
      %s29 = int_to_ptr.vmem [resolvable:$true] %s28
      %34 = dma.hbm_to_vmem [thread:$0]  %s1, 8192, %s29, [#allocation3], 64, 64, 4
    $region9: #{basic_layer_forward.1} parent=1 // pred_fallthru
      _
    // Predicated region
    $region10: #{basic_layer_forward.1} parent=1 // pred_check
      _
    $region11: #{basic_layer_forward.1} parent=1 // pred_check_branch
      %36 = sbr.rel (0) target = $region13
    $region12: #{basic_layer_forward.1} parent=1 // pred_region
      %s38 = ssub.s32 8192, 8192
      %39 = vsyncadd [#allocation5], %s38
      %s40 = sshll.u32 [#allocation4], 4
      %s41 = int_to_ptr.vmem [resolvable:$true] %s40
      %46 = dma.hbm_to_vmem [thread:$0]  %s2, 8192, %s41, [#allocation5], 128, 128, 8
    $region13: #{basic_layer_forward.1} parent=1 // pred_fallthru
      _
    // Predicated region
    $region14: #{basic_layer_forward.1} parent=1 // pred_check
      _
    $region15: #{basic_layer_forward.1} parent=1 // pred_check_branch
      %48 = sbr.rel (0) target = $region17
    $region16: #{basic_layer_forward.1} parent=1 // pred_region
      _
    $region17: #{basic_layer_forward.1} parent=1 // pred_fallthru
      _
    // Predicated region
    $region18: #{basic_layer_forward.1} parent=1 // pred_check
      _
    $region19: #{basic_layer_forward.1} parent=1 // pred_check_branch
      %50 = sbr.rel (0) target = $region21
    $region20: #{basic_layer_forward.1} parent=1 // pred_region
      _
    $region21: #{basic_layer_forward.1} parent=1 // pred_fallthru
      _
    // Predicated region
    $region22: #{basic_layer_forward.1} parent=1 // pred_check
      _
    $region23: #{basic_layer_forward.1} parent=1 // pred_check_branch
      %52 = sbr.rel (0) target = $region25
    $region24: #{basic_layer_forward.1} parent=1 // pred_region
      _
    $region25: #{basic_layer_forward.1} parent=1 // pred_fallthru
      _
    // Predicated region
    $region26: #{basic_layer_forward.1} parent=1 // pred_check
      _
    $region27: #{basic_layer_forward.1} parent=1 // pred_check_branch
      %54 = sbr.rel (0) target = $region29
    $region28: #{basic_layer_forward.1} parent=1 // pred_region
      _
    $region29: #{basic_layer_forward.1} parent=1 // pred_fallthru
      _
    // Predicated region
    $region30: #{basic_layer_forward.1} parent=1 // pred_check
      _
    $region31: #{basic_layer_forward.1} parent=1 // pred_check_branch
      %56 = sbr.rel (0) target = $region33
    $region32: #{basic_layer_forward.1} parent=1 // pred_region
      %s58 = ssub.s32 512, 512
      %59 = vsyncadd [#allocation5], %s58
      %s60 = sshll.u32 [#allocation6], 4
      %s61 = int_to_ptr.vmem [resolvable:$true] %s60
      %66 = dma.hbm_to_vmem [thread:$0]  %s7, 512, %s61, [#allocation5], 64, 64, 4
    $region33: #{basic_layer_forward.1} parent=1 // pred_fallthru
      _
    // Predicated region
    $region34: #{basic_layer_forward.1} parent=1 // pred_check
      _
    $region35: #{basic_layer_forward.1} parent=1 // pred_check_branch
      %68 = sbr.rel (0) target = $region37
    $region36: #{basic_layer_forward.1} parent=1 // pred_region
      _
    $region37: #{basic_layer_forward.1} parent=1 // pred_fallthru
      _
    // Predicated region
    $region38: #{basic_layer_forward.1} parent=1 // pred_check
      _
    $region39: #{basic_layer_forward.1} parent=1 // pred_check_branch
      %70 = sbr.rel (0) target = $region41
    $region40: #{basic_layer_forward.1} parent=1 // pred_region
      _
    $region41: #{basic_layer_forward.1} parent=1 // pred_fallthru
      _
    // Predicated region
    $region42: #{basic_layer_forward.1} parent=1 // pred_check
      _
    $region43: #{basic_layer_forward.1} parent=1 // pred_check_branch
      %72 = sbr.rel (0) target = $region45
    $region44: #{basic_layer_forward.1} parent=1 // pred_region
      _
    $region45: #{basic_layer_forward.1} parent=1 // pred_fallthru
      _
    // Predicated region
    $region46: #{basic_layer_forward.1} parent=1 // pred_check
      _
    $region47: #{basic_layer_forward.1} parent=1 // pred_check_branch
      %74 = sbr.rel (0) target = $region49
    $region48: #{basic_layer_forward.1} parent=1 // pred_region
      _
    $region49: #{basic_layer_forward.1} parent=1 // pred_fallthru
      _
    // Predicated region
    $region50: #{basic_layer_forward.1} parent=1 // pred_check
      _
    $region51: #{basic_layer_forward.1} parent=1 // pred_check_branch
      %76 = sbr.rel (0) target = $region53
    $region52: #{basic_layer_forward.1} parent=1 // pred_region
      _
    $region53: #{basic_layer_forward.1} parent=1 // pred_fallthru
      _
    // Predicated region
    $region54: #{basic_layer_forward.1} parent=1 // pred_check
      _
    $region55: #{basic_layer_forward.1} parent=1 // pred_check_branch
      %78 = sbr.rel (0) target = $region57
    $region56: #{basic_layer_forward.1} parent=1 // pred_region
      _
    $region57: #{basic_layer_forward.1} parent=1 // pred_fallthru
      _
    // Predicated region
    $region58: #{basic_layer_forward.1} parent=1 // pred_check
      _
    $region59: #{basic_layer_forward.1} parent=1 // pred_check_branch
      %80 = sbr.rel (0) target = $region61
    $region60: #{basic_layer_forward.1} parent=1 // pred_region
      %81 = dma.done [#allocation3], 8192
    $region61: #{basic_layer_forward.1} parent=1 // pred_fallthru
      _
    // Predicated region
    $region62: #{basic_layer_forward.1} parent=1 // pred_check
      _
    $region63: #{basic_layer_forward.1} parent=1 // pred_check_branch
      %83 = sbr.rel (0) target = $region65
    $region64: #{basic_layer_forward.1} parent=1 // pred_region
      %84 = dma.done [#allocation5], 8192
    $region65: #{basic_layer_forward.1} parent=1 // pred_fallthru
      _
    // Predicated region
    $region66: #{basic_layer_forward.1} parent=1 // pred_check
      _
    $region67: #{basic_layer_forward.1} parent=1 // pred_check_branch
      %86 = sbr.rel (0) target = $region69
    $region68: #{basic_layer_forward.1} parent=1 // pred_region
      %87 = dma.done [#allocation5], 512
    $region69: #{basic_layer_forward.1} parent=1 // pred_fallthru
      _
    %v89 = vld [vmem:[%s0] sm:$0xff]
    %v90 = vld [vmem:[%s0 + $0x8] sm:$0xff]
    %v91 = vld [vmem:[%s0 + $0x10] sm:$0xff]
    %v92 = vld [vmem:[%s0 + $0x18] sm:$0xff]
    %v93 = vld [vmem:[%s0 + $0x20] sm:$0xff]
    %v94 = vld [vmem:[%s0 + $0x28] sm:$0xff]
    %v95 = vld [vmem:[%s0 + $0x30] sm:$0xff]
    %v96 = vld [vmem:[%s0 + $0x38] sm:$0xff]
    %v97 = vld [vmem:[%s0 + $0x40] sm:$0xff]
    %v98 = vld [vmem:[%s0 + $0x48] sm:$0xff]
    %v99 = vld [vmem:[%s0 + $0x50] sm:$0xff]
    %v100 = vld [vmem:[%s0 + $0x58] sm:$0xff]
    %v101 = vld [vmem:[%s0 + $0x60] sm:$0xff]
    %v102 = vld [vmem:[%s0 + $0x68] sm:$0xff]
    %v103 = vld [vmem:[%s0 + $0x70] sm:$0xff]
    %v104 = vld [vmem:[%s0 + $0x78] sm:$0xff]
    %v105 = vld [vmem:[#allocation4] sm:$0xff]
    %v106 = vld [vmem:[#allocation4 + $0x8] sm:$0xff]
    %v107 = vld [vmem:[#allocation4 + $0x10] sm:$0xff]
    %v108 = vld [vmem:[#allocation4 + $0x18] sm:$0xff]
    %v109 = vld [vmem:[#allocation4 + $0x20] sm:$0xff]
    %v110 = vld [vmem:[#allocation4 + $0x28] sm:$0xff]
    %v111 = vld [vmem:[#allocation4 + $0x30] sm:$0xff]
    %v112 = vld [vmem:[#allocation4 + $0x38] sm:$0xff]
    %v113 = vld [vmem:[#allocation4 + $0x40] sm:$0xff]
    %v114 = vld [vmem:[#allocation4 + $0x48] sm:$0xff]
    %v115 = vld [vmem:[#allocation4 + $0x50] sm:$0xff]
    %v116 = vld [vmem:[#allocation4 + $0x58] sm:$0xff]
    %v117 = vld [vmem:[#allocation4 + $0x60] sm:$0xff]
    %v118 = vld [vmem:[#allocation4 + $0x68] sm:$0xff]
    %v119 = vld [vmem:[#allocation4 + $0x70] sm:$0xff]
    %v120 = vld [vmem:[#allocation4 + $0x78] sm:$0xff]
    %v121 = vld [vmem:[#allocation4 + $0x80] sm:$0xff]
    %v122 = vld [vmem:[#allocation4 + $0x88] sm:$0xff]
    %v123 = vld [vmem:[#allocation4 + $0x90] sm:$0xff]
    %v124 = vld [vmem:[#allocation4 + $0x98] sm:$0xff]
    %v125 = vld [vmem:[#allocation4 + $0xa0] sm:$0xff]
    %v126 = vld [vmem:[#allocation4 + $0xa8] sm:$0xff]
    %v127 = vld [vmem:[#allocation4 + $0xb0] sm:$0xff]
    %v128 = vld [vmem:[#allocation4 + $0xb8] sm:$0xff]
    %v129 = vld [vmem:[#allocation4 + $0xc0] sm:$0xff]
    %v130 = vld [vmem:[#allocation4 + $0xc8] sm:$0xff]
    %v131 = vld [vmem:[#allocation4 + $0xd0] sm:$0xff]
    %v132 = vld [vmem:[#allocation4 + $0xd8] sm:$0xff]
    %v133 = vld [vmem:[#allocation4 + $0xe0] sm:$0xff]
    %v134 = vld [vmem:[#allocation4 + $0xe8] sm:$0xff]
    %v135 = vld [vmem:[#allocation4 + $0xf0] sm:$0xff]
    %v136 = vld [vmem:[#allocation4 + $0xf8] sm:$0xff]
    %v137 = vld [vmem:[#allocation4 + $0x100] sm:$0xff]
    %v138 = vld [vmem:[#allocation4 + $0x108] sm:$0xff]
    %v139 = vld [vmem:[#allocation4 + $0x110] sm:$0xff]
    %v140 = vld [vmem:[#allocation4 + $0x118] sm:$0xff]
    %v141 = vld [vmem:[#allocation4 + $0x120] sm:$0xff]
    %v142 = vld [vmem:[#allocation4 + $0x128] sm:$0xff]
    %v143 = vld [vmem:[#allocation4 + $0x130] sm:$0xff]
    %v144 = vld [vmem:[#allocation4 + $0x138] sm:$0xff]
    %v145 = vld [vmem:[#allocation4 + $0x140] sm:$0xff]
    %v146 = vld [vmem:[#allocation4 + $0x148] sm:$0xff]
    %v147 = vld [vmem:[#allocation4 + $0x150] sm:$0xff]
    %v148 = vld [vmem:[#allocation4 + $0x158] sm:$0xff]
    %v149 = vld [vmem:[#allocation4 + $0x160] sm:$0xff]
    %v150 = vld [vmem:[#allocation4 + $0x168] sm:$0xff]
    %v151 = vld [vmem:[#allocation4 + $0x170] sm:$0xff]
    %v152 = vld [vmem:[#allocation4 + $0x178] sm:$0xff]
    %v153 = vld [vmem:[#allocation4 + $0x180] sm:$0xff]
    %v154 = vld [vmem:[#allocation4 + $0x188] sm:$0xff]
    %v155 = vld [vmem:[#allocation4 + $0x190] sm:$0xff]
    %v156 = vld [vmem:[#allocation4 + $0x198] sm:$0xff]
    %v157 = vld [vmem:[#allocation4 + $0x1a0] sm:$0xff]
    %v158 = vld [vmem:[#allocation4 + $0x1a8] sm:$0xff]
    %v159 = vld [vmem:[#allocation4 + $0x1b0] sm:$0xff]
    %v160 = vld [vmem:[#allocation4 + $0x1b8] sm:$0xff]
    %v161 = vld [vmem:[#allocation4 + $0x1c0] sm:$0xff]
    %v162 = vld [vmem:[#allocation4 + $0x1c8] sm:$0xff]
    %v163 = vld [vmem:[#allocation4 + $0x1d0] sm:$0xff]
    %v164 = vld [vmem:[#allocation4 + $0x1d8] sm:$0xff]
    %v165 = vld [vmem:[#allocation4 + $0x1e0] sm:$0xff]
    %v166 = vld [vmem:[#allocation4 + $0x1e8] sm:$0xff]
    %v167 = vld [vmem:[#allocation4 + $0x1f0] sm:$0xff]
    %v168 = vld [vmem:[#allocation4 + $0x1f8] sm:$0xff]
    %v169 = vld [vmem:[%s3] sm:$0x1]
    %v170 = vld [vmem:[%s4] sm:$0x1]
    %vm171 = vcmask 261120
    %v172 = vsel %vm171, %v89, 0.0
    %173 = vadd.xlane.f32.xlu0 %v172
    %v174 = vpop.xlane.xlu0 %173
    %v175 = vsel %vm171, %v90, 0.0
    %176 = vadd.xlane.f32.xlu0 %v175
    %v177 = vpop.xlane.xlu0 %176
    %v178 = vsel %vm171, %v91, 0.0
    %179 = vadd.xlane.f32.xlu0 %v178
    %v180 = vpop.xlane.xlu0 %179
    %v181 = vsel %vm171, %v92, 0.0
    %182 = vadd.xlane.f32.xlu0 %v181
    %v183 = vpop.xlane.xlu0 %182
    %v184 = vsel %vm171, %v93, 0.0
    %185 = vadd.xlane.f32.xlu0 %v184
    %v186 = vpop.xlane.xlu0 %185
    %v187 = vsel %vm171, %v94, 0.0
    %188 = vadd.xlane.f32.xlu0 %v187
    %v189 = vpop.xlane.xlu0 %188
    %v190 = vsel %vm171, %v95, 0.0
    %191 = vadd.xlane.f32.xlu0 %v190
    %v192 = vpop.xlane.xlu0 %191
    %v193 = vsel %vm171, %v96, 0.0
    %194 = vadd.xlane.f32.xlu0 %v193
    %v195 = vpop.xlane.xlu0 %194
    %v196 = vsel %vm171, %v97, 0.0
    %197 = vadd.xlane.f32.xlu0 %v196
    %v198 = vpop.xlane.xlu0 %197
    %v199 = vsel %vm171, %v98, 0.0
    %200 = vadd.xlane.f32.xlu0 %v199
    %v201 = vpop.xlane.xlu0 %200
    %v202 = vsel %vm171, %v99, 0.0
    %203 = vadd.xlane.f32.xlu0 %v202
    %v204 = vpop.xlane.xlu0 %203
    %v205 = vsel %vm171, %v100, 0.0
    %206 = vadd.xlane.f32.xlu0 %v205
    %v207 = vpop.xlane.xlu0 %206
    %v208 = vsel %vm171, %v101, 0.0
    %209 = vadd.xlane.f32.xlu0 %v208
    %v210 = vpop.xlane.xlu0 %209
    %v211 = vsel %vm171, %v102, 0.0
    %212 = vadd.xlane.f32.xlu0 %v211
    %v213 = vpop.xlane.xlu0 %212
    %v214 = vsel %vm171, %v103, 0.0
    %215 = vadd.xlane.f32.xlu0 %v214
    %v216 = vpop.xlane.xlu0 %215
    %v217 = vsel %vm171, %v104, 0.0
    %218 = vadd.xlane.f32.xlu0 %v217
    %v219 = vpop.xlane.xlu0 %218
    %v220 = vrcp.pop 32.0
    %v221 = vmul.f32 %v174, %v220
    %v222 = vmul.f32 %v177, %v220
    %v223 = vmul.f32 %v180, %v220
    %v224 = vmul.f32 %v183, %v220
    %v225 = vmul.f32 %v186, %v220
    %v226 = vmul.f32 %v189, %v220
    %v227 = vmul.f32 %v192, %v220
    %v228 = vmul.f32 %v195, %v220
    %v229 = vmul.f32 %v198, %v220
    %v230 = vmul.f32 %v201, %v220
    %v231 = vmul.f32 %v204, %v220
    %v232 = vmul.f32 %v207, %v220
    %v233 = vmul.f32 %v210, %v220
    %v234 = vmul.f32 %v213, %v220
    %v235 = vmul.f32 %v216, %v220
    %v236 = vmul.f32 %v219, %v220
    %v237 = vsub.f32 %v89, %v221
    %v238 = vsub.f32 %v90, %v222
    %v239 = vsub.f32 %v91, %v223
    %v240 = vsub.f32 %v92, %v224
    %v241 = vsub.f32 %v93, %v225
    %v242 = vsub.f32 %v94, %v226
    %v243 = vsub.f32 %v95, %v227
    %v244 = vsub.f32 %v96, %v228
    %v245 = vsub.f32 %v97, %v229
    %v246 = vsub.f32 %v98, %v230
    %v247 = vsub.f32 %v99, %v231
    %v248 = vsub.f32 %v100, %v232
    %v249 = vsub.f32 %v101, %v233
    %v250 = vsub.f32 %v102, %v234
    %v251 = vsub.f32 %v103, %v235
    %v252 = vsub.f32 %v104, %v236
    %v253 = vmul.f32 %v237, %v237
    %v254 = vmul.f32 %v238, %v238
    %v255 = vmul.f32 %v239, %v239
    %v256 = vmul.f32 %v240, %v240
    %v257 = vmul.f32 %v241, %v241
    %v258 = vmul.f32 %v242, %v242
    %v259 = vmul.f32 %v243, %v243
    %v260 = vmul.f32 %v244, %v244
    %v261 = vmul.f32 %v245, %v245
    %v262 = vmul.f32 %v246, %v246
    %v263 = vmul.f32 %v247, %v247
    %v264 = vmul.f32 %v248, %v248
    %v265 = vmul.f32 %v249, %v249
    %v266 = vmul.f32 %v250, %v250
    %v267 = vmul.f32 %v251, %v251
    %v268 = vmul.f32 %v252, %v252
    %v269 = vsel %vm171, %v253, 0.0
    %270 = vadd.xlane.f32.xlu0 %v269
    %v271 = vpop.xlane.xlu0 %270
    %v272 = vsel %vm171, %v254, 0.0
    %273 = vadd.xlane.f32.xlu0 %v272
    %v274 = vpop.xlane.xlu0 %273
    %v275 = vsel %vm171, %v255, 0.0
    %276 = vadd.xlane.f32.xlu0 %v275
    %v277 = vpop.xlane.xlu0 %276
    %v278 = vsel %vm171, %v256, 0.0
    %279 = vadd.xlane.f32.xlu0 %v278
    %v280 = vpop.xlane.xlu0 %279
    %v281 = vsel %vm171, %v257, 0.0
    %282 = vadd.xlane.f32.xlu0 %v281
    %v283 = vpop.xlane.xlu0 %282
    %v284 = vsel %vm171, %v258, 0.0
    %285 = vadd.xlane.f32.xlu0 %v284
    %v286 = vpop.xlane.xlu0 %285
    %v287 = vsel %vm171, %v259, 0.0
    %288 = vadd.xlane.f32.xlu0 %v287
    %v289 = vpop.xlane.xlu0 %288
    %v290 = vsel %vm171, %v260, 0.0
    %291 = vadd.xlane.f32.xlu0 %v290
    %v292 = vpop.xlane.xlu0 %291
    %v293 = vsel %vm171, %v261, 0.0
    %294 = vadd.xlane.f32.xlu0 %v293
    %v295 = vpop.xlane.xlu0 %294
    %v296 = vsel %vm171, %v262, 0.0
    %297 = vadd.xlane.f32.xlu0 %v296
    %v298 = vpop.xlane.xlu0 %297
    %v299 = vsel %vm171, %v263, 0.0
    %300 = vadd.xlane.f32.xlu0 %v299
    %v301 = vpop.xlane.xlu0 %300
    %v302 = vsel %vm171, %v264, 0.0
    %303 = vadd.xlane.f32.xlu0 %v302
    %v304 = vpop.xlane.xlu0 %303
    %v305 = vsel %vm171, %v265, 0.0
    %306 = vadd.xlane.f32.xlu0 %v305
    %v307 = vpop.xlane.xlu0 %306
    %v308 = vsel %vm171, %v266, 0.0
    %309 = vadd.xlane.f32.xlu0 %v308
    %v310 = vpop.xlane.xlu0 %309
    %v311 = vsel %vm171, %v267, 0.0
    %312 = vadd.xlane.f32.xlu0 %v311
    %v313 = vpop.xlane.xlu0 %312
    %v314 = vsel %vm171, %v268, 0.0
    %315 = vadd.xlane.f32.xlu0 %v314
    %v316 = vpop.xlane.xlu0 %315
    %v317 = vmul.f32 %v271, %v220
    %v318 = vmul.f32 %v274, %v220
    %v319 = vmul.f32 %v277, %v220
    %v320 = vmul.f32 %v280, %v220
    %v321 = vmul.f32 %v283, %v220
    %v322 = vmul.f32 %v286, %v220
    %v323 = vmul.f32 %v289, %v220
    %v324 = vmul.f32 %v292, %v220
    %v325 = vmul.f32 %v295, %v220
    %v326 = vmul.f32 %v298, %v220
    %v327 = vmul.f32 %v301, %v220
    %v328 = vmul.f32 %v304, %v220
    %v329 = vmul.f32 %v307, %v220
    %v330 = vmul.f32 %v310, %v220
    %v331 = vmul.f32 %v313, %v220
    %v332 = vmul.f32 %v316, %v220
    %v333 = vadd.f32 %v317, 1e-05
    %v334 = vadd.f32 %v318, 1e-05
    %v335 = vadd.f32 %v319, 1e-05
    %v336 = vadd.f32 %v320, 1e-05
    %v337 = vadd.f32 %v321, 1e-05
    %v338 = vadd.f32 %v322, 1e-05
    %v339 = vadd.f32 %v323, 1e-05
    %v340 = vadd.f32 %v324, 1e-05
    %v341 = vadd.f32 %v325, 1e-05
    %v342 = vadd.f32 %v326, 1e-05
    %v343 = vadd.f32 %v327, 1e-05
    %v344 = vadd.f32 %v328, 1e-05
    %v345 = vadd.f32 %v329, 1e-05
    %v346 = vadd.f32 %v330, 1e-05
    %v347 = vadd.f32 %v331, 1e-05
    %v348 = vadd.f32 %v332, 1e-05
    %v349 = vrsqrt.pop %v333
    %v350 = vrsqrt.pop %v334
    %v351 = vrsqrt.pop %v335
    %v352 = vrsqrt.pop %v336
    %v353 = vrsqrt.pop %v337
    %v354 = vrsqrt.pop %v338
    %v355 = vrsqrt.pop %v339
    %v356 = vrsqrt.pop %v340
    %v357 = vrsqrt.pop %v341
    %v358 = vrsqrt.pop %v342
    %v359 = vrsqrt.pop %v343
    %v360 = vrsqrt.pop %v344
    %v361 = vrsqrt.pop %v345
    %v362 = vrsqrt.pop %v346
    %v363 = vrsqrt.pop %v347
    %v364 = vrsqrt.pop %v348
    %v365 = vmul.f32 %v237, %v349
    %v366 = vmul.f32 %v238, %v350
    %v367 = vmul.f32 %v239, %v351
    %v368 = vmul.f32 %v240, %v352
    %v369 = vmul.f32 %v241, %v353
    %v370 = vmul.f32 %v242, %v354
    %v371 = vmul.f32 %v243, %v355
    %v372 = vmul.f32 %v244, %v356
    %v373 = vmul.f32 %v245, %v357
    %v374 = vmul.f32 %v246, %v358
    %v375 = vmul.f32 %v247, %v359
    %v376 = vmul.f32 %v248, %v360
    %v377 = vmul.f32 %v249, %v361
    %v378 = vmul.f32 %v250, %v362
    %v379 = vmul.f32 %v251, %v363
    %v380 = vmul.f32 %v252, %v364
    %v382 = vlaneseq
    %v383 = vshrl.u32 %v382, 7
    %v384 = vsub.s32 0, %v383
    %v385 = vrot.slane %v169, %v384
    %v387 = vmul.f32 %v365, %v385
    %v388 = vmul.f32 %v366, %v385
    %v389 = vmul.f32 %v367, %v385
    %v390 = vmul.f32 %v368, %v385
    %v391 = vmul.f32 %v369, %v385
    %v392 = vmul.f32 %v370, %v385
    %v393 = vmul.f32 %v371, %v385
    %v394 = vmul.f32 %v372, %v385
    %v395 = vmul.f32 %v373, %v385
    %v396 = vmul.f32 %v374, %v385
    %v397 = vmul.f32 %v375, %v385
    %v398 = vmul.f32 %v376, %v385
    %v399 = vmul.f32 %v377, %v385
    %v400 = vmul.f32 %v378, %v385
    %v401 = vmul.f32 %v379, %v385
    %v402 = vmul.f32 %v380, %v385
    %v404 = vlaneseq
    %v405 = vshrl.u32 %v404, 7
    %v406 = vsub.s32 0, %v405
    %v407 = vrot.slane %v170, %v406
    %v409 = vadd.f32 %v387, %v407
    %v410 = vadd.f32 %v388, %v407
    %v411 = vadd.f32 %v389, %v407
    %v412 = vadd.f32 %v390, %v407
    %v413 = vadd.f32 %v391, %v407
    %v414 = vadd.f32 %v392, %v407
    %v415 = vadd.f32 %v393, %v407
    %v416 = vadd.f32 %v394, %v407
    %v417 = vadd.f32 %v395, %v407
    %v418 = vadd.f32 %v396, %v407
    %v419 = vadd.f32 %v397, %v407
    %v420 = vadd.f32 %v398, %v407
    %v421 = vadd.f32 %v399, %v407
    %v422 = vadd.f32 %v400, %v407
    %v423 = vadd.f32 %v401, %v407
    %v424 = vadd.f32 %v402, %v407
    %v425 = vpack.c.bf16 %v410, %v409
    %v426 = vpack.c.bf16 %v412, %v411
    %v427 = vpack.c.bf16 %v414, %v413
    %v428 = vpack.c.bf16 %v416, %v415
    %v429 = vpack.c.bf16 %v418, %v417
    %v430 = vpack.c.bf16 %v420, %v419
    %v431 = vpack.c.bf16 %v422, %v421
    %v432 = vpack.c.bf16 %v424, %v423
    %v433 = vld [vmem:[#allocation6] sm:$0xf]
    %v434 = vld [vmem:[#allocation6 + $0x4] sm:$0xf]
    %v435 = vld [vmem:[#allocation6 + $0x8] sm:$0xf]
    %v436 = vld [vmem:[#allocation6 + $0xc] sm:$0xf]
    %v441 = vunpack.c.l.b16 %v433
    %v442 = vunpack.c.l.b16 %v434
    %v443 = vunpack.c.l.b16 %v435
    %v444 = vunpack.c.l.b16 %v436
    %v445 = vpack.c.b16 %v442, %v441
    %v446 = vpack.c.b16 %v444, %v443
    %v450 = vsel %vm171, %v425, 0
    %v453 = vsel %vm171, %v426, 0
    %v456 = vsel %vm171, %v427, 0
    %v459 = vsel %vm171, %v428, 0
    %v462 = vsel %vm171, %v429, 0
    %v465 = vsel %vm171, %v430, 0
    %v468 = vsel %vm171, %v431, 0
    %v471 = vsel %vm171, %v432, 0
    %473 = vmatprep.subr.bf16.mxu0 0
    %474 = vmatpush1.bf16.msra.mxu0 0
    %475 = vmatprep.subr.bf16.mxu0 0
    %476 = vmatpush1.bf16.msra.mxu0 0
    %477 = vmatprep.subr.bf16.mxu0 0
    %478 = vmatpush1.bf16.msra.mxu0 0
    %479 = vmatprep.subr.bf16.mxu0 0
    %480 = vmatpush1.bf16.msra.mxu0 0
    %481 = vmatprep.subr.bf16.mxu0 0
    %482 = vmatpush1.bf16.msra.mxu0 0
    %483 = vmatprep.subr.bf16.mxu0 0
    %484 = vmatpush1.bf16.msra.mxu0 0
    %485 = vmatprep.subr.bf16.mxu0 0
    %486 = vmatpush1.bf16.msra.mxu0 %v446
    %487 = vmatprep.subr.bf16.mxu0 0
    %488 = vmatpush1.bf16.msra.mxu0 %v445
    %489 = vmatprep.subr.bf16.mxu0 0
    %490 = vmatpush2.bf16.msra.mxu0 0
    %491 = vmatprep.subr.bf16.mxu0 0
    %492 = vmatpush2.bf16.msra.mxu0 0
    %493 = vmatprep.subr.bf16.mxu0 0
    %494 = vmatpush2.bf16.msra.mxu0 0
    %495 = vmatprep.subr.bf16.mxu0 0
    %496 = vmatpush2.bf16.msra.mxu0 0
    %497 = vmatprep.subr.bf16.mxu0 0
    %498 = vmatpush2.bf16.msra.mxu0 0
    %499 = vmatprep.subr.bf16.mxu0 0
    %500 = vmatpush2.bf16.msra.mxu0 0
    %501 = vmatprep.subr.bf16.mxu0 0
    %502 = vmatpush2.bf16.msra.mxu0 0
    %503 = vmatprep.subr.bf16.mxu0 0
    %504 = vmatpush2.bf16.msra.mxu0 0
    %505 = vmatprep.mubr.bf16.mxu0 0
    %506 = vmatmul.mubr.bf16.gmra.mxu0 %v450
    %v507 = vpop.f32.mrf.mxu0
    %v508 = vadd.f32 0.0, %v507
    %v509 = vpop.f32.mrf.mxu0
    %v510 = vpop.f32.mrf.mxu0
    %v511 = vadd.f32 0.0, %v510
    %v512 = vpop.f32.mrf.mxu0
    %513 = vmatprep.mubr.bf16.mxu0 0
    %514 = vmatmul.mubr.bf16.gmra.mxu0 %v453
    %v515 = vpop.f32.mrf.mxu0
    %v516 = vadd.f32 0.0, %v515
    %v517 = vpop.f32.mrf.mxu0
    %v518 = vpop.f32.mrf.mxu0
    %v519 = vadd.f32 0.0, %v518
    %v520 = vpop.f32.mrf.mxu0
    %521 = vmatprep.mubr.bf16.mxu0 0
    %522 = vmatmul.mubr.bf16.gmra.mxu0 %v456
    %v523 = vpop.f32.mrf.mxu0
    %v524 = vadd.f32 0.0, %v523
    %v525 = vpop.f32.mrf.mxu0
    %v526 = vpop.f32.mrf.mxu0
    %v527 = vadd.f32 0.0, %v526
    %v528 = vpop.f32.mrf.mxu0
    %529 = vmatprep.mubr.bf16.mxu0 0
    %530 = vmatmul.mubr.bf16.gmra.mxu0 %v459
    %v531 = vpop.f32.mrf.mxu0
    %v532 = vadd.f32 0.0, %v531
    %v533 = vpop.f32.mrf.mxu0
    %v534 = vpop.f32.mrf.mxu0
    %v535 = vadd.f32 0.0, %v534
    %v536 = vpop.f32.mrf.mxu0
    %537 = vmatprep.mubr.bf16.mxu0 0
    %538 = vmatmul.mubr.bf16.gmra.mxu0 %v462
    %v539 = vpop.f32.mrf.mxu0
    %v540 = vadd.f32 0.0, %v539
    %v541 = vpop.f32.mrf.mxu0
    %v542 = vpop.f32.mrf.mxu0
    %v543 = vadd.f32 0.0, %v542
    %v544 = vpop.f32.mrf.mxu0
    %545 = vmatprep.mubr.bf16.mxu0 0
    %546 = vmatmul.mubr.bf16.gmra.mxu0 %v465
    %v547 = vpop.f32.mrf.mxu0
    %v548 = vadd.f32 0.0, %v547
    %v549 = vpop.f32.mrf.mxu0
    %v550 = vpop.f32.mrf.mxu0
    %v551 = vadd.f32 0.0, %v550
    %v552 = vpop.f32.mrf.mxu0
    %553 = vmatprep.mubr.bf16.mxu0 0
    %554 = vmatmul.mubr.bf16.gmra.mxu0 %v468
    %v555 = vpop.f32.mrf.mxu0
    %v556 = vadd.f32 0.0, %v555
    %v557 = vpop.f32.mrf.mxu0
    %v558 = vpop.f32.mrf.mxu0
    %v559 = vadd.f32 0.0, %v558
    %v560 = vpop.f32.mrf.mxu0
    %561 = vmatprep.mubr.bf16.mxu0 0
    %562 = vmatmul.mubr.bf16.gmra.mxu0 %v471
    %v563 = vpop.f32.mrf.mxu0
    %v564 = vadd.f32 0.0, %v563
    %v565 = vpop.f32.mrf.mxu0
    %v566 = vpop.f32.mrf.mxu0
    %v567 = vadd.f32 0.0, %v566
    %v568 = vpop.f32.mrf.mxu0
    %569 = vdwg.mxu0
    %v570 = vmul.f32 %v508, %v105
    %v571 = vmul.f32 %v511, %v106
    %v572 = vmul.f32 %v516, %v107
    %v573 = vmul.f32 %v519, %v108
    %v574 = vmul.f32 %v524, %v109
    %v575 = vmul.f32 %v527, %v110
    %v576 = vmul.f32 %v532, %v111
    %v577 = vmul.f32 %v535, %v112
    %v578 = vmul.f32 %v540, %v113
    %v579 = vmul.f32 %v543, %v114
    %v580 = vmul.f32 %v548, %v115
    %v581 = vmul.f32 %v551, %v116
    %v582 = vmul.f32 %v556, %v117
    %v583 = vmul.f32 %v559, %v118
    %v584 = vmul.f32 %v564, %v119
    %v585 = vmul.f32 %v567, %v120
    %v586 = vmul.f32 %v508, %v121
    %v587 = vmul.f32 %v511, %v122
    %v588 = vmul.f32 %v516, %v123
    %v589 = vmul.f32 %v519, %v124
    %v590 = vmul.f32 %v524, %v125
    %v591 = vmul.f32 %v527, %v126
    %v592 = vmul.f32 %v532, %v127
    %v593 = vmul.f32 %v535, %v128
    %v594 = vmul.f32 %v540, %v129
    %v595 = vmul.f32 %v543, %v130
    %v596 = vmul.f32 %v548, %v131
    %v597 = vmul.f32 %v551, %v132
    %v598 = vmul.f32 %v556, %v133
    %v599 = vmul.f32 %v559, %v134
    %v600 = vmul.f32 %v564, %v135
    %v601 = vmul.f32 %v567, %v136
    %v602 = vmul.f32 %v508, %v137
    %v603 = vmul.f32 %v511, %v138
    %v604 = vmul.f32 %v516, %v139
    %v605 = vmul.f32 %v519, %v140
    %v606 = vmul.f32 %v524, %v141
    %v607 = vmul.f32 %v527, %v142
    %v608 = vmul.f32 %v532, %v143
    %v609 = vmul.f32 %v535, %v144
    %v610 = vmul.f32 %v540, %v145
    %v611 = vmul.f32 %v543, %v146
    %v612 = vmul.f32 %v548, %v147
    %v613 = vmul.f32 %v551, %v148
    %v614 = vmul.f32 %v556, %v149
    %v615 = vmul.f32 %v559, %v150
    %v616 = vmul.f32 %v564, %v151
    %v617 = vmul.f32 %v567, %v152
    %v618 = vmul.f32 %v508, %v153
    %v619 = vmul.f32 %v511, %v154
    %v620 = vmul.f32 %v516, %v155
    %v621 = vmul.f32 %v519, %v156
    %v622 = vmul.f32 %v524, %v157
    %v623 = vmul.f32 %v527, %v158
    %v624 = vmul.f32 %v532, %v159
    %v625 = vmul.f32 %v535, %v160
    %v626 = vmul.f32 %v540, %v161
    %v627 = vmul.f32 %v543, %v162
    %v628 = vmul.f32 %v548, %v163
    %v629 = vmul.f32 %v551, %v164
    %v630 = vmul.f32 %v556, %v165
    %v631 = vmul.f32 %v559, %v166
    %v632 = vmul.f32 %v564, %v167
    %v633 = vmul.f32 %v567, %v168
    %v634 = vpack.c.bf16 %v571, %v570
    %v635 = vpack.c.bf16 %v573, %v572
    %v636 = vpack.c.bf16 %v575, %v574
    %v637 = vpack.c.bf16 %v577, %v576
    %v638 = vpack.c.bf16 %v579, %v578
    %v639 = vpack.c.bf16 %v581, %v580
    %v640 = vpack.c.bf16 %v583, %v582
    %v641 = vpack.c.bf16 %v585, %v584
    %v642 = vpack.c.bf16 %v587, %v586
    %v643 = vpack.c.bf16 %v589, %v588
    %v644 = vpack.c.bf16 %v591, %v590
    %v645 = vpack.c.bf16 %v593, %v592
    %v646 = vpack.c.bf16 %v595, %v594
    %v647 = vpack.c.bf16 %v597, %v596
    %v648 = vpack.c.bf16 %v599, %v598
    %v649 = vpack.c.bf16 %v601, %v600
    %v650 = vpack.c.bf16 %v603, %v602
    %v651 = vpack.c.bf16 %v605, %v604
    %v652 = vpack.c.bf16 %v607, %v606
    %v653 = vpack.c.bf16 %v609, %v608
    %v654 = vpack.c.bf16 %v611, %v610
    %v655 = vpack.c.bf16 %v613, %v612
    %v656 = vpack.c.bf16 %v615, %v614
    %v657 = vpack.c.bf16 %v617, %v616
    %v658 = vpack.c.bf16 %v619, %v618
    %v659 = vpack.c.bf16 %v621, %v620
    %v660 = vpack.c.bf16 %v623, %v622
    %v661 = vpack.c.bf16 %v625, %v624
    %v662 = vpack.c.bf16 %v627, %v626
    %v663 = vpack.c.bf16 %v629, %v628
    %v664 = vpack.c.bf16 %v631, %v630
    %v665 = vpack.c.bf16 %v633, %v632
    %v666 = vpack.c.bf16 %v511, %v508
    %v667 = vpack.c.bf16 %v519, %v516
    %v668 = vpack.c.bf16 %v527, %v524
    %v669 = vpack.c.bf16 %v535, %v532
    %v670 = vpack.c.bf16 %v543, %v540
    %v671 = vpack.c.bf16 %v551, %v548
    %v672 = vpack.c.bf16 %v559, %v556
    %v673 = vpack.c.bf16 %v567, %v564
    %v674 = vld [vmem:[#allocation2] sm:$0xf]
    %v675 = vld [vmem:[#allocation2 + $0x4] sm:$0xf]
    %v676 = vld [vmem:[#allocation2 + $0x8] sm:$0xf]
    %v677 = vld [vmem:[#allocation2 + $0xc] sm:$0xf]
    %v678 = vld [vmem:[#allocation2 + $0x10] sm:$0xf]
    %v679 = vld [vmem:[#allocation2 + $0x14] sm:$0xf]
    %v680 = vld [vmem:[#allocation2 + $0x18] sm:$0xf]
    %v681 = vld [vmem:[#allocation2 + $0x1c] sm:$0xf]
    %v682 = vld [vmem:[#allocation2 + $0x20] sm:$0xf]
    %v683 = vld [vmem:[#allocation2 + $0x24] sm:$0xf]
    %v684 = vld [vmem:[#allocation2 + $0x28] sm:$0xf]
    %v685 = vld [vmem:[#allocation2 + $0x2c] sm:$0xf]
    %v686 = vld [vmem:[#allocation2 + $0x30] sm:$0xf]
    %v687 = vld [vmem:[#allocation2 + $0x34] sm:$0xf]
    %v688 = vld [vmem:[#allocation2 + $0x38] sm:$0xf]
    %v689 = vld [vmem:[#allocation2 + $0x3c] sm:$0xf]
    %v690 = vld [vmem:[#allocation2 + $0x40] sm:$0xf]
    %v691 = vld [vmem:[#allocation2 + $0x44] sm:$0xf]
    %v692 = vld [vmem:[#allocation2 + $0x48] sm:$0xf]
    %v693 = vld [vmem:[#allocation2 + $0x4c] sm:$0xf]
    %v694 = vld [vmem:[#allocation2 + $0x50] sm:$0xf]
    %v695 = vld [vmem:[#allocation2 + $0x54] sm:$0xf]
    %v696 = vld [vmem:[#allocation2 + $0x58] sm:$0xf]
    %v697 = vld [vmem:[#allocation2 + $0x5c] sm:$0xf]
    %v698 = vld [vmem:[#allocation2 + $0x60] sm:$0xf]
    %v699 = vld [vmem:[#allocation2 + $0x64] sm:$0xf]
    %v700 = vld [vmem:[#allocation2 + $0x68] sm:$0xf]
    %v701 = vld [vmem:[#allocation2 + $0x6c] sm:$0xf]
    %v702 = vld [vmem:[#allocation2 + $0x70] sm:$0xf]
    %v703 = vld [vmem:[#allocation2 + $0x74] sm:$0xf]
    %v704 = vld [vmem:[#allocation2 + $0x78] sm:$0xf]
    %v705 = vld [vmem:[#allocation2 + $0x7c] sm:$0xf]
    %v706 = vld [vmem:[#allocation2 + $0x80] sm:$0xf]
    %v707 = vld [vmem:[#allocation2 + $0x84] sm:$0xf]
    %v708 = vld [vmem:[#allocation2 + $0x88] sm:$0xf]
    %v709 = vld [vmem:[#allocation2 + $0x8c] sm:$0xf]
    %v710 = vld [vmem:[#allocation2 + $0x90] sm:$0xf]
    %v711 = vld [vmem:[#allocation2 + $0x94] sm:$0xf]
    %v712 = vld [vmem:[#allocation2 + $0x98] sm:$0xf]
    %v713 = vld [vmem:[#allocation2 + $0x9c] sm:$0xf]
    %v714 = vld [vmem:[#allocation2 + $0xa0] sm:$0xf]
    %v715 = vld [vmem:[#allocation2 + $0xa4] sm:$0xf]
    %v716 = vld [vmem:[#allocation2 + $0xa8] sm:$0xf]
    %v717 = vld [vmem:[#allocation2 + $0xac] sm:$0xf]
    %v718 = vld [vmem:[#allocation2 + $0xb0] sm:$0xf]
    %v719 = vld [vmem:[#allocation2 + $0xb4] sm:$0xf]
    %v720 = vld [vmem:[#allocation2 + $0xb8] sm:$0xf]
    %v721 = vld [vmem:[#allocation2 + $0xbc] sm:$0xf]
    %v722 = vld [vmem:[#allocation2 + $0xc0] sm:$0xf]
    %v723 = vld [vmem:[#allocation2 + $0xc4] sm:$0xf]
    %v724 = vld [vmem:[#allocation2 + $0xc8] sm:$0xf]
    %v725 = vld [vmem:[#allocation2 + $0xcc] sm:$0xf]
    %v726 = vld [vmem:[#allocation2 + $0xd0] sm:$0xf]
    %v727 = vld [vmem:[#allocation2 + $0xd4] sm:$0xf]
    %v728 = vld [vmem:[#allocation2 + $0xd8] sm:$0xf]
    %v729 = vld [vmem:[#allocation2 + $0xdc] sm:$0xf]
    %v730 = vld [vmem:[#allocation2 + $0xe0] sm:$0xf]
    %v731 = vld [vmem:[#allocation2 + $0xe4] sm:$0xf]
    %v732 = vld [vmem:[#allocation2 + $0xe8] sm:$0xf]
    %v733 = vld [vmem:[#allocation2 + $0xec] sm:$0xf]
    %v734 = vld [vmem:[#allocation2 + $0xf0] sm:$0xf]
    %v735 = vld [vmem:[#allocation2 + $0xf4] sm:$0xf]
    %v736 = vld [vmem:[#allocation2 + $0xf8] sm:$0xf]
    %v737 = vld [vmem:[#allocation2 + $0xfc] sm:$0xf]
    %v738 = vunpack.c.l.bf16 %v674
    %v739 = vunpack.c.l.bf16 %v675
    %v740 = vunpack.c.l.bf16 %v676
    %v741 = vunpack.c.l.bf16 %v677
    %v742 = vunpack.c.l.bf16 %v678
    %v743 = vunpack.c.l.bf16 %v679
    %v744 = vunpack.c.l.bf16 %v680
    %v745 = vunpack.c.l.bf16 %v681
    %v746 = vunpack.c.l.bf16 %v682
    %v747 = vunpack.c.l.bf16 %v683
    %v748 = vunpack.c.l.bf16 %v684
    %v749 = vunpack.c.l.bf16 %v685
    %v750 = vunpack.c.l.bf16 %v686
    %v751 = vunpack.c.l.bf16 %v687
    %v752 = vunpack.c.l.bf16 %v688
    %v753 = vunpack.c.l.bf16 %v689
    %v754 = vunpack.c.l.bf16 %v690
    %v755 = vunpack.c.l.bf16 %v691
    %v756 = vunpack.c.l.bf16 %v692
    %v757 = vunpack.c.l.bf16 %v693
    %v758 = vunpack.c.l.bf16 %v694
    %v759 = vunpack.c.l.bf16 %v695
    %v760 = vunpack.c.l.bf16 %v696
    %v761 = vunpack.c.l.bf16 %v697
    %v762 = vunpack.c.l.bf16 %v698
    %v763 = vunpack.c.l.bf16 %v699
    %v764 = vunpack.c.l.bf16 %v700
    %v765 = vunpack.c.l.bf16 %v701
    %v766 = vunpack.c.l.bf16 %v702
    %v767 = vunpack.c.l.bf16 %v703
    %v768 = vunpack.c.l.bf16 %v704
    %v769 = vunpack.c.l.bf16 %v705
    %v770 = vunpack.c.l.bf16 %v706
    %v771 = vunpack.c.l.bf16 %v707
    %v772 = vunpack.c.l.bf16 %v708
    %v773 = vunpack.c.l.bf16 %v709
    %v774 = vunpack.c.l.bf16 %v710
    %v775 = vunpack.c.l.bf16 %v711
    %v776 = vunpack.c.l.bf16 %v712
    %v777 = vunpack.c.l.bf16 %v713
    %v778 = vunpack.c.l.bf16 %v714
    %v779 = vunpack.c.l.bf16 %v715
    %v780 = vunpack.c.l.bf16 %v716
    %v781 = vunpack.c.l.bf16 %v717
    %v782 = vunpack.c.l.bf16 %v718
    %v783 = vunpack.c.l.bf16 %v719
    %v784 = vunpack.c.l.bf16 %v720
    %v785 = vunpack.c.l.bf16 %v721
    %v786 = vunpack.c.l.bf16 %v722
    %v787 = vunpack.c.l.bf16 %v723
    %v788 = vunpack.c.l.bf16 %v724
    %v789 = vunpack.c.l.bf16 %v725
    %v790 = vunpack.c.l.bf16 %v726
    %v791 = vunpack.c.l.bf16 %v727
    %v792 = vunpack.c.l.bf16 %v728
    %v793 = vunpack.c.l.bf16 %v729
    %v794 = vunpack.c.l.bf16 %v730
    %v795 = vunpack.c.l.bf16 %v731
    %v796 = vunpack.c.l.bf16 %v732
    %v797 = vunpack.c.l.bf16 %v733
    %v798 = vunpack.c.l.bf16 %v734
    %v799 = vunpack.c.l.bf16 %v735
    %v800 = vunpack.c.l.bf16 %v736
    %v801 = vunpack.c.l.bf16 %v737
    %810 = vrot.lane.b32.xlu0 %v666, 96
    %v811 = vpop.permute.xlu0 %810
    %812 = vrot.lane.b32.xlu0 %v667, 96
    %v813 = vpop.permute.xlu0 %812
    %814 = vrot.lane.b32.xlu0 %v668, 96
    %v815 = vpop.permute.xlu0 %814
    %816 = vrot.lane.b32.xlu0 %v669, 96
    %v817 = vpop.permute.xlu0 %816
    %818 = vrot.lane.b32.xlu0 %v670, 96
    %v819 = vpop.permute.xlu0 %818
    %820 = vrot.lane.b32.xlu0 %v671, 96
    %v821 = vpop.permute.xlu0 %820
    %822 = vrot.lane.b32.xlu0 %v672, 96
    %v823 = vpop.permute.xlu0 %822
    %824 = vrot.lane.b32.xlu0 %v673, 96
    %v825 = vpop.permute.xlu0 %824
    %v827 = vsel %vm171, %v634, 0
    %v830 = vsel %vm171, %v635, 0
    %v833 = vsel %vm171, %v636, 0
    %v836 = vsel %vm171, %v637, 0
    %v839 = vsel %vm171, %v638, 0
    %v842 = vsel %vm171, %v639, 0
    %v845 = vsel %vm171, %v640, 0
    %v848 = vsel %vm171, %v641, 0
    %v851 = vsel %vm171, %v642, 0
    %v854 = vsel %vm171, %v643, 0
    %v857 = vsel %vm171, %v644, 0
    %v860 = vsel %vm171, %v645, 0
    %v863 = vsel %vm171, %v646, 0
    %v866 = vsel %vm171, %v647, 0
    %v869 = vsel %vm171, %v648, 0
    %v872 = vsel %vm171, %v649, 0
    %v875 = vsel %vm171, %v650, 0
    %v878 = vsel %vm171, %v651, 0
    %v881 = vsel %vm171, %v652, 0
    %v884 = vsel %vm171, %v653, 0
    %v887 = vsel %vm171, %v654, 0
    %v890 = vsel %vm171, %v655, 0
    %v893 = vsel %vm171, %v656, 0
    %v896 = vsel %vm171, %v657, 0
    %v899 = vsel %vm171, %v658, 0
    %v902 = vsel %vm171, %v659, 0
    %v905 = vsel %vm171, %v660, 0
    %v908 = vsel %vm171, %v661, 0
    %v911 = vsel %vm171, %v662, 0
    %v914 = vsel %vm171, %v663, 0
    %v917 = vsel %vm171, %v664, 0
    %v920 = vsel %vm171, %v665, 0
    %v923 = vsel %vm171, %v811, 0
    %v926 = vsel %vm171, %v813, 0
    %v929 = vsel %vm171, %v815, 0
    %v932 = vsel %vm171, %v817, 0
    %v935 = vsel %vm171, %v819, 0
    %v938 = vsel %vm171, %v821, 0
    %v941 = vsel %vm171, %v823, 0
    %v944 = vsel %vm171, %v825, 0
    %946 = vmatprep.subr.bf16.mxu0 0
    %947 = vmatpush1.bf16.xpose.msra.mxu0 %v944
    %948 = vmatprep.subr.bf16.mxu0 0
    %949 = vmatpush1.bf16.xpose.msra.mxu0 %v941
    %950 = vmatprep.subr.bf16.mxu0 0
    %951 = vmatpush1.bf16.xpose.msra.mxu0 %v938
    %952 = vmatprep.subr.bf16.mxu0 0
    %953 = vmatpush1.bf16.xpose.msra.mxu0 %v935
    %954 = vmatprep.subr.bf16.mxu0 0
    %955 = vmatpush1.bf16.xpose.msra.mxu0 %v932
    %956 = vmatprep.subr.bf16.mxu0 0
    %957 = vmatpush1.bf16.xpose.msra.mxu0 %v929
    %958 = vmatprep.subr.bf16.mxu0 0
    %959 = vmatpush1.bf16.xpose.msra.mxu0 %v926
    %960 = vmatprep.subr.bf16.mxu0 0
    %961 = vmatpush1.bf16.xpose.msra.mxu0 %v923
    %962 = vmatprep.subr.bf16.mxu0 0
    %963 = vmatpush2.bf16.xpose.msra.mxu0 0
    %964 = vmatprep.subr.bf16.mxu0 0
    %965 = vmatpush2.bf16.xpose.msra.mxu0 0
    %966 = vmatprep.subr.bf16.mxu0 0
    %967 = vmatpush2.bf16.xpose.msra.mxu0 0
    %968 = vmatprep.subr.bf16.mxu0 0
    %969 = vmatpush2.bf16.xpose.msra.mxu0 0
    %970 = vmatprep.subr.bf16.mxu0 0
    %971 = vmatpush2.bf16.xpose.msra.mxu0 0
    %972 = vmatprep.subr.bf16.mxu0 0
    %973 = vmatpush2.bf16.xpose.msra.mxu0 0
    %974 = vmatprep.subr.bf16.mxu0 0
    %975 = vmatpush2.bf16.xpose.msra.mxu0 0
    %976 = vmatprep.subr.bf16.mxu0 0
    %977 = vmatpush2.bf16.xpose.msra.mxu0 0
    %978 = vmatprep.mubr.bf16.mxu0 0
    %979 = vmatmul.mubr.bf16.gmra.mxu0 %v827
    %v980 = vpop.f32.mrf.mxu0
    %v981 = vadd.f32 %v738, %v980
    %v982 = vpop.f32.mrf.mxu0
    %v983 = vpop.f32.mrf.mxu0
    %v984 = vadd.f32 %v739, %v983
    %v985 = vpop.f32.mrf.mxu0
    %986 = vmatprep.mubr.bf16.mxu0 0
    %987 = vmatmul.mubr.bf16.gmra.mxu0 %v830
    %v988 = vpop.f32.mrf.mxu0
    %v989 = vadd.f32 %v740, %v988
    %v990 = vpop.f32.mrf.mxu0
    %v991 = vpop.f32.mrf.mxu0
    %v992 = vadd.f32 %v741, %v991
    %v993 = vpop.f32.mrf.mxu0
    %994 = vmatprep.mubr.bf16.mxu0 0
    %995 = vmatmul.mubr.bf16.gmra.mxu0 %v833
    %v996 = vpop.f32.mrf.mxu0
    %v997 = vadd.f32 %v742, %v996
    %v998 = vpop.f32.mrf.mxu0
    %v999 = vpop.f32.mrf.mxu0
    %v1000 = vadd.f32 %v743, %v999
    %v1001 = vpop.f32.mrf.mxu0
    %1002 = vmatprep.mubr.bf16.mxu0 0
    %1003 = vmatmul.mubr.bf16.gmra.mxu0 %v836
    %v1004 = vpop.f32.mrf.mxu0
    %v1005 = vadd.f32 %v744, %v1004
    %v1006 = vpop.f32.mrf.mxu0
    %v1007 = vpop.f32.mrf.mxu0
    %v1008 = vadd.f32 %v745, %v1007
    %v1009 = vpop.f32.mrf.mxu0
    %1010 = vmatprep.mubr.bf16.mxu0 0
    %1011 = vmatmul.mubr.bf16.gmra.mxu0 %v839
    %v1012 = vpop.f32.mrf.mxu0
    %v1013 = vadd.f32 %v746, %v1012
    %v1014 = vpop.f32.mrf.mxu0
    %v1015 = vpop.f32.mrf.mxu0
    %v1016 = vadd.f32 %v747, %v1015
    %v1017 = vpop.f32.mrf.mxu0
    %1018 = vmatprep.mubr.bf16.mxu0 0
    %1019 = vmatmul.mubr.bf16.gmra.mxu0 %v842
    %v1020 = vpop.f32.mrf.mxu0
    %v1021 = vadd.f32 %v748, %v1020
    %v1022 = vpop.f32.mrf.mxu0
    %v1023 = vpop.f32.mrf.mxu0
    %v1024 = vadd.f32 %v749, %v1023
    %v1025 = vpop.f32.mrf.mxu0
    %1026 = vmatprep.mubr.bf16.mxu0 0
    %1027 = vmatmul.mubr.bf16.gmra.mxu0 %v845
    %v1028 = vpop.f32.mrf.mxu0
    %v1029 = vadd.f32 %v750, %v1028
    %v1030 = vpop.f32.mrf.mxu0
    %v1031 = vpop.f32.mrf.mxu0
    %v1032 = vadd.f32 %v751, %v1031
    %v1033 = vpop.f32.mrf.mxu0
    %1034 = vmatprep.mubr.bf16.mxu0 0
    %1035 = vmatmul.mubr.bf16.gmra.mxu0 %v848
    %v1036 = vpop.f32.mrf.mxu0
    %v1037 = vadd.f32 %v752, %v1036
    %v1038 = vpop.f32.mrf.mxu0
    %v1039 = vpop.f32.mrf.mxu0
    %v1040 = vadd.f32 %v753, %v1039
    %v1041 = vpop.f32.mrf.mxu0
    %1042 = vmatprep.mubr.bf16.mxu0 0
    %1043 = vmatmul.mubr.bf16.gmra.mxu0 %v851
    %v1044 = vpop.f32.mrf.mxu0
    %v1045 = vadd.f32 %v754, %v1044
    %v1046 = vpop.f32.mrf.mxu0
    %v1047 = vpop.f32.mrf.mxu0
    %v1048 = vadd.f32 %v755, %v1047
    %v1049 = vpop.f32.mrf.mxu0
    %1050 = vmatprep.mubr.bf16.mxu0 0
    %1051 = vmatmul.mubr.bf16.gmra.mxu0 %v854
    %v1052 = vpop.f32.mrf.mxu0
    %v1053 = vadd.f32 %v756, %v1052
    %v1054 = vpop.f32.mrf.mxu0
    %v1055 = vpop.f32.mrf.mxu0
    %v1056 = vadd.f32 %v757, %v1055
    %v1057 = vpop.f32.mrf.mxu0
    %1058 = vmatprep.mubr.bf16.mxu0 0
    %1059 = vmatmul.mubr.bf16.gmra.mxu0 %v857
    %v1060 = vpop.f32.mrf.mxu0
    %v1061 = vadd.f32 %v758, %v1060
    %v1062 = vpop.f32.mrf.mxu0
    %v1063 = vpop.f32.mrf.mxu0
    %v1064 = vadd.f32 %v759, %v1063
    %v1065 = vpop.f32.mrf.mxu0
    %1066 = vmatprep.mubr.bf16.mxu0 0
    %1067 = vmatmul.mubr.bf16.gmra.mxu0 %v860
    %v1068 = vpop.f32.mrf.mxu0
    %v1069 = vadd.f32 %v760, %v1068
    %v1070 = vpop.f32.mrf.mxu0
    %v1071 = vpop.f32.mrf.mxu0
    %v1072 = vadd.f32 %v761, %v1071
    %v1073 = vpop.f32.mrf.mxu0
    %1074 = vmatprep.mubr.bf16.mxu0 0
    %1075 = vmatmul.mubr.bf16.gmra.mxu0 %v863
    %v1076 = vpop.f32.mrf.mxu0
    %v1077 = vadd.f32 %v762, %v1076
    %v1078 = vpop.f32.mrf.mxu0
    %v1079 = vpop.f32.mrf.mxu0
    %v1080 = vadd.f32 %v763, %v1079
    %v1081 = vpop.f32.mrf.mxu0
    %1082 = vmatprep.mubr.bf16.mxu0 0
    %1083 = vmatmul.mubr.bf16.gmra.mxu0 %v866
    %v1084 = vpop.f32.mrf.mxu0
    %v1085 = vadd.f32 %v764, %v1084
    %v1086 = vpop.f32.mrf.mxu0
    %v1087 = vpop.f32.mrf.mxu0
    %v1088 = vadd.f32 %v765, %v1087
    %v1089 = vpop.f32.mrf.mxu0
    %1090 = vmatprep.mubr.bf16.mxu0 0
    %1091 = vmatmul.mubr.bf16.gmra.mxu0 %v869
    %v1092 = vpop.f32.mrf.mxu0
    %v1093 = vadd.f32 %v766, %v1092
    %v1094 = vpop.f32.mrf.mxu0
    %v1095 = vpop.f32.mrf.mxu0
    %v1096 = vadd.f32 %v767, %v1095
    %v1097 = vpop.f32.mrf.mxu0
    %1098 = vmatprep.mubr.bf16.mxu0 0
    %1099 = vmatmul.mubr.bf16.gmra.mxu0 %v872
    %v1100 = vpop.f32.mrf.mxu0
    %v1101 = vadd.f32 %v768, %v1100
    %v1102 = vpop.f32.mrf.mxu0
    %v1103 = vpop.f32.mrf.mxu0
    %v1104 = vadd.f32 %v769, %v1103
    %v1105 = vpop.f32.mrf.mxu0
    %1106 = vmatprep.mubr.bf16.mxu0 0
    %1107 = vmatmul.mubr.bf16.gmra.mxu0 %v875
    %v1108 = vpop.f32.mrf.mxu0
    %v1109 = vadd.f32 %v770, %v1108
    %v1110 = vpop.f32.mrf.mxu0
    %v1111 = vpop.f32.mrf.mxu0
    %v1112 = vadd.f32 %v771, %v1111
    %v1113 = vpop.f32.mrf.mxu0
    %1114 = vmatprep.mubr.bf16.mxu0 0
    %1115 = vmatmul.mubr.bf16.gmra.mxu0 %v878
    %v1116 = vpop.f32.mrf.mxu0
    %v1117 = vadd.f32 %v772, %v1116
    %v1118 = vpop.f32.mrf.mxu0
    %v1119 = vpop.f32.mrf.mxu0
    %v1120 = vadd.f32 %v773, %v1119
    %v1121 = vpop.f32.mrf.mxu0
    %1122 = vmatprep.mubr.bf16.mxu0 0
    %1123 = vmatmul.mubr.bf16.gmra.mxu0 %v881
    %v1124 = vpop.f32.mrf.mxu0
    %v1125 = vadd.f32 %v774, %v1124
    %v1126 = vpop.f32.mrf.mxu0
    %v1127 = vpop.f32.mrf.mxu0
    %v1128 = vadd.f32 %v775, %v1127
    %v1129 = vpop.f32.mrf.mxu0
    %1130 = vmatprep.mubr.bf16.mxu0 0
    %1131 = vmatmul.mubr.bf16.gmra.mxu0 %v884
    %v1132 = vpop.f32.mrf.mxu0
    %v1133 = vadd.f32 %v776, %v1132
    %v1134 = vpop.f32.mrf.mxu0
    %v1135 = vpop.f32.mrf.mxu0
    %v1136 = vadd.f32 %v777, %v1135
    %v1137 = vpop.f32.mrf.mxu0
    %1138 = vmatprep.mubr.bf16.mxu0 0
    %1139 = vmatmul.mubr.bf16.gmra.mxu0 %v887
    %v1140 = vpop.f32.mrf.mxu0
    %v1141 = vadd.f32 %v778, %v1140
    %v1142 = vpop.f32.mrf.mxu0
    %v1143 = vpop.f32.mrf.mxu0
    %v1144 = vadd.f32 %v779, %v1143
    %v1145 = vpop.f32.mrf.mxu0
    %1146 = vmatprep.mubr.bf16.mxu0 0
    %1147 = vmatmul.mubr.bf16.gmra.mxu0 %v890
    %v1148 = vpop.f32.mrf.mxu0
    %v1149 = vadd.f32 %v780, %v1148
    %v1150 = vpop.f32.mrf.mxu0
    %v1151 = vpop.f32.mrf.mxu0
    %v1152 = vadd.f32 %v781, %v1151
    %v1153 = vpop.f32.mrf.mxu0
    %1154 = vmatprep.mubr.bf16.mxu0 0
    %1155 = vmatmul.mubr.bf16.gmra.mxu0 %v893
    %v1156 = vpop.f32.mrf.mxu0
    %v1157 = vadd.f32 %v782, %v1156
    %v1158 = vpop.f32.mrf.mxu0
    %v1159 = vpop.f32.mrf.mxu0
    %v1160 = vadd.f32 %v783, %v1159
    %v1161 = vpop.f32.mrf.mxu0
    %1162 = vmatprep.mubr.bf16.mxu0 0
    %1163 = vmatmul.mubr.bf16.gmra.mxu0 %v896
    %v1164 = vpop.f32.mrf.mxu0
    %v1165 = vadd.f32 %v784, %v1164
    %v1166 = vpop.f32.mrf.mxu0
    %v1167 = vpop.f32.mrf.mxu0
    %v1168 = vadd.f32 %v785, %v1167
    %v1169 = vpop.f32.mrf.mxu0
    %1170 = vmatprep.mubr.bf16.mxu0 0
    %1171 = vmatmul.mubr.bf16.gmra.mxu0 %v899
    %v1172 = vpop.f32.mrf.mxu0
    %v1173 = vadd.f32 %v786, %v1172
    %v1174 = vpop.f32.mrf.mxu0
    %v1175 = vpop.f32.mrf.mxu0
    %v1176 = vadd.f32 %v787, %v1175
    %v1177 = vpop.f32.mrf.mxu0
    %1178 = vmatprep.mubr.bf16.mxu0 0
    %1179 = vmatmul.mubr.bf16.gmra.mxu0 %v902
    %v1180 = vpop.f32.mrf.mxu0
    %v1181 = vadd.f32 %v788, %v1180
    %v1182 = vpop.f32.mrf.mxu0
    %v1183 = vpop.f32.mrf.mxu0
    %v1184 = vadd.f32 %v789, %v1183
    %v1185 = vpop.f32.mrf.mxu0
    %1186 = vmatprep.mubr.bf16.mxu0 0
    %1187 = vmatmul.mubr.bf16.gmra.mxu0 %v905
    %v1188 = vpop.f32.mrf.mxu0
    %v1189 = vadd.f32 %v790, %v1188
    %v1190 = vpop.f32.mrf.mxu0
    %v1191 = vpop.f32.mrf.mxu0
    %v1192 = vadd.f32 %v791, %v1191
    %v1193 = vpop.f32.mrf.mxu0
    %1194 = vmatprep.mubr.bf16.mxu0 0
    %1195 = vmatmul.mubr.bf16.gmra.mxu0 %v908
    %v1196 = vpop.f32.mrf.mxu0
    %v1197 = vadd.f32 %v792, %v1196
    %v1198 = vpop.f32.mrf.mxu0
    %v1199 = vpop.f32.mrf.mxu0
    %v1200 = vadd.f32 %v793, %v1199
    %v1201 = vpop.f32.mrf.mxu0
    %1202 = vmatprep.mubr.bf16.mxu0 0
    %1203 = vmatmul.mubr.bf16.gmra.mxu0 %v911
    %v1204 = vpop.f32.mrf.mxu0
    %v1205 = vadd.f32 %v794, %v1204
    %v1206 = vpop.f32.mrf.mxu0
    %v1207 = vpop.f32.mrf.mxu0
    %v1208 = vadd.f32 %v795, %v1207
    %v1209 = vpop.f32.mrf.mxu0
    %1210 = vmatprep.mubr.bf16.mxu0 0
    %1211 = vmatmul.mubr.bf16.gmra.mxu0 %v914
    %v1212 = vpop.f32.mrf.mxu0
    %v1213 = vadd.f32 %v796, %v1212
    %v1214 = vpop.f32.mrf.mxu0
    %v1215 = vpop.f32.mrf.mxu0
    %v1216 = vadd.f32 %v797, %v1215
    %v1217 = vpop.f32.mrf.mxu0
    %1218 = vmatprep.mubr.bf16.mxu0 0
    %1219 = vmatmul.mubr.bf16.gmra.mxu0 %v917
    %v1220 = vpop.f32.mrf.mxu0
    %v1221 = vadd.f32 %v798, %v1220
    %v1222 = vpop.f32.mrf.mxu0
    %v1223 = vpop.f32.mrf.mxu0
    %v1224 = vadd.f32 %v799, %v1223
    %v1225 = vpop.f32.mrf.mxu0
    %1226 = vmatprep.mubr.bf16.mxu0 0
    %1227 = vmatmul.mubr.bf16.gmra.mxu0 %v920
    %v1228 = vpop.f32.mrf.mxu0
    %v1229 = vadd.f32 %v800, %v1228
    %v1230 = vpop.f32.mrf.mxu0
    %v1231 = vpop.f32.mrf.mxu0
    %v1232 = vadd.f32 %v801, %v1231
    %v1233 = vpop.f32.mrf.mxu0
    %1234 = vdwg.mxu0
    %1235 = vmax.xlane.f32.xlu0 %v981
    %v1236 = vpop.xlane.xlu0 %1235
    %1237 = vmax.xlane.f32.xlu0 %v984
    %v1238 = vpop.xlane.xlu0 %1237
    %1239 = vmax.xlane.f32.xlu0 %v989
    %v1240 = vpop.xlane.xlu0 %1239
    %1241 = vmax.xlane.f32.xlu0 %v992
    %v1242 = vpop.xlane.xlu0 %1241
    %1243 = vmax.xlane.f32.xlu0 %v997
    %v1244 = vpop.xlane.xlu0 %1243
    %1245 = vmax.xlane.f32.xlu0 %v1000
    %v1246 = vpop.xlane.xlu0 %1245
    %1247 = vmax.xlane.f32.xlu0 %v1005
    %v1248 = vpop.xlane.xlu0 %1247
    %1249 = vmax.xlane.f32.xlu0 %v1008
    %v1250 = vpop.xlane.xlu0 %1249
    %1251 = vmax.xlane.f32.xlu0 %v1013
    %v1252 = vpop.xlane.xlu0 %1251
    %1253 = vmax.xlane.f32.xlu0 %v1016
    %v1254 = vpop.xlane.xlu0 %1253
    %1255 = vmax.xlane.f32.xlu0 %v1021
    %v1256 = vpop.xlane.xlu0 %1255
    %1257 = vmax.xlane.f32.xlu0 %v1024
    %v1258 = vpop.xlane.xlu0 %1257
    %1259 = vmax.xlane.f32.xlu0 %v1029
    %v1260 = vpop.xlane.xlu0 %1259
    %1261 = vmax.xlane.f32.xlu0 %v1032
    %v1262 = vpop.xlane.xlu0 %1261
    %1263 = vmax.xlane.f32.xlu0 %v1037
    %v1264 = vpop.xlane.xlu0 %1263
    %1265 = vmax.xlane.f32.xlu0 %v1040
    %v1266 = vpop.xlane.xlu0 %1265
    %1267 = vmax.xlane.f32.xlu0 %v1045
    %v1268 = vpop.xlane.xlu0 %1267
    %1269 = vmax.xlane.f32.xlu0 %v1048
    %v1270 = vpop.xlane.xlu0 %1269
    %1271 = vmax.xlane.f32.xlu0 %v1053
    %v1272 = vpop.xlane.xlu0 %1271
    %1273 = vmax.xlane.f32.xlu0 %v1056
    %v1274 = vpop.xlane.xlu0 %1273
    %1275 = vmax.xlane.f32.xlu0 %v1061
    %v1276 = vpop.xlane.xlu0 %1275
    %1277 = vmax.xlane.f32.xlu0 %v1064
    %v1278 = vpop.xlane.xlu0 %1277
    %1279 = vmax.xlane.f32.xlu0 %v1069
    %v1280 = vpop.xlane.xlu0 %1279
    %1281 = vmax.xlane.f32.xlu0 %v1072
    %v1282 = vpop.xlane.xlu0 %1281
    %1283 = vmax.xlane.f32.xlu0 %v1077
    %v1284 = vpop.xlane.xlu0 %1283
    %1285 = vmax.xlane.f32.xlu0 %v1080
    %v1286 = vpop.xlane.xlu0 %1285
    %1287 = vmax.xlane.f32.xlu0 %v1085
    %v1288 = vpop.xlane.xlu0 %1287
    %1289 = vmax.xlane.f32.xlu0 %v1088
    %v1290 = vpop.xlane.xlu0 %1289
    %1291 = vmax.xlane.f32.xlu0 %v1093
    %v1292 = vpop.xlane.xlu0 %1291
    %1293 = vmax.xlane.f32.xlu0 %v1096
    %v1294 = vpop.xlane.xlu0 %1293
    %1295 = vmax.xlane.f32.xlu0 %v1101
    %v1296 = vpop.xlane.xlu0 %1295
    %1297 = vmax.xlane.f32.xlu0 %v1104
    %v1298 = vpop.xlane.xlu0 %1297
    %1299 = vmax.xlane.f32.xlu0 %v1109
    %v1300 = vpop.xlane.xlu0 %1299
    %1301 = vmax.xlane.f32.xlu0 %v1112
    %v1302 = vpop.xlane.xlu0 %1301
    %1303 = vmax.xlane.f32.xlu0 %v1117
    %v1304 = vpop.xlane.xlu0 %1303
    %1305 = vmax.xlane.f32.xlu0 %v1120
    %v1306 = vpop.xlane.xlu0 %1305
    %1307 = vmax.xlane.f32.xlu0 %v1125
    %v1308 = vpop.xlane.xlu0 %1307
    %1309 = vmax.xlane.f32.xlu0 %v1128
    %v1310 = vpop.xlane.xlu0 %1309
    %1311 = vmax.xlane.f32.xlu0 %v1133
    %v1312 = vpop.xlane.xlu0 %1311
    %1313 = vmax.xlane.f32.xlu0 %v1136
    %v1314 = vpop.xlane.xlu0 %1313
    %1315 = vmax.xlane.f32.xlu0 %v1141
    %v1316 = vpop.xlane.xlu0 %1315
    %1317 = vmax.xlane.f32.xlu0 %v1144
    %v1318 = vpop.xlane.xlu0 %1317
    %1319 = vmax.xlane.f32.xlu0 %v1149
    %v1320 = vpop.xlane.xlu0 %1319
    %1321 = vmax.xlane.f32.xlu0 %v1152
    %v1322 = vpop.xlane.xlu0 %1321
    %1323 = vmax.xlane.f32.xlu0 %v1157
    %v1324 = vpop.xlane.xlu0 %1323
    %1325 = vmax.xlane.f32.xlu0 %v1160
    %v1326 = vpop.xlane.xlu0 %1325
    %1327 = vmax.xlane.f32.xlu0 %v1165
    %v1328 = vpop.xlane.xlu0 %1327
    %1329 = vmax.xlane.f32.xlu0 %v1168
    %v1330 = vpop.xlane.xlu0 %1329
    %1331 = vmax.xlane.f32.xlu0 %v1173
    %v1332 = vpop.xlane.xlu0 %1331
    %1333 = vmax.xlane.f32.xlu0 %v1176
    %v1334 = vpop.xlane.xlu0 %1333
    %1335 = vmax.xlane.f32.xlu0 %v1181
    %v1336 = vpop.xlane.xlu0 %1335
    %1337 = vmax.xlane.f32.xlu0 %v1184
    %v1338 = vpop.xlane.xlu0 %1337
    %1339 = vmax.xlane.f32.xlu0 %v1189
    %v1340 = vpop.xlane.xlu0 %1339
    %1341 = vmax.xlane.f32.xlu0 %v1192
    %v1342 = vpop.xlane.xlu0 %1341
    %1343 = vmax.xlane.f32.xlu0 %v1197
    %v1344 = vpop.xlane.xlu0 %1343
    %1345 = vmax.xlane.f32.xlu0 %v1200
    %v1346 = vpop.xlane.xlu0 %1345
    %1347 = vmax.xlane.f32.xlu0 %v1205
    %v1348 = vpop.xlane.xlu0 %1347
    %1349 = vmax.xlane.f32.xlu0 %v1208
    %v1350 = vpop.xlane.xlu0 %1349
    %1351 = vmax.xlane.f32.xlu0 %v1213
    %v1352 = vpop.xlane.xlu0 %1351
    %1353 = vmax.xlane.f32.xlu0 %v1216
    %v1354 = vpop.xlane.xlu0 %1353
    %1355 = vmax.xlane.f32.xlu0 %v1221
    %v1356 = vpop.xlane.xlu0 %1355
    %1357 = vmax.xlane.f32.xlu0 %v1224
    %v1358 = vpop.xlane.xlu0 %1357
    %1359 = vmax.xlane.f32.xlu0 %v1229
    %v1360 = vpop.xlane.xlu0 %1359
    %1361 = vmax.xlane.f32.xlu0 %v1232
    %v1362 = vpop.xlane.xlu0 %1361
    %v1363 = vsub.f32 %v981, %v1236
    %v1364 = vsub.f32 %v984, %v1238
    %v1365 = vsub.f32 %v989, %v1240
    %v1366 = vsub.f32 %v992, %v1242
    %v1367 = vsub.f32 %v997, %v1244
    %v1368 = vsub.f32 %v1000, %v1246
    %v1369 = vsub.f32 %v1005, %v1248
    %v1370 = vsub.f32 %v1008, %v1250
    %v1371 = vsub.f32 %v1013, %v1252
    %v1372 = vsub.f32 %v1016, %v1254
    %v1373 = vsub.f32 %v1021, %v1256
    %v1374 = vsub.f32 %v1024, %v1258
    %v1375 = vsub.f32 %v1029, %v1260
    %v1376 = vsub.f32 %v1032, %v1262
    %v1377 = vsub.f32 %v1037, %v1264
    %v1378 = vsub.f32 %v1040, %v1266
    %v1379 = vsub.f32 %v1045, %v1268
    %v1380 = vsub.f32 %v1048, %v1270
    %v1381 = vsub.f32 %v1053, %v1272
    %v1382 = vsub.f32 %v1056, %v1274
    %v1383 = vsub.f32 %v1061, %v1276
    %v1384 = vsub.f32 %v1064, %v1278
    %v1385 = vsub.f32 %v1069, %v1280
    %v1386 = vsub.f32 %v1072, %v1282
    %v1387 = vsub.f32 %v1077, %v1284
    %v1388 = vsub.f32 %v1080, %v1286
    %v1389 = vsub.f32 %v1085, %v1288
    %v1390 = vsub.f32 %v1088, %v1290
    %v1391 = vsub.f32 %v1093, %v1292
    %v1392 = vsub.f32 %v1096, %v1294
    %v1393 = vsub.f32 %v1101, %v1296
    %v1394 = vsub.f32 %v1104, %v1298
    %v1395 = vsub.f32 %v1109, %v1300
    %v1396 = vsub.f32 %v1112, %v1302
    %v1397 = vsub.f32 %v1117, %v1304
    %v1398 = vsub.f32 %v1120, %v1306
    %v1399 = vsub.f32 %v1125, %v1308
    %v1400 = vsub.f32 %v1128, %v1310
    %v1401 = vsub.f32 %v1133, %v1312
    %v1402 = vsub.f32 %v1136, %v1314
    %v1403 = vsub.f32 %v1141, %v1316
    %v1404 = vsub.f32 %v1144, %v1318
    %v1405 = vsub.f32 %v1149, %v1320
    %v1406 = vsub.f32 %v1152, %v1322
    %v1407 = vsub.f32 %v1157, %v1324
    %v1408 = vsub.f32 %v1160, %v1326
    %v1409 = vsub.f32 %v1165, %v1328
    %v1410 = vsub.f32 %v1168, %v1330
    %v1411 = vsub.f32 %v1173, %v1332
    %v1412 = vsub.f32 %v1176, %v1334
    %v1413 = vsub.f32 %v1181, %v1336
    %v1414 = vsub.f32 %v1184, %v1338
    %v1415 = vsub.f32 %v1189, %v1340
    %v1416 = vsub.f32 %v1192, %v1342
    %v1417 = vsub.f32 %v1197, %v1344
    %v1418 = vsub.f32 %v1200, %v1346
    %v1419 = vsub.f32 %v1205, %v1348
    %v1420 = vsub.f32 %v1208, %v1350
    %v1421 = vsub.f32 %v1213, %v1352
    %v1422 = vsub.f32 %v1216, %v1354
    %v1423 = vsub.f32 %v1221, %v1356
    %v1424 = vsub.f32 %v1224, %v1358
    %v1425 = vsub.f32 %v1229, %v1360
    %v1426 = vsub.f32 %v1232, %v1362
    %v1427 = vmul.f32 %v1363, 1.442695
    %v1428 = vpow.pop %v1427
    %v1429 = vmul.f32 %v1364, 1.442695
    %v1430 = vpow.pop %v1429
    %v1431 = vmul.f32 %v1365, 1.442695
    %v1432 = vpow.pop %v1431
    %v1433 = vmul.f32 %v1366, 1.442695
    %v1434 = vpow.pop %v1433
    %v1435 = vmul.f32 %v1367, 1.442695
    %v1436 = vpow.pop %v1435
    %v1437 = vmul.f32 %v1368, 1.442695
    %v1438 = vpow.pop %v1437
    %v1439 = vmul.f32 %v1369, 1.442695
    %v1440 = vpow.pop %v1439
    %v1441 = vmul.f32 %v1370, 1.442695
    %v1442 = vpow.pop %v1441
    %v1443 = vmul.f32 %v1371, 1.442695
    %v1444 = vpow.pop %v1443
    %v1445 = vmul.f32 %v1372, 1.442695
    %v1446 = vpow.pop %v1445
    %v1447 = vmul.f32 %v1373, 1.442695
    %v1448 = vpow.pop %v1447
    %v1449 = vmul.f32 %v1374, 1.442695
    %v1450 = vpow.pop %v1449
    %v1451 = vmul.f32 %v1375, 1.442695
    %v1452 = vpow.pop %v1451
    %v1453 = vmul.f32 %v1376, 1.442695
    %v1454 = vpow.pop %v1453
    %v1455 = vmul.f32 %v1377, 1.442695
    %v1456 = vpow.pop %v1455
    %v1457 = vmul.f32 %v1378, 1.442695
    %v1458 = vpow.pop %v1457
    %v1459 = vmul.f32 %v1379, 1.442695
    %v1460 = vpow.pop %v1459
    %v1461 = vmul.f32 %v1380, 1.442695
    %v1462 = vpow.pop %v1461
    %v1463 = vmul.f32 %v1381, 1.442695
    %v1464 = vpow.pop %v1463
    %v1465 = vmul.f32 %v1382, 1.442695
    %v1466 = vpow.pop %v1465
    %v1467 = vmul.f32 %v1383, 1.442695
    %v1468 = vpow.pop %v1467
    %v1469 = vmul.f32 %v1384, 1.442695
    %v1470 = vpow.pop %v1469
    %v1471 = vmul.f32 %v1385, 1.442695
    %v1472 = vpow.pop %v1471
    %v1473 = vmul.f32 %v1386, 1.442695
    %v1474 = vpow.pop %v1473
    %v1475 = vmul.f32 %v1387, 1.442695
    %v1476 = vpow.pop %v1475
    %v1477 = vmul.f32 %v1388, 1.442695
    %v1478 = vpow.pop %v1477
    %v1479 = vmul.f32 %v1389, 1.442695
    %v1480 = vpow.pop %v1479
    %v1481 = vmul.f32 %v1390, 1.442695
    %v1482 = vpow.pop %v1481
    %v1483 = vmul.f32 %v1391, 1.442695
    %v1484 = vpow.pop %v1483
    %v1485 = vmul.f32 %v1392, 1.442695
    %v1486 = vpow.pop %v1485
    %v1487 = vmul.f32 %v1393, 1.442695
    %v1488 = vpow.pop %v1487
    %v1489 = vmul.f32 %v1394, 1.442695
    %v1490 = vpow.pop %v1489
    %v1491 = vmul.f32 %v1395, 1.442695
    %v1492 = vpow.pop %v1491
    %v1493 = vmul.f32 %v1396, 1.442695
    %v1494 = vpow.pop %v1493
    %v1495 = vmul.f32 %v1397, 1.442695
    %v1496 = vpow.pop %v1495
    %v1497 = vmul.f32 %v1398, 1.442695
    %v1498 = vpow.pop %v1497
    %v1499 = vmul.f32 %v1399, 1.442695
    %v1500 = vpow.pop %v1499
    %v1501 = vmul.f32 %v1400, 1.442695
    %v1502 = vpow.pop %v1501
    %v1503 = vmul.f32 %v1401, 1.442695
    %v1504 = vpow.pop %v1503
    %v1505 = vmul.f32 %v1402, 1.442695
    %v1506 = vpow.pop %v1505
    %v1507 = vmul.f32 %v1403, 1.442695
    %v1508 = vpow.pop %v1507
    %v1509 = vmul.f32 %v1404, 1.442695
    %v1510 = vpow.pop %v1509
    %v1511 = vmul.f32 %v1405, 1.442695
    %v1512 = vpow.pop %v1511
    %v1513 = vmul.f32 %v1406, 1.442695
    %v1514 = vpow.pop %v1513
    %v1515 = vmul.f32 %v1407, 1.442695
    %v1516 = vpow.pop %v1515
    %v1517 = vmul.f32 %v1408, 1.442695
    %v1518 = vpow.pop %v1517
    %v1519 = vmul.f32 %v1409, 1.442695
    %v1520 = vpow.pop %v1519
    %v1521 = vmul.f32 %v1410, 1.442695
    %v1522 = vpow.pop %v1521
    %v1523 = vmul.f32 %v1411, 1.442695
    %v1524 = vpow.pop %v1523
    %v1525 = vmul.f32 %v1412, 1.442695
    %v1526 = vpow.pop %v1525
    %v1527 = vmul.f32 %v1413, 1.442695
    %v1528 = vpow.pop %v1527
    %v1529 = vmul.f32 %v1414, 1.442695
    %v1530 = vpow.pop %v1529
    %v1531 = vmul.f32 %v1415, 1.442695
    %v1532 = vpow.pop %v1531
    %v1533 = vmul.f32 %v1416, 1.442695
    %v1534 = vpow.pop %v1533
    %v1535 = vmul.f32 %v1417, 1.442695
    %v1536 = vpow.pop %v1535
    %v1537 = vmul.f32 %v1418, 1.442695
    %v1538 = vpow.pop %v1537
    %v1539 = vmul.f32 %v1419, 1.442695
    %v1540 = vpow.pop %v1539
    %v1541 = vmul.f32 %v1420, 1.442695
    %v1542 = vpow.pop %v1541
    %v1543 = vmul.f32 %v1421, 1.442695
    %v1544 = vpow.pop %v1543
    %v1545 = vmul.f32 %v1422, 1.442695
    %v1546 = vpow.pop %v1545
    %v1547 = vmul.f32 %v1423, 1.442695
    %v1548 = vpow.pop %v1547
    %v1549 = vmul.f32 %v1424, 1.442695
    %v1550 = vpow.pop %v1549
    %v1551 = vmul.f32 %v1425, 1.442695
    %v1552 = vpow.pop %v1551
    %v1553 = vmul.f32 %v1426, 1.442695
    %v1554 = vpow.pop %v1553
    %1555 = vadd.xlane.f32.xlu0 %v1428
    %v1556 = vpop.xlane.xlu0 %1555
    %1557 = vadd.xlane.f32.xlu0 %v1430
    %v1558 = vpop.xlane.xlu0 %1557
    %1559 = vadd.xlane.f32.xlu0 %v1432
    %v1560 = vpop.xlane.xlu0 %1559
    %1561 = vadd.xlane.f32.xlu0 %v1434
    %v1562 = vpop.xlane.xlu0 %1561
    %1563 = vadd.xlane.f32.xlu0 %v1436
    %v1564 = vpop.xlane.xlu0 %1563
    %1565 = vadd.xlane.f32.xlu0 %v1438
    %v1566 = vpop.xlane.xlu0 %1565
    %1567 = vadd.xlane.f32.xlu0 %v1440
    %v1568 = vpop.xlane.xlu0 %1567
    %1569 = vadd.xlane.f32.xlu0 %v1442
    %v1570 = vpop.xlane.xlu0 %1569
    %1571 = vadd.xlane.f32.xlu0 %v1444
    %v1572 = vpop.xlane.xlu0 %1571
    %1573 = vadd.xlane.f32.xlu0 %v1446
    %v1574 = vpop.xlane.xlu0 %1573
    %1575 = vadd.xlane.f32.xlu0 %v1448
    %v1576 = vpop.xlane.xlu0 %1575
    %1577 = vadd.xlane.f32.xlu0 %v1450
    %v1578 = vpop.xlane.xlu0 %1577
    %1579 = vadd.xlane.f32.xlu0 %v1452
    %v1580 = vpop.xlane.xlu0 %1579
    %1581 = vadd.xlane.f32.xlu0 %v1454
    %v1582 = vpop.xlane.xlu0 %1581
    %1583 = vadd.xlane.f32.xlu0 %v1456
    %v1584 = vpop.xlane.xlu0 %1583
    %1585 = vadd.xlane.f32.xlu0 %v1458
    %v1586 = vpop.xlane.xlu0 %1585
    %1587 = vadd.xlane.f32.xlu0 %v1460
    %v1588 = vpop.xlane.xlu0 %1587
    %1589 = vadd.xlane.f32.xlu0 %v1462
    %v1590 = vpop.xlane.xlu0 %1589
    %1591 = vadd.xlane.f32.xlu0 %v1464
    %v1592 = vpop.xlane.xlu0 %1591
    %1593 = vadd.xlane.f32.xlu0 %v1466
    %v1594 = vpop.xlane.xlu0 %1593
    %1595 = vadd.xlane.f32.xlu0 %v1468
    %v1596 = vpop.xlane.xlu0 %1595
    %1597 = vadd.xlane.f32.xlu0 %v1470
    %v1598 = vpop.xlane.xlu0 %1597
    %1599 = vadd.xlane.f32.xlu0 %v1472
    %v1600 = vpop.xlane.xlu0 %1599
    %1601 = vadd.xlane.f32.xlu0 %v1474
    %v1602 = vpop.xlane.xlu0 %1601
    %1603 = vadd.xlane.f32.xlu0 %v1476
    %v1604 = vpop.xlane.xlu0 %1603
    %1605 = vadd.xlane.f32.xlu0 %v1478
    %v1606 = vpop.xlane.xlu0 %1605
    %1607 = vadd.xlane.f32.xlu0 %v1480
    %v1608 = vpop.xlane.xlu0 %1607
    %1609 = vadd.xlane.f32.xlu0 %v1482
    %v1610 = vpop.xlane.xlu0 %1609
    %1611 = vadd.xlane.f32.xlu0 %v1484
    %v1612 = vpop.xlane.xlu0 %1611
    %1613 = vadd.xlane.f32.xlu0 %v1486
    %v1614 = vpop.xlane.xlu0 %1613
    %1615 = vadd.xlane.f32.xlu0 %v1488
    %v1616 = vpop.xlane.xlu0 %1615
    %1617 = vadd.xlane.f32.xlu0 %v1490
    %v1618 = vpop.xlane.xlu0 %1617
    %1619 = vadd.xlane.f32.xlu0 %v1492
    %v1620 = vpop.xlane.xlu0 %1619
    %1621 = vadd.xlane.f32.xlu0 %v1494
    %v1622 = vpop.xlane.xlu0 %1621
    %1623 = vadd.xlane.f32.xlu0 %v1496
    %v1624 = vpop.xlane.xlu0 %1623
    %1625 = vadd.xlane.f32.xlu0 %v1498
    %v1626 = vpop.xlane.xlu0 %1625
    %1627 = vadd.xlane.f32.xlu0 %v1500
    %v1628 = vpop.xlane.xlu0 %1627
    %1629 = vadd.xlane.f32.xlu0 %v1502
    %v1630 = vpop.xlane.xlu0 %1629
    %1631 = vadd.xlane.f32.xlu0 %v1504
    %v1632 = vpop.xlane.xlu0 %1631
    %1633 = vadd.xlane.f32.xlu0 %v1506
    %v1634 = vpop.xlane.xlu0 %1633
    %1635 = vadd.xlane.f32.xlu0 %v1508
    %v1636 = vpop.xlane.xlu0 %1635
    %1637 = vadd.xlane.f32.xlu0 %v1510
    %v1638 = vpop.xlane.xlu0 %1637
    %1639 = vadd.xlane.f32.xlu0 %v1512
    %v1640 = vpop.xlane.xlu0 %1639
    %1641 = vadd.xlane.f32.xlu0 %v1514
    %v1642 = vpop.xlane.xlu0 %1641
    %1643 = vadd.xlane.f32.xlu0 %v1516
    %v1644 = vpop.xlane.xlu0 %1643
    %1645 = vadd.xlane.f32.xlu0 %v1518
    %v1646 = vpop.xlane.xlu0 %1645
    %1647 = vadd.xlane.f32.xlu0 %v1520
    %v1648 = vpop.xlane.xlu0 %1647
    %1649 = vadd.xlane.f32.xlu0 %v1522
    %v1650 = vpop.xlane.xlu0 %1649
    %1651 = vadd.xlane.f32.xlu0 %v1524
    %v1652 = vpop.xlane.xlu0 %1651
    %1653 = vadd.xlane.f32.xlu0 %v1526
    %v1654 = vpop.xlane.xlu0 %1653
    %1655 = vadd.xlane.f32.xlu0 %v1528
    %v1656 = vpop.xlane.xlu0 %1655
    %1657 = vadd.xlane.f32.xlu0 %v1530
    %v1658 = vpop.xlane.xlu0 %1657
    %1659 = vadd.xlane.f32.xlu0 %v1532
    %v1660 = vpop.xlane.xlu0 %1659
    %1661 = vadd.xlane.f32.xlu0 %v1534
    %v1662 = vpop.xlane.xlu0 %1661
    %1663 = vadd.xlane.f32.xlu0 %v1536
    %v1664 = vpop.xlane.xlu0 %1663
    %1665 = vadd.xlane.f32.xlu0 %v1538
    %v1666 = vpop.xlane.xlu0 %1665
    %1667 = vadd.xlane.f32.xlu0 %v1540
    %v1668 = vpop.xlane.xlu0 %1667
    %1669 = vadd.xlane.f32.xlu0 %v1542
    %v1670 = vpop.xlane.xlu0 %1669
    %1671 = vadd.xlane.f32.xlu0 %v1544
    %v1672 = vpop.xlane.xlu0 %1671
    %1673 = vadd.xlane.f32.xlu0 %v1546
    %v1674 = vpop.xlane.xlu0 %1673
    %1675 = vadd.xlane.f32.xlu0 %v1548
    %v1676 = vpop.xlane.xlu0 %1675
    %1677 = vadd.xlane.f32.xlu0 %v1550
    %v1678 = vpop.xlane.xlu0 %1677
    %1679 = vadd.xlane.f32.xlu0 %v1552
    %v1680 = vpop.xlane.xlu0 %1679
    %1681 = vadd.xlane.f32.xlu0 %v1554
    %v1682 = vpop.xlane.xlu0 %1681
    %v1683 = vpack.c.bf16 %v1430, %v1428
    %v1684 = vpack.c.bf16 %v1434, %v1432
    %v1685 = vpack.c.bf16 %v1438, %v1436
    %v1686 = vpack.c.bf16 %v1442, %v1440
    %v1687 = vpack.c.bf16 %v1446, %v1444
    %v1688 = vpack.c.bf16 %v1450, %v1448
    %v1689 = vpack.c.bf16 %v1454, %v1452
    %v1690 = vpack.c.bf16 %v1458, %v1456
    %v1691 = vpack.c.bf16 %v1462, %v1460
    %v1692 = vpack.c.bf16 %v1466, %v1464
    %v1693 = vpack.c.bf16 %v1470, %v1468
    %v1694 = vpack.c.bf16 %v1474, %v1472
    %v1695 = vpack.c.bf16 %v1478, %v1476
    %v1696 = vpack.c.bf16 %v1482, %v1480
    %v1697 = vpack.c.bf16 %v1486, %v1484
    %v1698 = vpack.c.bf16 %v1490, %v1488
    %v1699 = vpack.c.bf16 %v1494, %v1492
    %v1700 = vpack.c.bf16 %v1498, %v1496
    %v1701 = vpack.c.bf16 %v1502, %v1500
    %v1702 = vpack.c.bf16 %v1506, %v1504
    %v1703 = vpack.c.bf16 %v1510, %v1508
    %v1704 = vpack.c.bf16 %v1514, %v1512
    %v1705 = vpack.c.bf16 %v1518, %v1516
    %v1706 = vpack.c.bf16 %v1522, %v1520
    %v1707 = vpack.c.bf16 %v1526, %v1524
    %v1708 = vpack.c.bf16 %v1530, %v1528
    %v1709 = vpack.c.bf16 %v1534, %v1532
    %v1710 = vpack.c.bf16 %v1538, %v1536
    %v1711 = vpack.c.bf16 %v1542, %v1540
    %v1712 = vpack.c.bf16 %v1546, %v1544
    %v1713 = vpack.c.bf16 %v1550, %v1548
    %v1714 = vpack.c.bf16 %v1554, %v1552
    %1715 = vrot.lane.b32.xlu0 %v666, 64
    %v1716 = vpop.permute.xlu0 %1715
    %1717 = vrot.lane.b32.xlu0 %v667, 64
    %v1718 = vpop.permute.xlu0 %1717
    %1719 = vrot.lane.b32.xlu0 %v668, 64
    %v1720 = vpop.permute.xlu0 %1719
    %1721 = vrot.lane.b32.xlu0 %v669, 64
    %v1722 = vpop.permute.xlu0 %1721
    %1723 = vrot.lane.b32.xlu0 %v670, 64
    %v1724 = vpop.permute.xlu0 %1723
    %1725 = vrot.lane.b32.xlu0 %v671, 64
    %v1726 = vpop.permute.xlu0 %1725
    %1727 = vrot.lane.b32.xlu0 %v672, 64
    %v1728 = vpop.permute.xlu0 %1727
    %1729 = vrot.lane.b32.xlu0 %v673, 64
    %v1730 = vpop.permute.xlu0 %1729
    %1739 = vmatprep.subr.bf16.mxu0 0
    %1740 = vmatpush1.bf16.msra.mxu0 %v1730
    %1741 = vmatprep.subr.bf16.mxu0 0
    %1742 = vmatpush1.bf16.msra.mxu0 %v1728
    %1743 = vmatprep.subr.bf16.mxu0 0
    %1744 = vmatpush1.bf16.msra.mxu0 %v1726
    %1745 = vmatprep.subr.bf16.mxu0 0
    %1746 = vmatpush1.bf16.msra.mxu0 %v1724
    %1747 = vmatprep.subr.bf16.mxu0 0
    %1748 = vmatpush1.bf16.msra.mxu0 %v1722
    %1749 = vmatprep.subr.bf16.mxu0 0
    %1750 = vmatpush1.bf16.msra.mxu0 %v1720
    %1751 = vmatprep.subr.bf16.mxu0 0
    %1752 = vmatpush1.bf16.msra.mxu0 %v1718
    %1753 = vmatprep.subr.bf16.mxu0 0
    %1754 = vmatpush1.bf16.msra.mxu0 %v1716
    %1755 = vmatprep.subr.bf16.mxu0 0
    %1756 = vmatpush2.bf16.msra.mxu0 0
    %1757 = vmatprep.subr.bf16.mxu0 0
    %1758 = vmatpush2.bf16.msra.mxu0 0
    %1759 = vmatprep.subr.bf16.mxu0 0
    %1760 = vmatpush2.bf16.msra.mxu0 0
    %1761 = vmatprep.subr.bf16.mxu0 0
    %1762 = vmatpush2.bf16.msra.mxu0 0
    %1763 = vmatprep.subr.bf16.mxu0 0
    %1764 = vmatpush2.bf16.msra.mxu0 0
    %1765 = vmatprep.subr.bf16.mxu0 0
    %1766 = vmatpush2.bf16.msra.mxu0 0
    %1767 = vmatprep.subr.bf16.mxu0 0
    %1768 = vmatpush2.bf16.msra.mxu0 0
    %1769 = vmatprep.subr.bf16.mxu0 0
    %1770 = vmatpush2.bf16.msra.mxu0 0
    %1771 = vmatprep.mubr.bf16.mxu0 0
    %1772 = vmatmul.mubr.bf16.gmra.mxu0 %v1683
    %v1773 = vpop.f32.mrf.mxu0
    %v1774 = vadd.f32 0.0, %v1773
    %v1775 = vpop.f32.mrf.mxu0
    %v1776 = vpop.f32.mrf.mxu0
    %v1777 = vadd.f32 0.0, %v1776
    %v1778 = vpop.f32.mrf.mxu0
    %1779 = vmatprep.mubr.bf16.mxu0 0
    %1780 = vmatmul.mubr.bf16.gmra.mxu0 %v1684
    %v1781 = vpop.f32.mrf.mxu0
    %v1782 = vadd.f32 0.0, %v1781
    %v1783 = vpop.f32.mrf.mxu0
    %v1784 = vpop.f32.mrf.mxu0
    %v1785 = vadd.f32 0.0, %v1784
    %v1786 = vpop.f32.mrf.mxu0
    %1787 = vmatprep.mubr.bf16.mxu0 0
    %1788 = vmatmul.mubr.bf16.gmra.mxu0 %v1685
    %v1789 = vpop.f32.mrf.mxu0
    %v1790 = vadd.f32 0.0, %v1789
    %v1791 = vpop.f32.mrf.mxu0
    %v1792 = vpop.f32.mrf.mxu0
    %v1793 = vadd.f32 0.0, %v1792
    %v1794 = vpop.f32.mrf.mxu0
    %1795 = vmatprep.mubr.bf16.mxu0 0
    %1796 = vmatmul.mubr.bf16.gmra.mxu0 %v1686
    %v1797 = vpop.f32.mrf.mxu0
    %v1798 = vadd.f32 0.0, %v1797
    %v1799 = vpop.f32.mrf.mxu0
    %v1800 = vpop.f32.mrf.mxu0
    %v1801 = vadd.f32 0.0, %v1800
    %v1802 = vpop.f32.mrf.mxu0
    %1803 = vmatprep.mubr.bf16.mxu0 0
    %1804 = vmatmul.mubr.bf16.gmra.mxu0 %v1687
    %v1805 = vpop.f32.mrf.mxu0
    %v1806 = vadd.f32 0.0, %v1805
    %v1807 = vpop.f32.mrf.mxu0
    %v1808 = vpop.f32.mrf.mxu0
    %v1809 = vadd.f32 0.0, %v1808
    %v1810 = vpop.f32.mrf.mxu0
    %1811 = vmatprep.mubr.bf16.mxu0 0
    %1812 = vmatmul.mubr.bf16.gmra.mxu0 %v1688
    %v1813 = vpop.f32.mrf.mxu0
    %v1814 = vadd.f32 0.0, %v1813
    %v1815 = vpop.f32.mrf.mxu0
    %v1816 = vpop.f32.mrf.mxu0
    %v1817 = vadd.f32 0.0, %v1816
    %v1818 = vpop.f32.mrf.mxu0
    %1819 = vmatprep.mubr.bf16.mxu0 0
    %1820 = vmatmul.mubr.bf16.gmra.mxu0 %v1689
    %v1821 = vpop.f32.mrf.mxu0
    %v1822 = vadd.f32 0.0, %v1821
    %v1823 = vpop.f32.mrf.mxu0
    %v1824 = vpop.f32.mrf.mxu0
    %v1825 = vadd.f32 0.0, %v1824
    %v1826 = vpop.f32.mrf.mxu0
    %1827 = vmatprep.mubr.bf16.mxu0 0
    %1828 = vmatmul.mubr.bf16.gmra.mxu0 %v1690
    %v1829 = vpop.f32.mrf.mxu0
    %v1830 = vadd.f32 0.0, %v1829
    %v1831 = vpop.f32.mrf.mxu0
    %v1832 = vpop.f32.mrf.mxu0
    %v1833 = vadd.f32 0.0, %v1832
    %v1834 = vpop.f32.mrf.mxu0
    %1835 = vmatprep.mubr.bf16.mxu0 0
    %1836 = vmatmul.mubr.bf16.gmra.mxu0 %v1691
    %v1837 = vpop.f32.mrf.mxu0
    %v1838 = vadd.f32 0.0, %v1837
    %v1839 = vpop.f32.mrf.mxu0
    %v1840 = vpop.f32.mrf.mxu0
    %v1841 = vadd.f32 0.0, %v1840
    %v1842 = vpop.f32.mrf.mxu0
    %1843 = vmatprep.mubr.bf16.mxu0 0
    %1844 = vmatmul.mubr.bf16.gmra.mxu0 %v1692
    %v1845 = vpop.f32.mrf.mxu0
    %v1846 = vadd.f32 0.0, %v1845
    %v1847 = vpop.f32.mrf.mxu0
    %v1848 = vpop.f32.mrf.mxu0
    %v1849 = vadd.f32 0.0, %v1848
    %v1850 = vpop.f32.mrf.mxu0
    %1851 = vmatprep.mubr.bf16.mxu0 0
    %1852 = vmatmul.mubr.bf16.gmra.mxu0 %v1693
    %v1853 = vpop.f32.mrf.mxu0
    %v1854 = vadd.f32 0.0, %v1853
    %v1855 = vpop.f32.mrf.mxu0
    %v1856 = vpop.f32.mrf.mxu0
    %v1857 = vadd.f32 0.0, %v1856
    %v1858 = vpop.f32.mrf.mxu0
    %1859 = vmatprep.mubr.bf16.mxu0 0
    %1860 = vmatmul.mubr.bf16.gmra.mxu0 %v1694
    %v1861 = vpop.f32.mrf.mxu0
    %v1862 = vadd.f32 0.0, %v1861
    %v1863 = vpop.f32.mrf.mxu0
    %v1864 = vpop.f32.mrf.mxu0
    %v1865 = vadd.f32 0.0, %v1864
    %v1866 = vpop.f32.mrf.mxu0
    %1867 = vmatprep.mubr.bf16.mxu0 0
    %1868 = vmatmul.mubr.bf16.gmra.mxu0 %v1695
    %v1869 = vpop.f32.mrf.mxu0
    %v1870 = vadd.f32 0.0, %v1869
    %v1871 = vpop.f32.mrf.mxu0
    %v1872 = vpop.f32.mrf.mxu0
    %v1873 = vadd.f32 0.0, %v1872
    %v1874 = vpop.f32.mrf.mxu0
    %1875 = vmatprep.mubr.bf16.mxu0 0
    %1876 = vmatmul.mubr.bf16.gmra.mxu0 %v1696
    %v1877 = vpop.f32.mrf.mxu0
    %v1878 = vadd.f32 0.0, %v1877
    %v1879 = vpop.f32.mrf.mxu0
    %v1880 = vpop.f32.mrf.mxu0
    %v1881 = vadd.f32 0.0, %v1880
    %v1882 = vpop.f32.mrf.mxu0
    %1883 = vmatprep.mubr.bf16.mxu0 0
    %1884 = vmatmul.mubr.bf16.gmra.mxu0 %v1697
    %v1885 = vpop.f32.mrf.mxu0
    %v1886 = vadd.f32 0.0, %v1885
    %v1887 = vpop.f32.mrf.mxu0
    %v1888 = vpop.f32.mrf.mxu0
    %v1889 = vadd.f32 0.0, %v1888
    %v1890 = vpop.f32.mrf.mxu0
    %1891 = vmatprep.mubr.bf16.mxu0 0
    %1892 = vmatmul.mubr.bf16.gmra.mxu0 %v1698
    %v1893 = vpop.f32.mrf.mxu0
    %v1894 = vadd.f32 0.0, %v1893
    %v1895 = vpop.f32.mrf.mxu0
    %v1896 = vpop.f32.mrf.mxu0
    %v1897 = vadd.f32 0.0, %v1896
    %v1898 = vpop.f32.mrf.mxu0
    %1899 = vmatprep.mubr.bf16.mxu0 0
    %1900 = vmatmul.mubr.bf16.gmra.mxu0 %v1699
    %v1901 = vpop.f32.mrf.mxu0
    %v1902 = vadd.f32 0.0, %v1901
    %v1903 = vpop.f32.mrf.mxu0
    %v1904 = vpop.f32.mrf.mxu0
    %v1905 = vadd.f32 0.0, %v1904
    %v1906 = vpop.f32.mrf.mxu0
    %1907 = vmatprep.mubr.bf16.mxu0 0
    %1908 = vmatmul.mubr.bf16.gmra.mxu0 %v1700
    %v1909 = vpop.f32.mrf.mxu0
    %v1910 = vadd.f32 0.0, %v1909
    %v1911 = vpop.f32.mrf.mxu0
    %v1912 = vpop.f32.mrf.mxu0
    %v1913 = vadd.f32 0.0, %v1912
    %v1914 = vpop.f32.mrf.mxu0
    %1915 = vmatprep.mubr.bf16.mxu0 0
    %1916 = vmatmul.mubr.bf16.gmra.mxu0 %v1701
    %v1917 = vpop.f32.mrf.mxu0
    %v1918 = vadd.f32 0.0, %v1917
    %v1919 = vpop.f32.mrf.mxu0
    %v1920 = vpop.f32.mrf.mxu0
    %v1921 = vadd.f32 0.0, %v1920
    %v1922 = vpop.f32.mrf.mxu0
    %1923 = vmatprep.mubr.bf16.mxu0 0
    %1924 = vmatmul.mubr.bf16.gmra.mxu0 %v1702
    %v1925 = vpop.f32.mrf.mxu0
    %v1926 = vadd.f32 0.0, %v1925
    %v1927 = vpop.f32.mrf.mxu0
    %v1928 = vpop.f32.mrf.mxu0
    %v1929 = vadd.f32 0.0, %v1928
    %v1930 = vpop.f32.mrf.mxu0
    %1931 = vmatprep.mubr.bf16.mxu0 0
    %1932 = vmatmul.mubr.bf16.gmra.mxu0 %v1703
    %v1933 = vpop.f32.mrf.mxu0
    %v1934 = vadd.f32 0.0, %v1933
    %v1935 = vpop.f32.mrf.mxu0
    %v1936 = vpop.f32.mrf.mxu0
    %v1937 = vadd.f32 0.0, %v1936
    %v1938 = vpop.f32.mrf.mxu0
    %1939 = vmatprep.mubr.bf16.mxu0 0
    %1940 = vmatmul.mubr.bf16.gmra.mxu0 %v1704
    %v1941 = vpop.f32.mrf.mxu0
    %v1942 = vadd.f32 0.0, %v1941
    %v1943 = vpop.f32.mrf.mxu0
    %v1944 = vpop.f32.mrf.mxu0
    %v1945 = vadd.f32 0.0, %v1944
    %v1946 = vpop.f32.mrf.mxu0
    %1947 = vmatprep.mubr.bf16.mxu0 0
    %1948 = vmatmul.mubr.bf16.gmra.mxu0 %v1705
    %v1949 = vpop.f32.mrf.mxu0
    %v1950 = vadd.f32 0.0, %v1949
    %v1951 = vpop.f32.mrf.mxu0
    %v1952 = vpop.f32.mrf.mxu0
    %v1953 = vadd.f32 0.0, %v1952
    %v1954 = vpop.f32.mrf.mxu0
    %1955 = vmatprep.mubr.bf16.mxu0 0
    %1956 = vmatmul.mubr.bf16.gmra.mxu0 %v1706
    %v1957 = vpop.f32.mrf.mxu0
    %v1958 = vadd.f32 0.0, %v1957
    %v1959 = vpop.f32.mrf.mxu0
    %v1960 = vpop.f32.mrf.mxu0
    %v1961 = vadd.f32 0.0, %v1960
    %v1962 = vpop.f32.mrf.mxu0
    %1963 = vmatprep.mubr.bf16.mxu0 0
    %1964 = vmatmul.mubr.bf16.gmra.mxu0 %v1707
    %v1965 = vpop.f32.mrf.mxu0
    %v1966 = vadd.f32 0.0, %v1965
    %v1967 = vpop.f32.mrf.mxu0
    %v1968 = vpop.f32.mrf.mxu0
    %v1969 = vadd.f32 0.0, %v1968
    %v1970 = vpop.f32.mrf.mxu0
    %1971 = vmatprep.mubr.bf16.mxu0 0
    %1972 = vmatmul.mubr.bf16.gmra.mxu0 %v1708
    %v1973 = vpop.f32.mrf.mxu0
    %v1974 = vadd.f32 0.0, %v1973
    %v1975 = vpop.f32.mrf.mxu0
    %v1976 = vpop.f32.mrf.mxu0
    %v1977 = vadd.f32 0.0, %v1976
    %v1978 = vpop.f32.mrf.mxu0
    %1979 = vmatprep.mubr.bf16.mxu0 0
    %1980 = vmatmul.mubr.bf16.gmra.mxu0 %v1709
    %v1981 = vpop.f32.mrf.mxu0
    %v1982 = vadd.f32 0.0, %v1981
    %v1983 = vpop.f32.mrf.mxu0
    %v1984 = vpop.f32.mrf.mxu0
    %v1985 = vadd.f32 0.0, %v1984
    %v1986 = vpop.f32.mrf.mxu0
    %1987 = vmatprep.mubr.bf16.mxu0 0
    %1988 = vmatmul.mubr.bf16.gmra.mxu0 %v1710
    %v1989 = vpop.f32.mrf.mxu0
    %v1990 = vadd.f32 0.0, %v1989
    %v1991 = vpop.f32.mrf.mxu0
    %v1992 = vpop.f32.mrf.mxu0
    %v1993 = vadd.f32 0.0, %v1992
    %v1994 = vpop.f32.mrf.mxu0
    %1995 = vmatprep.mubr.bf16.mxu0 0
    %1996 = vmatmul.mubr.bf16.gmra.mxu0 %v1711
    %v1997 = vpop.f32.mrf.mxu0
    %v1998 = vadd.f32 0.0, %v1997
    %v1999 = vpop.f32.mrf.mxu0
    %v2000 = vpop.f32.mrf.mxu0
    %v2001 = vadd.f32 0.0, %v2000
    %v2002 = vpop.f32.mrf.mxu0
    %2003 = vmatprep.mubr.bf16.mxu0 0
    %2004 = vmatmul.mubr.bf16.gmra.mxu0 %v1712
    %v2005 = vpop.f32.mrf.mxu0
    %v2006 = vadd.f32 0.0, %v2005
    %v2007 = vpop.f32.mrf.mxu0
    %v2008 = vpop.f32.mrf.mxu0
    %v2009 = vadd.f32 0.0, %v2008
    %v2010 = vpop.f32.mrf.mxu0
    %2011 = vmatprep.mubr.bf16.mxu0 0
    %2012 = vmatmul.mubr.bf16.gmra.mxu0 %v1713
    %v2013 = vpop.f32.mrf.mxu0
    %v2014 = vadd.f32 0.0, %v2013
    %v2015 = vpop.f32.mrf.mxu0
    %v2016 = vpop.f32.mrf.mxu0
    %v2017 = vadd.f32 0.0, %v2016
    %v2018 = vpop.f32.mrf.mxu0
    %2019 = vmatprep.mubr.bf16.mxu0 0
    %2020 = vmatmul.mubr.bf16.gmra.mxu0 %v1714
    %v2021 = vpop.f32.mrf.mxu0
    %v2022 = vadd.f32 0.0, %v2021
    %v2023 = vpop.f32.mrf.mxu0
    %v2024 = vpop.f32.mrf.mxu0
    %v2025 = vadd.f32 0.0, %v2024
    %v2026 = vpop.f32.mrf.mxu0
    %2027 = vdwg.mxu0
    %v2028 = vrcp.pop %v1556
    %v2029 = vrcp.pop %v1558
    %v2030 = vrcp.pop %v1560
    %v2031 = vrcp.pop %v1562
    %v2032 = vrcp.pop %v1564
    %v2033 = vrcp.pop %v1566
    %v2034 = vrcp.pop %v1568
    %v2035 = vrcp.pop %v1570
    %v2036 = vrcp.pop %v1572
    %v2037 = vrcp.pop %v1574
    %v2038 = vrcp.pop %v1576
    %v2039 = vrcp.pop %v1578
    %v2040 = vrcp.pop %v1580
    %v2041 = vrcp.pop %v1582
    %v2042 = vrcp.pop %v1584
    %v2043 = vrcp.pop %v1586
    %v2044 = vrcp.pop %v1588
    %v2045 = vrcp.pop %v1590
    %v2046 = vrcp.pop %v1592
    %v2047 = vrcp.pop %v1594
    %v2048 = vrcp.pop %v1596
    %v2049 = vrcp.pop %v1598
    %v2050 = vrcp.pop %v1600
    %v2051 = vrcp.pop %v1602
    %v2052 = vrcp.pop %v1604
    %v2053 = vrcp.pop %v1606
    %v2054 = vrcp.pop %v1608
    %v2055 = vrcp.pop %v1610
    %v2056 = vrcp.pop %v1612
    %v2057 = vrcp.pop %v1614
    %v2058 = vrcp.pop %v1616
    %v2059 = vrcp.pop %v1618
    %v2060 = vrcp.pop %v1620
    %v2061 = vrcp.pop %v1622
    %v2062 = vrcp.pop %v1624
    %v2063 = vrcp.pop %v1626
    %v2064 = vrcp.pop %v1628
    %v2065 = vrcp.pop %v1630
    %v2066 = vrcp.pop %v1632
    %v2067 = vrcp.pop %v1634
    %v2068 = vrcp.pop %v1636
    %v2069 = vrcp.pop %v1638
    %v2070 = vrcp.pop %v1640
    %v2071 = vrcp.pop %v1642
    %v2072 = vrcp.pop %v1644
    %v2073 = vrcp.pop %v1646
    %v2074 = vrcp.pop %v1648
    %v2075 = vrcp.pop %v1650
    %v2076 = vrcp.pop %v1652
    %v2077 = vrcp.pop %v1654
    %v2078 = vrcp.pop %v1656
    %v2079 = vrcp.pop %v1658
    %v2080 = vrcp.pop %v1660
    %v2081 = vrcp.pop %v1662
    %v2082 = vrcp.pop %v1664
    %v2083 = vrcp.pop %v1666
    %v2084 = vrcp.pop %v1668
    %v2085 = vrcp.pop %v1670
    %v2086 = vrcp.pop %v1672
    %v2087 = vrcp.pop %v1674
    %v2088 = vrcp.pop %v1676
    %v2089 = vrcp.pop %v1678
    %v2090 = vrcp.pop %v1680
    %v2091 = vrcp.pop %v1682
    %v2092 = vmul.f32 %v1774, %v105
    %v2093 = vmul.f32 %v1777, %v106
    %v2094 = vmul.f32 %v1782, %v107
    %v2095 = vmul.f32 %v1785, %v108
    %v2096 = vmul.f32 %v1790, %v109
    %v2097 = vmul.f32 %v1793, %v110
    %v2098 = vmul.f32 %v1798, %v111
    %v2099 = vmul.f32 %v1801, %v112
    %v2100 = vmul.f32 %v1806, %v113
    %v2101 = vmul.f32 %v1809, %v114
    %v2102 = vmul.f32 %v1814, %v115
    %v2103 = vmul.f32 %v1817, %v116
    %v2104 = vmul.f32 %v1822, %v117
    %v2105 = vmul.f32 %v1825, %v118
    %v2106 = vmul.f32 %v1830, %v119
    %v2107 = vmul.f32 %v1833, %v120
    %v2108 = vmul.f32 %v1838, %v121
    %v2109 = vmul.f32 %v1841, %v122
    %v2110 = vmul.f32 %v1846, %v123
    %v2111 = vmul.f32 %v1849, %v124
    %v2112 = vmul.f32 %v1854, %v125
    %v2113 = vmul.f32 %v1857, %v126
    %v2114 = vmul.f32 %v1862, %v127
    %v2115 = vmul.f32 %v1865, %v128
    %v2116 = vmul.f32 %v1870, %v129
    %v2117 = vmul.f32 %v1873, %v130
    %v2118 = vmul.f32 %v1878, %v131
    %v2119 = vmul.f32 %v1881, %v132
    %v2120 = vmul.f32 %v1886, %v133
    %v2121 = vmul.f32 %v1889, %v134
    %v2122 = vmul.f32 %v1894, %v135
    %v2123 = vmul.f32 %v1897, %v136
    %v2124 = vmul.f32 %v1902, %v137
    %v2125 = vmul.f32 %v1905, %v138
    %v2126 = vmul.f32 %v1910, %v139
    %v2127 = vmul.f32 %v1913, %v140
    %v2128 = vmul.f32 %v1918, %v141
    %v2129 = vmul.f32 %v1921, %v142
    %v2130 = vmul.f32 %v1926, %v143
    %v2131 = vmul.f32 %v1929, %v144
    %v2132 = vmul.f32 %v1934, %v145
    %v2133 = vmul.f32 %v1937, %v146
    %v2134 = vmul.f32 %v1942, %v147
    %v2135 = vmul.f32 %v1945, %v148
    %v2136 = vmul.f32 %v1950, %v149
    %v2137 = vmul.f32 %v1953, %v150
    %v2138 = vmul.f32 %v1958, %v151
    %v2139 = vmul.f32 %v1961, %v152
    %v2140 = vmul.f32 %v1966, %v153
    %v2141 = vmul.f32 %v1969, %v154
    %v2142 = vmul.f32 %v1974, %v155
    %v2143 = vmul.f32 %v1977, %v156
    %v2144 = vmul.f32 %v1982, %v157
    %v2145 = vmul.f32 %v1985, %v158
    %v2146 = vmul.f32 %v1990, %v159
    %v2147 = vmul.f32 %v1993, %v160
    %v2148 = vmul.f32 %v1998, %v161
    %v2149 = vmul.f32 %v2001, %v162
    %v2150 = vmul.f32 %v2006, %v163
    %v2151 = vmul.f32 %v2009, %v164
    %v2152 = vmul.f32 %v2014, %v165
    %v2153 = vmul.f32 %v2017, %v166
    %v2154 = vmul.f32 %v2022, %v167
    %v2155 = vmul.f32 %v2025, %v168
    %v2156 = vmul.f32 %v2092, %v2028
    %v2157 = vmul.f32 %v2093, %v2029
    %v2158 = vmul.f32 %v2094, %v2030
    %v2159 = vmul.f32 %v2095, %v2031
    %v2160 = vmul.f32 %v2096, %v2032
    %v2161 = vmul.f32 %v2097, %v2033
    %v2162 = vmul.f32 %v2098, %v2034
    %v2163 = vmul.f32 %v2099, %v2035
    %v2164 = vmul.f32 %v2100, %v2036
    %v2165 = vmul.f32 %v2101, %v2037
    %v2166 = vmul.f32 %v2102, %v2038
    %v2167 = vmul.f32 %v2103, %v2039
    %v2168 = vmul.f32 %v2104, %v2040
    %v2169 = vmul.f32 %v2105, %v2041
    %v2170 = vmul.f32 %v2106, %v2042
    %v2171 = vmul.f32 %v2107, %v2043
    %v2172 = vmul.f32 %v2108, %v2044
    %v2173 = vmul.f32 %v2109, %v2045
    %v2174 = vmul.f32 %v2110, %v2046
    %v2175 = vmul.f32 %v2111, %v2047
    %v2176 = vmul.f32 %v2112, %v2048
    %v2177 = vmul.f32 %v2113, %v2049
    %v2178 = vmul.f32 %v2114, %v2050
    %v2179 = vmul.f32 %v2115, %v2051
    %v2180 = vmul.f32 %v2116, %v2052
    %v2181 = vmul.f32 %v2117, %v2053
    %v2182 = vmul.f32 %v2118, %v2054
    %v2183 = vmul.f32 %v2119, %v2055
    %v2184 = vmul.f32 %v2120, %v2056
    %v2185 = vmul.f32 %v2121, %v2057
    %v2186 = vmul.f32 %v2122, %v2058
    %v2187 = vmul.f32 %v2123, %v2059
    %v2188 = vmul.f32 %v2124, %v2060
    %v2189 = vmul.f32 %v2125, %v2061
    %v2190 = vmul.f32 %v2126, %v2062
    %v2191 = vmul.f32 %v2127, %v2063
    %v2192 = vmul.f32 %v2128, %v2064
    %v2193 = vmul.f32 %v2129, %v2065
    %v2194 = vmul.f32 %v2130, %v2066
    %v2195 = vmul.f32 %v2131, %v2067
    %v2196 = vmul.f32 %v2132, %v2068
    %v2197 = vmul.f32 %v2133, %v2069
    %v2198 = vmul.f32 %v2134, %v2070
    %v2199 = vmul.f32 %v2135, %v2071
    %v2200 = vmul.f32 %v2136, %v2072
    %v2201 = vmul.f32 %v2137, %v2073
    %v2202 = vmul.f32 %v2138, %v2074
    %v2203 = vmul.f32 %v2139, %v2075
    %v2204 = vmul.f32 %v2140, %v2076
    %v2205 = vmul.f32 %v2141, %v2077
    %v2206 = vmul.f32 %v2142, %v2078
    %v2207 = vmul.f32 %v2143, %v2079
    %v2208 = vmul.f32 %v2144, %v2080
    %v2209 = vmul.f32 %v2145, %v2081
    %v2210 = vmul.f32 %v2146, %v2082
    %v2211 = vmul.f32 %v2147, %v2083
    %v2212 = vmul.f32 %v2148, %v2084
    %v2213 = vmul.f32 %v2149, %v2085
    %v2214 = vmul.f32 %v2150, %v2086
    %v2215 = vmul.f32 %v2151, %v2087
    %v2216 = vmul.f32 %v2152, %v2088
    %v2217 = vmul.f32 %v2153, %v2089
    %v2218 = vmul.f32 %v2154, %v2090
    %v2219 = vmul.f32 %v2155, %v2091
    %v2220 = vadd.f32 %v2156, %v2172
    %v2221 = vadd.f32 %v2157, %v2173
    %v2222 = vadd.f32 %v2158, %v2174
    %v2223 = vadd.f32 %v2159, %v2175
    %v2224 = vadd.f32 %v2160, %v2176
    %v2225 = vadd.f32 %v2161, %v2177
    %v2226 = vadd.f32 %v2162, %v2178
    %v2227 = vadd.f32 %v2163, %v2179
    %v2228 = vadd.f32 %v2164, %v2180
    %v2229 = vadd.f32 %v2165, %v2181
    %v2230 = vadd.f32 %v2166, %v2182
    %v2231 = vadd.f32 %v2167, %v2183
    %v2232 = vadd.f32 %v2168, %v2184
    %v2233 = vadd.f32 %v2169, %v2185
    %v2234 = vadd.f32 %v2170, %v2186
    %v2235 = vadd.f32 %v2171, %v2187
    %v2236 = vadd.f32 %v2220, %v2188
    %v2237 = vadd.f32 %v2221, %v2189
    %v2238 = vadd.f32 %v2222, %v2190
    %v2239 = vadd.f32 %v2223, %v2191
    %v2240 = vadd.f32 %v2224, %v2192
    %v2241 = vadd.f32 %v2225, %v2193
    %v2242 = vadd.f32 %v2226, %v2194
    %v2243 = vadd.f32 %v2227, %v2195
    %v2244 = vadd.f32 %v2228, %v2196
    %v2245 = vadd.f32 %v2229, %v2197
    %v2246 = vadd.f32 %v2230, %v2198
    %v2247 = vadd.f32 %v2231, %v2199
    %v2248 = vadd.f32 %v2232, %v2200
    %v2249 = vadd.f32 %v2233, %v2201
    %v2250 = vadd.f32 %v2234, %v2202
    %v2251 = vadd.f32 %v2235, %v2203
    %v2252 = vadd.f32 %v2236, %v2204
    %v2253 = vadd.f32 %v2237, %v2205
    %v2254 = vadd.f32 %v2238, %v2206
    %v2255 = vadd.f32 %v2239, %v2207
    %v2256 = vadd.f32 %v2240, %v2208
    %v2257 = vadd.f32 %v2241, %v2209
    %v2258 = vadd.f32 %v2242, %v2210
    %v2259 = vadd.f32 %v2243, %v2211
    %v2260 = vadd.f32 %v2244, %v2212
    %v2261 = vadd.f32 %v2245, %v2213
    %v2262 = vadd.f32 %v2246, %v2214
    %v2263 = vadd.f32 %v2247, %v2215
    %v2264 = vadd.f32 %v2248, %v2216
    %v2265 = vadd.f32 %v2249, %v2217
    %v2266 = vadd.f32 %v2250, %v2218
    %v2267 = vadd.f32 %v2251, %v2219
    %v2268 = vpack.c.bf16 %v2253, %v2252
    %v2269 = vpack.c.bf16 %v2255, %v2254
    %v2270 = vpack.c.bf16 %v2257, %v2256
    %v2271 = vpack.c.bf16 %v2259, %v2258
    %v2272 = vpack.c.bf16 %v2261, %v2260
    %v2273 = vpack.c.bf16 %v2263, %v2262
    %v2274 = vpack.c.bf16 %v2265, %v2264
    %v2275 = vpack.c.bf16 %v2267, %v2266
    %v2276 = vld [vmem:[%s8] sm:$0xf]
    %v2277 = vld [vmem:[%s8 + $0x4] sm:$0xf]
    %v2278 = vld [vmem:[%s8 + $0x8] sm:$0xf]
    %v2279 = vld [vmem:[%s8 + $0xc] sm:$0xf]
    %v2280 = vld [vmem:[%s9] sm:$0x1]
    %v2282 = vlaneseq
    %v2283 = vshrl.u32 %v2282, 7
    %v2284 = vsub.s32 0, %v2283
    %v2285 = vrot.slane %v2280, %v2284
    %v2291 = vunpack.c.l.b16 %v2276
    %v2292 = vunpack.c.l.b16 %v2277
    %v2293 = vunpack.c.l.b16 %v2278
    %v2294 = vunpack.c.l.b16 %v2279
    %v2295 = vpack.c.b16 %v2292, %v2291
    %v2296 = vpack.c.b16 %v2294, %v2293
    %v2300 = vsel %vm171, %v2268, 0
    %v2303 = vsel %vm171, %v2269, 0
    %v2306 = vsel %vm171, %v2270, 0
    %v2309 = vsel %vm171, %v2271, 0
    %v2312 = vsel %vm171, %v2272, 0
    %v2315 = vsel %vm171, %v2273, 0
    %v2318 = vsel %vm171, %v2274, 0
    %v2321 = vsel %vm171, %v2275, 0
    %2323 = vmatprep.subr.bf16.mxu0 0
    %2324 = vmatpush1.bf16.msra.mxu0 0
    %2325 = vmatprep.subr.bf16.mxu0 0
    %2326 = vmatpush1.bf16.msra.mxu0 0
    %2327 = vmatprep.subr.bf16.mxu0 0
    %2328 = vmatpush1.bf16.msra.mxu0 0
    %2329 = vmatprep.subr.bf16.mxu0 0
    %2330 = vmatpush1.bf16.msra.mxu0 0
    %2331 = vmatprep.subr.bf16.mxu0 0
    %2332 = vmatpush1.bf16.msra.mxu0 0
    %2333 = vmatprep.subr.bf16.mxu0 0
    %2334 = vmatpush1.bf16.msra.mxu0 0
    %2335 = vmatprep.subr.bf16.mxu0 0
    %2336 = vmatpush1.bf16.msra.mxu0 %v2296
    %2337 = vmatprep.subr.bf16.mxu0 0
    %2338 = vmatpush1.bf16.msra.mxu0 %v2295
    %2339 = vmatprep.subr.bf16.mxu0 0
    %2340 = vmatpush2.bf16.msra.mxu0 0
    %2341 = vmatprep.subr.bf16.mxu0 0
    %2342 = vmatpush2.bf16.msra.mxu0 0
    %2343 = vmatprep.subr.bf16.mxu0 0
    %2344 = vmatpush2.bf16.msra.mxu0 0
    %2345 = vmatprep.subr.bf16.mxu0 0
    %2346 = vmatpush2.bf16.msra.mxu0 0
    %2347 = vmatprep.subr.bf16.mxu0 0
    %2348 = vmatpush2.bf16.msra.mxu0 0
    %2349 = vmatprep.subr.bf16.mxu0 0
    %2350 = vmatpush2.bf16.msra.mxu0 0
    %2351 = vmatprep.subr.bf16.mxu0 0
    %2352 = vmatpush2.bf16.msra.mxu0 0
    %2353 = vmatprep.subr.bf16.mxu0 0
    %2354 = vmatpush2.bf16.msra.mxu0 0
    %2355 = vmatprep.mubr.bf16.mxu0 0
    %2356 = vmatmul.mubr.bf16.gmra.mxu0 %v2300
    %v2357 = vpop.f32.mrf.mxu0
    %v2358 = vadd.f32 %v2285, %v2357
    %v2359 = vpop.f32.mrf.mxu0
    %v2360 = vpop.f32.mrf.mxu0
    %v2361 = vadd.f32 %v2285, %v2360
    %v2362 = vpop.f32.mrf.mxu0
    %2363 = vmatprep.mubr.bf16.mxu0 0
    %2364 = vmatmul.mubr.bf16.gmra.mxu0 %v2303
    %v2365 = vpop.f32.mrf.mxu0
    %v2366 = vadd.f32 %v2285, %v2365
    %v2367 = vpop.f32.mrf.mxu0
    %v2368 = vpop.f32.mrf.mxu0
    %v2369 = vadd.f32 %v2285, %v2368
    %v2370 = vpop.f32.mrf.mxu0
    %2371 = vmatprep.mubr.bf16.mxu0 0
    %2372 = vmatmul.mubr.bf16.gmra.mxu0 %v2306
    %v2373 = vpop.f32.mrf.mxu0
    %v2374 = vadd.f32 %v2285, %v2373
    %v2375 = vpop.f32.mrf.mxu0
    %v2376 = vpop.f32.mrf.mxu0
    %v2377 = vadd.f32 %v2285, %v2376
    %v2378 = vpop.f32.mrf.mxu0
    %2379 = vmatprep.mubr.bf16.mxu0 0
    %2380 = vmatmul.mubr.bf16.gmra.mxu0 %v2309
    %v2381 = vpop.f32.mrf.mxu0
    %v2382 = vadd.f32 %v2285, %v2381
    %v2383 = vpop.f32.mrf.mxu0
    %v2384 = vpop.f32.mrf.mxu0
    %v2385 = vadd.f32 %v2285, %v2384
    %v2386 = vpop.f32.mrf.mxu0
    %2387 = vmatprep.mubr.bf16.mxu0 0
    %2388 = vmatmul.mubr.bf16.gmra.mxu0 %v2312
    %v2389 = vpop.f32.mrf.mxu0
    %v2390 = vadd.f32 %v2285, %v2389
    %v2391 = vpop.f32.mrf.mxu0
    %v2392 = vpop.f32.mrf.mxu0
    %v2393 = vadd.f32 %v2285, %v2392
    %v2394 = vpop.f32.mrf.mxu0
    %2395 = vmatprep.mubr.bf16.mxu0 0
    %2396 = vmatmul.mubr.bf16.gmra.mxu0 %v2315
    %v2397 = vpop.f32.mrf.mxu0
    %v2398 = vadd.f32 %v2285, %v2397
    %v2399 = vpop.f32.mrf.mxu0
    %v2400 = vpop.f32.mrf.mxu0
    %v2401 = vadd.f32 %v2285, %v2400
    %v2402 = vpop.f32.mrf.mxu0
    %2403 = vmatprep.mubr.bf16.mxu0 0
    %2404 = vmatmul.mubr.bf16.gmra.mxu0 %v2318
    %v2405 = vpop.f32.mrf.mxu0
    %v2406 = vadd.f32 %v2285, %v2405
    %v2407 = vpop.f32.mrf.mxu0
    %v2408 = vpop.f32.mrf.mxu0
    %v2409 = vadd.f32 %v2285, %v2408
    %v2410 = vpop.f32.mrf.mxu0
    %2411 = vmatprep.mubr.bf16.mxu0 0
    %2412 = vmatmul.mubr.bf16.gmra.mxu0 %v2321
    %v2413 = vpop.f32.mrf.mxu0
    %v2414 = vadd.f32 %v2285, %v2413
    %v2415 = vpop.f32.mrf.mxu0
    %v2416 = vpop.f32.mrf.mxu0
    %v2417 = vadd.f32 %v2285, %v2416
    %v2418 = vpop.f32.mrf.mxu0
    %2419 = vdwg.mxu0
    %v2420 = vadd.f32 %v89, %v2358
    %v2421 = vadd.f32 %v90, %v2361
    %v2422 = vadd.f32 %v91, %v2366
    %v2423 = vadd.f32 %v92, %v2369
    %v2424 = vadd.f32 %v93, %v2374
    %v2425 = vadd.f32 %v94, %v2377
    %v2426 = vadd.f32 %v95, %v2382
    %v2427 = vadd.f32 %v96, %v2385
    %v2428 = vadd.f32 %v97, %v2390
    %v2429 = vadd.f32 %v98, %v2393
    %v2430 = vadd.f32 %v99, %v2398
    %v2431 = vadd.f32 %v100, %v2401
    %v2432 = vadd.f32 %v101, %v2406
    %v2433 = vadd.f32 %v102, %v2409
    %v2434 = vadd.f32 %v103, %v2414
    %v2435 = vadd.f32 %v104, %v2417
    %v2436 = vld [vmem:[%s5] sm:$0x1]
    %v2437 = vld [vmem:[%s6] sm:$0x1]
    %v2438 = vsel %vm171, %v2420, 0.0
    %2439 = vadd.xlane.f32.xlu0 %v2438
    %v2440 = vpop.xlane.xlu0 %2439
    %v2441 = vsel %vm171, %v2421, 0.0
    %2442 = vadd.xlane.f32.xlu0 %v2441
    %v2443 = vpop.xlane.xlu0 %2442
    %v2444 = vsel %vm171, %v2422, 0.0
    %2445 = vadd.xlane.f32.xlu0 %v2444
    %v2446 = vpop.xlane.xlu0 %2445
    %v2447 = vsel %vm171, %v2423, 0.0
    %2448 = vadd.xlane.f32.xlu0 %v2447
    %v2449 = vpop.xlane.xlu0 %2448
    %v2450 = vsel %vm171, %v2424, 0.0
    %2451 = vadd.xlane.f32.xlu0 %v2450
    %v2452 = vpop.xlane.xlu0 %2451
    %v2453 = vsel %vm171, %v2425, 0.0
    %2454 = vadd.xlane.f32.xlu0 %v2453
    %v2455 = vpop.xlane.xlu0 %2454
    %v2456 = vsel %vm171, %v2426, 0.0
    %2457 = vadd.xlane.f32.xlu0 %v2456
    %v2458 = vpop.xlane.xlu0 %2457
    %v2459 = vsel %vm171, %v2427, 0.0
    %2460 = vadd.xlane.f32.xlu0 %v2459
    %v2461 = vpop.xlane.xlu0 %2460
    %v2462 = vsel %vm171, %v2428, 0.0
    %2463 = vadd.xlane.f32.xlu0 %v2462
    %v2464 = vpop.xlane.xlu0 %2463
    %v2465 = vsel %vm171, %v2429, 0.0
    %2466 = vadd.xlane.f32.xlu0 %v2465
    %v2467 = vpop.xlane.xlu0 %2466
    %v2468 = vsel %vm171, %v2430, 0.0
    %2469 = vadd.xlane.f32.xlu0 %v2468
    %v2470 = vpop.xlane.xlu0 %2469
    %v2471 = vsel %vm171, %v2431, 0.0
    %2472 = vadd.xlane.f32.xlu0 %v2471
    %v2473 = vpop.xlane.xlu0 %2472
    %v2474 = vsel %vm171, %v2432, 0.0
    %2475 = vadd.xlane.f32.xlu0 %v2474
    %v2476 = vpop.xlane.xlu0 %2475
    %v2477 = vsel %vm171, %v2433, 0.0
    %2478 = vadd.xlane.f32.xlu0 %v2477
    %v2479 = vpop.xlane.xlu0 %2478
    %v2480 = vsel %vm171, %v2434, 0.0
    %2481 = vadd.xlane.f32.xlu0 %v2480
    %v2482 = vpop.xlane.xlu0 %2481
    %v2483 = vsel %vm171, %v2435, 0.0
    %2484 = vadd.xlane.f32.xlu0 %v2483
    %v2485 = vpop.xlane.xlu0 %2484
    %v2486 = vmul.f32 %v2440, %v220
    %v2487 = vmul.f32 %v2443, %v220
    %v2488 = vmul.f32 %v2446, %v220
    %v2489 = vmul.f32 %v2449, %v220
    %v2490 = vmul.f32 %v2452, %v220
    %v2491 = vmul.f32 %v2455, %v220
    %v2492 = vmul.f32 %v2458, %v220
    %v2493 = vmul.f32 %v2461, %v220
    %v2494 = vmul.f32 %v2464, %v220
    %v2495 = vmul.f32 %v2467, %v220
    %v2496 = vmul.f32 %v2470, %v220
    %v2497 = vmul.f32 %v2473, %v220
    %v2498 = vmul.f32 %v2476, %v220
    %v2499 = vmul.f32 %v2479, %v220
    %v2500 = vmul.f32 %v2482, %v220
    %v2501 = vmul.f32 %v2485, %v220
    %v2502 = vsub.f32 %v2420, %v2486
    %v2503 = vsub.f32 %v2421, %v2487
    %v2504 = vsub.f32 %v2422, %v2488
    %v2505 = vsub.f32 %v2423, %v2489
    %v2506 = vsub.f32 %v2424, %v2490
    %v2507 = vsub.f32 %v2425, %v2491
    %v2508 = vsub.f32 %v2426, %v2492
    %v2509 = vsub.f32 %v2427, %v2493
    %v2510 = vsub.f32 %v2428, %v2494
    %v2511 = vsub.f32 %v2429, %v2495
    %v2512 = vsub.f32 %v2430, %v2496
    %v2513 = vsub.f32 %v2431, %v2497
    %v2514 = vsub.f32 %v2432, %v2498
    %v2515 = vsub.f32 %v2433, %v2499
    %v2516 = vsub.f32 %v2434, %v2500
    %v2517 = vsub.f32 %v2435, %v2501
    %v2518 = vmul.f32 %v2502, %v2502
    %v2519 = vmul.f32 %v2503, %v2503
    %v2520 = vmul.f32 %v2504, %v2504
    %v2521 = vmul.f32 %v2505, %v2505
    %v2522 = vmul.f32 %v2506, %v2506
    %v2523 = vmul.f32 %v2507, %v2507
    %v2524 = vmul.f32 %v2508, %v2508
    %v2525 = vmul.f32 %v2509, %v2509
    %v2526 = vmul.f32 %v2510, %v2510
    %v2527 = vmul.f32 %v2511, %v2511
    %v2528 = vmul.f32 %v2512, %v2512
    %v2529 = vmul.f32 %v2513, %v2513
    %v2530 = vmul.f32 %v2514, %v2514
    %v2531 = vmul.f32 %v2515, %v2515
    %v2532 = vmul.f32 %v2516, %v2516
    %v2533 = vmul.f32 %v2517, %v2517
    %v2534 = vsel %vm171, %v2518, 0.0
    %2535 = vadd.xlane.f32.xlu0 %v2534
    %v2536 = vpop.xlane.xlu0 %2535
    %v2537 = vsel %vm171, %v2519, 0.0
    %2538 = vadd.xlane.f32.xlu0 %v2537
    %v2539 = vpop.xlane.xlu0 %2538
    %v2540 = vsel %vm171, %v2520, 0.0
    %2541 = vadd.xlane.f32.xlu0 %v2540
    %v2542 = vpop.xlane.xlu0 %2541
    %v2543 = vsel %vm171, %v2521, 0.0
    %2544 = vadd.xlane.f32.xlu0 %v2543
    %v2545 = vpop.xlane.xlu0 %2544
    %v2546 = vsel %vm171, %v2522, 0.0
    %2547 = vadd.xlane.f32.xlu0 %v2546
    %v2548 = vpop.xlane.xlu0 %2547
    %v2549 = vsel %vm171, %v2523, 0.0
    %2550 = vadd.xlane.f32.xlu0 %v2549
    %v2551 = vpop.xlane.xlu0 %2550
    %v2552 = vsel %vm171, %v2524, 0.0
    %2553 = vadd.xlane.f32.xlu0 %v2552
    %v2554 = vpop.xlane.xlu0 %2553
    %v2555 = vsel %vm171, %v2525, 0.0
    %2556 = vadd.xlane.f32.xlu0 %v2555
    %v2557 = vpop.xlane.xlu0 %2556
    %v2558 = vsel %vm171, %v2526, 0.0
    %2559 = vadd.xlane.f32.xlu0 %v2558
    %v2560 = vpop.xlane.xlu0 %2559
    %v2561 = vsel %vm171, %v2527, 0.0
    %2562 = vadd.xlane.f32.xlu0 %v2561
    %v2563 = vpop.xlane.xlu0 %2562
    %v2564 = vsel %vm171, %v2528, 0.0
    %2565 = vadd.xlane.f32.xlu0 %v2564
    %v2566 = vpop.xlane.xlu0 %2565
    %v2567 = vsel %vm171, %v2529, 0.0
    %2568 = vadd.xlane.f32.xlu0 %v2567
    %v2569 = vpop.xlane.xlu0 %2568
    %v2570 = vsel %vm171, %v2530, 0.0
    %2571 = vadd.xlane.f32.xlu0 %v2570
    %v2572 = vpop.xlane.xlu0 %2571
    %v2573 = vsel %vm171, %v2531, 0.0
    %2574 = vadd.xlane.f32.xlu0 %v2573
    %v2575 = vpop.xlane.xlu0 %2574
    %v2576 = vsel %vm171, %v2532, 0.0
    %2577 = vadd.xlane.f32.xlu0 %v2576
    %v2578 = vpop.xlane.xlu0 %2577
    %v2579 = vsel %vm171, %v2533, 0.0
    %2580 = vadd.xlane.f32.xlu0 %v2579
    %v2581 = vpop.xlane.xlu0 %2580
    %v2582 = vmul.f32 %v2536, %v220
    %v2583 = vmul.f32 %v2539, %v220
    %v2584 = vmul.f32 %v2542, %v220
    %v2585 = vmul.f32 %v2545, %v220
    %v2586 = vmul.f32 %v2548, %v220
    %v2587 = vmul.f32 %v2551, %v220
    %v2588 = vmul.f32 %v2554, %v220
    %v2589 = vmul.f32 %v2557, %v220
    %v2590 = vmul.f32 %v2560, %v220
    %v2591 = vmul.f32 %v2563, %v220
    %v2592 = vmul.f32 %v2566, %v220
    %v2593 = vmul.f32 %v2569, %v220
    %v2594 = vmul.f32 %v2572, %v220
    %v2595 = vmul.f32 %v2575, %v220
    %v2596 = vmul.f32 %v2578, %v220
    %v2597 = vmul.f32 %v2581, %v220
    %v2598 = vadd.f32 %v2582, 1e-05
    %v2599 = vadd.f32 %v2583, 1e-05
    %v2600 = vadd.f32 %v2584, 1e-05
    %v2601 = vadd.f32 %v2585, 1e-05
    %v2602 = vadd.f32 %v2586, 1e-05
    %v2603 = vadd.f32 %v2587, 1e-05
    %v2604 = vadd.f32 %v2588, 1e-05
    %v2605 = vadd.f32 %v2589, 1e-05
    %v2606 = vadd.f32 %v2590, 1e-05
    %v2607 = vadd.f32 %v2591, 1e-05
    %v2608 = vadd.f32 %v2592, 1e-05
    %v2609 = vadd.f32 %v2593, 1e-05
    %v2610 = vadd.f32 %v2594, 1e-05
    %v2611 = vadd.f32 %v2595, 1e-05
    %v2612 = vadd.f32 %v2596, 1e-05
    %v2613 = vadd.f32 %v2597, 1e-05
    %v2614 = vrsqrt.pop %v2598
    %v2615 = vrsqrt.pop %v2599
    %v2616 = vrsqrt.pop %v2600
    %v2617 = vrsqrt.pop %v2601
    %v2618 = vrsqrt.pop %v2602
    %v2619 = vrsqrt.pop %v2603
    %v2620 = vrsqrt.pop %v2604
    %v2621 = vrsqrt.pop %v2605
    %v2622 = vrsqrt.pop %v2606
    %v2623 = vrsqrt.pop %v2607
    %v2624 = vrsqrt.pop %v2608
    %v2625 = vrsqrt.pop %v2609
    %v2626 = vrsqrt.pop %v2610
    %v2627 = vrsqrt.pop %v2611
    %v2628 = vrsqrt.pop %v2612
    %v2629 = vrsqrt.pop %v2613
    %v2630 = vmul.f32 %v2502, %v2614
    %v2631 = vmul.f32 %v2503, %v2615
    %v2632 = vmul.f32 %v2504, %v2616
    %v2633 = vmul.f32 %v2505, %v2617
    %v2634 = vmul.f32 %v2506, %v2618
    %v2635 = vmul.f32 %v2507, %v2619
    %v2636 = vmul.f32 %v2508, %v2620
    %v2637 = vmul.f32 %v2509, %v2621
    %v2638 = vmul.f32 %v2510, %v2622
    %v2639 = vmul.f32 %v2511, %v2623
    %v2640 = vmul.f32 %v2512, %v2624
    %v2641 = vmul.f32 %v2513, %v2625
    %v2642 = vmul.f32 %v2514, %v2626
    %v2643 = vmul.f32 %v2515, %v2627
    %v2644 = vmul.f32 %v2516, %v2628
    %v2645 = vmul.f32 %v2517, %v2629
    %v2647 = vlaneseq
    %v2648 = vshrl.u32 %v2647, 7
    %v2649 = vsub.s32 0, %v2648
    %v2650 = vrot.slane %v2436, %v2649
    %v2652 = vmul.f32 %v2630, %v2650
    %v2653 = vmul.f32 %v2631, %v2650
    %v2654 = vmul.f32 %v2632, %v2650
    %v2655 = vmul.f32 %v2633, %v2650
    %v2656 = vmul.f32 %v2634, %v2650
    %v2657 = vmul.f32 %v2635, %v2650
    %v2658 = vmul.f32 %v2636, %v2650
    %v2659 = vmul.f32 %v2637, %v2650
    %v2660 = vmul.f32 %v2638, %v2650
    %v2661 = vmul.f32 %v2639, %v2650
    %v2662 = vmul.f32 %v2640, %v2650
    %v2663 = vmul.f32 %v2641, %v2650
    %v2664 = vmul.f32 %v2642, %v2650
    %v2665 = vmul.f32 %v2643, %v2650
    %v2666 = vmul.f32 %v2644, %v2650
    %v2667 = vmul.f32 %v2645, %v2650
    %v2669 = vlaneseq
    %v2670 = vshrl.u32 %v2669, 7
    %v2671 = vsub.s32 0, %v2670
    %v2672 = vrot.slane %v2437, %v2671
    %v2674 = vadd.f32 %v2652, %v2672
    %v2675 = vadd.f32 %v2653, %v2672
    %v2676 = vadd.f32 %v2654, %v2672
    %v2677 = vadd.f32 %v2655, %v2672
    %v2678 = vadd.f32 %v2656, %v2672
    %v2679 = vadd.f32 %v2657, %v2672
    %v2680 = vadd.f32 %v2658, %v2672
    %v2681 = vadd.f32 %v2659, %v2672
    %v2682 = vadd.f32 %v2660, %v2672
    %v2683 = vadd.f32 %v2661, %v2672
    %v2684 = vadd.f32 %v2662, %v2672
    %v2685 = vadd.f32 %v2663, %v2672
    %v2686 = vadd.f32 %v2664, %v2672
    %v2687 = vadd.f32 %v2665, %v2672
    %v2688 = vadd.f32 %v2666, %v2672
    %v2689 = vadd.f32 %v2667, %v2672
    %v2690 = vpack.c.bf16 %v2675, %v2674
    %v2691 = vpack.c.bf16 %v2677, %v2676
    %v2692 = vpack.c.bf16 %v2679, %v2678
    %v2693 = vpack.c.bf16 %v2681, %v2680
    %v2694 = vpack.c.bf16 %v2683, %v2682
    %v2695 = vpack.c.bf16 %v2685, %v2684
    %v2696 = vpack.c.bf16 %v2687, %v2686
    %v2697 = vpack.c.bf16 %v2689, %v2688
    %v2698 = vld [vmem:[%s10] sm:$0xf]
    %v2699 = vld [vmem:[%s10 + $0x4] sm:$0xf]
    %v2700 = vld [vmem:[%s10 + $0x8] sm:$0xf]
    %v2701 = vld [vmem:[%s10 + $0xc] sm:$0xf]
    %v2702 = vld [vmem:[%s11] sm:$0x1]
    %v2704 = vlaneseq
    %v2705 = vshrl.u32 %v2704, 7
    %v2706 = vsub.s32 0, %v2705
    %v2707 = vrot.slane %v2702, %v2706
    %v2713 = vunpack.c.l.b16 %v2698
    %v2714 = vunpack.c.l.b16 %v2699
    %v2715 = vunpack.c.l.b16 %v2700
    %v2716 = vunpack.c.l.b16 %v2701
    %v2717 = vpack.c.b16 %v2714, %v2713
    %v2718 = vpack.c.b16 %v2716, %v2715
    %v2722 = vsel %vm171, %v2690, 0
    %v2725 = vsel %vm171, %v2691, 0
    %v2728 = vsel %vm171, %v2692, 0
    %v2731 = vsel %vm171, %v2693, 0
    %v2734 = vsel %vm171, %v2694, 0
    %v2737 = vsel %vm171, %v2695, 0
    %v2740 = vsel %vm171, %v2696, 0
    %v2743 = vsel %vm171, %v2697, 0
    %2745 = vmatprep.subr.bf16.mxu0 0
    %2746 = vmatpush1.bf16.msra.mxu0 0
    %2747 = vmatprep.subr.bf16.mxu0 0
    %2748 = vmatpush1.bf16.msra.mxu0 0
    %2749 = vmatprep.subr.bf16.mxu0 0
    %2750 = vmatpush1.bf16.msra.mxu0 0
    %2751 = vmatprep.subr.bf16.mxu0 0
    %2752 = vmatpush1.bf16.msra.mxu0 0
    %2753 = vmatprep.subr.bf16.mxu0 0
    %2754 = vmatpush1.bf16.msra.mxu0 0
    %2755 = vmatprep.subr.bf16.mxu0 0
    %2756 = vmatpush1.bf16.msra.mxu0 0
    %2757 = vmatprep.subr.bf16.mxu0 0
    %2758 = vmatpush1.bf16.msra.mxu0 %v2718
    %2759 = vmatprep.subr.bf16.mxu0 0
    %2760 = vmatpush1.bf16.msra.mxu0 %v2717
    %2761 = vmatprep.subr.bf16.mxu0 0
    %2762 = vmatpush2.bf16.msra.mxu0 0
    %2763 = vmatprep.subr.bf16.mxu0 0
    %2764 = vmatpush2.bf16.msra.mxu0 0
    %2765 = vmatprep.subr.bf16.mxu0 0
    %2766 = vmatpush2.bf16.msra.mxu0 0
    %2767 = vmatprep.subr.bf16.mxu0 0
    %2768 = vmatpush2.bf16.msra.mxu0 0
    %2769 = vmatprep.subr.bf16.mxu0 0
    %2770 = vmatpush2.bf16.msra.mxu0 0
    %2771 = vmatprep.subr.bf16.mxu0 0
    %2772 = vmatpush2.bf16.msra.mxu0 0
    %2773 = vmatprep.subr.bf16.mxu0 0
    %2774 = vmatpush2.bf16.msra.mxu0 0
    %2775 = vmatprep.subr.bf16.mxu0 0
    %2776 = vmatpush2.bf16.msra.mxu0 0
    %2777 = vmatprep.mubr.bf16.mxu0 0
    %2778 = vmatmul.mubr.bf16.gmra.mxu0 %v2722
    %v2779 = vpop.f32.mrf.mxu0
    %v2780 = vadd.f32 %v2707, %v2779
    %v2781 = vpop.f32.mrf.mxu0
    %v2782 = vpop.f32.mrf.mxu0
    %v2783 = vadd.f32 %v2707, %v2782
    %v2784 = vpop.f32.mrf.mxu0
    %2785 = vmatprep.mubr.bf16.mxu0 0
    %2786 = vmatmul.mubr.bf16.gmra.mxu0 %v2725
    %v2787 = vpop.f32.mrf.mxu0
    %v2788 = vadd.f32 %v2707, %v2787
    %v2789 = vpop.f32.mrf.mxu0
    %v2790 = vpop.f32.mrf.mxu0
    %v2791 = vadd.f32 %v2707, %v2790
    %v2792 = vpop.f32.mrf.mxu0
    %2793 = vmatprep.mubr.bf16.mxu0 0
    %2794 = vmatmul.mubr.bf16.gmra.mxu0 %v2728
    %v2795 = vpop.f32.mrf.mxu0
    %v2796 = vadd.f32 %v2707, %v2795
    %v2797 = vpop.f32.mrf.mxu0
    %v2798 = vpop.f32.mrf.mxu0
    %v2799 = vadd.f32 %v2707, %v2798
    %v2800 = vpop.f32.mrf.mxu0
    %2801 = vmatprep.mubr.bf16.mxu0 0
    %2802 = vmatmul.mubr.bf16.gmra.mxu0 %v2731
    %v2803 = vpop.f32.mrf.mxu0
    %v2804 = vadd.f32 %v2707, %v2803
    %v2805 = vpop.f32.mrf.mxu0
    %v2806 = vpop.f32.mrf.mxu0
    %v2807 = vadd.f32 %v2707, %v2806
    %v2808 = vpop.f32.mrf.mxu0
    %2809 = vmatprep.mubr.bf16.mxu0 0
    %2810 = vmatmul.mubr.bf16.gmra.mxu0 %v2734
    %v2811 = vpop.f32.mrf.mxu0
    %v2812 = vadd.f32 %v2707, %v2811
    %v2813 = vpop.f32.mrf.mxu0
    %v2814 = vpop.f32.mrf.mxu0
    %v2815 = vadd.f32 %v2707, %v2814
    %v2816 = vpop.f32.mrf.mxu0
    %2817 = vmatprep.mubr.bf16.mxu0 0
    %2818 = vmatmul.mubr.bf16.gmra.mxu0 %v2737
    %v2819 = vpop.f32.mrf.mxu0
    %v2820 = vadd.f32 %v2707, %v2819
    %v2821 = vpop.f32.mrf.mxu0
    %v2822 = vpop.f32.mrf.mxu0
    %v2823 = vadd.f32 %v2707, %v2822
    %v2824 = vpop.f32.mrf.mxu0
    %2825 = vmatprep.mubr.bf16.mxu0 0
    %2826 = vmatmul.mubr.bf16.gmra.mxu0 %v2740
    %v2827 = vpop.f32.mrf.mxu0
    %v2828 = vadd.f32 %v2707, %v2827
    %v2829 = vpop.f32.mrf.mxu0
    %v2830 = vpop.f32.mrf.mxu0
    %v2831 = vadd.f32 %v2707, %v2830
    %v2832 = vpop.f32.mrf.mxu0
    %2833 = vmatprep.mubr.bf16.mxu0 0
    %2834 = vmatmul.mubr.bf16.gmra.mxu0 %v2743
    %v2835 = vpop.f32.mrf.mxu0
    %v2836 = vadd.f32 %v2707, %v2835
    %v2837 = vpop.f32.mrf.mxu0
    %v2838 = vpop.f32.mrf.mxu0
    %v2839 = vadd.f32 %v2707, %v2838
    %v2840 = vpop.f32.mrf.mxu0
    %2841 = vdwg.mxu0
    %v2842 = vmul.f32 %v2780, 0.5
    %v2843 = vmul.f32 %v2783, 0.5
    %v2844 = vmul.f32 %v2788, 0.5
    %v2845 = vmul.f32 %v2791, 0.5
    %v2846 = vmul.f32 %v2796, 0.5
    %v2847 = vmul.f32 %v2799, 0.5
    %v2848 = vmul.f32 %v2804, 0.5
    %v2849 = vmul.f32 %v2807, 0.5
    %v2850 = vmul.f32 %v2812, 0.5
    %v2851 = vmul.f32 %v2815, 0.5
    %v2852 = vmul.f32 %v2820, 0.5
    %v2853 = vmul.f32 %v2823, 0.5
    %v2854 = vmul.f32 %v2828, 0.5
    %v2855 = vmul.f32 %v2831, 0.5
    %v2856 = vmul.f32 %v2836, 0.5
    %v2857 = vmul.f32 %v2839, 0.5
    %v2858 = vmul.f32 %v2780, 0.044715
    %v2859 = vmul.f32 %v2783, 0.044715
    %v2860 = vmul.f32 %v2788, 0.044715
    %v2861 = vmul.f32 %v2791, 0.044715
    %v2862 = vmul.f32 %v2796, 0.044715
    %v2863 = vmul.f32 %v2799, 0.044715
    %v2864 = vmul.f32 %v2804, 0.044715
    %v2865 = vmul.f32 %v2807, 0.044715
    %v2866 = vmul.f32 %v2812, 0.044715
    %v2867 = vmul.f32 %v2815, 0.044715
    %v2868 = vmul.f32 %v2820, 0.044715
    %v2869 = vmul.f32 %v2823, 0.044715
    %v2870 = vmul.f32 %v2828, 0.044715
    %v2871 = vmul.f32 %v2831, 0.044715
    %v2872 = vmul.f32 %v2836, 0.044715
    %v2873 = vmul.f32 %v2839, 0.044715
    %v2874 = vmul.f32 %v2858, %v2780
    %v2875 = vmul.f32 %v2859, %v2783
    %v2876 = vmul.f32 %v2860, %v2788
    %v2877 = vmul.f32 %v2861, %v2791
    %v2878 = vmul.f32 %v2862, %v2796
    %v2879 = vmul.f32 %v2863, %v2799
    %v2880 = vmul.f32 %v2864, %v2804
    %v2881 = vmul.f32 %v2865, %v2807
    %v2882 = vmul.f32 %v2866, %v2812
    %v2883 = vmul.f32 %v2867, %v2815
    %v2884 = vmul.f32 %v2868, %v2820
    %v2885 = vmul.f32 %v2869, %v2823
    %v2886 = vmul.f32 %v2870, %v2828
    %v2887 = vmul.f32 %v2871, %v2831
    %v2888 = vmul.f32 %v2872, %v2836
    %v2889 = vmul.f32 %v2873, %v2839
    %v2890 = vmul.f32 %v2874, %v2780
    %v2891 = vmul.f32 %v2875, %v2783
    %v2892 = vmul.f32 %v2876, %v2788
    %v2893 = vmul.f32 %v2877, %v2791
    %v2894 = vmul.f32 %v2878, %v2796
    %v2895 = vmul.f32 %v2879, %v2799
    %v2896 = vmul.f32 %v2880, %v2804
    %v2897 = vmul.f32 %v2881, %v2807
    %v2898 = vmul.f32 %v2882, %v2812
    %v2899 = vmul.f32 %v2883, %v2815
    %v2900 = vmul.f32 %v2884, %v2820
    %v2901 = vmul.f32 %v2885, %v2823
    %v2902 = vmul.f32 %v2886, %v2828
    %v2903 = vmul.f32 %v2887, %v2831
    %v2904 = vmul.f32 %v2888, %v2836
    %v2905 = vmul.f32 %v2889, %v2839
    %v2906 = vadd.f32 %v2780, %v2890
    %v2907 = vadd.f32 %v2783, %v2891
    %v2908 = vadd.f32 %v2788, %v2892
    %v2909 = vadd.f32 %v2791, %v2893
    %v2910 = vadd.f32 %v2796, %v2894
    %v2911 = vadd.f32 %v2799, %v2895
    %v2912 = vadd.f32 %v2804, %v2896
    %v2913 = vadd.f32 %v2807, %v2897
    %v2914 = vadd.f32 %v2812, %v2898
    %v2915 = vadd.f32 %v2815, %v2899
    %v2916 = vadd.f32 %v2820, %v2900
    %v2917 = vadd.f32 %v2823, %v2901
    %v2918 = vadd.f32 %v2828, %v2902
    %v2919 = vadd.f32 %v2831, %v2903
    %v2920 = vadd.f32 %v2836, %v2904
    %v2921 = vadd.f32 %v2839, %v2905
    %v2922 = vmul.f32 %v2906, 0.7978846
    %v2923 = vmul.f32 %v2907, 0.7978846
    %v2924 = vmul.f32 %v2908, 0.7978846
    %v2925 = vmul.f32 %v2909, 0.7978846
    %v2926 = vmul.f32 %v2910, 0.7978846
    %v2927 = vmul.f32 %v2911, 0.7978846
    %v2928 = vmul.f32 %v2912, 0.7978846
    %v2929 = vmul.f32 %v2913, 0.7978846
    %v2930 = vmul.f32 %v2914, 0.7978846
    %v2931 = vmul.f32 %v2915, 0.7978846
    %v2932 = vmul.f32 %v2916, 0.7978846
    %v2933 = vmul.f32 %v2917, 0.7978846
    %v2934 = vmul.f32 %v2918, 0.7978846
    %v2935 = vmul.f32 %v2919, 0.7978846
    %v2936 = vmul.f32 %v2920, 0.7978846
    %v2937 = vmul.f32 %v2921, 0.7978846
    %v2938 = vtanh.pop %v2922
    %v2939 = vtanh.pop %v2923
    %v2940 = vtanh.pop %v2924
    %v2941 = vtanh.pop %v2925
    %v2942 = vtanh.pop %v2926
    %v2943 = vtanh.pop %v2927
    %v2944 = vtanh.pop %v2928
    %v2945 = vtanh.pop %v2929
    %v2946 = vtanh.pop %v2930
    %v2947 = vtanh.pop %v2931
    %v2948 = vtanh.pop %v2932
    %v2949 = vtanh.pop %v2933
    %v2950 = vtanh.pop %v2934
    %v2951 = vtanh.pop %v2935
    %v2952 = vtanh.pop %v2936
    %v2953 = vtanh.pop %v2937
    %v2954 = vadd.f32 %v2938, 1.0
    %v2955 = vadd.f32 %v2939, 1.0
    %v2956 = vadd.f32 %v2940, 1.0
    %v2957 = vadd.f32 %v2941, 1.0
    %v2958 = vadd.f32 %v2942, 1.0
    %v2959 = vadd.f32 %v2943, 1.0
    %v2960 = vadd.f32 %v2944, 1.0
    %v2961 = vadd.f32 %v2945, 1.0
    %v2962 = vadd.f32 %v2946, 1.0
    %v2963 = vadd.f32 %v2947, 1.0
    %v2964 = vadd.f32 %v2948, 1.0
    %v2965 = vadd.f32 %v2949, 1.0
    %v2966 = vadd.f32 %v2950, 1.0
    %v2967 = vadd.f32 %v2951, 1.0
    %v2968 = vadd.f32 %v2952, 1.0
    %v2969 = vadd.f32 %v2953, 1.0
    %v2970 = vmul.f32 %v2842, %v2954
    %v2971 = vmul.f32 %v2843, %v2955
    %v2972 = vmul.f32 %v2844, %v2956
    %v2973 = vmul.f32 %v2845, %v2957
    %v2974 = vmul.f32 %v2846, %v2958
    %v2975 = vmul.f32 %v2847, %v2959
    %v2976 = vmul.f32 %v2848, %v2960
    %v2977 = vmul.f32 %v2849, %v2961
    %v2978 = vmul.f32 %v2850, %v2962
    %v2979 = vmul.f32 %v2851, %v2963
    %v2980 = vmul.f32 %v2852, %v2964
    %v2981 = vmul.f32 %v2853, %v2965
    %v2982 = vmul.f32 %v2854, %v2966
    %v2983 = vmul.f32 %v2855, %v2967
    %v2984 = vmul.f32 %v2856, %v2968
    %v2985 = vmul.f32 %v2857, %v2969
    %v2986 = vpack.c.bf16 %v2971, %v2970
    %v2987 = vpack.c.bf16 %v2973, %v2972
    %v2988 = vpack.c.bf16 %v2975, %v2974
    %v2989 = vpack.c.bf16 %v2977, %v2976
    %v2990 = vpack.c.bf16 %v2979, %v2978
    %v2991 = vpack.c.bf16 %v2981, %v2980
    %v2992 = vpack.c.bf16 %v2983, %v2982
    %v2993 = vpack.c.bf16 %v2985, %v2984
    %v2994 = vld [vmem:[%s12] sm:$0xf]
    %v2995 = vld [vmem:[%s12 + $0x4] sm:$0xf]
    %v2996 = vld [vmem:[%s12 + $0x8] sm:$0xf]
    %v2997 = vld [vmem:[%s12 + $0xc] sm:$0xf]
    %v2998 = vld [vmem:[%s12 + $0x10] sm:$0xf]
    %v2999 = vld [vmem:[%s12 + $0x14] sm:$0xf]
    %v3000 = vld [vmem:[%s12 + $0x18] sm:$0xf]
    %v3001 = vld [vmem:[%s12 + $0x1c] sm:$0xf]
    %v3002 = vld [vmem:[%s12 + $0x20] sm:$0xf]
    %v3003 = vld [vmem:[%s12 + $0x24] sm:$0xf]
    %v3004 = vld [vmem:[%s12 + $0x28] sm:$0xf]
    %v3005 = vld [vmem:[%s12 + $0x2c] sm:$0xf]
    %v3006 = vld [vmem:[%s12 + $0x30] sm:$0xf]
    %v3007 = vld [vmem:[%s12 + $0x34] sm:$0xf]
    %v3008 = vld [vmem:[%s12 + $0x38] sm:$0xf]
    %v3009 = vld [vmem:[%s12 + $0x3c] sm:$0xf]
    %v3010 = vld [vmem:[%s13] sm:$0x1]
    %v3012 = vlaneseq
    %v3013 = vshrl.u32 %v3012, 7
    %v3014 = vsub.s32 0, %v3013
    %v3015 = vrot.slane %v3010, %v3014
    %v3033 = vunpack.c.l.b16 %v2994
    %v3034 = vunpack.c.l.b16 %v2995
    %v3035 = vunpack.c.l.b16 %v2996
    %v3036 = vunpack.c.l.b16 %v2997
    %v3037 = vunpack.c.l.b16 %v2998
    %v3038 = vunpack.c.l.b16 %v2999
    %v3039 = vunpack.c.l.b16 %v3000
    %v3040 = vunpack.c.l.b16 %v3001
    %v3041 = vunpack.c.l.b16 %v3002
    %v3042 = vunpack.c.l.b16 %v3003
    %v3043 = vunpack.c.l.b16 %v3004
    %v3044 = vunpack.c.l.b16 %v3005
    %v3045 = vunpack.c.l.b16 %v3006
    %v3046 = vunpack.c.l.b16 %v3007
    %v3047 = vunpack.c.l.b16 %v3008
    %v3048 = vunpack.c.l.b16 %v3009
    %v3049 = vpack.c.b16 %v3034, %v3033
    %v3050 = vpack.c.b16 %v3036, %v3035
    %v3051 = vpack.c.b16 %v3038, %v3037
    %v3052 = vpack.c.b16 %v3040, %v3039
    %v3053 = vpack.c.b16 %v3042, %v3041
    %v3054 = vpack.c.b16 %v3044, %v3043
    %v3055 = vpack.c.b16 %v3046, %v3045
    %v3056 = vpack.c.b16 %v3048, %v3047
    %3065 = vmatprep.subr.bf16.mxu0 0
    %3066 = vmatpush1.bf16.msra.mxu0 %v3056
    %3067 = vmatprep.subr.bf16.mxu0 0
    %3068 = vmatpush1.bf16.msra.mxu0 %v3055
    %3069 = vmatprep.subr.bf16.mxu0 0
    %3070 = vmatpush1.bf16.msra.mxu0 %v3054
    %3071 = vmatprep.subr.bf16.mxu0 0
    %3072 = vmatpush1.bf16.msra.mxu0 %v3053
    %3073 = vmatprep.subr.bf16.mxu0 0
    %3074 = vmatpush1.bf16.msra.mxu0 %v3052
    %3075 = vmatprep.subr.bf16.mxu0 0
    %3076 = vmatpush1.bf16.msra.mxu0 %v3051
    %3077 = vmatprep.subr.bf16.mxu0 0
    %3078 = vmatpush1.bf16.msra.mxu0 %v3050
    %3079 = vmatprep.subr.bf16.mxu0 0
    %3080 = vmatpush1.bf16.msra.mxu0 %v3049
    %3081 = vmatprep.subr.bf16.mxu0 0
    %3082 = vmatpush2.bf16.msra.mxu0 0
    %3083 = vmatprep.subr.bf16.mxu0 0
    %3084 = vmatpush2.bf16.msra.mxu0 0
    %3085 = vmatprep.subr.bf16.mxu0 0
    %3086 = vmatpush2.bf16.msra.mxu0 0
    %3087 = vmatprep.subr.bf16.mxu0 0
    %3088 = vmatpush2.bf16.msra.mxu0 0
    %3089 = vmatprep.subr.bf16.mxu0 0
    %3090 = vmatpush2.bf16.msra.mxu0 0
    %3091 = vmatprep.subr.bf16.mxu0 0
    %3092 = vmatpush2.bf16.msra.mxu0 0
    %3093 = vmatprep.subr.bf16.mxu0 0
    %3094 = vmatpush2.bf16.msra.mxu0 0
    %3095 = vmatprep.subr.bf16.mxu0 0
    %3096 = vmatpush2.bf16.msra.mxu0 0
    %3097 = vmatprep.mubr.bf16.mxu0 0
    %3098 = vmatmul.mubr.bf16.gmra.mxu0 %v2986
    %v3099 = vpop.f32.mrf.mxu0
    %v3100 = vadd.f32 %v3015, %v3099
    %v3101 = vpop.f32.mrf.mxu0
    %v3102 = vpop.f32.mrf.mxu0
    %v3103 = vadd.f32 %v3015, %v3102
    %v3104 = vpop.f32.mrf.mxu0
    %3105 = vmatprep.mubr.bf16.mxu0 0
    %3106 = vmatmul.mubr.bf16.gmra.mxu0 %v2987
    %v3107 = vpop.f32.mrf.mxu0
    %v3108 = vadd.f32 %v3015, %v3107
    %v3109 = vpop.f32.mrf.mxu0
    %v3110 = vpop.f32.mrf.mxu0
    %v3111 = vadd.f32 %v3015, %v3110
    %v3112 = vpop.f32.mrf.mxu0
    %3113 = vmatprep.mubr.bf16.mxu0 0
    %3114 = vmatmul.mubr.bf16.gmra.mxu0 %v2988
    %v3115 = vpop.f32.mrf.mxu0
    %v3116 = vadd.f32 %v3015, %v3115
    %v3117 = vpop.f32.mrf.mxu0
    %v3118 = vpop.f32.mrf.mxu0
    %v3119 = vadd.f32 %v3015, %v3118
    %v3120 = vpop.f32.mrf.mxu0
    %3121 = vmatprep.mubr.bf16.mxu0 0
    %3122 = vmatmul.mubr.bf16.gmra.mxu0 %v2989
    %v3123 = vpop.f32.mrf.mxu0
    %v3124 = vadd.f32 %v3015, %v3123
    %v3125 = vpop.f32.mrf.mxu0
    %v3126 = vpop.f32.mrf.mxu0
    %v3127 = vadd.f32 %v3015, %v3126
    %v3128 = vpop.f32.mrf.mxu0
    %3129 = vmatprep.mubr.bf16.mxu0 0
    %3130 = vmatmul.mubr.bf16.gmra.mxu0 %v2990
    %v3131 = vpop.f32.mrf.mxu0
    %v3132 = vadd.f32 %v3015, %v3131
    %v3133 = vpop.f32.mrf.mxu0
    %v3134 = vpop.f32.mrf.mxu0
    %v3135 = vadd.f32 %v3015, %v3134
    %v3136 = vpop.f32.mrf.mxu0
    %3137 = vmatprep.mubr.bf16.mxu0 0
    %3138 = vmatmul.mubr.bf16.gmra.mxu0 %v2991
    %v3139 = vpop.f32.mrf.mxu0
    %v3140 = vadd.f32 %v3015, %v3139
    %v3141 = vpop.f32.mrf.mxu0
    %v3142 = vpop.f32.mrf.mxu0
    %v3143 = vadd.f32 %v3015, %v3142
    %v3144 = vpop.f32.mrf.mxu0
    %3145 = vmatprep.mubr.bf16.mxu0 0
    %3146 = vmatmul.mubr.bf16.gmra.mxu0 %v2992
    %v3147 = vpop.f32.mrf.mxu0
    %v3148 = vadd.f32 %v3015, %v3147
    %v3149 = vpop.f32.mrf.mxu0
    %v3150 = vpop.f32.mrf.mxu0
    %v3151 = vadd.f32 %v3015, %v3150
    %v3152 = vpop.f32.mrf.mxu0
    %3153 = vmatprep.mubr.bf16.mxu0 0
    %3154 = vmatmul.mubr.bf16.gmra.mxu0 %v2993
    %v3155 = vpop.f32.mrf.mxu0
    %v3156 = vadd.f32 %v3015, %v3155
    %v3157 = vpop.f32.mrf.mxu0
    %v3158 = vpop.f32.mrf.mxu0
    %v3159 = vadd.f32 %v3015, %v3158
    %v3160 = vpop.f32.mrf.mxu0
    %3161 = vdwg.mxu0
    %v3162 = vadd.f32 %v2420, %v3100
    %v3163 = vadd.f32 %v2421, %v3103
    %v3164 = vadd.f32 %v2422, %v3108
    %v3165 = vadd.f32 %v2423, %v3111
    %v3166 = vadd.f32 %v2424, %v3116
    %v3167 = vadd.f32 %v2425, %v3119
    %v3168 = vadd.f32 %v2426, %v3124
    %v3169 = vadd.f32 %v2427, %v3127
    %v3170 = vadd.f32 %v2428, %v3132
    %v3171 = vadd.f32 %v2429, %v3135
    %v3172 = vadd.f32 %v2430, %v3140
    %v3173 = vadd.f32 %v2431, %v3143
    %v3174 = vadd.f32 %v2432, %v3148
    %v3175 = vadd.f32 %v2433, %v3151
    %v3176 = vadd.f32 %v2434, %v3156
    %v3177 = vadd.f32 %v2435, %v3159
    %s3178 = scalar_lea.vmem %s3, 1
    %v3179 = vld [vmem:[%s3178] sm:$0x1]
    %s3180 = scalar_lea.vmem %s4, 1
    %v3181 = vld [vmem:[%s3180] sm:$0x1]
    %v3182 = vsel %vm171, %v3162, 0.0
    %3183 = vadd.xlane.f32.xlu0 %v3182
    %v3184 = vpop.xlane.xlu0 %3183
    %v3185 = vsel %vm171, %v3163, 0.0
    %3186 = vadd.xlane.f32.xlu0 %v3185
    %v3187 = vpop.xlane.xlu0 %3186
    %v3188 = vsel %vm171, %v3164, 0.0
    %3189 = vadd.xlane.f32.xlu0 %v3188
    %v3190 = vpop.xlane.xlu0 %3189
    %v3191 = vsel %vm171, %v3165, 0.0
    %3192 = vadd.xlane.f32.xlu0 %v3191
    %v3193 = vpop.xlane.xlu0 %3192
    %v3194 = vsel %vm171, %v3166, 0.0
    %3195 = vadd.xlane.f32.xlu0 %v3194
    %v3196 = vpop.xlane.xlu0 %3195
    %v3197 = vsel %vm171, %v3167, 0.0
    %3198 = vadd.xlane.f32.xlu0 %v3197
    %v3199 = vpop.xlane.xlu0 %3198
    %v3200 = vsel %vm171, %v3168, 0.0
    %3201 = vadd.xlane.f32.xlu0 %v3200
    %v3202 = vpop.xlane.xlu0 %3201
    %v3203 = vsel %vm171, %v3169, 0.0
    %3204 = vadd.xlane.f32.xlu0 %v3203
    %v3205 = vpop.xlane.xlu0 %3204
    %v3206 = vsel %vm171, %v3170, 0.0
    %3207 = vadd.xlane.f32.xlu0 %v3206
    %v3208 = vpop.xlane.xlu0 %3207
    %v3209 = vsel %vm171, %v3171, 0.0
    %3210 = vadd.xlane.f32.xlu0 %v3209
    %v3211 = vpop.xlane.xlu0 %3210
    %v3212 = vsel %vm171, %v3172, 0.0
    %3213 = vadd.xlane.f32.xlu0 %v3212
    %v3214 = vpop.xlane.xlu0 %3213
    %v3215 = vsel %vm171, %v3173, 0.0
    %3216 = vadd.xlane.f32.xlu0 %v3215
    %v3217 = vpop.xlane.xlu0 %3216
    %v3218 = vsel %vm171, %v3174, 0.0
    %3219 = vadd.xlane.f32.xlu0 %v3218
    %v3220 = vpop.xlane.xlu0 %3219
    %v3221 = vsel %vm171, %v3175, 0.0
    %3222 = vadd.xlane.f32.xlu0 %v3221
    %v3223 = vpop.xlane.xlu0 %3222
    %v3224 = vsel %vm171, %v3176, 0.0
    %3225 = vadd.xlane.f32.xlu0 %v3224
    %v3226 = vpop.xlane.xlu0 %3225
    %v3227 = vsel %vm171, %v3177, 0.0
    %3228 = vadd.xlane.f32.xlu0 %v3227
    %v3229 = vpop.xlane.xlu0 %3228
    %v3230 = vmul.f32 %v3184, %v220
    %v3231 = vmul.f32 %v3187, %v220
    %v3232 = vmul.f32 %v3190, %v220
    %v3233 = vmul.f32 %v3193, %v220
    %v3234 = vmul.f32 %v3196, %v220
    %v3235 = vmul.f32 %v3199, %v220
    %v3236 = vmul.f32 %v3202, %v220
    %v3237 = vmul.f32 %v3205, %v220
    %v3238 = vmul.f32 %v3208, %v220
    %v3239 = vmul.f32 %v3211, %v220
    %v3240 = vmul.f32 %v3214, %v220
    %v3241 = vmul.f32 %v3217, %v220
    %v3242 = vmul.f32 %v3220, %v220
    %v3243 = vmul.f32 %v3223, %v220
    %v3244 = vmul.f32 %v3226, %v220
    %v3245 = vmul.f32 %v3229, %v220
    %v3246 = vsub.f32 %v3162, %v3230
    %v3247 = vsub.f32 %v3163, %v3231
    %v3248 = vsub.f32 %v3164, %v3232
    %v3249 = vsub.f32 %v3165, %v3233
    %v3250 = vsub.f32 %v3166, %v3234
    %v3251 = vsub.f32 %v3167, %v3235
    %v3252 = vsub.f32 %v3168, %v3236
    %v3253 = vsub.f32 %v3169, %v3237
    %v3254 = vsub.f32 %v3170, %v3238
    %v3255 = vsub.f32 %v3171, %v3239
    %v3256 = vsub.f32 %v3172, %v3240
    %v3257 = vsub.f32 %v3173, %v3241
    %v3258 = vsub.f32 %v3174, %v3242
    %v3259 = vsub.f32 %v3175, %v3243
    %v3260 = vsub.f32 %v3176, %v3244
    %v3261 = vsub.f32 %v3177, %v3245
    %v3262 = vmul.f32 %v3246, %v3246
    %v3263 = vmul.f32 %v3247, %v3247
    %v3264 = vmul.f32 %v3248, %v3248
    %v3265 = vmul.f32 %v3249, %v3249
    %v3266 = vmul.f32 %v3250, %v3250
    %v3267 = vmul.f32 %v3251, %v3251
    %v3268 = vmul.f32 %v3252, %v3252
    %v3269 = vmul.f32 %v3253, %v3253
    %v3270 = vmul.f32 %v3254, %v3254
    %v3271 = vmul.f32 %v3255, %v3255
    %v3272 = vmul.f32 %v3256, %v3256
    %v3273 = vmul.f32 %v3257, %v3257
    %v3274 = vmul.f32 %v3258, %v3258
    %v3275 = vmul.f32 %v3259, %v3259
    %v3276 = vmul.f32 %v3260, %v3260
    %v3277 = vmul.f32 %v3261, %v3261
    %v3278 = vsel %vm171, %v3262, 0.0
    %3279 = vadd.xlane.f32.xlu0 %v3278
    %v3280 = vpop.xlane.xlu0 %3279
    %v3281 = vsel %vm171, %v3263, 0.0
    %3282 = vadd.xlane.f32.xlu0 %v3281
    %v3283 = vpop.xlane.xlu0 %3282
    %v3284 = vsel %vm171, %v3264, 0.0
    %3285 = vadd.xlane.f32.xlu0 %v3284
    %v3286 = vpop.xlane.xlu0 %3285
    %v3287 = vsel %vm171, %v3265, 0.0
    %3288 = vadd.xlane.f32.xlu0 %v3287
    %v3289 = vpop.xlane.xlu0 %3288
    %v3290 = vsel %vm171, %v3266, 0.0
    %3291 = vadd.xlane.f32.xlu0 %v3290
    %v3292 = vpop.xlane.xlu0 %3291
    %v3293 = vsel %vm171, %v3267, 0.0
    %3294 = vadd.xlane.f32.xlu0 %v3293
    %v3295 = vpop.xlane.xlu0 %3294
    %v3296 = vsel %vm171, %v3268, 0.0
    %3297 = vadd.xlane.f32.xlu0 %v3296
    %v3298 = vpop.xlane.xlu0 %3297
    %v3299 = vsel %vm171, %v3269, 0.0
    %3300 = vadd.xlane.f32.xlu0 %v3299
    %v3301 = vpop.xlane.xlu0 %3300
    %v3302 = vsel %vm171, %v3270, 0.0
    %3303 = vadd.xlane.f32.xlu0 %v3302
    %v3304 = vpop.xlane.xlu0 %3303
    %v3305 = vsel %vm171, %v3271, 0.0
    %3306 = vadd.xlane.f32.xlu0 %v3305
    %v3307 = vpop.xlane.xlu0 %3306
    %v3308 = vsel %vm171, %v3272, 0.0
    %3309 = vadd.xlane.f32.xlu0 %v3308
    %v3310 = vpop.xlane.xlu0 %3309
    %v3311 = vsel %vm171, %v3273, 0.0
    %3312 = vadd.xlane.f32.xlu0 %v3311
    %v3313 = vpop.xlane.xlu0 %3312
    %v3314 = vsel %vm171, %v3274, 0.0
    %3315 = vadd.xlane.f32.xlu0 %v3314
    %v3316 = vpop.xlane.xlu0 %3315
    %v3317 = vsel %vm171, %v3275, 0.0
    %3318 = vadd.xlane.f32.xlu0 %v3317
    %v3319 = vpop.xlane.xlu0 %3318
    %v3320 = vsel %vm171, %v3276, 0.0
    %3321 = vadd.xlane.f32.xlu0 %v3320
    %v3322 = vpop.xlane.xlu0 %3321
    %v3323 = vsel %vm171, %v3277, 0.0
    %3324 = vadd.xlane.f32.xlu0 %v3323
    %v3325 = vpop.xlane.xlu0 %3324
    %v3326 = vmul.f32 %v3280, %v220
    %v3327 = vmul.f32 %v3283, %v220
    %v3328 = vmul.f32 %v3286, %v220
    %v3329 = vmul.f32 %v3289, %v220
    %v3330 = vmul.f32 %v3292, %v220
    %v3331 = vmul.f32 %v3295, %v220
    %v3332 = vmul.f32 %v3298, %v220
    %v3333 = vmul.f32 %v3301, %v220
    %v3334 = vmul.f32 %v3304, %v220
    %v3335 = vmul.f32 %v3307, %v220
    %v3336 = vmul.f32 %v3310, %v220
    %v3337 = vmul.f32 %v3313, %v220
    %v3338 = vmul.f32 %v3316, %v220
    %v3339 = vmul.f32 %v3319, %v220
    %v3340 = vmul.f32 %v3322, %v220
    %v3341 = vmul.f32 %v3325, %v220
    %v3342 = vadd.f32 %v3326, 1e-05
    %v3343 = vadd.f32 %v3327, 1e-05
    %v3344 = vadd.f32 %v3328, 1e-05
    %v3345 = vadd.f32 %v3329, 1e-05
    %v3346 = vadd.f32 %v3330, 1e-05
    %v3347 = vadd.f32 %v3331, 1e-05
    %v3348 = vadd.f32 %v3332, 1e-05
    %v3349 = vadd.f32 %v3333, 1e-05
    %v3350 = vadd.f32 %v3334, 1e-05
    %v3351 = vadd.f32 %v3335, 1e-05
    %v3352 = vadd.f32 %v3336, 1e-05
    %v3353 = vadd.f32 %v3337, 1e-05
    %v3354 = vadd.f32 %v3338, 1e-05
    %v3355 = vadd.f32 %v3339, 1e-05
    %v3356 = vadd.f32 %v3340, 1e-05
    %v3357 = vadd.f32 %v3341, 1e-05
    %v3358 = vrsqrt.pop %v3342
    %v3359 = vrsqrt.pop %v3343
    %v3360 = vrsqrt.pop %v3344
    %v3361 = vrsqrt.pop %v3345
    %v3362 = vrsqrt.pop %v3346
    %v3363 = vrsqrt.pop %v3347
    %v3364 = vrsqrt.pop %v3348
    %v3365 = vrsqrt.pop %v3349
    %v3366 = vrsqrt.pop %v3350
    %v3367 = vrsqrt.pop %v3351
    %v3368 = vrsqrt.pop %v3352
    %v3369 = vrsqrt.pop %v3353
    %v3370 = vrsqrt.pop %v3354
    %v3371 = vrsqrt.pop %v3355
    %v3372 = vrsqrt.pop %v3356
    %v3373 = vrsqrt.pop %v3357
    %v3374 = vmul.f32 %v3246, %v3358
    %v3375 = vmul.f32 %v3247, %v3359
    %v3376 = vmul.f32 %v3248, %v3360
    %v3377 = vmul.f32 %v3249, %v3361
    %v3378 = vmul.f32 %v3250, %v3362
    %v3379 = vmul.f32 %v3251, %v3363
    %v3380 = vmul.f32 %v3252, %v3364
    %v3381 = vmul.f32 %v3253, %v3365
    %v3382 = vmul.f32 %v3254, %v3366
    %v3383 = vmul.f32 %v3255, %v3367
    %v3384 = vmul.f32 %v3256, %v3368
    %v3385 = vmul.f32 %v3257, %v3369
    %v3386 = vmul.f32 %v3258, %v3370
    %v3387 = vmul.f32 %v3259, %v3371
    %v3388 = vmul.f32 %v3260, %v3372
    %v3389 = vmul.f32 %v3261, %v3373
    %v3391 = vlaneseq
    %v3392 = vshrl.u32 %v3391, 7
    %v3393 = vsub.s32 0, %v3392
    %v3394 = vrot.slane %v3179, %v3393
    %v3396 = vmul.f32 %v3374, %v3394
    %v3397 = vmul.f32 %v3375, %v3394
    %v3398 = vmul.f32 %v3376, %v3394
    %v3399 = vmul.f32 %v3377, %v3394
    %v3400 = vmul.f32 %v3378, %v3394
    %v3401 = vmul.f32 %v3379, %v3394
    %v3402 = vmul.f32 %v3380, %v3394
    %v3403 = vmul.f32 %v3381, %v3394
    %v3404 = vmul.f32 %v3382, %v3394
    %v3405 = vmul.f32 %v3383, %v3394
    %v3406 = vmul.f32 %v3384, %v3394
    %v3407 = vmul.f32 %v3385, %v3394
    %v3408 = vmul.f32 %v3386, %v3394
    %v3409 = vmul.f32 %v3387, %v3394
    %v3410 = vmul.f32 %v3388, %v3394
    %v3411 = vmul.f32 %v3389, %v3394
    %v3413 = vlaneseq
    %v3414 = vshrl.u32 %v3413, 7
    %v3415 = vsub.s32 0, %v3414
    %v3416 = vrot.slane %v3181, %v3415
    %v3418 = vadd.f32 %v3396, %v3416
    %v3419 = vadd.f32 %v3397, %v3416
    %v3420 = vadd.f32 %v3398, %v3416
    %v3421 = vadd.f32 %v3399, %v3416
    %v3422 = vadd.f32 %v3400, %v3416
    %v3423 = vadd.f32 %v3401, %v3416
    %v3424 = vadd.f32 %v3402, %v3416
    %v3425 = vadd.f32 %v3403, %v3416
    %v3426 = vadd.f32 %v3404, %v3416
    %v3427 = vadd.f32 %v3405, %v3416
    %v3428 = vadd.f32 %v3406, %v3416
    %v3429 = vadd.f32 %v3407, %v3416
    %v3430 = vadd.f32 %v3408, %v3416
    %v3431 = vadd.f32 %v3409, %v3416
    %v3432 = vadd.f32 %v3410, %v3416
    %v3433 = vadd.f32 %v3411, %v3416
    %v3434 = vpack.c.bf16 %v3419, %v3418
    %v3435 = vpack.c.bf16 %v3421, %v3420
    %v3436 = vpack.c.bf16 %v3423, %v3422
    %v3437 = vpack.c.bf16 %v3425, %v3424
    %v3438 = vpack.c.bf16 %v3427, %v3426
    %v3439 = vpack.c.bf16 %v3429, %v3428
    %v3440 = vpack.c.bf16 %v3431, %v3430
    %v3441 = vpack.c.bf16 %v3433, %v3432
    %s3442 = scalar_lea.vmem [#allocation6], 16
    %v3443 = vld [vmem:[%s3442] sm:$0xf]
    %v3444 = vld [vmem:[%s3442 + $0x4] sm:$0xf]
    %v3445 = vld [vmem:[%s3442 + $0x8] sm:$0xf]
    %v3446 = vld [vmem:[%s3442 + $0xc] sm:$0xf]
    %v3451 = vunpack.c.l.b16 %v3443
    %v3452 = vunpack.c.l.b16 %v3444
    %v3453 = vunpack.c.l.b16 %v3445
    %v3454 = vunpack.c.l.b16 %v3446
    %v3455 = vpack.c.b16 %v3452, %v3451
    %v3456 = vpack.c.b16 %v3454, %v3453
    %v3460 = vsel %vm171, %v3434, 0
    %v3463 = vsel %vm171, %v3435, 0
    %v3466 = vsel %vm171, %v3436, 0
    %v3469 = vsel %vm171, %v3437, 0
    %v3472 = vsel %vm171, %v3438, 0
    %v3475 = vsel %vm171, %v3439, 0
    %v3478 = vsel %vm171, %v3440, 0
    %v3481 = vsel %vm171, %v3441, 0
    %3483 = vmatprep.subr.bf16.mxu0 0
    %3484 = vmatpush1.bf16.msra.mxu0 0
    %3485 = vmatprep.subr.bf16.mxu0 0
    %3486 = vmatpush1.bf16.msra.mxu0 0
    %3487 = vmatprep.subr.bf16.mxu0 0
    %3488 = vmatpush1.bf16.msra.mxu0 0
    %3489 = vmatprep.subr.bf16.mxu0 0
    %3490 = vmatpush1.bf16.msra.mxu0 0
    %3491 = vmatprep.subr.bf16.mxu0 0
    %3492 = vmatpush1.bf16.msra.mxu0 0
    %3493 = vmatprep.subr.bf16.mxu0 0
    %3494 = vmatpush1.bf16.msra.mxu0 0
    %3495 = vmatprep.subr.bf16.mxu0 0
    %3496 = vmatpush1.bf16.msra.mxu0 %v3456
    %3497 = vmatprep.subr.bf16.mxu0 0
    %3498 = vmatpush1.bf16.msra.mxu0 %v3455
    %3499 = vmatprep.subr.bf16.mxu0 0
    %3500 = vmatpush2.bf16.msra.mxu0 0
    %3501 = vmatprep.subr.bf16.mxu0 0
    %3502 = vmatpush2.bf16.msra.mxu0 0
    %3503 = vmatprep.subr.bf16.mxu0 0
    %3504 = vmatpush2.bf16.msra.mxu0 0
    %3505 = vmatprep.subr.bf16.mxu0 0
    %3506 = vmatpush2.bf16.msra.mxu0 0
    %3507 = vmatprep.subr.bf16.mxu0 0
    %3508 = vmatpush2.bf16.msra.mxu0 0
    %3509 = vmatprep.subr.bf16.mxu0 0
    %3510 = vmatpush2.bf16.msra.mxu0 0
    %3511 = vmatprep.subr.bf16.mxu0 0
    %3512 = vmatpush2.bf16.msra.mxu0 0
    %3513 = vmatprep.subr.bf16.mxu0 0
    %3514 = vmatpush2.bf16.msra.mxu0 0
    %3515 = vmatprep.mubr.bf16.mxu0 0
    %3516 = vmatmul.mubr.bf16.gmra.mxu0 %v3460
    %v3517 = vpop.f32.mrf.mxu0
    %v3518 = vadd.f32 0.0, %v3517
    %v3519 = vpop.f32.mrf.mxu0
    %v3520 = vpop.f32.mrf.mxu0
    %v3521 = vadd.f32 0.0, %v3520
    %v3522 = vpop.f32.mrf.mxu0
    %3523 = vmatprep.mubr.bf16.mxu0 0
    %3524 = vmatmul.mubr.bf16.gmra.mxu0 %v3463
    %v3525 = vpop.f32.mrf.mxu0
    %v3526 = vadd.f32 0.0, %v3525
    %v3527 = vpop.f32.mrf.mxu0
    %v3528 = vpop.f32.mrf.mxu0
    %v3529 = vadd.f32 0.0, %v3528
    %v3530 = vpop.f32.mrf.mxu0
    %3531 = vmatprep.mubr.bf16.mxu0 0
    %3532 = vmatmul.mubr.bf16.gmra.mxu0 %v3466
    %v3533 = vpop.f32.mrf.mxu0
    %v3534 = vadd.f32 0.0, %v3533
    %v3535 = vpop.f32.mrf.mxu0
    %v3536 = vpop.f32.mrf.mxu0
    %v3537 = vadd.f32 0.0, %v3536
    %v3538 = vpop.f32.mrf.mxu0
    %3539 = vmatprep.mubr.bf16.mxu0 0
    %3540 = vmatmul.mubr.bf16.gmra.mxu0 %v3469
    %v3541 = vpop.f32.mrf.mxu0
    %v3542 = vadd.f32 0.0, %v3541
    %v3543 = vpop.f32.mrf.mxu0
    %v3544 = vpop.f32.mrf.mxu0
    %v3545 = vadd.f32 0.0, %v3544
    %v3546 = vpop.f32.mrf.mxu0
    %3547 = vmatprep.mubr.bf16.mxu0 0
    %3548 = vmatmul.mubr.bf16.gmra.mxu0 %v3472
    %v3549 = vpop.f32.mrf.mxu0
    %v3550 = vadd.f32 0.0, %v3549
    %v3551 = vpop.f32.mrf.mxu0
    %v3552 = vpop.f32.mrf.mxu0
    %v3553 = vadd.f32 0.0, %v3552
    %v3554 = vpop.f32.mrf.mxu0
    %3555 = vmatprep.mubr.bf16.mxu0 0
    %3556 = vmatmul.mubr.bf16.gmra.mxu0 %v3475
    %v3557 = vpop.f32.mrf.mxu0
    %v3558 = vadd.f32 0.0, %v3557
    %v3559 = vpop.f32.mrf.mxu0
    %v3560 = vpop.f32.mrf.mxu0
    %v3561 = vadd.f32 0.0, %v3560
    %v3562 = vpop.f32.mrf.mxu0
    %3563 = vmatprep.mubr.bf16.mxu0 0
    %3564 = vmatmul.mubr.bf16.gmra.mxu0 %v3478
    %v3565 = vpop.f32.mrf.mxu0
    %v3566 = vadd.f32 0.0, %v3565
    %v3567 = vpop.f32.mrf.mxu0
    %v3568 = vpop.f32.mrf.mxu0
    %v3569 = vadd.f32 0.0, %v3568
    %v3570 = vpop.f32.mrf.mxu0
    %3571 = vmatprep.mubr.bf16.mxu0 0
    %3572 = vmatmul.mubr.bf16.gmra.mxu0 %v3481
    %v3573 = vpop.f32.mrf.mxu0
    %v3574 = vadd.f32 0.0, %v3573
    %v3575 = vpop.f32.mrf.mxu0
    %v3576 = vpop.f32.mrf.mxu0
    %v3577 = vadd.f32 0.0, %v3576
    %v3578 = vpop.f32.mrf.mxu0
    %3579 = vdwg.mxu0
    %v3580 = vmul.f32 %v3518, %v105
    %v3581 = vmul.f32 %v3521, %v106
    %v3582 = vmul.f32 %v3526, %v107
    %v3583 = vmul.f32 %v3529, %v108
    %v3584 = vmul.f32 %v3534, %v109
    %v3585 = vmul.f32 %v3537, %v110
    %v3586 = vmul.f32 %v3542, %v111
    %v3587 = vmul.f32 %v3545, %v112
    %v3588 = vmul.f32 %v3550, %v113
    %v3589 = vmul.f32 %v3553, %v114
    %v3590 = vmul.f32 %v3558, %v115
    %v3591 = vmul.f32 %v3561, %v116
    %v3592 = vmul.f32 %v3566, %v117
    %v3593 = vmul.f32 %v3569, %v118
    %v3594 = vmul.f32 %v3574, %v119
    %v3595 = vmul.f32 %v3577, %v120
    %v3596 = vmul.f32 %v3518, %v121
    %v3597 = vmul.f32 %v3521, %v122
    %v3598 = vmul.f32 %v3526, %v123
    %v3599 = vmul.f32 %v3529, %v124
    %v3600 = vmul.f32 %v3534, %v125
    %v3601 = vmul.f32 %v3537, %v126
    %v3602 = vmul.f32 %v3542, %v127
    %v3603 = vmul.f32 %v3545, %v128
    %v3604 = vmul.f32 %v3550, %v129
    %v3605 = vmul.f32 %v3553, %v130
    %v3606 = vmul.f32 %v3558, %v131
    %v3607 = vmul.f32 %v3561, %v132
    %v3608 = vmul.f32 %v3566, %v133
    %v3609 = vmul.f32 %v3569, %v134
    %v3610 = vmul.f32 %v3574, %v135
    %v3611 = vmul.f32 %v3577, %v136
    %v3612 = vmul.f32 %v3518, %v137
    %v3613 = vmul.f32 %v3521, %v138
    %v3614 = vmul.f32 %v3526, %v139
    %v3615 = vmul.f32 %v3529, %v140
    %v3616 = vmul.f32 %v3534, %v141
    %v3617 = vmul.f32 %v3537, %v142
    %v3618 = vmul.f32 %v3542, %v143
    %v3619 = vmul.f32 %v3545, %v144
    %v3620 = vmul.f32 %v3550, %v145
    %v3621 = vmul.f32 %v3553, %v146
    %v3622 = vmul.f32 %v3558, %v147
    %v3623 = vmul.f32 %v3561, %v148
    %v3624 = vmul.f32 %v3566, %v149
    %v3625 = vmul.f32 %v3569, %v150
    %v3626 = vmul.f32 %v3574, %v151
    %v3627 = vmul.f32 %v3577, %v152
    %v3628 = vmul.f32 %v3518, %v153
    %v3629 = vmul.f32 %v3521, %v154
    %v3630 = vmul.f32 %v3526, %v155
    %v3631 = vmul.f32 %v3529, %v156
    %v3632 = vmul.f32 %v3534, %v157
    %v3633 = vmul.f32 %v3537, %v158
    %v3634 = vmul.f32 %v3542, %v159
    %v3635 = vmul.f32 %v3545, %v160
    %v3636 = vmul.f32 %v3550, %v161
    %v3637 = vmul.f32 %v3553, %v162
    %v3638 = vmul.f32 %v3558, %v163
    %v3639 = vmul.f32 %v3561, %v164
    %v3640 = vmul.f32 %v3566, %v165
    %v3641 = vmul.f32 %v3569, %v166
    %v3642 = vmul.f32 %v3574, %v167
    %v3643 = vmul.f32 %v3577, %v168
    %v3644 = vpack.c.bf16 %v3581, %v3580
    %v3645 = vpack.c.bf16 %v3583, %v3582
    %v3646 = vpack.c.bf16 %v3585, %v3584
    %v3647 = vpack.c.bf16 %v3587, %v3586
    %v3648 = vpack.c.bf16 %v3589, %v3588
    %v3649 = vpack.c.bf16 %v3591, %v3590
    %v3650 = vpack.c.bf16 %v3593, %v3592
    %v3651 = vpack.c.bf16 %v3595, %v3594
    %v3652 = vpack.c.bf16 %v3597, %v3596
    %v3653 = vpack.c.bf16 %v3599, %v3598
    %v3654 = vpack.c.bf16 %v3601, %v3600
    %v3655 = vpack.c.bf16 %v3603, %v3602
    %v3656 = vpack.c.bf16 %v3605, %v3604
    %v3657 = vpack.c.bf16 %v3607, %v3606
    %v3658 = vpack.c.bf16 %v3609, %v3608
    %v3659 = vpack.c.bf16 %v3611, %v3610
    %v3660 = vpack.c.bf16 %v3613, %v3612
    %v3661 = vpack.c.bf16 %v3615, %v3614
    %v3662 = vpack.c.bf16 %v3617, %v3616
    %v3663 = vpack.c.bf16 %v3619, %v3618
    %v3664 = vpack.c.bf16 %v3621, %v3620
    %v3665 = vpack.c.bf16 %v3623, %v3622
    %v3666 = vpack.c.bf16 %v3625, %v3624
    %v3667 = vpack.c.bf16 %v3627, %v3626
    %v3668 = vpack.c.bf16 %v3629, %v3628
    %v3669 = vpack.c.bf16 %v3631, %v3630
    %v3670 = vpack.c.bf16 %v3633, %v3632
    %v3671 = vpack.c.bf16 %v3635, %v3634
    %v3672 = vpack.c.bf16 %v3637, %v3636
    %v3673 = vpack.c.bf16 %v3639, %v3638
    %v3674 = vpack.c.bf16 %v3641, %v3640
    %v3675 = vpack.c.bf16 %v3643, %v3642
    %v3676 = vpack.c.bf16 %v3521, %v3518
    %v3677 = vpack.c.bf16 %v3529, %v3526
    %v3678 = vpack.c.bf16 %v3537, %v3534
    %v3679 = vpack.c.bf16 %v3545, %v3542
    %v3680 = vpack.c.bf16 %v3553, %v3550
    %v3681 = vpack.c.bf16 %v3561, %v3558
    %v3682 = vpack.c.bf16 %v3569, %v3566
    %v3683 = vpack.c.bf16 %v3577, %v3574
    %s3684 = scalar_lea.vmem [#allocation2], 256
    %v3685 = vld [vmem:[%s3684] sm:$0xf]
    %v3686 = vld [vmem:[%s3684 + $0x4] sm:$0xf]
    %v3687 = vld [vmem:[%s3684 + $0x8] sm:$0xf]
    %v3688 = vld [vmem:[%s3684 + $0xc] sm:$0xf]
    %v3689 = vld [vmem:[%s3684 + $0x10] sm:$0xf]
    %v3690 = vld [vmem:[%s3684 + $0x14] sm:$0xf]
    %v3691 = vld [vmem:[%s3684 + $0x18] sm:$0xf]
    %v3692 = vld [vmem:[%s3684 + $0x1c] sm:$0xf]
    %v3693 = vld [vmem:[%s3684 + $0x20] sm:$0xf]
    %v3694 = vld [vmem:[%s3684 + $0x24] sm:$0xf]
    %v3695 = vld [vmem:[%s3684 + $0x28] sm:$0xf]
    %v3696 = vld [vmem:[%s3684 + $0x2c] sm:$0xf]
    %v3697 = vld [vmem:[%s3684 + $0x30] sm:$0xf]
    %v3698 = vld [vmem:[%s3684 + $0x34] sm:$0xf]
    %v3699 = vld [vmem:[%s3684 + $0x38] sm:$0xf]
    %v3700 = vld [vmem:[%s3684 + $0x3c] sm:$0xf]
    %v3701 = vld [vmem:[%s3684 + $0x40] sm:$0xf]
    %v3702 = vld [vmem:[%s3684 + $0x44] sm:$0xf]
    %v3703 = vld [vmem:[%s3684 + $0x48] sm:$0xf]
    %v3704 = vld [vmem:[%s3684 + $0x4c] sm:$0xf]
    %v3705 = vld [vmem:[%s3684 + $0x50] sm:$0xf]
    %v3706 = vld [vmem:[%s3684 + $0x54] sm:$0xf]
    %v3707 = vld [vmem:[%s3684 + $0x58] sm:$0xf]
    %v3708 = vld [vmem:[%s3684 + $0x5c] sm:$0xf]
    %v3709 = vld [vmem:[%s3684 + $0x60] sm:$0xf]
    %v3710 = vld [vmem:[%s3684 + $0x64] sm:$0xf]
    %v3711 = vld [vmem:[%s3684 + $0x68] sm:$0xf]
    %v3712 = vld [vmem:[%s3684 + $0x6c] sm:$0xf]
    %v3713 = vld [vmem:[%s3684 + $0x70] sm:$0xf]
    %v3714 = vld [vmem:[%s3684 + $0x74] sm:$0xf]
    %v3715 = vld [vmem:[%s3684 + $0x78] sm:$0xf]
    %v3716 = vld [vmem:[%s3684 + $0x7c] sm:$0xf]
    %v3717 = vld [vmem:[%s3684 + $0x80] sm:$0xf]
    %v3718 = vld [vmem:[%s3684 + $0x84] sm:$0xf]
    %v3719 = vld [vmem:[%s3684 + $0x88] sm:$0xf]
    %v3720 = vld [vmem:[%s3684 + $0x8c] sm:$0xf]
    %v3721 = vld [vmem:[%s3684 + $0x90] sm:$0xf]
    %v3722 = vld [vmem:[%s3684 + $0x94] sm:$0xf]
    %v3723 = vld [vmem:[%s3684 + $0x98] sm:$0xf]
    %v3724 = vld [vmem:[%s3684 + $0x9c] sm:$0xf]
    %v3725 = vld [vmem:[%s3684 + $0xa0] sm:$0xf]
    %v3726 = vld [vmem:[%s3684 + $0xa4] sm:$0xf]
    %v3727 = vld [vmem:[%s3684 + $0xa8] sm:$0xf]
    %v3728 = vld [vmem:[%s3684 + $0xac] sm:$0xf]
    %v3729 = vld [vmem:[%s3684 + $0xb0] sm:$0xf]
    %v3730 = vld [vmem:[%s3684 + $0xb4] sm:$0xf]
    %v3731 = vld [vmem:[%s3684 + $0xb8] sm:$0xf]
    %v3732 = vld [vmem:[%s3684 + $0xbc] sm:$0xf]
    %v3733 = vld [vmem:[%s3684 + $0xc0] sm:$0xf]
    %v3734 = vld [vmem:[%s3684 + $0xc4] sm:$0xf]
    %v3735 = vld [vmem:[%s3684 + $0xc8] sm:$0xf]
    %v3736 = vld [vmem:[%s3684 + $0xcc] sm:$0xf]
    %v3737 = vld [vmem:[%s3684 + $0xd0] sm:$0xf]
    %v3738 = vld [vmem:[%s3684 + $0xd4] sm:$0xf]
    %v3739 = vld [vmem:[%s3684 + $0xd8] sm:$0xf]
    %v3740 = vld [vmem:[%s3684 + $0xdc] sm:$0xf]
    %v3741 = vld [vmem:[%s3684 + $0xe0] sm:$0xf]
    %v3742 = vld [vmem:[%s3684 + $0xe4] sm:$0xf]
    %v3743 = vld [vmem:[%s3684 + $0xe8] sm:$0xf]
    %v3744 = vld [vmem:[%s3684 + $0xec] sm:$0xf]
    %v3745 = vld [vmem:[%s3684 + $0xf0] sm:$0xf]
    %v3746 = vld [vmem:[%s3684 + $0xf4] sm:$0xf]
    %v3747 = vld [vmem:[%s3684 + $0xf8] sm:$0xf]
    %v3748 = vld [vmem:[%s3684 + $0xfc] sm:$0xf]
    %v3749 = vunpack.c.l.bf16 %v3685
    %v3750 = vunpack.c.l.bf16 %v3686
    %v3751 = vunpack.c.l.bf16 %v3687
    %v3752 = vunpack.c.l.bf16 %v3688
    %v3753 = vunpack.c.l.bf16 %v3689
    %v3754 = vunpack.c.l.bf16 %v3690
    %v3755 = vunpack.c.l.bf16 %v3691
    %v3756 = vunpack.c.l.bf16 %v3692
    %v3757 = vunpack.c.l.bf16 %v3693
    %v3758 = vunpack.c.l.bf16 %v3694
    %v3759 = vunpack.c.l.bf16 %v3695
    %v3760 = vunpack.c.l.bf16 %v3696
    %v3761 = vunpack.c.l.bf16 %v3697
    %v3762 = vunpack.c.l.bf16 %v3698
    %v3763 = vunpack.c.l.bf16 %v3699
    %v3764 = vunpack.c.l.bf16 %v3700
    %v3765 = vunpack.c.l.bf16 %v3701
    %v3766 = vunpack.c.l.bf16 %v3702
    %v3767 = vunpack.c.l.bf16 %v3703
    %v3768 = vunpack.c.l.bf16 %v3704
    %v3769 = vunpack.c.l.bf16 %v3705
    %v3770 = vunpack.c.l.bf16 %v3706
    %v3771 = vunpack.c.l.bf16 %v3707
    %v3772 = vunpack.c.l.bf16 %v3708
    %v3773 = vunpack.c.l.bf16 %v3709
    %v3774 = vunpack.c.l.bf16 %v3710
    %v3775 = vunpack.c.l.bf16 %v3711
    %v3776 = vunpack.c.l.bf16 %v3712
    %v3777 = vunpack.c.l.bf16 %v3713
    %v3778 = vunpack.c.l.bf16 %v3714
    %v3779 = vunpack.c.l.bf16 %v3715
    %v3780 = vunpack.c.l.bf16 %v3716
    %v3781 = vunpack.c.l.bf16 %v3717
    %v3782 = vunpack.c.l.bf16 %v3718
    %v3783 = vunpack.c.l.bf16 %v3719
    %v3784 = vunpack.c.l.bf16 %v3720
    %v3785 = vunpack.c.l.bf16 %v3721
    %v3786 = vunpack.c.l.bf16 %v3722
    %v3787 = vunpack.c.l.bf16 %v3723
    %v3788 = vunpack.c.l.bf16 %v3724
    %v3789 = vunpack.c.l.bf16 %v3725
    %v3790 = vunpack.c.l.bf16 %v3726
    %v3791 = vunpack.c.l.bf16 %v3727
    %v3792 = vunpack.c.l.bf16 %v3728
    %v3793 = vunpack.c.l.bf16 %v3729
    %v3794 = vunpack.c.l.bf16 %v3730
    %v3795 = vunpack.c.l.bf16 %v3731
    %v3796 = vunpack.c.l.bf16 %v3732
    %v3797 = vunpack.c.l.bf16 %v3733
    %v3798 = vunpack.c.l.bf16 %v3734
    %v3799 = vunpack.c.l.bf16 %v3735
    %v3800 = vunpack.c.l.bf16 %v3736
    %v3801 = vunpack.c.l.bf16 %v3737
    %v3802 = vunpack.c.l.bf16 %v3738
    %v3803 = vunpack.c.l.bf16 %v3739
    %v3804 = vunpack.c.l.bf16 %v3740
    %v3805 = vunpack.c.l.bf16 %v3741
    %v3806 = vunpack.c.l.bf16 %v3742
    %v3807 = vunpack.c.l.bf16 %v3743
    %v3808 = vunpack.c.l.bf16 %v3744
    %v3809 = vunpack.c.l.bf16 %v3745
    %v3810 = vunpack.c.l.bf16 %v3746
    %v3811 = vunpack.c.l.bf16 %v3747
    %v3812 = vunpack.c.l.bf16 %v3748
    %3821 = vrot.lane.b32.xlu0 %v3676, 96
    %v3822 = vpop.permute.xlu0 %3821
    %3823 = vrot.lane.b32.xlu0 %v3677, 96
    %v3824 = vpop.permute.xlu0 %3823
    %3825 = vrot.lane.b32.xlu0 %v3678, 96
    %v3826 = vpop.permute.xlu0 %3825
    %3827 = vrot.lane.b32.xlu0 %v3679, 96
    %v3828 = vpop.permute.xlu0 %3827
    %3829 = vrot.lane.b32.xlu0 %v3680, 96
    %v3830 = vpop.permute.xlu0 %3829
    %3831 = vrot.lane.b32.xlu0 %v3681, 96
    %v3832 = vpop.permute.xlu0 %3831
    %3833 = vrot.lane.b32.xlu0 %v3682, 96
    %v3834 = vpop.permute.xlu0 %3833
    %3835 = vrot.lane.b32.xlu0 %v3683, 96
    %v3836 = vpop.permute.xlu0 %3835
    %v3838 = vsel %vm171, %v3644, 0
    %v3841 = vsel %vm171, %v3645, 0
    %v3844 = vsel %vm171, %v3646, 0
    %v3847 = vsel %vm171, %v3647, 0
    %v3850 = vsel %vm171, %v3648, 0
    %v3853 = vsel %vm171, %v3649, 0
    %v3856 = vsel %vm171, %v3650, 0
    %v3859 = vsel %vm171, %v3651, 0
    %v3862 = vsel %vm171, %v3652, 0
    %v3865 = vsel %vm171, %v3653, 0
    %v3868 = vsel %vm171, %v3654, 0
    %v3871 = vsel %vm171, %v3655, 0
    %v3874 = vsel %vm171, %v3656, 0
    %v3877 = vsel %vm171, %v3657, 0
    %v3880 = vsel %vm171, %v3658, 0
    %v3883 = vsel %vm171, %v3659, 0
    %v3886 = vsel %vm171, %v3660, 0
    %v3889 = vsel %vm171, %v3661, 0
    %v3892 = vsel %vm171, %v3662, 0
    %v3895 = vsel %vm171, %v3663, 0
    %v3898 = vsel %vm171, %v3664, 0
    %v3901 = vsel %vm171, %v3665, 0
    %v3904 = vsel %vm171, %v3666, 0
    %v3907 = vsel %vm171, %v3667, 0
    %v3910 = vsel %vm171, %v3668, 0
    %v3913 = vsel %vm171, %v3669, 0
    %v3916 = vsel %vm171, %v3670, 0
    %v3919 = vsel %vm171, %v3671, 0
    %v3922 = vsel %vm171, %v3672, 0
    %v3925 = vsel %vm171, %v3673, 0
    %v3928 = vsel %vm171, %v3674, 0
    %v3931 = vsel %vm171, %v3675, 0
    %v3934 = vsel %vm171, %v3822, 0
    %v3937 = vsel %vm171, %v3824, 0
    %v3940 = vsel %vm171, %v3826, 0
    %v3943 = vsel %vm171, %v3828, 0
    %v3946 = vsel %vm171, %v3830, 0
    %v3949 = vsel %vm171, %v3832, 0
    %v3952 = vsel %vm171, %v3834, 0
    %v3955 = vsel %vm171, %v3836, 0
    %3957 = vmatprep.subr.bf16.mxu0 0
    %3958 = vmatpush1.bf16.xpose.msra.mxu0 %v3955
    %3959 = vmatprep.subr.bf16.mxu0 0
    %3960 = vmatpush1.bf16.xpose.msra.mxu0 %v3952
    %3961 = vmatprep.subr.bf16.mxu0 0
    %3962 = vmatpush1.bf16.xpose.msra.mxu0 %v3949
    %3963 = vmatprep.subr.bf16.mxu0 0
    %3964 = vmatpush1.bf16.xpose.msra.mxu0 %v3946
    %3965 = vmatprep.subr.bf16.mxu0 0
    %3966 = vmatpush1.bf16.xpose.msra.mxu0 %v3943
    %3967 = vmatprep.subr.bf16.mxu0 0
    %3968 = vmatpush1.bf16.xpose.msra.mxu0 %v3940
    %3969 = vmatprep.subr.bf16.mxu0 0
    %3970 = vmatpush1.bf16.xpose.msra.mxu0 %v3937
    %3971 = vmatprep.subr.bf16.mxu0 0
    %3972 = vmatpush1.bf16.xpose.msra.mxu0 %v3934
    %3973 = vmatprep.subr.bf16.mxu0 0
    %3974 = vmatpush2.bf16.xpose.msra.mxu0 0
    %3975 = vmatprep.subr.bf16.mxu0 0
    %3976 = vmatpush2.bf16.xpose.msra.mxu0 0
    %3977 = vmatprep.subr.bf16.mxu0 0
    %3978 = vmatpush2.bf16.xpose.msra.mxu0 0
    %3979 = vmatprep.subr.bf16.mxu0 0
    %3980 = vmatpush2.bf16.xpose.msra.mxu0 0
    %3981 = vmatprep.subr.bf16.mxu0 0
    %3982 = vmatpush2.bf16.xpose.msra.mxu0 0
    %3983 = vmatprep.subr.bf16.mxu0 0
    %3984 = vmatpush2.bf16.xpose.msra.mxu0 0
    %3985 = vmatprep.subr.bf16.mxu0 0
    %3986 = vmatpush2.bf16.xpose.msra.mxu0 0
    %3987 = vmatprep.subr.bf16.mxu0 0
    %3988 = vmatpush2.bf16.xpose.msra.mxu0 0
    %3989 = vmatprep.mubr.bf16.mxu0 0
    %3990 = vmatmul.mubr.bf16.gmra.mxu0 %v3838
    %v3991 = vpop.f32.mrf.mxu0
    %v3992 = vadd.f32 %v3749, %v3991
    %v3993 = vpop.f32.mrf.mxu0
    %v3994 = vpop.f32.mrf.mxu0
    %v3995 = vadd.f32 %v3750, %v3994
    %v3996 = vpop.f32.mrf.mxu0
    %3997 = vmatprep.mubr.bf16.mxu0 0
    %3998 = vmatmul.mubr.bf16.gmra.mxu0 %v3841
    %v3999 = vpop.f32.mrf.mxu0
    %v4000 = vadd.f32 %v3751, %v3999
    %v4001 = vpop.f32.mrf.mxu0
    %v4002 = vpop.f32.mrf.mxu0
    %v4003 = vadd.f32 %v3752, %v4002
    %v4004 = vpop.f32.mrf.mxu0
    %4005 = vmatprep.mubr.bf16.mxu0 0
    %4006 = vmatmul.mubr.bf16.gmra.mxu0 %v3844
    %v4007 = vpop.f32.mrf.mxu0
    %v4008 = vadd.f32 %v3753, %v4007
    %v4009 = vpop.f32.mrf.mxu0
    %v4010 = vpop.f32.mrf.mxu0
    %v4011 = vadd.f32 %v3754, %v4010
    %v4012 = vpop.f32.mrf.mxu0
    %4013 = vmatprep.mubr.bf16.mxu0 0
    %4014 = vmatmul.mubr.bf16.gmra.mxu0 %v3847
    %v4015 = vpop.f32.mrf.mxu0
    %v4016 = vadd.f32 %v3755, %v4015
    %v4017 = vpop.f32.mrf.mxu0
    %v4018 = vpop.f32.mrf.mxu0
    %v4019 = vadd.f32 %v3756, %v4018
    %v4020 = vpop.f32.mrf.mxu0
    %4021 = vmatprep.mubr.bf16.mxu0 0
    %4022 = vmatmul.mubr.bf16.gmra.mxu0 %v3850
    %v4023 = vpop.f32.mrf.mxu0
    %v4024 = vadd.f32 %v3757, %v4023
    %v4025 = vpop.f32.mrf.mxu0
    %v4026 = vpop.f32.mrf.mxu0
    %v4027 = vadd.f32 %v3758, %v4026
    %v4028 = vpop.f32.mrf.mxu0
    %4029 = vmatprep.mubr.bf16.mxu0 0
    %4030 = vmatmul.mubr.bf16.gmra.mxu0 %v3853
    %v4031 = vpop.f32.mrf.mxu0
    %v4032 = vadd.f32 %v3759, %v4031
    %v4033 = vpop.f32.mrf.mxu0
    %v4034 = vpop.f32.mrf.mxu0
    %v4035 = vadd.f32 %v3760, %v4034
    %v4036 = vpop.f32.mrf.mxu0
    %4037 = vmatprep.mubr.bf16.mxu0 0
    %4038 = vmatmul.mubr.bf16.gmra.mxu0 %v3856
    %v4039 = vpop.f32.mrf.mxu0
    %v4040 = vadd.f32 %v3761, %v4039
    %v4041 = vpop.f32.mrf.mxu0
    %v4042 = vpop.f32.mrf.mxu0
    %v4043 = vadd.f32 %v3762, %v4042
    %v4044 = vpop.f32.mrf.mxu0
    %4045 = vmatprep.mubr.bf16.mxu0 0
    %4046 = vmatmul.mubr.bf16.gmra.mxu0 %v3859
    %v4047 = vpop.f32.mrf.mxu0
    %v4048 = vadd.f32 %v3763, %v4047
    %v4049 = vpop.f32.mrf.mxu0
    %v4050 = vpop.f32.mrf.mxu0
    %v4051 = vadd.f32 %v3764, %v4050
    %v4052 = vpop.f32.mrf.mxu0
    %4053 = vmatprep.mubr.bf16.mxu0 0
    %4054 = vmatmul.mubr.bf16.gmra.mxu0 %v3862
    %v4055 = vpop.f32.mrf.mxu0
    %v4056 = vadd.f32 %v3765, %v4055
    %v4057 = vpop.f32.mrf.mxu0
    %v4058 = vpop.f32.mrf.mxu0
    %v4059 = vadd.f32 %v3766, %v4058
    %v4060 = vpop.f32.mrf.mxu0
    %4061 = vmatprep.mubr.bf16.mxu0 0
    %4062 = vmatmul.mubr.bf16.gmra.mxu0 %v3865
    %v4063 = vpop.f32.mrf.mxu0
    %v4064 = vadd.f32 %v3767, %v4063
    %v4065 = vpop.f32.mrf.mxu0
    %v4066 = vpop.f32.mrf.mxu0
    %v4067 = vadd.f32 %v3768, %v4066
    %v4068 = vpop.f32.mrf.mxu0
    %4069 = vmatprep.mubr.bf16.mxu0 0
    %4070 = vmatmul.mubr.bf16.gmra.mxu0 %v3868
    %v4071 = vpop.f32.mrf.mxu0
    %v4072 = vadd.f32 %v3769, %v4071
    %v4073 = vpop.f32.mrf.mxu0
    %v4074 = vpop.f32.mrf.mxu0
    %v4075 = vadd.f32 %v3770, %v4074
    %v4076 = vpop.f32.mrf.mxu0
    %4077 = vmatprep.mubr.bf16.mxu0 0
    %4078 = vmatmul.mubr.bf16.gmra.mxu0 %v3871
    %v4079 = vpop.f32.mrf.mxu0
    %v4080 = vadd.f32 %v3771, %v4079
    %v4081 = vpop.f32.mrf.mxu0
    %v4082 = vpop.f32.mrf.mxu0
    %v4083 = vadd.f32 %v3772, %v4082
    %v4084 = vpop.f32.mrf.mxu0
    %4085 = vmatprep.mubr.bf16.mxu0 0
    %4086 = vmatmul.mubr.bf16.gmra.mxu0 %v3874
    %v4087 = vpop.f32.mrf.mxu0
    %v4088 = vadd.f32 %v3773, %v4087
    %v4089 = vpop.f32.mrf.mxu0
    %v4090 = vpop.f32.mrf.mxu0
    %v4091 = vadd.f32 %v3774, %v4090
    %v4092 = vpop.f32.mrf.mxu0
    %4093 = vmatprep.mubr.bf16.mxu0 0
    %4094 = vmatmul.mubr.bf16.gmra.mxu0 %v3877
    %v4095 = vpop.f32.mrf.mxu0
    %v4096 = vadd.f32 %v3775, %v4095
    %v4097 = vpop.f32.mrf.mxu0
    %v4098 = vpop.f32.mrf.mxu0
    %v4099 = vadd.f32 %v3776, %v4098
    %v4100 = vpop.f32.mrf.mxu0
    %4101 = vmatprep.mubr.bf16.mxu0 0
    %4102 = vmatmul.mubr.bf16.gmra.mxu0 %v3880
    %v4103 = vpop.f32.mrf.mxu0
    %v4104 = vadd.f32 %v3777, %v4103
    %v4105 = vpop.f32.mrf.mxu0
    %v4106 = vpop.f32.mrf.mxu0
    %v4107 = vadd.f32 %v3778, %v4106
    %v4108 = vpop.f32.mrf.mxu0
    %4109 = vmatprep.mubr.bf16.mxu0 0
    %4110 = vmatmul.mubr.bf16.gmra.mxu0 %v3883
    %v4111 = vpop.f32.mrf.mxu0
    %v4112 = vadd.f32 %v3779, %v4111
    %v4113 = vpop.f32.mrf.mxu0
    %v4114 = vpop.f32.mrf.mxu0
    %v4115 = vadd.f32 %v3780, %v4114
    %v4116 = vpop.f32.mrf.mxu0
    %4117 = vmatprep.mubr.bf16.mxu0 0
    %4118 = vmatmul.mubr.bf16.gmra.mxu0 %v3886
    %v4119 = vpop.f32.mrf.mxu0
    %v4120 = vadd.f32 %v3781, %v4119
    %v4121 = vpop.f32.mrf.mxu0
    %v4122 = vpop.f32.mrf.mxu0
    %v4123 = vadd.f32 %v3782, %v4122
    %v4124 = vpop.f32.mrf.mxu0
    %4125 = vmatprep.mubr.bf16.mxu0 0
    %4126 = vmatmul.mubr.bf16.gmra.mxu0 %v3889
    %v4127 = vpop.f32.mrf.mxu0
    %v4128 = vadd.f32 %v3783, %v4127
    %v4129 = vpop.f32.mrf.mxu0
    %v4130 = vpop.f32.mrf.mxu0
    %v4131 = vadd.f32 %v3784, %v4130
    %v4132 = vpop.f32.mrf.mxu0
    %4133 = vmatprep.mubr.bf16.mxu0 0
    %4134 = vmatmul.mubr.bf16.gmra.mxu0 %v3892
    %v4135 = vpop.f32.mrf.mxu0
    %v4136 = vadd.f32 %v3785, %v4135
    %v4137 = vpop.f32.mrf.mxu0
    %v4138 = vpop.f32.mrf.mxu0
    %v4139 = vadd.f32 %v3786, %v4138
    %v4140 = vpop.f32.mrf.mxu0
    %4141 = vmatprep.mubr.bf16.mxu0 0
    %4142 = vmatmul.mubr.bf16.gmra.mxu0 %v3895
    %v4143 = vpop.f32.mrf.mxu0
    %v4144 = vadd.f32 %v3787, %v4143
    %v4145 = vpop.f32.mrf.mxu0
    %v4146 = vpop.f32.mrf.mxu0
    %v4147 = vadd.f32 %v3788, %v4146
    %v4148 = vpop.f32.mrf.mxu0
    %4149 = vmatprep.mubr.bf16.mxu0 0
    %4150 = vmatmul.mubr.bf16.gmra.mxu0 %v3898
    %v4151 = vpop.f32.mrf.mxu0
    %v4152 = vadd.f32 %v3789, %v4151
    %v4153 = vpop.f32.mrf.mxu0
    %v4154 = vpop.f32.mrf.mxu0
    %v4155 = vadd.f32 %v3790, %v4154
    %v4156 = vpop.f32.mrf.mxu0
    %4157 = vmatprep.mubr.bf16.mxu0 0
    %4158 = vmatmul.mubr.bf16.gmra.mxu0 %v3901
    %v4159 = vpop.f32.mrf.mxu0
    %v4160 = vadd.f32 %v3791, %v4159
    %v4161 = vpop.f32.mrf.mxu0
    %v4162 = vpop.f32.mrf.mxu0
    %v4163 = vadd.f32 %v3792, %v4162
    %v4164 = vpop.f32.mrf.mxu0
    %4165 = vmatprep.mubr.bf16.mxu0 0
    %4166 = vmatmul.mubr.bf16.gmra.mxu0 %v3904
    %v4167 = vpop.f32.mrf.mxu0
    %v4168 = vadd.f32 %v3793, %v4167
    %v4169 = vpop.f32.mrf.mxu0
    %v4170 = vpop.f32.mrf.mxu0
    %v4171 = vadd.f32 %v3794, %v4170
    %v4172 = vpop.f32.mrf.mxu0
    %4173 = vmatprep.mubr.bf16.mxu0 0
    %4174 = vmatmul.mubr.bf16.gmra.mxu0 %v3907
    %v4175 = vpop.f32.mrf.mxu0
    %v4176 = vadd.f32 %v3795, %v4175
    %v4177 = vpop.f32.mrf.mxu0
    %v4178 = vpop.f32.mrf.mxu0
    %v4179 = vadd.f32 %v3796, %v4178
    %v4180 = vpop.f32.mrf.mxu0
    %4181 = vmatprep.mubr.bf16.mxu0 0
    %4182 = vmatmul.mubr.bf16.gmra.mxu0 %v3910
    %v4183 = vpop.f32.mrf.mxu0
    %v4184 = vadd.f32 %v3797, %v4183
    %v4185 = vpop.f32.mrf.mxu0
    %v4186 = vpop.f32.mrf.mxu0
    %v4187 = vadd.f32 %v3798, %v4186
    %v4188 = vpop.f32.mrf.mxu0
    %4189 = vmatprep.mubr.bf16.mxu0 0
    %4190 = vmatmul.mubr.bf16.gmra.mxu0 %v3913
    %v4191 = vpop.f32.mrf.mxu0
    %v4192 = vadd.f32 %v3799, %v4191
    %v4193 = vpop.f32.mrf.mxu0
    %v4194 = vpop.f32.mrf.mxu0
    %v4195 = vadd.f32 %v3800, %v4194
    %v4196 = vpop.f32.mrf.mxu0
    %4197 = vmatprep.mubr.bf16.mxu0 0
    %4198 = vmatmul.mubr.bf16.gmra.mxu0 %v3916
    %v4199 = vpop.f32.mrf.mxu0
    %v4200 = vadd.f32 %v3801, %v4199
    %v4201 = vpop.f32.mrf.mxu0
    %v4202 = vpop.f32.mrf.mxu0
    %v4203 = vadd.f32 %v3802, %v4202
    %v4204 = vpop.f32.mrf.mxu0
    %4205 = vmatprep.mubr.bf16.mxu0 0
    %4206 = vmatmul.mubr.bf16.gmra.mxu0 %v3919
    %v4207 = vpop.f32.mrf.mxu0
    %v4208 = vadd.f32 %v3803, %v4207
    %v4209 = vpop.f32.mrf.mxu0
    %v4210 = vpop.f32.mrf.mxu0
    %v4211 = vadd.f32 %v3804, %v4210
    %v4212 = vpop.f32.mrf.mxu0
    %4213 = vmatprep.mubr.bf16.mxu0 0
    %4214 = vmatmul.mubr.bf16.gmra.mxu0 %v3922
    %v4215 = vpop.f32.mrf.mxu0
    %v4216 = vadd.f32 %v3805, %v4215
    %v4217 = vpop.f32.mrf.mxu0
    %v4218 = vpop.f32.mrf.mxu0
    %v4219 = vadd.f32 %v3806, %v4218
    %v4220 = vpop.f32.mrf.mxu0
    %4221 = vmatprep.mubr.bf16.mxu0 0
    %4222 = vmatmul.mubr.bf16.gmra.mxu0 %v3925
    %v4223 = vpop.f32.mrf.mxu0
    %v4224 = vadd.f32 %v3807, %v4223
    %v4225 = vpop.f32.mrf.mxu0
    %v4226 = vpop.f32.mrf.mxu0
    %v4227 = vadd.f32 %v3808, %v4226
    %v4228 = vpop.f32.mrf.mxu0
    %4229 = vmatprep.mubr.bf16.mxu0 0
    %4230 = vmatmul.mubr.bf16.gmra.mxu0 %v3928
    %v4231 = vpop.f32.mrf.mxu0
    %v4232 = vadd.f32 %v3809, %v4231
    %v4233 = vpop.f32.mrf.mxu0
    %v4234 = vpop.f32.mrf.mxu0
    %v4235 = vadd.f32 %v3810, %v4234
    %v4236 = vpop.f32.mrf.mxu0
    %4237 = vmatprep.mubr.bf16.mxu0 0
    %4238 = vmatmul.mubr.bf16.gmra.mxu0 %v3931
    %v4239 = vpop.f32.mrf.mxu0
    %v4240 = vadd.f32 %v3811, %v4239
    %v4241 = vpop.f32.mrf.mxu0
    %v4242 = vpop.f32.mrf.mxu0
    %v4243 = vadd.f32 %v3812, %v4242
    %v4244 = vpop.f32.mrf.mxu0
    %4245 = vdwg.mxu0
    %4246 = vmax.xlane.f32.xlu0 %v3992
    %v4247 = vpop.xlane.xlu0 %4246
    %4248 = vmax.xlane.f32.xlu0 %v3995
    %v4249 = vpop.xlane.xlu0 %4248
    %4250 = vmax.xlane.f32.xlu0 %v4000
    %v4251 = vpop.xlane.xlu0 %4250
    %4252 = vmax.xlane.f32.xlu0 %v4003
    %v4253 = vpop.xlane.xlu0 %4252
    %4254 = vmax.xlane.f32.xlu0 %v4008
    %v4255 = vpop.xlane.xlu0 %4254
    %4256 = vmax.xlane.f32.xlu0 %v4011
    %v4257 = vpop.xlane.xlu0 %4256
    %4258 = vmax.xlane.f32.xlu0 %v4016
    %v4259 = vpop.xlane.xlu0 %4258
    %4260 = vmax.xlane.f32.xlu0 %v4019
    %v4261 = vpop.xlane.xlu0 %4260
    %4262 = vmax.xlane.f32.xlu0 %v4024
    %v4263 = vpop.xlane.xlu0 %4262
    %4264 = vmax.xlane.f32.xlu0 %v4027
    %v4265 = vpop.xlane.xlu0 %4264
    %4266 = vmax.xlane.f32.xlu0 %v4032
    %v4267 = vpop.xlane.xlu0 %4266
    %4268 = vmax.xlane.f32.xlu0 %v4035
    %v4269 = vpop.xlane.xlu0 %4268
    %4270 = vmax.xlane.f32.xlu0 %v4040
    %v4271 = vpop.xlane.xlu0 %4270
    %4272 = vmax.xlane.f32.xlu0 %v4043
    %v4273 = vpop.xlane.xlu0 %4272
    %4274 = vmax.xlane.f32.xlu0 %v4048
    %v4275 = vpop.xlane.xlu0 %4274
    %4276 = vmax.xlane.f32.xlu0 %v4051
    %v4277 = vpop.xlane.xlu0 %4276
    %4278 = vmax.xlane.f32.xlu0 %v4056
    %v4279 = vpop.xlane.xlu0 %4278
    %4280 = vmax.xlane.f32.xlu0 %v4059
    %v4281 = vpop.xlane.xlu0 %4280
    %4282 = vmax.xlane.f32.xlu0 %v4064
    %v4283 = vpop.xlane.xlu0 %4282
    %4284 = vmax.xlane.f32.xlu0 %v4067
    %v4285 = vpop.xlane.xlu0 %4284
    %4286 = vmax.xlane.f32.xlu0 %v4072
    %v4287 = vpop.xlane.xlu0 %4286
    %4288 = vmax.xlane.f32.xlu0 %v4075
    %v4289 = vpop.xlane.xlu0 %4288
    %4290 = vmax.xlane.f32.xlu0 %v4080
    %v4291 = vpop.xlane.xlu0 %4290
    %4292 = vmax.xlane.f32.xlu0 %v4083
    %v4293 = vpop.xlane.xlu0 %4292
    %4294 = vmax.xlane.f32.xlu0 %v4088
    %v4295 = vpop.xlane.xlu0 %4294
    %4296 = vmax.xlane.f32.xlu0 %v4091
    %v4297 = vpop.xlane.xlu0 %4296
    %4298 = vmax.xlane.f32.xlu0 %v4096
    %v4299 = vpop.xlane.xlu0 %4298
    %4300 = vmax.xlane.f32.xlu0 %v4099
    %v4301 = vpop.xlane.xlu0 %4300
    %4302 = vmax.xlane.f32.xlu0 %v4104
    %v4303 = vpop.xlane.xlu0 %4302
    %4304 = vmax.xlane.f32.xlu0 %v4107
    %v4305 = vpop.xlane.xlu0 %4304
    %4306 = vmax.xlane.f32.xlu0 %v4112
    %v4307 = vpop.xlane.xlu0 %4306
    %4308 = vmax.xlane.f32.xlu0 %v4115
    %v4309 = vpop.xlane.xlu0 %4308
    %4310 = vmax.xlane.f32.xlu0 %v4120
    %v4311 = vpop.xlane.xlu0 %4310
    %4312 = vmax.xlane.f32.xlu0 %v4123
    %v4313 = vpop.xlane.xlu0 %4312
    %4314 = vmax.xlane.f32.xlu0 %v4128
    %v4315 = vpop.xlane.xlu0 %4314
    %4316 = vmax.xlane.f32.xlu0 %v4131
    %v4317 = vpop.xlane.xlu0 %4316
    %4318 = vmax.xlane.f32.xlu0 %v4136
    %v4319 = vpop.xlane.xlu0 %4318
    %4320 = vmax.xlane.f32.xlu0 %v4139
    %v4321 = vpop.xlane.xlu0 %4320
    %4322 = vmax.xlane.f32.xlu0 %v4144
    %v4323 = vpop.xlane.xlu0 %4322
    %4324 = vmax.xlane.f32.xlu0 %v4147
    %v4325 = vpop.xlane.xlu0 %4324
    %4326 = vmax.xlane.f32.xlu0 %v4152
    %v4327 = vpop.xlane.xlu0 %4326
    %4328 = vmax.xlane.f32.xlu0 %v4155
    %v4329 = vpop.xlane.xlu0 %4328
    %4330 = vmax.xlane.f32.xlu0 %v4160
    %v4331 = vpop.xlane.xlu0 %4330
    %4332 = vmax.xlane.f32.xlu0 %v4163
    %v4333 = vpop.xlane.xlu0 %4332
    %4334 = vmax.xlane.f32.xlu0 %v4168
    %v4335 = vpop.xlane.xlu0 %4334
    %4336 = vmax.xlane.f32.xlu0 %v4171
    %v4337 = vpop.xlane.xlu0 %4336
    %4338 = vmax.xlane.f32.xlu0 %v4176
    %v4339 = vpop.xlane.xlu0 %4338
    %4340 = vmax.xlane.f32.xlu0 %v4179
    %v4341 = vpop.xlane.xlu0 %4340
    %4342 = vmax.xlane.f32.xlu0 %v4184
    %v4343 = vpop.xlane.xlu0 %4342
    %4344 = vmax.xlane.f32.xlu0 %v4187
    %v4345 = vpop.xlane.xlu0 %4344
    %4346 = vmax.xlane.f32.xlu0 %v4192
    %v4347 = vpop.xlane.xlu0 %4346
    %4348 = vmax.xlane.f32.xlu0 %v4195
    %v4349 = vpop.xlane.xlu0 %4348
    %4350 = vmax.xlane.f32.xlu0 %v4200
    %v4351 = vpop.xlane.xlu0 %4350
    %4352 = vmax.xlane.f32.xlu0 %v4203
    %v4353 = vpop.xlane.xlu0 %4352
    %4354 = vmax.xlane.f32.xlu0 %v4208
    %v4355 = vpop.xlane.xlu0 %4354
    %4356 = vmax.xlane.f32.xlu0 %v4211
    %v4357 = vpop.xlane.xlu0 %4356
    %4358 = vmax.xlane.f32.xlu0 %v4216
    %v4359 = vpop.xlane.xlu0 %4358
    %4360 = vmax.xlane.f32.xlu0 %v4219
    %v4361 = vpop.xlane.xlu0 %4360
    %4362 = vmax.xlane.f32.xlu0 %v4224
    %v4363 = vpop.xlane.xlu0 %4362
    %4364 = vmax.xlane.f32.xlu0 %v4227
    %v4365 = vpop.xlane.xlu0 %4364
    %4366 = vmax.xlane.f32.xlu0 %v4232
    %v4367 = vpop.xlane.xlu0 %4366
    %4368 = vmax.xlane.f32.xlu0 %v4235
    %v4369 = vpop.xlane.xlu0 %4368
    %4370 = vmax.xlane.f32.xlu0 %v4240
    %v4371 = vpop.xlane.xlu0 %4370
    %4372 = vmax.xlane.f32.xlu0 %v4243
    %v4373 = vpop.xlane.xlu0 %4372
    %v4374 = vsub.f32 %v3992, %v4247
    %v4375 = vsub.f32 %v3995, %v4249
    %v4376 = vsub.f32 %v4000, %v4251
    %v4377 = vsub.f32 %v4003, %v4253
    %v4378 = vsub.f32 %v4008, %v4255
    %v4379 = vsub.f32 %v4011, %v4257
    %v4380 = vsub.f32 %v4016, %v4259
    %v4381 = vsub.f32 %v4019, %v4261
    %v4382 = vsub.f32 %v4024, %v4263
    %v4383 = vsub.f32 %v4027, %v4265
    %v4384 = vsub.f32 %v4032, %v4267
    %v4385 = vsub.f32 %v4035, %v4269
    %v4386 = vsub.f32 %v4040, %v4271
    %v4387 = vsub.f32 %v4043, %v4273
    %v4388 = vsub.f32 %v4048, %v4275
    %v4389 = vsub.f32 %v4051, %v4277
    %v4390 = vsub.f32 %v4056, %v4279
    %v4391 = vsub.f32 %v4059, %v4281
    %v4392 = vsub.f32 %v4064, %v4283
    %v4393 = vsub.f32 %v4067, %v4285
    %v4394 = vsub.f32 %v4072, %v4287
    %v4395 = vsub.f32 %v4075, %v4289
    %v4396 = vsub.f32 %v4080, %v4291
    %v4397 = vsub.f32 %v4083, %v4293
    %v4398 = vsub.f32 %v4088, %v4295
    %v4399 = vsub.f32 %v4091, %v4297
    %v4400 = vsub.f32 %v4096, %v4299
    %v4401 = vsub.f32 %v4099, %v4301
    %v4402 = vsub.f32 %v4104, %v4303
    %v4403 = vsub.f32 %v4107, %v4305
    %v4404 = vsub.f32 %v4112, %v4307
    %v4405 = vsub.f32 %v4115, %v4309
    %v4406 = vsub.f32 %v4120, %v4311
    %v4407 = vsub.f32 %v4123, %v4313
    %v4408 = vsub.f32 %v4128, %v4315
    %v4409 = vsub.f32 %v4131, %v4317
    %v4410 = vsub.f32 %v4136, %v4319
    %v4411 = vsub.f32 %v4139, %v4321
    %v4412 = vsub.f32 %v4144, %v4323
    %v4413 = vsub.f32 %v4147, %v4325
    %v4414 = vsub.f32 %v4152, %v4327
    %v4415 = vsub.f32 %v4155, %v4329
    %v4416 = vsub.f32 %v4160, %v4331
    %v4417 = vsub.f32 %v4163, %v4333
    %v4418 = vsub.f32 %v4168, %v4335
    %v4419 = vsub.f32 %v4171, %v4337
    %v4420 = vsub.f32 %v4176, %v4339
    %v4421 = vsub.f32 %v4179, %v4341
    %v4422 = vsub.f32 %v4184, %v4343
    %v4423 = vsub.f32 %v4187, %v4345
    %v4424 = vsub.f32 %v4192, %v4347
    %v4425 = vsub.f32 %v4195, %v4349
    %v4426 = vsub.f32 %v4200, %v4351
    %v4427 = vsub.f32 %v4203, %v4353
    %v4428 = vsub.f32 %v4208, %v4355
    %v4429 = vsub.f32 %v4211, %v4357
    %v4430 = vsub.f32 %v4216, %v4359
    %v4431 = vsub.f32 %v4219, %v4361
    %v4432 = vsub.f32 %v4224, %v4363
    %v4433 = vsub.f32 %v4227, %v4365
    %v4434 = vsub.f32 %v4232, %v4367
    %v4435 = vsub.f32 %v4235, %v4369
    %v4436 = vsub.f32 %v4240, %v4371
    %v4437 = vsub.f32 %v4243, %v4373
    %v4438 = vmul.f32 %v4374, 1.442695
    %v4439 = vpow.pop %v4438
    %v4440 = vmul.f32 %v4375, 1.442695
    %v4441 = vpow.pop %v4440
    %v4442 = vmul.f32 %v4376, 1.442695
    %v4443 = vpow.pop %v4442
    %v4444 = vmul.f32 %v4377, 1.442695
    %v4445 = vpow.pop %v4444
    %v4446 = vmul.f32 %v4378, 1.442695
    %v4447 = vpow.pop %v4446
    %v4448 = vmul.f32 %v4379, 1.442695
    %v4449 = vpow.pop %v4448
    %v4450 = vmul.f32 %v4380, 1.442695
    %v4451 = vpow.pop %v4450
    %v4452 = vmul.f32 %v4381, 1.442695
    %v4453 = vpow.pop %v4452
    %v4454 = vmul.f32 %v4382, 1.442695
    %v4455 = vpow.pop %v4454
    %v4456 = vmul.f32 %v4383, 1.442695
    %v4457 = vpow.pop %v4456
    %v4458 = vmul.f32 %v4384, 1.442695
    %v4459 = vpow.pop %v4458
    %v4460 = vmul.f32 %v4385, 1.442695
    %v4461 = vpow.pop %v4460
    %v4462 = vmul.f32 %v4386, 1.442695
    %v4463 = vpow.pop %v4462
    %v4464 = vmul.f32 %v4387, 1.442695
    %v4465 = vpow.pop %v4464
    %v4466 = vmul.f32 %v4388, 1.442695
    %v4467 = vpow.pop %v4466
    %v4468 = vmul.f32 %v4389, 1.442695
    %v4469 = vpow.pop %v4468
    %v4470 = vmul.f32 %v4390, 1.442695
    %v4471 = vpow.pop %v4470
    %v4472 = vmul.f32 %v4391, 1.442695
    %v4473 = vpow.pop %v4472
    %v4474 = vmul.f32 %v4392, 1.442695
    %v4475 = vpow.pop %v4474
    %v4476 = vmul.f32 %v4393, 1.442695
    %v4477 = vpow.pop %v4476
    %v4478 = vmul.f32 %v4394, 1.442695
    %v4479 = vpow.pop %v4478
    %v4480 = vmul.f32 %v4395, 1.442695
    %v4481 = vpow.pop %v4480
    %v4482 = vmul.f32 %v4396, 1.442695
    %v4483 = vpow.pop %v4482
    %v4484 = vmul.f32 %v4397, 1.442695
    %v4485 = vpow.pop %v4484
    %v4486 = vmul.f32 %v4398, 1.442695
    %v4487 = vpow.pop %v4486
    %v4488 = vmul.f32 %v4399, 1.442695
    %v4489 = vpow.pop %v4488
    %v4490 = vmul.f32 %v4400, 1.442695
    %v4491 = vpow.pop %v4490
    %v4492 = vmul.f32 %v4401, 1.442695
    %v4493 = vpow.pop %v4492
    %v4494 = vmul.f32 %v4402, 1.442695
    %v4495 = vpow.pop %v4494
    %v4496 = vmul.f32 %v4403, 1.442695
    %v4497 = vpow.pop %v4496
    %v4498 = vmul.f32 %v4404, 1.442695
    %v4499 = vpow.pop %v4498
    %v4500 = vmul.f32 %v4405, 1.442695
    %v4501 = vpow.pop %v4500
    %v4502 = vmul.f32 %v4406, 1.442695
    %v4503 = vpow.pop %v4502
    %v4504 = vmul.f32 %v4407, 1.442695
    %v4505 = vpow.pop %v4504
    %v4506 = vmul.f32 %v4408, 1.442695
    %v4507 = vpow.pop %v4506
    %v4508 = vmul.f32 %v4409, 1.442695
    %v4509 = vpow.pop %v4508
    %v4510 = vmul.f32 %v4410, 1.442695
    %v4511 = vpow.pop %v4510
    %v4512 = vmul.f32 %v4411, 1.442695
    %v4513 = vpow.pop %v4512
    %v4514 = vmul.f32 %v4412, 1.442695
    %v4515 = vpow.pop %v4514
    %v4516 = vmul.f32 %v4413, 1.442695
    %v4517 = vpow.pop %v4516
    %v4518 = vmul.f32 %v4414, 1.442695
    %v4519 = vpow.pop %v4518
    %v4520 = vmul.f32 %v4415, 1.442695
    %v4521 = vpow.pop %v4520
    %v4522 = vmul.f32 %v4416, 1.442695
    %v4523 = vpow.pop %v4522
    %v4524 = vmul.f32 %v4417, 1.442695
    %v4525 = vpow.pop %v4524
    %v4526 = vmul.f32 %v4418, 1.442695
    %v4527 = vpow.pop %v4526
    %v4528 = vmul.f32 %v4419, 1.442695
    %v4529 = vpow.pop %v4528
    %v4530 = vmul.f32 %v4420, 1.442695
    %v4531 = vpow.pop %v4530
    %v4532 = vmul.f32 %v4421, 1.442695
    %v4533 = vpow.pop %v4532
    %v4534 = vmul.f32 %v4422, 1.442695
    %v4535 = vpow.pop %v4534
    %v4536 = vmul.f32 %v4423, 1.442695
    %v4537 = vpow.pop %v4536
    %v4538 = vmul.f32 %v4424, 1.442695
    %v4539 = vpow.pop %v4538
    %v4540 = vmul.f32 %v4425, 1.442695
    %v4541 = vpow.pop %v4540
    %v4542 = vmul.f32 %v4426, 1.442695
    %v4543 = vpow.pop %v4542
    %v4544 = vmul.f32 %v4427, 1.442695
    %v4545 = vpow.pop %v4544
    %v4546 = vmul.f32 %v4428, 1.442695
    %v4547 = vpow.pop %v4546
    %v4548 = vmul.f32 %v4429, 1.442695
    %v4549 = vpow.pop %v4548
    %v4550 = vmul.f32 %v4430, 1.442695
    %v4551 = vpow.pop %v4550
    %v4552 = vmul.f32 %v4431, 1.442695
    %v4553 = vpow.pop %v4552
    %v4554 = vmul.f32 %v4432, 1.442695
    %v4555 = vpow.pop %v4554
    %v4556 = vmul.f32 %v4433, 1.442695
    %v4557 = vpow.pop %v4556
    %v4558 = vmul.f32 %v4434, 1.442695
    %v4559 = vpow.pop %v4558
    %v4560 = vmul.f32 %v4435, 1.442695
    %v4561 = vpow.pop %v4560
    %v4562 = vmul.f32 %v4436, 1.442695
    %v4563 = vpow.pop %v4562
    %v4564 = vmul.f32 %v4437, 1.442695
    %v4565 = vpow.pop %v4564
    %4566 = vadd.xlane.f32.xlu0 %v4439
    %v4567 = vpop.xlane.xlu0 %4566
    %4568 = vadd.xlane.f32.xlu0 %v4441
    %v4569 = vpop.xlane.xlu0 %4568
    %4570 = vadd.xlane.f32.xlu0 %v4443
    %v4571 = vpop.xlane.xlu0 %4570
    %4572 = vadd.xlane.f32.xlu0 %v4445
    %v4573 = vpop.xlane.xlu0 %4572
    %4574 = vadd.xlane.f32.xlu0 %v4447
    %v4575 = vpop.xlane.xlu0 %4574
    %4576 = vadd.xlane.f32.xlu0 %v4449
    %v4577 = vpop.xlane.xlu0 %4576
    %4578 = vadd.xlane.f32.xlu0 %v4451
    %v4579 = vpop.xlane.xlu0 %4578
    %4580 = vadd.xlane.f32.xlu0 %v4453
    %v4581 = vpop.xlane.xlu0 %4580
    %4582 = vadd.xlane.f32.xlu0 %v4455
    %v4583 = vpop.xlane.xlu0 %4582
    %4584 = vadd.xlane.f32.xlu0 %v4457
    %v4585 = vpop.xlane.xlu0 %4584
    %4586 = vadd.xlane.f32.xlu0 %v4459
    %v4587 = vpop.xlane.xlu0 %4586
    %4588 = vadd.xlane.f32.xlu0 %v4461
    %v4589 = vpop.xlane.xlu0 %4588
    %4590 = vadd.xlane.f32.xlu0 %v4463
    %v4591 = vpop.xlane.xlu0 %4590
    %4592 = vadd.xlane.f32.xlu0 %v4465
    %v4593 = vpop.xlane.xlu0 %4592
    %4594 = vadd.xlane.f32.xlu0 %v4467
    %v4595 = vpop.xlane.xlu0 %4594
    %4596 = vadd.xlane.f32.xlu0 %v4469
    %v4597 = vpop.xlane.xlu0 %4596
    %4598 = vadd.xlane.f32.xlu0 %v4471
    %v4599 = vpop.xlane.xlu0 %4598
    %4600 = vadd.xlane.f32.xlu0 %v4473
    %v4601 = vpop.xlane.xlu0 %4600
    %4602 = vadd.xlane.f32.xlu0 %v4475
    %v4603 = vpop.xlane.xlu0 %4602
    %4604 = vadd.xlane.f32.xlu0 %v4477
    %v4605 = vpop.xlane.xlu0 %4604
    %4606 = vadd.xlane.f32.xlu0 %v4479
    %v4607 = vpop.xlane.xlu0 %4606
    %4608 = vadd.xlane.f32.xlu0 %v4481
    %v4609 = vpop.xlane.xlu0 %4608
    %4610 = vadd.xlane.f32.xlu0 %v4483
    %v4611 = vpop.xlane.xlu0 %4610
    %4612 = vadd.xlane.f32.xlu0 %v4485
    %v4613 = vpop.xlane.xlu0 %4612
    %4614 = vadd.xlane.f32.xlu0 %v4487
    %v4615 = vpop.xlane.xlu0 %4614
    %4616 = vadd.xlane.f32.xlu0 %v4489
    %v4617 = vpop.xlane.xlu0 %4616
    %4618 = vadd.xlane.f32.xlu0 %v4491
    %v4619 = vpop.xlane.xlu0 %4618
    %4620 = vadd.xlane.f32.xlu0 %v4493
    %v4621 = vpop.xlane.xlu0 %4620
    %4622 = vadd.xlane.f32.xlu0 %v4495
    %v4623 = vpop.xlane.xlu0 %4622
    %4624 = vadd.xlane.f32.xlu0 %v4497
    %v4625 = vpop.xlane.xlu0 %4624
    %4626 = vadd.xlane.f32.xlu0 %v4499
    %v4627 = vpop.xlane.xlu0 %4626
    %4628 = vadd.xlane.f32.xlu0 %v4501
    %v4629 = vpop.xlane.xlu0 %4628
    %4630 = vadd.xlane.f32.xlu0 %v4503
    %v4631 = vpop.xlane.xlu0 %4630
    %4632 = vadd.xlane.f32.xlu0 %v4505
    %v4633 = vpop.xlane.xlu0 %4632
    %4634 = vadd.xlane.f32.xlu0 %v4507
    %v4635 = vpop.xlane.xlu0 %4634
    %4636 = vadd.xlane.f32.xlu0 %v4509
    %v4637 = vpop.xlane.xlu0 %4636
    %4638 = vadd.xlane.f32.xlu0 %v4511
    %v4639 = vpop.xlane.xlu0 %4638
    %4640 = vadd.xlane.f32.xlu0 %v4513
    %v4641 = vpop.xlane.xlu0 %4640
    %4642 = vadd.xlane.f32.xlu0 %v4515
    %v4643 = vpop.xlane.xlu0 %4642
    %4644 = vadd.xlane.f32.xlu0 %v4517
    %v4645 = vpop.xlane.xlu0 %4644
    %4646 = vadd.xlane.f32.xlu0 %v4519
    %v4647 = vpop.xlane.xlu0 %4646
    %4648 = vadd.xlane.f32.xlu0 %v4521
    %v4649 = vpop.xlane.xlu0 %4648
    %4650 = vadd.xlane.f32.xlu0 %v4523
    %v4651 = vpop.xlane.xlu0 %4650
    %4652 = vadd.xlane.f32.xlu0 %v4525
    %v4653 = vpop.xlane.xlu0 %4652
    %4654 = vadd.xlane.f32.xlu0 %v4527
    %v4655 = vpop.xlane.xlu0 %4654
    %4656 = vadd.xlane.f32.xlu0 %v4529
    %v4657 = vpop.xlane.xlu0 %4656
    %4658 = vadd.xlane.f32.xlu0 %v4531
    %v4659 = vpop.xlane.xlu0 %4658
    %4660 = vadd.xlane.f32.xlu0 %v4533
    %v4661 = vpop.xlane.xlu0 %4660
    %4662 = vadd.xlane.f32.xlu0 %v4535
    %v4663 = vpop.xlane.xlu0 %4662
    %4664 = vadd.xlane.f32.xlu0 %v4537
    %v4665 = vpop.xlane.xlu0 %4664
    %4666 = vadd.xlane.f32.xlu0 %v4539
    %v4667 = vpop.xlane.xlu0 %4666
    %4668 = vadd.xlane.f32.xlu0 %v4541
    %v4669 = vpop.xlane.xlu0 %4668
    %4670 = vadd.xlane.f32.xlu0 %v4543
    %v4671 = vpop.xlane.xlu0 %4670
    %4672 = vadd.xlane.f32.xlu0 %v4545
    %v4673 = vpop.xlane.xlu0 %4672
    %4674 = vadd.xlane.f32.xlu0 %v4547
    %v4675 = vpop.xlane.xlu0 %4674
    %4676 = vadd.xlane.f32.xlu0 %v4549
    %v4677 = vpop.xlane.xlu0 %4676
    %4678 = vadd.xlane.f32.xlu0 %v4551
    %v4679 = vpop.xlane.xlu0 %4678
    %4680 = vadd.xlane.f32.xlu0 %v4553
    %v4681 = vpop.xlane.xlu0 %4680
    %4682 = vadd.xlane.f32.xlu0 %v4555
    %v4683 = vpop.xlane.xlu0 %4682
    %4684 = vadd.xlane.f32.xlu0 %v4557
    %v4685 = vpop.xlane.xlu0 %4684
    %4686 = vadd.xlane.f32.xlu0 %v4559
    %v4687 = vpop.xlane.xlu0 %4686
    %4688 = vadd.xlane.f32.xlu0 %v4561
    %v4689 = vpop.xlane.xlu0 %4688
    %4690 = vadd.xlane.f32.xlu0 %v4563
    %v4691 = vpop.xlane.xlu0 %4690
    %4692 = vadd.xlane.f32.xlu0 %v4565
    %v4693 = vpop.xlane.xlu0 %4692
    %v4694 = vpack.c.bf16 %v4441, %v4439
    %v4695 = vpack.c.bf16 %v4445, %v4443
    %v4696 = vpack.c.bf16 %v4449, %v4447
    %v4697 = vpack.c.bf16 %v4453, %v4451
    %v4698 = vpack.c.bf16 %v4457, %v4455
    %v4699 = vpack.c.bf16 %v4461, %v4459
    %v4700 = vpack.c.bf16 %v4465, %v4463
    %v4701 = vpack.c.bf16 %v4469, %v4467
    %v4702 = vpack.c.bf16 %v4473, %v4471
    %v4703 = vpack.c.bf16 %v4477, %v4475
    %v4704 = vpack.c.bf16 %v4481, %v4479
    %v4705 = vpack.c.bf16 %v4485, %v4483
    %v4706 = vpack.c.bf16 %v4489, %v4487
    %v4707 = vpack.c.bf16 %v4493, %v4491
    %v4708 = vpack.c.bf16 %v4497, %v4495
    %v4709 = vpack.c.bf16 %v4501, %v4499
    %v4710 = vpack.c.bf16 %v4505, %v4503
    %v4711 = vpack.c.bf16 %v4509, %v4507
    %v4712 = vpack.c.bf16 %v4513, %v4511
    %v4713 = vpack.c.bf16 %v4517, %v4515
    %v4714 = vpack.c.bf16 %v4521, %v4519
    %v4715 = vpack.c.bf16 %v4525, %v4523
    %v4716 = vpack.c.bf16 %v4529, %v4527
    %v4717 = vpack.c.bf16 %v4533, %v4531
    %v4718 = vpack.c.bf16 %v4537, %v4535
    %v4719 = vpack.c.bf16 %v4541, %v4539
    %v4720 = vpack.c.bf16 %v4545, %v4543
    %v4721 = vpack.c.bf16 %v4549, %v4547
    %v4722 = vpack.c.bf16 %v4553, %v4551
    %v4723 = vpack.c.bf16 %v4557, %v4555
    %v4724 = vpack.c.bf16 %v4561, %v4559
    %v4725 = vpack.c.bf16 %v4565, %v4563
    %4726 = vrot.lane.b32.xlu0 %v3676, 64
    %v4727 = vpop.permute.xlu0 %4726
    %4728 = vrot.lane.b32.xlu0 %v3677, 64
    %v4729 = vpop.permute.xlu0 %4728
    %4730 = vrot.lane.b32.xlu0 %v3678, 64
    %v4731 = vpop.permute.xlu0 %4730
    %4732 = vrot.lane.b32.xlu0 %v3679, 64
    %v4733 = vpop.permute.xlu0 %4732
    %4734 = vrot.lane.b32.xlu0 %v3680, 64
    %v4735 = vpop.permute.xlu0 %4734
    %4736 = vrot.lane.b32.xlu0 %v3681, 64
    %v4737 = vpop.permute.xlu0 %4736
    %4738 = vrot.lane.b32.xlu0 %v3682, 64
    %v4739 = vpop.permute.xlu0 %4738
    %4740 = vrot.lane.b32.xlu0 %v3683, 64
    %v4741 = vpop.permute.xlu0 %4740
    %4750 = vmatprep.subr.bf16.mxu0 0
    %4751 = vmatpush1.bf16.msra.mxu0 %v4741
    %4752 = vmatprep.subr.bf16.mxu0 0
    %4753 = vmatpush1.bf16.msra.mxu0 %v4739
    %4754 = vmatprep.subr.bf16.mxu0 0
    %4755 = vmatpush1.bf16.msra.mxu0 %v4737
    %4756 = vmatprep.subr.bf16.mxu0 0
    %4757 = vmatpush1.bf16.msra.mxu0 %v4735
    %4758 = vmatprep.subr.bf16.mxu0 0
    %4759 = vmatpush1.bf16.msra.mxu0 %v4733
    %4760 = vmatprep.subr.bf16.mxu0 0
    %4761 = vmatpush1.bf16.msra.mxu0 %v4731
    %4762 = vmatprep.subr.bf16.mxu0 0
    %4763 = vmatpush1.bf16.msra.mxu0 %v4729
    %4764 = vmatprep.subr.bf16.mxu0 0
    %4765 = vmatpush1.bf16.msra.mxu0 %v4727
    %4766 = vmatprep.subr.bf16.mxu0 0
    %4767 = vmatpush2.bf16.msra.mxu0 0
    %4768 = vmatprep.subr.bf16.mxu0 0
    %4769 = vmatpush2.bf16.msra.mxu0 0
    %4770 = vmatprep.subr.bf16.mxu0 0
    %4771 = vmatpush2.bf16.msra.mxu0 0
    %4772 = vmatprep.subr.bf16.mxu0 0
    %4773 = vmatpush2.bf16.msra.mxu0 0
    %4774 = vmatprep.subr.bf16.mxu0 0
    %4775 = vmatpush2.bf16.msra.mxu0 0
    %4776 = vmatprep.subr.bf16.mxu0 0
    %4777 = vmatpush2.bf16.msra.mxu0 0
    %4778 = vmatprep.subr.bf16.mxu0 0
    %4779 = vmatpush2.bf16.msra.mxu0 0
    %4780 = vmatprep.subr.bf16.mxu0 0
    %4781 = vmatpush2.bf16.msra.mxu0 0
    %4782 = vmatprep.mubr.bf16.mxu0 0
    %4783 = vmatmul.mubr.bf16.gmra.mxu0 %v4694
    %v4784 = vpop.f32.mrf.mxu0
    %v4785 = vadd.f32 0.0, %v4784
    %v4786 = vpop.f32.mrf.mxu0
    %v4787 = vpop.f32.mrf.mxu0
    %v4788 = vadd.f32 0.0, %v4787
    %v4789 = vpop.f32.mrf.mxu0
    %4790 = vmatprep.mubr.bf16.mxu0 0
    %4791 = vmatmul.mubr.bf16.gmra.mxu0 %v4695
    %v4792 = vpop.f32.mrf.mxu0
    %v4793 = vadd.f32 0.0, %v4792
    %v4794 = vpop.f32.mrf.mxu0
    %v4795 = vpop.f32.mrf.mxu0
    %v4796 = vadd.f32 0.0, %v4795
    %v4797 = vpop.f32.mrf.mxu0
    %4798 = vmatprep.mubr.bf16.mxu0 0
    %4799 = vmatmul.mubr.bf16.gmra.mxu0 %v4696
    %v4800 = vpop.f32.mrf.mxu0
    %v4801 = vadd.f32 0.0, %v4800
    %v4802 = vpop.f32.mrf.mxu0
    %v4803 = vpop.f32.mrf.mxu0
    %v4804 = vadd.f32 0.0, %v4803
    %v4805 = vpop.f32.mrf.mxu0
    %4806 = vmatprep.mubr.bf16.mxu0 0
    %4807 = vmatmul.mubr.bf16.gmra.mxu0 %v4697
    %v4808 = vpop.f32.mrf.mxu0
    %v4809 = vadd.f32 0.0, %v4808
    %v4810 = vpop.f32.mrf.mxu0
    %v4811 = vpop.f32.mrf.mxu0
    %v4812 = vadd.f32 0.0, %v4811
    %v4813 = vpop.f32.mrf.mxu0
    %4814 = vmatprep.mubr.bf16.mxu0 0
    %4815 = vmatmul.mubr.bf16.gmra.mxu0 %v4698
    %v4816 = vpop.f32.mrf.mxu0
    %v4817 = vadd.f32 0.0, %v4816
    %v4818 = vpop.f32.mrf.mxu0
    %v4819 = vpop.f32.mrf.mxu0
    %v4820 = vadd.f32 0.0, %v4819
    %v4821 = vpop.f32.mrf.mxu0
    %4822 = vmatprep.mubr.bf16.mxu0 0
    %4823 = vmatmul.mubr.bf16.gmra.mxu0 %v4699
    %v4824 = vpop.f32.mrf.mxu0
    %v4825 = vadd.f32 0.0, %v4824
    %v4826 = vpop.f32.mrf.mxu0
    %v4827 = vpop.f32.mrf.mxu0
    %v4828 = vadd.f32 0.0, %v4827
    %v4829 = vpop.f32.mrf.mxu0
    %4830 = vmatprep.mubr.bf16.mxu0 0
    %4831 = vmatmul.mubr.bf16.gmra.mxu0 %v4700
    %v4832 = vpop.f32.mrf.mxu0
    %v4833 = vadd.f32 0.0, %v4832
    %v4834 = vpop.f32.mrf.mxu0
    %v4835 = vpop.f32.mrf.mxu0
    %v4836 = vadd.f32 0.0, %v4835
    %v4837 = vpop.f32.mrf.mxu0
    %4838 = vmatprep.mubr.bf16.mxu0 0
    %4839 = vmatmul.mubr.bf16.gmra.mxu0 %v4701
    %v4840 = vpop.f32.mrf.mxu0
    %v4841 = vadd.f32 0.0, %v4840
    %v4842 = vpop.f32.mrf.mxu0
    %v4843 = vpop.f32.mrf.mxu0
    %v4844 = vadd.f32 0.0, %v4843
    %v4845 = vpop.f32.mrf.mxu0
    %4846 = vmatprep.mubr.bf16.mxu0 0
    %4847 = vmatmul.mubr.bf16.gmra.mxu0 %v4702
    %v4848 = vpop.f32.mrf.mxu0
    %v4849 = vadd.f32 0.0, %v4848
    %v4850 = vpop.f32.mrf.mxu0
    %v4851 = vpop.f32.mrf.mxu0
    %v4852 = vadd.f32 0.0, %v4851
    %v4853 = vpop.f32.mrf.mxu0
    %4854 = vmatprep.mubr.bf16.mxu0 0
    %4855 = vmatmul.mubr.bf16.gmra.mxu0 %v4703
    %v4856 = vpop.f32.mrf.mxu0
    %v4857 = vadd.f32 0.0, %v4856
    %v4858 = vpop.f32.mrf.mxu0
    %v4859 = vpop.f32.mrf.mxu0
    %v4860 = vadd.f32 0.0, %v4859
    %v4861 = vpop.f32.mrf.mxu0
    %4862 = vmatprep.mubr.bf16.mxu0 0
    %4863 = vmatmul.mubr.bf16.gmra.mxu0 %v4704
    %v4864 = vpop.f32.mrf.mxu0
    %v4865 = vadd.f32 0.0, %v4864
    %v4866 = vpop.f32.mrf.mxu0
    %v4867 = vpop.f32.mrf.mxu0
    %v4868 = vadd.f32 0.0, %v4867
    %v4869 = vpop.f32.mrf.mxu0
    %4870 = vmatprep.mubr.bf16.mxu0 0
    %4871 = vmatmul.mubr.bf16.gmra.mxu0 %v4705
    %v4872 = vpop.f32.mrf.mxu0
    %v4873 = vadd.f32 0.0, %v4872
    %v4874 = vpop.f32.mrf.mxu0
    %v4875 = vpop.f32.mrf.mxu0
    %v4876 = vadd.f32 0.0, %v4875
    %v4877 = vpop.f32.mrf.mxu0
    %4878 = vmatprep.mubr.bf16.mxu0 0
    %4879 = vmatmul.mubr.bf16.gmra.mxu0 %v4706
    %v4880 = vpop.f32.mrf.mxu0
    %v4881 = vadd.f32 0.0, %v4880
    %v4882 = vpop.f32.mrf.mxu0
    %v4883 = vpop.f32.mrf.mxu0
    %v4884 = vadd.f32 0.0, %v4883
    %v4885 = vpop.f32.mrf.mxu0
    %4886 = vmatprep.mubr.bf16.mxu0 0
    %4887 = vmatmul.mubr.bf16.gmra.mxu0 %v4707
    %v4888 = vpop.f32.mrf.mxu0
    %v4889 = vadd.f32 0.0, %v4888
    %v4890 = vpop.f32.mrf.mxu0
    %v4891 = vpop.f32.mrf.mxu0
    %v4892 = vadd.f32 0.0, %v4891
    %v4893 = vpop.f32.mrf.mxu0
    %4894 = vmatprep.mubr.bf16.mxu0 0
    %4895 = vmatmul.mubr.bf16.gmra.mxu0 %v4708
    %v4896 = vpop.f32.mrf.mxu0
    %v4897 = vadd.f32 0.0, %v4896
    %v4898 = vpop.f32.mrf.mxu0
    %v4899 = vpop.f32.mrf.mxu0
    %v4900 = vadd.f32 0.0, %v4899
    %v4901 = vpop.f32.mrf.mxu0
    %4902 = vmatprep.mubr.bf16.mxu0 0
    %4903 = vmatmul.mubr.bf16.gmra.mxu0 %v4709
    %v4904 = vpop.f32.mrf.mxu0
    %v4905 = vadd.f32 0.0, %v4904
    %v4906 = vpop.f32.mrf.mxu0
    %v4907 = vpop.f32.mrf.mxu0
    %v4908 = vadd.f32 0.0, %v4907
    %v4909 = vpop.f32.mrf.mxu0
    %4910 = vmatprep.mubr.bf16.mxu0 0
    %4911 = vmatmul.mubr.bf16.gmra.mxu0 %v4710
    %v4912 = vpop.f32.mrf.mxu0
    %v4913 = vadd.f32 0.0, %v4912
    %v4914 = vpop.f32.mrf.mxu0
    %v4915 = vpop.f32.mrf.mxu0
    %v4916 = vadd.f32 0.0, %v4915
    %v4917 = vpop.f32.mrf.mxu0
    %4918 = vmatprep.mubr.bf16.mxu0 0
    %4919 = vmatmul.mubr.bf16.gmra.mxu0 %v4711
    %v4920 = vpop.f32.mrf.mxu0
    %v4921 = vadd.f32 0.0, %v4920
    %v4922 = vpop.f32.mrf.mxu0
    %v4923 = vpop.f32.mrf.mxu0
    %v4924 = vadd.f32 0.0, %v4923
    %v4925 = vpop.f32.mrf.mxu0
    %4926 = vmatprep.mubr.bf16.mxu0 0
    %4927 = vmatmul.mubr.bf16.gmra.mxu0 %v4712
    %v4928 = vpop.f32.mrf.mxu0
    %v4929 = vadd.f32 0.0, %v4928
    %v4930 = vpop.f32.mrf.mxu0
    %v4931 = vpop.f32.mrf.mxu0
    %v4932 = vadd.f32 0.0, %v4931
    %v4933 = vpop.f32.mrf.mxu0
    %4934 = vmatprep.mubr.bf16.mxu0 0
    %4935 = vmatmul.mubr.bf16.gmra.mxu0 %v4713
    %v4936 = vpop.f32.mrf.mxu0
    %v4937 = vadd.f32 0.0, %v4936
    %v4938 = vpop.f32.mrf.mxu0
    %v4939 = vpop.f32.mrf.mxu0
    %v4940 = vadd.f32 0.0, %v4939
    %v4941 = vpop.f32.mrf.mxu0
    %4942 = vmatprep.mubr.bf16.mxu0 0
    %4943 = vmatmul.mubr.bf16.gmra.mxu0 %v4714
    %v4944 = vpop.f32.mrf.mxu0
    %v4945 = vadd.f32 0.0, %v4944
    %v4946 = vpop.f32.mrf.mxu0
    %v4947 = vpop.f32.mrf.mxu0
    %v4948 = vadd.f32 0.0, %v4947
    %v4949 = vpop.f32.mrf.mxu0
    %4950 = vmatprep.mubr.bf16.mxu0 0
    %4951 = vmatmul.mubr.bf16.gmra.mxu0 %v4715
    %v4952 = vpop.f32.mrf.mxu0
    %v4953 = vadd.f32 0.0, %v4952
    %v4954 = vpop.f32.mrf.mxu0
    %v4955 = vpop.f32.mrf.mxu0
    %v4956 = vadd.f32 0.0, %v4955
    %v4957 = vpop.f32.mrf.mxu0
    %4958 = vmatprep.mubr.bf16.mxu0 0
    %4959 = vmatmul.mubr.bf16.gmra.mxu0 %v4716
    %v4960 = vpop.f32.mrf.mxu0
    %v4961 = vadd.f32 0.0, %v4960
    %v4962 = vpop.f32.mrf.mxu0
    %v4963 = vpop.f32.mrf.mxu0
    %v4964 = vadd.f32 0.0, %v4963
    %v4965 = vpop.f32.mrf.mxu0
    %4966 = vmatprep.mubr.bf16.mxu0 0
    %4967 = vmatmul.mubr.bf16.gmra.mxu0 %v4717
    %v4968 = vpop.f32.mrf.mxu0
    %v4969 = vadd.f32 0.0, %v4968
    %v4970 = vpop.f32.mrf.mxu0
    %v4971 = vpop.f32.mrf.mxu0
    %v4972 = vadd.f32 0.0, %v4971
    %v4973 = vpop.f32.mrf.mxu0
    %4974 = vmatprep.mubr.bf16.mxu0 0
    %4975 = vmatmul.mubr.bf16.gmra.mxu0 %v4718
    %v4976 = vpop.f32.mrf.mxu0
    %v4977 = vadd.f32 0.0, %v4976
    %v4978 = vpop.f32.mrf.mxu0
    %v4979 = vpop.f32.mrf.mxu0
    %v4980 = vadd.f32 0.0, %v4979
    %v4981 = vpop.f32.mrf.mxu0
    %4982 = vmatprep.mubr.bf16.mxu0 0
    %4983 = vmatmul.mubr.bf16.gmra.mxu0 %v4719
    %v4984 = vpop.f32.mrf.mxu0
    %v4985 = vadd.f32 0.0, %v4984
    %v4986 = vpop.f32.mrf.mxu0
    %v4987 = vpop.f32.mrf.mxu0
    %v4988 = vadd.f32 0.0, %v4987
    %v4989 = vpop.f32.mrf.mxu0
    %4990 = vmatprep.mubr.bf16.mxu0 0
    %4991 = vmatmul.mubr.bf16.gmra.mxu0 %v4720
    %v4992 = vpop.f32.mrf.mxu0
    %v4993 = vadd.f32 0.0, %v4992
    %v4994 = vpop.f32.mrf.mxu0
    %v4995 = vpop.f32.mrf.mxu0
    %v4996 = vadd.f32 0.0, %v4995
    %v4997 = vpop.f32.mrf.mxu0
    %4998 = vmatprep.mubr.bf16.mxu0 0
    %4999 = vmatmul.mubr.bf16.gmra.mxu0 %v4721
    %v5000 = vpop.f32.mrf.mxu0
    %v5001 = vadd.f32 0.0, %v5000
    %v5002 = vpop.f32.mrf.mxu0
    %v5003 = vpop.f32.mrf.mxu0
    %v5004 = vadd.f32 0.0, %v5003
    %v5005 = vpop.f32.mrf.mxu0
    %5006 = vmatprep.mubr.bf16.mxu0 0
    %5007 = vmatmul.mubr.bf16.gmra.mxu0 %v4722
    %v5008 = vpop.f32.mrf.mxu0
    %v5009 = vadd.f32 0.0, %v5008
    %v5010 = vpop.f32.mrf.mxu0
    %v5011 = vpop.f32.mrf.mxu0
    %v5012 = vadd.f32 0.0, %v5011
    %v5013 = vpop.f32.mrf.mxu0
    %5014 = vmatprep.mubr.bf16.mxu0 0
    %5015 = vmatmul.mubr.bf16.gmra.mxu0 %v4723
    %v5016 = vpop.f32.mrf.mxu0
    %v5017 = vadd.f32 0.0, %v5016
    %v5018 = vpop.f32.mrf.mxu0
    %v5019 = vpop.f32.mrf.mxu0
    %v5020 = vadd.f32 0.0, %v5019
    %v5021 = vpop.f32.mrf.mxu0
    %5022 = vmatprep.mubr.bf16.mxu0 0
    %5023 = vmatmul.mubr.bf16.gmra.mxu0 %v4724
    %v5024 = vpop.f32.mrf.mxu0
    %v5025 = vadd.f32 0.0, %v5024
    %v5026 = vpop.f32.mrf.mxu0
    %v5027 = vpop.f32.mrf.mxu0
    %v5028 = vadd.f32 0.0, %v5027
    %v5029 = vpop.f32.mrf.mxu0
    %5030 = vmatprep.mubr.bf16.mxu0 0
    %5031 = vmatmul.mubr.bf16.gmra.mxu0 %v4725
    %v5032 = vpop.f32.mrf.mxu0
    %v5033 = vadd.f32 0.0, %v5032
    %v5034 = vpop.f32.mrf.mxu0
    %v5035 = vpop.f32.mrf.mxu0
    %v5036 = vadd.f32 0.0, %v5035
    %v5037 = vpop.f32.mrf.mxu0
    %5038 = vdwg.mxu0
    %v5039 = vrcp.pop %v4567
    %v5040 = vrcp.pop %v4569
    %v5041 = vrcp.pop %v4571
    %v5042 = vrcp.pop %v4573
    %v5043 = vrcp.pop %v4575
    %v5044 = vrcp.pop %v4577
    %v5045 = vrcp.pop %v4579
    %v5046 = vrcp.pop %v4581
    %v5047 = vrcp.pop %v4583
    %v5048 = vrcp.pop %v4585
    %v5049 = vrcp.pop %v4587
    %v5050 = vrcp.pop %v4589
    %v5051 = vrcp.pop %v4591
    %v5052 = vrcp.pop %v4593
    %v5053 = vrcp.pop %v4595
    %v5054 = vrcp.pop %v4597
    %v5055 = vrcp.pop %v4599
    %v5056 = vrcp.pop %v4601
    %v5057 = vrcp.pop %v4603
    %v5058 = vrcp.pop %v4605
    %v5059 = vrcp.pop %v4607
    %v5060 = vrcp.pop %v4609
    %v5061 = vrcp.pop %v4611
    %v5062 = vrcp.pop %v4613
    %v5063 = vrcp.pop %v4615
    %v5064 = vrcp.pop %v4617
    %v5065 = vrcp.pop %v4619
    %v5066 = vrcp.pop %v4621
    %v5067 = vrcp.pop %v4623
    %v5068 = vrcp.pop %v4625
    %v5069 = vrcp.pop %v4627
    %v5070 = vrcp.pop %v4629
    %v5071 = vrcp.pop %v4631
    %v5072 = vrcp.pop %v4633
    %v5073 = vrcp.pop %v4635
    %v5074 = vrcp.pop %v4637
    %v5075 = vrcp.pop %v4639
    %v5076 = vrcp.pop %v4641
    %v5077 = vrcp.pop %v4643
    %v5078 = vrcp.pop %v4645
    %v5079 = vrcp.pop %v4647
    %v5080 = vrcp.pop %v4649
    %v5081 = vrcp.pop %v4651
    %v5082 = vrcp.pop %v4653
    %v5083 = vrcp.pop %v4655
    %v5084 = vrcp.pop %v4657
    %v5085 = vrcp.pop %v4659
    %v5086 = vrcp.pop %v4661
    %v5087 = vrcp.pop %v4663
    %v5088 = vrcp.pop %v4665
    %v5089 = vrcp.pop %v4667
    %v5090 = vrcp.pop %v4669
    %v5091 = vrcp.pop %v4671
    %v5092 = vrcp.pop %v4673
    %v5093 = vrcp.pop %v4675
    %v5094 = vrcp.pop %v4677
    %v5095 = vrcp.pop %v4679
    %v5096 = vrcp.pop %v4681
    %v5097 = vrcp.pop %v4683
    %v5098 = vrcp.pop %v4685
    %v5099 = vrcp.pop %v4687
    %v5100 = vrcp.pop %v4689
    %v5101 = vrcp.pop %v4691
    %v5102 = vrcp.pop %v4693
    %v5103 = vmul.f32 %v4785, %v105
    %v5104 = vmul.f32 %v4788, %v106
    %v5105 = vmul.f32 %v4793, %v107
    %v5106 = vmul.f32 %v4796, %v108
    %v5107 = vmul.f32 %v4801, %v109
    %v5108 = vmul.f32 %v4804, %v110
    %v5109 = vmul.f32 %v4809, %v111
    %v5110 = vmul.f32 %v4812, %v112
    %v5111 = vmul.f32 %v4817, %v113
    %v5112 = vmul.f32 %v4820, %v114
    %v5113 = vmul.f32 %v4825, %v115
    %v5114 = vmul.f32 %v4828, %v116
    %v5115 = vmul.f32 %v4833, %v117
    %v5116 = vmul.f32 %v4836, %v118
    %v5117 = vmul.f32 %v4841, %v119
    %v5118 = vmul.f32 %v4844, %v120
    %v5119 = vmul.f32 %v4849, %v121
    %v5120 = vmul.f32 %v4852, %v122
    %v5121 = vmul.f32 %v4857, %v123
    %v5122 = vmul.f32 %v4860, %v124
    %v5123 = vmul.f32 %v4865, %v125
    %v5124 = vmul.f32 %v4868, %v126
    %v5125 = vmul.f32 %v4873, %v127
    %v5126 = vmul.f32 %v4876, %v128
    %v5127 = vmul.f32 %v4881, %v129
    %v5128 = vmul.f32 %v4884, %v130
    %v5129 = vmul.f32 %v4889, %v131
    %v5130 = vmul.f32 %v4892, %v132
    %v5131 = vmul.f32 %v4897, %v133
    %v5132 = vmul.f32 %v4900, %v134
    %v5133 = vmul.f32 %v4905, %v135
    %v5134 = vmul.f32 %v4908, %v136
    %v5135 = vmul.f32 %v4913, %v137
    %v5136 = vmul.f32 %v4916, %v138
    %v5137 = vmul.f32 %v4921, %v139
    %v5138 = vmul.f32 %v4924, %v140
    %v5139 = vmul.f32 %v4929, %v141
    %v5140 = vmul.f32 %v4932, %v142
    %v5141 = vmul.f32 %v4937, %v143
    %v5142 = vmul.f32 %v4940, %v144
    %v5143 = vmul.f32 %v4945, %v145
    %v5144 = vmul.f32 %v4948, %v146
    %v5145 = vmul.f32 %v4953, %v147
    %v5146 = vmul.f32 %v4956, %v148
    %v5147 = vmul.f32 %v4961, %v149
    %v5148 = vmul.f32 %v4964, %v150
    %v5149 = vmul.f32 %v4969, %v151
    %v5150 = vmul.f32 %v4972, %v152
    %v5151 = vmul.f32 %v4977, %v153
    %v5152 = vmul.f32 %v4980, %v154
    %v5153 = vmul.f32 %v4985, %v155
    %v5154 = vmul.f32 %v4988, %v156
    %v5155 = vmul.f32 %v4993, %v157
    %v5156 = vmul.f32 %v4996, %v158
    %v5157 = vmul.f32 %v5001, %v159
    %v5158 = vmul.f32 %v5004, %v160
    %v5159 = vmul.f32 %v5009, %v161
    %v5160 = vmul.f32 %v5012, %v162
    %v5161 = vmul.f32 %v5017, %v163
    %v5162 = vmul.f32 %v5020, %v164
    %v5163 = vmul.f32 %v5025, %v165
    %v5164 = vmul.f32 %v5028, %v166
    %v5165 = vmul.f32 %v5033, %v167
    %v5166 = vmul.f32 %v5036, %v168
    %v5167 = vmul.f32 %v5103, %v5039
    %v5168 = vmul.f32 %v5104, %v5040
    %v5169 = vmul.f32 %v5105, %v5041
    %v5170 = vmul.f32 %v5106, %v5042
    %v5171 = vmul.f32 %v5107, %v5043
    %v5172 = vmul.f32 %v5108, %v5044
    %v5173 = vmul.f32 %v5109, %v5045
    %v5174 = vmul.f32 %v5110, %v5046
    %v5175 = vmul.f32 %v5111, %v5047
    %v5176 = vmul.f32 %v5112, %v5048
    %v5177 = vmul.f32 %v5113, %v5049
    %v5178 = vmul.f32 %v5114, %v5050
    %v5179 = vmul.f32 %v5115, %v5051
    %v5180 = vmul.f32 %v5116, %v5052
    %v5181 = vmul.f32 %v5117, %v5053
    %v5182 = vmul.f32 %v5118, %v5054
    %v5183 = vmul.f32 %v5119, %v5055
    %v5184 = vmul.f32 %v5120, %v5056
    %v5185 = vmul.f32 %v5121, %v5057
    %v5186 = vmul.f32 %v5122, %v5058
    %v5187 = vmul.f32 %v5123, %v5059
    %v5188 = vmul.f32 %v5124, %v5060
    %v5189 = vmul.f32 %v5125, %v5061
    %v5190 = vmul.f32 %v5126, %v5062
    %v5191 = vmul.f32 %v5127, %v5063
    %v5192 = vmul.f32 %v5128, %v5064
    %v5193 = vmul.f32 %v5129, %v5065
    %v5194 = vmul.f32 %v5130, %v5066
    %v5195 = vmul.f32 %v5131, %v5067
    %v5196 = vmul.f32 %v5132, %v5068
    %v5197 = vmul.f32 %v5133, %v5069
    %v5198 = vmul.f32 %v5134, %v5070
    %v5199 = vmul.f32 %v5135, %v5071
    %v5200 = vmul.f32 %v5136, %v5072
    %v5201 = vmul.f32 %v5137, %v5073
    %v5202 = vmul.f32 %v5138, %v5074
    %v5203 = vmul.f32 %v5139, %v5075
    %v5204 = vmul.f32 %v5140, %v5076
    %v5205 = vmul.f32 %v5141, %v5077
    %v5206 = vmul.f32 %v5142, %v5078
    %v5207 = vmul.f32 %v5143, %v5079
    %v5208 = vmul.f32 %v5144, %v5080
    %v5209 = vmul.f32 %v5145, %v5081
    %v5210 = vmul.f32 %v5146, %v5082
    %v5211 = vmul.f32 %v5147, %v5083
    %v5212 = vmul.f32 %v5148, %v5084
    %v5213 = vmul.f32 %v5149, %v5085
    %v5214 = vmul.f32 %v5150, %v5086
    %v5215 = vmul.f32 %v5151, %v5087
    %v5216 = vmul.f32 %v5152, %v5088
    %v5217 = vmul.f32 %v5153, %v5089
    %v5218 = vmul.f32 %v5154, %v5090
    %v5219 = vmul.f32 %v5155, %v5091
    %v5220 = vmul.f32 %v5156, %v5092
    %v5221 = vmul.f32 %v5157, %v5093
    %v5222 = vmul.f32 %v5158, %v5094
    %v5223 = vmul.f32 %v5159, %v5095
    %v5224 = vmul.f32 %v5160, %v5096
    %v5225 = vmul.f32 %v5161, %v5097
    %v5226 = vmul.f32 %v5162, %v5098
    %v5227 = vmul.f32 %v5163, %v5099
    %v5228 = vmul.f32 %v5164, %v5100
    %v5229 = vmul.f32 %v5165, %v5101
    %v5230 = vmul.f32 %v5166, %v5102
    %v5231 = vadd.f32 %v5167, %v5183
    %v5232 = vadd.f32 %v5168, %v5184
    %v5233 = vadd.f32 %v5169, %v5185
    %v5234 = vadd.f32 %v5170, %v5186
    %v5235 = vadd.f32 %v5171, %v5187
    %v5236 = vadd.f32 %v5172, %v5188
    %v5237 = vadd.f32 %v5173, %v5189
    %v5238 = vadd.f32 %v5174, %v5190
    %v5239 = vadd.f32 %v5175, %v5191
    %v5240 = vadd.f32 %v5176, %v5192
    %v5241 = vadd.f32 %v5177, %v5193
    %v5242 = vadd.f32 %v5178, %v5194
    %v5243 = vadd.f32 %v5179, %v5195
    %v5244 = vadd.f32 %v5180, %v5196
    %v5245 = vadd.f32 %v5181, %v5197
    %v5246 = vadd.f32 %v5182, %v5198
    %v5247 = vadd.f32 %v5231, %v5199
    %v5248 = vadd.f32 %v5232, %v5200
    %v5249 = vadd.f32 %v5233, %v5201
    %v5250 = vadd.f32 %v5234, %v5202
    %v5251 = vadd.f32 %v5235, %v5203
    %v5252 = vadd.f32 %v5236, %v5204
    %v5253 = vadd.f32 %v5237, %v5205
    %v5254 = vadd.f32 %v5238, %v5206
    %v5255 = vadd.f32 %v5239, %v5207
    %v5256 = vadd.f32 %v5240, %v5208
    %v5257 = vadd.f32 %v5241, %v5209
    %v5258 = vadd.f32 %v5242, %v5210
    %v5259 = vadd.f32 %v5243, %v5211
    %v5260 = vadd.f32 %v5244, %v5212
    %v5261 = vadd.f32 %v5245, %v5213
    %v5262 = vadd.f32 %v5246, %v5214
    %v5263 = vadd.f32 %v5247, %v5215
    %v5264 = vadd.f32 %v5248, %v5216
    %v5265 = vadd.f32 %v5249, %v5217
    %v5266 = vadd.f32 %v5250, %v5218
    %v5267 = vadd.f32 %v5251, %v5219
    %v5268 = vadd.f32 %v5252, %v5220
    %v5269 = vadd.f32 %v5253, %v5221
    %v5270 = vadd.f32 %v5254, %v5222
    %v5271 = vadd.f32 %v5255, %v5223
    %v5272 = vadd.f32 %v5256, %v5224
    %v5273 = vadd.f32 %v5257, %v5225
    %v5274 = vadd.f32 %v5258, %v5226
    %v5275 = vadd.f32 %v5259, %v5227
    %v5276 = vadd.f32 %v5260, %v5228
    %v5277 = vadd.f32 %v5261, %v5229
    %v5278 = vadd.f32 %v5262, %v5230
    %v5279 = vpack.c.bf16 %v5264, %v5263
    %v5280 = vpack.c.bf16 %v5266, %v5265
    %v5281 = vpack.c.bf16 %v5268, %v5267
    %v5282 = vpack.c.bf16 %v5270, %v5269
    %v5283 = vpack.c.bf16 %v5272, %v5271
    %v5284 = vpack.c.bf16 %v5274, %v5273
    %v5285 = vpack.c.bf16 %v5276, %v5275
    %v5286 = vpack.c.bf16 %v5278, %v5277
    %s5287 = scalar_lea.vmem %s8, 16
    %v5288 = vld [vmem:[%s5287] sm:$0xf]
    %v5289 = vld [vmem:[%s5287 + $0x4] sm:$0xf]
    %v5290 = vld [vmem:[%s5287 + $0x8] sm:$0xf]
    %v5291 = vld [vmem:[%s5287 + $0xc] sm:$0xf]
    %s5292 = scalar_lea.vmem %s9, 1
    %v5293 = vld [vmem:[%s5292] sm:$0x1]
    %v5295 = vlaneseq
    %v5296 = vshrl.u32 %v5295, 7
    %v5297 = vsub.s32 0, %v5296
    %v5298 = vrot.slane %v5293, %v5297
    %v5304 = vunpack.c.l.b16 %v5288
    %v5305 = vunpack.c.l.b16 %v5289
    %v5306 = vunpack.c.l.b16 %v5290
    %v5307 = vunpack.c.l.b16 %v5291
    %v5308 = vpack.c.b16 %v5305, %v5304
    %v5309 = vpack.c.b16 %v5307, %v5306
    %v5313 = vsel %vm171, %v5279, 0
    %v5316 = vsel %vm171, %v5280, 0
    %v5319 = vsel %vm171, %v5281, 0
    %v5322 = vsel %vm171, %v5282, 0
    %v5325 = vsel %vm171, %v5283, 0
    %v5328 = vsel %vm171, %v5284, 0
    %v5331 = vsel %vm171, %v5285, 0
    %v5334 = vsel %vm171, %v5286, 0
    %5336 = vmatprep.subr.bf16.mxu0 0
    %5337 = vmatpush1.bf16.msra.mxu0 0
    %5338 = vmatprep.subr.bf16.mxu0 0
    %5339 = vmatpush1.bf16.msra.mxu0 0
    %5340 = vmatprep.subr.bf16.mxu0 0
    %5341 = vmatpush1.bf16.msra.mxu0 0
    %5342 = vmatprep.subr.bf16.mxu0 0
    %5343 = vmatpush1.bf16.msra.mxu0 0
    %5344 = vmatprep.subr.bf16.mxu0 0
    %5345 = vmatpush1.bf16.msra.mxu0 0
    %5346 = vmatprep.subr.bf16.mxu0 0
    %5347 = vmatpush1.bf16.msra.mxu0 0
    %5348 = vmatprep.subr.bf16.mxu0 0
    %5349 = vmatpush1.bf16.msra.mxu0 %v5309
    %5350 = vmatprep.subr.bf16.mxu0 0
    %5351 = vmatpush1.bf16.msra.mxu0 %v5308
    %5352 = vmatprep.subr.bf16.mxu0 0
    %5353 = vmatpush2.bf16.msra.mxu0 0
    %5354 = vmatprep.subr.bf16.mxu0 0
    %5355 = vmatpush2.bf16.msra.mxu0 0
    %5356 = vmatprep.subr.bf16.mxu0 0
    %5357 = vmatpush2.bf16.msra.mxu0 0
    %5358 = vmatprep.subr.bf16.mxu0 0
    %5359 = vmatpush2.bf16.msra.mxu0 0
    %5360 = vmatprep.subr.bf16.mxu0 0
    %5361 = vmatpush2.bf16.msra.mxu0 0
    %5362 = vmatprep.subr.bf16.mxu0 0
    %5363 = vmatpush2.bf16.msra.mxu0 0
    %5364 = vmatprep.subr.bf16.mxu0 0
    %5365 = vmatpush2.bf16.msra.mxu0 0
    %5366 = vmatprep.subr.bf16.mxu0 0
    %5367 = vmatpush2.bf16.msra.mxu0 0
    %5368 = vmatprep.mubr.bf16.mxu0 0
    %5369 = vmatmul.mubr.bf16.gmra.mxu0 %v5313
    %v5370 = vpop.f32.mrf.mxu0
    %v5371 = vadd.f32 %v5298, %v5370
    %v5372 = vpop.f32.mrf.mxu0
    %v5373 = vpop.f32.mrf.mxu0
    %v5374 = vadd.f32 %v5298, %v5373
    %v5375 = vpop.f32.mrf.mxu0
    %5376 = vmatprep.mubr.bf16.mxu0 0
    %5377 = vmatmul.mubr.bf16.gmra.mxu0 %v5316
    %v5378 = vpop.f32.mrf.mxu0
    %v5379 = vadd.f32 %v5298, %v5378
    %v5380 = vpop.f32.mrf.mxu0
    %v5381 = vpop.f32.mrf.mxu0
    %v5382 = vadd.f32 %v5298, %v5381
    %v5383 = vpop.f32.mrf.mxu0
    %5384 = vmatprep.mubr.bf16.mxu0 0
    %5385 = vmatmul.mubr.bf16.gmra.mxu0 %v5319
    %v5386 = vpop.f32.mrf.mxu0
    %v5387 = vadd.f32 %v5298, %v5386
    %v5388 = vpop.f32.mrf.mxu0
    %v5389 = vpop.f32.mrf.mxu0
    %v5390 = vadd.f32 %v5298, %v5389
    %v5391 = vpop.f32.mrf.mxu0
    %5392 = vmatprep.mubr.bf16.mxu0 0
    %5393 = vmatmul.mubr.bf16.gmra.mxu0 %v5322
    %v5394 = vpop.f32.mrf.mxu0
    %v5395 = vadd.f32 %v5298, %v5394
    %v5396 = vpop.f32.mrf.mxu0
    %v5397 = vpop.f32.mrf.mxu0
    %v5398 = vadd.f32 %v5298, %v5397
    %v5399 = vpop.f32.mrf.mxu0
    %5400 = vmatprep.mubr.bf16.mxu0 0
    %5401 = vmatmul.mubr.bf16.gmra.mxu0 %v5325
    %v5402 = vpop.f32.mrf.mxu0
    %v5403 = vadd.f32 %v5298, %v5402
    %v5404 = vpop.f32.mrf.mxu0
    %v5405 = vpop.f32.mrf.mxu0
    %v5406 = vadd.f32 %v5298, %v5405
    %v5407 = vpop.f32.mrf.mxu0
    %5408 = vmatprep.mubr.bf16.mxu0 0
    %5409 = vmatmul.mubr.bf16.gmra.mxu0 %v5328
    %v5410 = vpop.f32.mrf.mxu0
    %v5411 = vadd.f32 %v5298, %v5410
    %v5412 = vpop.f32.mrf.mxu0
    %v5413 = vpop.f32.mrf.mxu0
    %v5414 = vadd.f32 %v5298, %v5413
    %v5415 = vpop.f32.mrf.mxu0
    %5416 = vmatprep.mubr.bf16.mxu0 0
    %5417 = vmatmul.mubr.bf16.gmra.mxu0 %v5331
    %v5418 = vpop.f32.mrf.mxu0
    %v5419 = vadd.f32 %v5298, %v5418
    %v5420 = vpop.f32.mrf.mxu0
    %v5421 = vpop.f32.mrf.mxu0
    %v5422 = vadd.f32 %v5298, %v5421
    %v5423 = vpop.f32.mrf.mxu0
    %5424 = vmatprep.mubr.bf16.mxu0 0
    %5425 = vmatmul.mubr.bf16.gmra.mxu0 %v5334
    %v5426 = vpop.f32.mrf.mxu0
    %v5427 = vadd.f32 %v5298, %v5426
    %v5428 = vpop.f32.mrf.mxu0
    %v5429 = vpop.f32.mrf.mxu0
    %v5430 = vadd.f32 %v5298, %v5429
    %v5431 = vpop.f32.mrf.mxu0
    %5432 = vdwg.mxu0
    %v5433 = vadd.f32 %v3162, %v5371
    %v5434 = vadd.f32 %v3163, %v5374
    %v5435 = vadd.f32 %v3164, %v5379
    %v5436 = vadd.f32 %v3165, %v5382
    %v5437 = vadd.f32 %v3166, %v5387
    %v5438 = vadd.f32 %v3167, %v5390
    %v5439 = vadd.f32 %v3168, %v5395
    %v5440 = vadd.f32 %v3169, %v5398
    %v5441 = vadd.f32 %v3170, %v5403
    %v5442 = vadd.f32 %v3171, %v5406
    %v5443 = vadd.f32 %v3172, %v5411
    %v5444 = vadd.f32 %v3173, %v5414
    %v5445 = vadd.f32 %v3174, %v5419
    %v5446 = vadd.f32 %v3175, %v5422
    %v5447 = vadd.f32 %v3176, %v5427
    %v5448 = vadd.f32 %v3177, %v5430
    %s5449 = scalar_lea.vmem %s5, 1
    %v5450 = vld [vmem:[%s5449] sm:$0x1]
    %s5451 = scalar_lea.vmem %s6, 1
    %v5452 = vld [vmem:[%s5451] sm:$0x1]
    %v5453 = vsel %vm171, %v5433, 0.0
    %5454 = vadd.xlane.f32.xlu0 %v5453
    %v5455 = vpop.xlane.xlu0 %5454
    %v5456 = vsel %vm171, %v5434, 0.0
    %5457 = vadd.xlane.f32.xlu0 %v5456
    %v5458 = vpop.xlane.xlu0 %5457
    %v5459 = vsel %vm171, %v5435, 0.0
    %5460 = vadd.xlane.f32.xlu0 %v5459
    %v5461 = vpop.xlane.xlu0 %5460
    %v5462 = vsel %vm171, %v5436, 0.0
    %5463 = vadd.xlane.f32.xlu0 %v5462
    %v5464 = vpop.xlane.xlu0 %5463
    %v5465 = vsel %vm171, %v5437, 0.0
    %5466 = vadd.xlane.f32.xlu0 %v5465
    %v5467 = vpop.xlane.xlu0 %5466
    %v5468 = vsel %vm171, %v5438, 0.0
    %5469 = vadd.xlane.f32.xlu0 %v5468
    %v5470 = vpop.xlane.xlu0 %5469
    %v5471 = vsel %vm171, %v5439, 0.0
    %5472 = vadd.xlane.f32.xlu0 %v5471
    %v5473 = vpop.xlane.xlu0 %5472
    %v5474 = vsel %vm171, %v5440, 0.0
    %5475 = vadd.xlane.f32.xlu0 %v5474
    %v5476 = vpop.xlane.xlu0 %5475
    %v5477 = vsel %vm171, %v5441, 0.0
    %5478 = vadd.xlane.f32.xlu0 %v5477
    %v5479 = vpop.xlane.xlu0 %5478
    %v5480 = vsel %vm171, %v5442, 0.0
    %5481 = vadd.xlane.f32.xlu0 %v5480
    %v5482 = vpop.xlane.xlu0 %5481
    %v5483 = vsel %vm171, %v5443, 0.0
    %5484 = vadd.xlane.f32.xlu0 %v5483
    %v5485 = vpop.xlane.xlu0 %5484
    %v5486 = vsel %vm171, %v5444, 0.0
    %5487 = vadd.xlane.f32.xlu0 %v5486
    %v5488 = vpop.xlane.xlu0 %5487
    %v5489 = vsel %vm171, %v5445, 0.0
    %5490 = vadd.xlane.f32.xlu0 %v5489
    %v5491 = vpop.xlane.xlu0 %5490
    %v5492 = vsel %vm171, %v5446, 0.0
    %5493 = vadd.xlane.f32.xlu0 %v5492
    %v5494 = vpop.xlane.xlu0 %5493
    %v5495 = vsel %vm171, %v5447, 0.0
    %5496 = vadd.xlane.f32.xlu0 %v5495
    %v5497 = vpop.xlane.xlu0 %5496
    %v5498 = vsel %vm171, %v5448, 0.0
    %5499 = vadd.xlane.f32.xlu0 %v5498
    %v5500 = vpop.xlane.xlu0 %5499
    %v5501 = vmul.f32 %v5455, %v220
    %v5502 = vmul.f32 %v5458, %v220
    %v5503 = vmul.f32 %v5461, %v220
    %v5504 = vmul.f32 %v5464, %v220
    %v5505 = vmul.f32 %v5467, %v220
    %v5506 = vmul.f32 %v5470, %v220
    %v5507 = vmul.f32 %v5473, %v220
    %v5508 = vmul.f32 %v5476, %v220
    %v5509 = vmul.f32 %v5479, %v220
    %v5510 = vmul.f32 %v5482, %v220
    %v5511 = vmul.f32 %v5485, %v220
    %v5512 = vmul.f32 %v5488, %v220
    %v5513 = vmul.f32 %v5491, %v220
    %v5514 = vmul.f32 %v5494, %v220
    %v5515 = vmul.f32 %v5497, %v220
    %v5516 = vmul.f32 %v5500, %v220
    %v5517 = vsub.f32 %v5433, %v5501
    %v5518 = vsub.f32 %v5434, %v5502
    %v5519 = vsub.f32 %v5435, %v5503
    %v5520 = vsub.f32 %v5436, %v5504
    %v5521 = vsub.f32 %v5437, %v5505
    %v5522 = vsub.f32 %v5438, %v5506
    %v5523 = vsub.f32 %v5439, %v5507
    %v5524 = vsub.f32 %v5440, %v5508
    %v5525 = vsub.f32 %v5441, %v5509
    %v5526 = vsub.f32 %v5442, %v5510
    %v5527 = vsub.f32 %v5443, %v5511
    %v5528 = vsub.f32 %v5444, %v5512
    %v5529 = vsub.f32 %v5445, %v5513
    %v5530 = vsub.f32 %v5446, %v5514
    %v5531 = vsub.f32 %v5447, %v5515
    %v5532 = vsub.f32 %v5448, %v5516
    %v5533 = vmul.f32 %v5517, %v5517
    %v5534 = vmul.f32 %v5518, %v5518
    %v5535 = vmul.f32 %v5519, %v5519
    %v5536 = vmul.f32 %v5520, %v5520
    %v5537 = vmul.f32 %v5521, %v5521
    %v5538 = vmul.f32 %v5522, %v5522
    %v5539 = vmul.f32 %v5523, %v5523
    %v5540 = vmul.f32 %v5524, %v5524
    %v5541 = vmul.f32 %v5525, %v5525
    %v5542 = vmul.f32 %v5526, %v5526
    %v5543 = vmul.f32 %v5527, %v5527
    %v5544 = vmul.f32 %v5528, %v5528
    %v5545 = vmul.f32 %v5529, %v5529
    %v5546 = vmul.f32 %v5530, %v5530
    %v5547 = vmul.f32 %v5531, %v5531
    %v5548 = vmul.f32 %v5532, %v5532
    %v5549 = vsel %vm171, %v5533, 0.0
    %5550 = vadd.xlane.f32.xlu0 %v5549
    %v5551 = vpop.xlane.xlu0 %5550
    %v5552 = vsel %vm171, %v5534, 0.0
    %5553 = vadd.xlane.f32.xlu0 %v5552
    %v5554 = vpop.xlane.xlu0 %5553
    %v5555 = vsel %vm171, %v5535, 0.0
    %5556 = vadd.xlane.f32.xlu0 %v5555
    %v5557 = vpop.xlane.xlu0 %5556
    %v5558 = vsel %vm171, %v5536, 0.0
    %5559 = vadd.xlane.f32.xlu0 %v5558
    %v5560 = vpop.xlane.xlu0 %5559
    %v5561 = vsel %vm171, %v5537, 0.0
    %5562 = vadd.xlane.f32.xlu0 %v5561
    %v5563 = vpop.xlane.xlu0 %5562
    %v5564 = vsel %vm171, %v5538, 0.0
    %5565 = vadd.xlane.f32.xlu0 %v5564
    %v5566 = vpop.xlane.xlu0 %5565
    %v5567 = vsel %vm171, %v5539, 0.0
    %5568 = vadd.xlane.f32.xlu0 %v5567
    %v5569 = vpop.xlane.xlu0 %5568
    %v5570 = vsel %vm171, %v5540, 0.0
    %5571 = vadd.xlane.f32.xlu0 %v5570
    %v5572 = vpop.xlane.xlu0 %5571
    %v5573 = vsel %vm171, %v5541, 0.0
    %5574 = vadd.xlane.f32.xlu0 %v5573
    %v5575 = vpop.xlane.xlu0 %5574
    %v5576 = vsel %vm171, %v5542, 0.0
    %5577 = vadd.xlane.f32.xlu0 %v5576
    %v5578 = vpop.xlane.xlu0 %5577
    %v5579 = vsel %vm171, %v5543, 0.0
    %5580 = vadd.xlane.f32.xlu0 %v5579
    %v5581 = vpop.xlane.xlu0 %5580
    %v5582 = vsel %vm171, %v5544, 0.0
    %5583 = vadd.xlane.f32.xlu0 %v5582
    %v5584 = vpop.xlane.xlu0 %5583
    %v5585 = vsel %vm171, %v5545, 0.0
    %5586 = vadd.xlane.f32.xlu0 %v5585
    %v5587 = vpop.xlane.xlu0 %5586
    %v5588 = vsel %vm171, %v5546, 0.0
    %5589 = vadd.xlane.f32.xlu0 %v5588
    %v5590 = vpop.xlane.xlu0 %5589
    %v5591 = vsel %vm171, %v5547, 0.0
    %5592 = vadd.xlane.f32.xlu0 %v5591
    %v5593 = vpop.xlane.xlu0 %5592
    %v5594 = vsel %vm171, %v5548, 0.0
    %5595 = vadd.xlane.f32.xlu0 %v5594
    %v5596 = vpop.xlane.xlu0 %5595
    %v5597 = vmul.f32 %v5551, %v220
    %v5598 = vmul.f32 %v5554, %v220
    %v5599 = vmul.f32 %v5557, %v220
    %v5600 = vmul.f32 %v5560, %v220
    %v5601 = vmul.f32 %v5563, %v220
    %v5602 = vmul.f32 %v5566, %v220
    %v5603 = vmul.f32 %v5569, %v220
    %v5604 = vmul.f32 %v5572, %v220
    %v5605 = vmul.f32 %v5575, %v220
    %v5606 = vmul.f32 %v5578, %v220
    %v5607 = vmul.f32 %v5581, %v220
    %v5608 = vmul.f32 %v5584, %v220
    %v5609 = vmul.f32 %v5587, %v220
    %v5610 = vmul.f32 %v5590, %v220
    %v5611 = vmul.f32 %v5593, %v220
    %v5612 = vmul.f32 %v5596, %v220
    %v5613 = vadd.f32 %v5597, 1e-05
    %v5614 = vadd.f32 %v5598, 1e-05
    %v5615 = vadd.f32 %v5599, 1e-05
    %v5616 = vadd.f32 %v5600, 1e-05
    %v5617 = vadd.f32 %v5601, 1e-05
    %v5618 = vadd.f32 %v5602, 1e-05
    %v5619 = vadd.f32 %v5603, 1e-05
    %v5620 = vadd.f32 %v5604, 1e-05
    %v5621 = vadd.f32 %v5605, 1e-05
    %v5622 = vadd.f32 %v5606, 1e-05
    %v5623 = vadd.f32 %v5607, 1e-05
    %v5624 = vadd.f32 %v5608, 1e-05
    %v5625 = vadd.f32 %v5609, 1e-05
    %v5626 = vadd.f32 %v5610, 1e-05
    %v5627 = vadd.f32 %v5611, 1e-05
    %v5628 = vadd.f32 %v5612, 1e-05
    %v5629 = vrsqrt.pop %v5613
    %v5630 = vrsqrt.pop %v5614
    %v5631 = vrsqrt.pop %v5615
    %v5632 = vrsqrt.pop %v5616
    %v5633 = vrsqrt.pop %v5617
    %v5634 = vrsqrt.pop %v5618
    %v5635 = vrsqrt.pop %v5619
    %v5636 = vrsqrt.pop %v5620
    %v5637 = vrsqrt.pop %v5621
    %v5638 = vrsqrt.pop %v5622
    %v5639 = vrsqrt.pop %v5623
    %v5640 = vrsqrt.pop %v5624
    %v5641 = vrsqrt.pop %v5625
    %v5642 = vrsqrt.pop %v5626
    %v5643 = vrsqrt.pop %v5627
    %v5644 = vrsqrt.pop %v5628
    %v5645 = vmul.f32 %v5517, %v5629
    %v5646 = vmul.f32 %v5518, %v5630
    %v5647 = vmul.f32 %v5519, %v5631
    %v5648 = vmul.f32 %v5520, %v5632
    %v5649 = vmul.f32 %v5521, %v5633
    %v5650 = vmul.f32 %v5522, %v5634
    %v5651 = vmul.f32 %v5523, %v5635
    %v5652 = vmul.f32 %v5524, %v5636
    %v5653 = vmul.f32 %v5525, %v5637
    %v5654 = vmul.f32 %v5526, %v5638
    %v5655 = vmul.f32 %v5527, %v5639
    %v5656 = vmul.f32 %v5528, %v5640
    %v5657 = vmul.f32 %v5529, %v5641
    %v5658 = vmul.f32 %v5530, %v5642
    %v5659 = vmul.f32 %v5531, %v5643
    %v5660 = vmul.f32 %v5532, %v5644
    %v5662 = vlaneseq
    %v5663 = vshrl.u32 %v5662, 7
    %v5664 = vsub.s32 0, %v5663
    %v5665 = vrot.slane %v5450, %v5664
    %v5667 = vmul.f32 %v5645, %v5665
    %v5668 = vmul.f32 %v5646, %v5665
    %v5669 = vmul.f32 %v5647, %v5665
    %v5670 = vmul.f32 %v5648, %v5665
    %v5671 = vmul.f32 %v5649, %v5665
    %v5672 = vmul.f32 %v5650, %v5665
    %v5673 = vmul.f32 %v5651, %v5665
    %v5674 = vmul.f32 %v5652, %v5665
    %v5675 = vmul.f32 %v5653, %v5665
    %v5676 = vmul.f32 %v5654, %v5665
    %v5677 = vmul.f32 %v5655, %v5665
    %v5678 = vmul.f32 %v5656, %v5665
    %v5679 = vmul.f32 %v5657, %v5665
    %v5680 = vmul.f32 %v5658, %v5665
    %v5681 = vmul.f32 %v5659, %v5665
    %v5682 = vmul.f32 %v5660, %v5665
    %v5684 = vlaneseq
    %v5685 = vshrl.u32 %v5684, 7
    %v5686 = vsub.s32 0, %v5685
    %v5687 = vrot.slane %v5452, %v5686
    %v5689 = vadd.f32 %v5667, %v5687
    %v5690 = vadd.f32 %v5668, %v5687
    %v5691 = vadd.f32 %v5669, %v5687
    %v5692 = vadd.f32 %v5670, %v5687
    %v5693 = vadd.f32 %v5671, %v5687
    %v5694 = vadd.f32 %v5672, %v5687
    %v5695 = vadd.f32 %v5673, %v5687
    %v5696 = vadd.f32 %v5674, %v5687
    %v5697 = vadd.f32 %v5675, %v5687
    %v5698 = vadd.f32 %v5676, %v5687
    %v5699 = vadd.f32 %v5677, %v5687
    %v5700 = vadd.f32 %v5678, %v5687
    %v5701 = vadd.f32 %v5679, %v5687
    %v5702 = vadd.f32 %v5680, %v5687
    %v5703 = vadd.f32 %v5681, %v5687
    %v5704 = vadd.f32 %v5682, %v5687
    %v5705 = vpack.c.bf16 %v5690, %v5689
    %v5706 = vpack.c.bf16 %v5692, %v5691
    %v5707 = vpack.c.bf16 %v5694, %v5693
    %v5708 = vpack.c.bf16 %v5696, %v5695
    %v5709 = vpack.c.bf16 %v5698, %v5697
    %v5710 = vpack.c.bf16 %v5700, %v5699
    %v5711 = vpack.c.bf16 %v5702, %v5701
    %v5712 = vpack.c.bf16 %v5704, %v5703
    %s5713 = scalar_lea.vmem %s10, 16
    %v5714 = vld [vmem:[%s5713] sm:$0xf]
    %v5715 = vld [vmem:[%s5713 + $0x4] sm:$0xf]
    %v5716 = vld [vmem:[%s5713 + $0x8] sm:$0xf]
    %v5717 = vld [vmem:[%s5713 + $0xc] sm:$0xf]
    %s5718 = scalar_lea.vmem %s11, 1
    %v5719 = vld [vmem:[%s5718] sm:$0x1]
    %v5721 = vlaneseq
    %v5722 = vshrl.u32 %v5721, 7
    %v5723 = vsub.s32 0, %v5722
    %v5724 = vrot.slane %v5719, %v5723
    %v5730 = vunpack.c.l.b16 %v5714
    %v5731 = vunpack.c.l.b16 %v5715
    %v5732 = vunpack.c.l.b16 %v5716
    %v5733 = vunpack.c.l.b16 %v5717
    %v5734 = vpack.c.b16 %v5731, %v5730
    %v5735 = vpack.c.b16 %v5733, %v5732
    %v5739 = vsel %vm171, %v5705, 0
    %v5742 = vsel %vm171, %v5706, 0
    %v5745 = vsel %vm171, %v5707, 0
    %v5748 = vsel %vm171, %v5708, 0
    %v5751 = vsel %vm171, %v5709, 0
    %v5754 = vsel %vm171, %v5710, 0
    %v5757 = vsel %vm171, %v5711, 0
    %v5760 = vsel %vm171, %v5712, 0
    %5762 = vmatprep.subr.bf16.mxu0 0
    %5763 = vmatpush1.bf16.msra.mxu0 0
    %5764 = vmatprep.subr.bf16.mxu0 0
    %5765 = vmatpush1.bf16.msra.mxu0 0
    %5766 = vmatprep.subr.bf16.mxu0 0
    %5767 = vmatpush1.bf16.msra.mxu0 0
    %5768 = vmatprep.subr.bf16.mxu0 0
    %5769 = vmatpush1.bf16.msra.mxu0 0
    %5770 = vmatprep.subr.bf16.mxu0 0
    %5771 = vmatpush1.bf16.msra.mxu0 0
    %5772 = vmatprep.subr.bf16.mxu0 0
    %5773 = vmatpush1.bf16.msra.mxu0 0
    %5774 = vmatprep.subr.bf16.mxu0 0
    %5775 = vmatpush1.bf16.msra.mxu0 %v5735
    %5776 = vmatprep.subr.bf16.mxu0 0
    %5777 = vmatpush1.bf16.msra.mxu0 %v5734
    %5778 = vmatprep.subr.bf16.mxu0 0
    %5779 = vmatpush2.bf16.msra.mxu0 0
    %5780 = vmatprep.subr.bf16.mxu0 0
    %5781 = vmatpush2.bf16.msra.mxu0 0
    %5782 = vmatprep.subr.bf16.mxu0 0
    %5783 = vmatpush2.bf16.msra.mxu0 0
    %5784 = vmatprep.subr.bf16.mxu0 0
    %5785 = vmatpush2.bf16.msra.mxu0 0
    %5786 = vmatprep.subr.bf16.mxu0 0
    %5787 = vmatpush2.bf16.msra.mxu0 0
    %5788 = vmatprep.subr.bf16.mxu0 0
    %5789 = vmatpush2.bf16.msra.mxu0 0
    %5790 = vmatprep.subr.bf16.mxu0 0
    %5791 = vmatpush2.bf16.msra.mxu0 0
    %5792 = vmatprep.subr.bf16.mxu0 0
    %5793 = vmatpush2.bf16.msra.mxu0 0
    %5794 = vmatprep.mubr.bf16.mxu0 0
    %5795 = vmatmul.mubr.bf16.gmra.mxu0 %v5739
    %v5796 = vpop.f32.mrf.mxu0
    %v5797 = vadd.f32 %v5724, %v5796
    %v5798 = vpop.f32.mrf.mxu0
    %v5799 = vpop.f32.mrf.mxu0
    %v5800 = vadd.f32 %v5724, %v5799
    %v5801 = vpop.f32.mrf.mxu0
    %5802 = vmatprep.mubr.bf16.mxu0 0
    %5803 = vmatmul.mubr.bf16.gmra.mxu0 %v5742
    %v5804 = vpop.f32.mrf.mxu0
    %v5805 = vadd.f32 %v5724, %v5804
    %v5806 = vpop.f32.mrf.mxu0
    %v5807 = vpop.f32.mrf.mxu0
    %v5808 = vadd.f32 %v5724, %v5807
    %v5809 = vpop.f32.mrf.mxu0
    %5810 = vmatprep.mubr.bf16.mxu0 0
    %5811 = vmatmul.mubr.bf16.gmra.mxu0 %v5745
    %v5812 = vpop.f32.mrf.mxu0
    %v5813 = vadd.f32 %v5724, %v5812
    %v5814 = vpop.f32.mrf.mxu0
    %v5815 = vpop.f32.mrf.mxu0
    %v5816 = vadd.f32 %v5724, %v5815
    %v5817 = vpop.f32.mrf.mxu0
    %5818 = vmatprep.mubr.bf16.mxu0 0
    %5819 = vmatmul.mubr.bf16.gmra.mxu0 %v5748
    %v5820 = vpop.f32.mrf.mxu0
    %v5821 = vadd.f32 %v5724, %v5820
    %v5822 = vpop.f32.mrf.mxu0
    %v5823 = vpop.f32.mrf.mxu0
    %v5824 = vadd.f32 %v5724, %v5823
    %v5825 = vpop.f32.mrf.mxu0
    %5826 = vmatprep.mubr.bf16.mxu0 0
    %5827 = vmatmul.mubr.bf16.gmra.mxu0 %v5751
    %v5828 = vpop.f32.mrf.mxu0
    %v5829 = vadd.f32 %v5724, %v5828
    %v5830 = vpop.f32.mrf.mxu0
    %v5831 = vpop.f32.mrf.mxu0
    %v5832 = vadd.f32 %v5724, %v5831
    %v5833 = vpop.f32.mrf.mxu0
    %5834 = vmatprep.mubr.bf16.mxu0 0
    %5835 = vmatmul.mubr.bf16.gmra.mxu0 %v5754
    %v5836 = vpop.f32.mrf.mxu0
    %v5837 = vadd.f32 %v5724, %v5836
    %v5838 = vpop.f32.mrf.mxu0
    %v5839 = vpop.f32.mrf.mxu0
    %v5840 = vadd.f32 %v5724, %v5839
    %v5841 = vpop.f32.mrf.mxu0
    %5842 = vmatprep.mubr.bf16.mxu0 0
    %5843 = vmatmul.mubr.bf16.gmra.mxu0 %v5757
    %v5844 = vpop.f32.mrf.mxu0
    %v5845 = vadd.f32 %v5724, %v5844
    %v5846 = vpop.f32.mrf.mxu0
    %v5847 = vpop.f32.mrf.mxu0
    %v5848 = vadd.f32 %v5724, %v5847
    %v5849 = vpop.f32.mrf.mxu0
    %5850 = vmatprep.mubr.bf16.mxu0 0
    %5851 = vmatmul.mubr.bf16.gmra.mxu0 %v5760
    %v5852 = vpop.f32.mrf.mxu0
    %v5853 = vadd.f32 %v5724, %v5852
    %v5854 = vpop.f32.mrf.mxu0
    %v5855 = vpop.f32.mrf.mxu0
    %v5856 = vadd.f32 %v5724, %v5855
    %v5857 = vpop.f32.mrf.mxu0
    %5858 = vdwg.mxu0
    %v5859 = vmul.f32 %v5797, 0.5
    %v5860 = vmul.f32 %v5800, 0.5
    %v5861 = vmul.f32 %v5805, 0.5
    %v5862 = vmul.f32 %v5808, 0.5
    %v5863 = vmul.f32 %v5813, 0.5
    %v5864 = vmul.f32 %v5816, 0.5
    %v5865 = vmul.f32 %v5821, 0.5
    %v5866 = vmul.f32 %v5824, 0.5
    %v5867 = vmul.f32 %v5829, 0.5
    %v5868 = vmul.f32 %v5832, 0.5
    %v5869 = vmul.f32 %v5837, 0.5
    %v5870 = vmul.f32 %v5840, 0.5
    %v5871 = vmul.f32 %v5845, 0.5
    %v5872 = vmul.f32 %v5848, 0.5
    %v5873 = vmul.f32 %v5853, 0.5
    %v5874 = vmul.f32 %v5856, 0.5
    %v5875 = vmul.f32 %v5797, 0.044715
    %v5876 = vmul.f32 %v5800, 0.044715
    %v5877 = vmul.f32 %v5805, 0.044715
    %v5878 = vmul.f32 %v5808, 0.044715
    %v5879 = vmul.f32 %v5813, 0.044715
    %v5880 = vmul.f32 %v5816, 0.044715
    %v5881 = vmul.f32 %v5821, 0.044715
    %v5882 = vmul.f32 %v5824, 0.044715
    %v5883 = vmul.f32 %v5829, 0.044715
    %v5884 = vmul.f32 %v5832, 0.044715
    %v5885 = vmul.f32 %v5837, 0.044715
    %v5886 = vmul.f32 %v5840, 0.044715
    %v5887 = vmul.f32 %v5845, 0.044715
    %v5888 = vmul.f32 %v5848, 0.044715
    %v5889 = vmul.f32 %v5853, 0.044715
    %v5890 = vmul.f32 %v5856, 0.044715
    %v5891 = vmul.f32 %v5875, %v5797
    %v5892 = vmul.f32 %v5876, %v5800
    %v5893 = vmul.f32 %v5877, %v5805
    %v5894 = vmul.f32 %v5878, %v5808
    %v5895 = vmul.f32 %v5879, %v5813
    %v5896 = vmul.f32 %v5880, %v5816
    %v5897 = vmul.f32 %v5881, %v5821
    %v5898 = vmul.f32 %v5882, %v5824
    %v5899 = vmul.f32 %v5883, %v5829
    %v5900 = vmul.f32 %v5884, %v5832
    %v5901 = vmul.f32 %v5885, %v5837
    %v5902 = vmul.f32 %v5886, %v5840
    %v5903 = vmul.f32 %v5887, %v5845
    %v5904 = vmul.f32 %v5888, %v5848
    %v5905 = vmul.f32 %v5889, %v5853
    %v5906 = vmul.f32 %v5890, %v5856
    %v5907 = vmul.f32 %v5891, %v5797
    %v5908 = vmul.f32 %v5892, %v5800
    %v5909 = vmul.f32 %v5893, %v5805
    %v5910 = vmul.f32 %v5894, %v5808
    %v5911 = vmul.f32 %v5895, %v5813
    %v5912 = vmul.f32 %v5896, %v5816
    %v5913 = vmul.f32 %v5897, %v5821
    %v5914 = vmul.f32 %v5898, %v5824
    %v5915 = vmul.f32 %v5899, %v5829
    %v5916 = vmul.f32 %v5900, %v5832
    %v5917 = vmul.f32 %v5901, %v5837
    %v5918 = vmul.f32 %v5902, %v5840
    %v5919 = vmul.f32 %v5903, %v5845
    %v5920 = vmul.f32 %v5904, %v5848
    %v5921 = vmul.f32 %v5905, %v5853
    %v5922 = vmul.f32 %v5906, %v5856
    %v5923 = vadd.f32 %v5797, %v5907
    %v5924 = vadd.f32 %v5800, %v5908
    %v5925 = vadd.f32 %v5805, %v5909
    %v5926 = vadd.f32 %v5808, %v5910
    %v5927 = vadd.f32 %v5813, %v5911
    %v5928 = vadd.f32 %v5816, %v5912
    %v5929 = vadd.f32 %v5821, %v5913
    %v5930 = vadd.f32 %v5824, %v5914
    %v5931 = vadd.f32 %v5829, %v5915
    %v5932 = vadd.f32 %v5832, %v5916
    %v5933 = vadd.f32 %v5837, %v5917
    %v5934 = vadd.f32 %v5840, %v5918
    %v5935 = vadd.f32 %v5845, %v5919
    %v5936 = vadd.f32 %v5848, %v5920
    %v5937 = vadd.f32 %v5853, %v5921
    %v5938 = vadd.f32 %v5856, %v5922
    %v5939 = vmul.f32 %v5923, 0.7978846
    %v5940 = vmul.f32 %v5924, 0.7978846
    %v5941 = vmul.f32 %v5925, 0.7978846
    %v5942 = vmul.f32 %v5926, 0.7978846
    %v5943 = vmul.f32 %v5927, 0.7978846
    %v5944 = vmul.f32 %v5928, 0.7978846
    %v5945 = vmul.f32 %v5929, 0.7978846
    %v5946 = vmul.f32 %v5930, 0.7978846
    %v5947 = vmul.f32 %v5931, 0.7978846
    %v5948 = vmul.f32 %v5932, 0.7978846
    %v5949 = vmul.f32 %v5933, 0.7978846
    %v5950 = vmul.f32 %v5934, 0.7978846
    %v5951 = vmul.f32 %v5935, 0.7978846
    %v5952 = vmul.f32 %v5936, 0.7978846
    %v5953 = vmul.f32 %v5937, 0.7978846
    %v5954 = vmul.f32 %v5938, 0.7978846
    %v5955 = vtanh.pop %v5939
    %v5956 = vtanh.pop %v5940
    %v5957 = vtanh.pop %v5941
    %v5958 = vtanh.pop %v5942
    %v5959 = vtanh.pop %v5943
    %v5960 = vtanh.pop %v5944
    %v5961 = vtanh.pop %v5945
    %v5962 = vtanh.pop %v5946
    %v5963 = vtanh.pop %v5947
    %v5964 = vtanh.pop %v5948
    %v5965 = vtanh.pop %v5949
    %v5966 = vtanh.pop %v5950
    %v5967 = vtanh.pop %v5951
    %v5968 = vtanh.pop %v5952
    %v5969 = vtanh.pop %v5953
    %v5970 = vtanh.pop %v5954
    %v5971 = vadd.f32 %v5955, 1.0
    %v5972 = vadd.f32 %v5956, 1.0
    %v5973 = vadd.f32 %v5957, 1.0
    %v5974 = vadd.f32 %v5958, 1.0
    %v5975 = vadd.f32 %v5959, 1.0
    %v5976 = vadd.f32 %v5960, 1.0
    %v5977 = vadd.f32 %v5961, 1.0
    %v5978 = vadd.f32 %v5962, 1.0
    %v5979 = vadd.f32 %v5963, 1.0
    %v5980 = vadd.f32 %v5964, 1.0
    %v5981 = vadd.f32 %v5965, 1.0
    %v5982 = vadd.f32 %v5966, 1.0
    %v5983 = vadd.f32 %v5967, 1.0
    %v5984 = vadd.f32 %v5968, 1.0
    %v5985 = vadd.f32 %v5969, 1.0
    %v5986 = vadd.f32 %v5970, 1.0
    %v5987 = vmul.f32 %v5859, %v5971
    %v5988 = vmul.f32 %v5860, %v5972
    %v5989 = vmul.f32 %v5861, %v5973
    %v5990 = vmul.f32 %v5862, %v5974
    %v5991 = vmul.f32 %v5863, %v5975
    %v5992 = vmul.f32 %v5864, %v5976
    %v5993 = vmul.f32 %v5865, %v5977
    %v5994 = vmul.f32 %v5866, %v5978
    %v5995 = vmul.f32 %v5867, %v5979
    %v5996 = vmul.f32 %v5868, %v5980
    %v5997 = vmul.f32 %v5869, %v5981
    %v5998 = vmul.f32 %v5870, %v5982
    %v5999 = vmul.f32 %v5871, %v5983
    %v6000 = vmul.f32 %v5872, %v5984
    %v6001 = vmul.f32 %v5873, %v5985
    %v6002 = vmul.f32 %v5874, %v5986
    %v6003 = vpack.c.bf16 %v5988, %v5987
    %v6004 = vpack.c.bf16 %v5990, %v5989
    %v6005 = vpack.c.bf16 %v5992, %v5991
    %v6006 = vpack.c.bf16 %v5994, %v5993
    %v6007 = vpack.c.bf16 %v5996, %v5995
    %v6008 = vpack.c.bf16 %v5998, %v5997
    %v6009 = vpack.c.bf16 %v6000, %v5999
    %v6010 = vpack.c.bf16 %v6002, %v6001
    %s6011 = scalar_lea.vmem %s12, 64
    %v6012 = vld [vmem:[%s6011] sm:$0xf]
    %v6013 = vld [vmem:[%s6011 + $0x4] sm:$0xf]
    %v6014 = vld [vmem:[%s6011 + $0x8] sm:$0xf]
    %v6015 = vld [vmem:[%s6011 + $0xc] sm:$0xf]
    %v6016 = vld [vmem:[%s6011 + $0x10] sm:$0xf]
    %v6017 = vld [vmem:[%s6011 + $0x14] sm:$0xf]
    %v6018 = vld [vmem:[%s6011 + $0x18] sm:$0xf]
    %v6019 = vld [vmem:[%s6011 + $0x1c] sm:$0xf]
    %v6020 = vld [vmem:[%s6011 + $0x20] sm:$0xf]
    %v6021 = vld [vmem:[%s6011 + $0x24] sm:$0xf]
    %v6022 = vld [vmem:[%s6011 + $0x28] sm:$0xf]
    %v6023 = vld [vmem:[%s6011 + $0x2c] sm:$0xf]
    %v6024 = vld [vmem:[%s6011 + $0x30] sm:$0xf]
    %v6025 = vld [vmem:[%s6011 + $0x34] sm:$0xf]
    %v6026 = vld [vmem:[%s6011 + $0x38] sm:$0xf]
    %v6027 = vld [vmem:[%s6011 + $0x3c] sm:$0xf]
    %s6028 = scalar_lea.vmem %s13, 1
    %v6029 = vld [vmem:[%s6028] sm:$0x1]
    %v6031 = vlaneseq
    %v6032 = vshrl.u32 %v6031, 7
    %v6033 = vsub.s32 0, %v6032
    %v6034 = vrot.slane %v6029, %v6033
    %v6052 = vunpack.c.l.b16 %v6012
    %v6053 = vunpack.c.l.b16 %v6013
    %v6054 = vunpack.c.l.b16 %v6014
    %v6055 = vunpack.c.l.b16 %v6015
    %v6056 = vunpack.c.l.b16 %v6016
    %v6057 = vunpack.c.l.b16 %v6017
    %v6058 = vunpack.c.l.b16 %v6018
    %v6059 = vunpack.c.l.b16 %v6019
    %v6060 = vunpack.c.l.b16 %v6020
    %v6061 = vunpack.c.l.b16 %v6021
    %v6062 = vunpack.c.l.b16 %v6022
    %v6063 = vunpack.c.l.b16 %v6023
    %v6064 = vunpack.c.l.b16 %v6024
    %v6065 = vunpack.c.l.b16 %v6025
    %v6066 = vunpack.c.l.b16 %v6026
    %v6067 = vunpack.c.l.b16 %v6027
    %v6068 = vpack.c.b16 %v6053, %v6052
    %v6069 = vpack.c.b16 %v6055, %v6054
    %v6070 = vpack.c.b16 %v6057, %v6056
    %v6071 = vpack.c.b16 %v6059, %v6058
    %v6072 = vpack.c.b16 %v6061, %v6060
    %v6073 = vpack.c.b16 %v6063, %v6062
    %v6074 = vpack.c.b16 %v6065, %v6064
    %v6075 = vpack.c.b16 %v6067, %v6066
    %6084 = vmatprep.subr.bf16.mxu0 0
    %6085 = vmatpush1.bf16.msra.mxu0 %v6075
    %6086 = vmatprep.subr.bf16.mxu0 0
    %6087 = vmatpush1.bf16.msra.mxu0 %v6074
    %6088 = vmatprep.subr.bf16.mxu0 0
    %6089 = vmatpush1.bf16.msra.mxu0 %v6073
    %6090 = vmatprep.subr.bf16.mxu0 0
    %6091 = vmatpush1.bf16.msra.mxu0 %v6072
    %6092 = vmatprep.subr.bf16.mxu0 0
    %6093 = vmatpush1.bf16.msra.mxu0 %v6071
    %6094 = vmatprep.subr.bf16.mxu0 0
    %6095 = vmatpush1.bf16.msra.mxu0 %v6070
    %6096 = vmatprep.subr.bf16.mxu0 0
    %6097 = vmatpush1.bf16.msra.mxu0 %v6069
    %6098 = vmatprep.subr.bf16.mxu0 0
    %6099 = vmatpush1.bf16.msra.mxu0 %v6068
    %6100 = vmatprep.subr.bf16.mxu0 0
    %6101 = vmatpush2.bf16.msra.mxu0 0
    %6102 = vmatprep.subr.bf16.mxu0 0
    %6103 = vmatpush2.bf16.msra.mxu0 0
    %6104 = vmatprep.subr.bf16.mxu0 0
    %6105 = vmatpush2.bf16.msra.mxu0 0
    %6106 = vmatprep.subr.bf16.mxu0 0
    %6107 = vmatpush2.bf16.msra.mxu0 0
    %6108 = vmatprep.subr.bf16.mxu0 0
    %6109 = vmatpush2.bf16.msra.mxu0 0
    %6110 = vmatprep.subr.bf16.mxu0 0
    %6111 = vmatpush2.bf16.msra.mxu0 0
    %6112 = vmatprep.subr.bf16.mxu0 0
    %6113 = vmatpush2.bf16.msra.mxu0 0
    %6114 = vmatprep.subr.bf16.mxu0 0
    %6115 = vmatpush2.bf16.msra.mxu0 0
    %6116 = vmatprep.mubr.bf16.mxu0 0
    %6117 = vmatmul.mubr.bf16.gmra.mxu0 %v6003
    %v6118 = vpop.f32.mrf.mxu0
    %v6119 = vadd.f32 %v6034, %v6118
    %v6120 = vpop.f32.mrf.mxu0
    %v6121 = vpop.f32.mrf.mxu0
    %v6122 = vadd.f32 %v6034, %v6121
    %v6123 = vpop.f32.mrf.mxu0
    %6124 = vmatprep.mubr.bf16.mxu0 0
    %6125 = vmatmul.mubr.bf16.gmra.mxu0 %v6004
    %v6126 = vpop.f32.mrf.mxu0
    %v6127 = vadd.f32 %v6034, %v6126
    %v6128 = vpop.f32.mrf.mxu0
    %v6129 = vpop.f32.mrf.mxu0
    %v6130 = vadd.f32 %v6034, %v6129
    %v6131 = vpop.f32.mrf.mxu0
    %6132 = vmatprep.mubr.bf16.mxu0 0
    %6133 = vmatmul.mubr.bf16.gmra.mxu0 %v6005
    %v6134 = vpop.f32.mrf.mxu0
    %v6135 = vadd.f32 %v6034, %v6134
    %v6136 = vpop.f32.mrf.mxu0
    %v6137 = vpop.f32.mrf.mxu0
    %v6138 = vadd.f32 %v6034, %v6137
    %v6139 = vpop.f32.mrf.mxu0
    %6140 = vmatprep.mubr.bf16.mxu0 0
    %6141 = vmatmul.mubr.bf16.gmra.mxu0 %v6006
    %v6142 = vpop.f32.mrf.mxu0
    %v6143 = vadd.f32 %v6034, %v6142
    %v6144 = vpop.f32.mrf.mxu0
    %v6145 = vpop.f32.mrf.mxu0
    %v6146 = vadd.f32 %v6034, %v6145
    %v6147 = vpop.f32.mrf.mxu0
    %6148 = vmatprep.mubr.bf16.mxu0 0
    %6149 = vmatmul.mubr.bf16.gmra.mxu0 %v6007
    %v6150 = vpop.f32.mrf.mxu0
    %v6151 = vadd.f32 %v6034, %v6150
    %v6152 = vpop.f32.mrf.mxu0
    %v6153 = vpop.f32.mrf.mxu0
    %v6154 = vadd.f32 %v6034, %v6153
    %v6155 = vpop.f32.mrf.mxu0
    %6156 = vmatprep.mubr.bf16.mxu0 0
    %6157 = vmatmul.mubr.bf16.gmra.mxu0 %v6008
    %v6158 = vpop.f32.mrf.mxu0
    %v6159 = vadd.f32 %v6034, %v6158
    %v6160 = vpop.f32.mrf.mxu0
    %v6161 = vpop.f32.mrf.mxu0
    %v6162 = vadd.f32 %v6034, %v6161
    %v6163 = vpop.f32.mrf.mxu0
    %6164 = vmatprep.mubr.bf16.mxu0 0
    %6165 = vmatmul.mubr.bf16.gmra.mxu0 %v6009
    %v6166 = vpop.f32.mrf.mxu0
    %v6167 = vadd.f32 %v6034, %v6166
    %v6168 = vpop.f32.mrf.mxu0
    %v6169 = vpop.f32.mrf.mxu0
    %v6170 = vadd.f32 %v6034, %v6169
    %v6171 = vpop.f32.mrf.mxu0
    %6172 = vmatprep.mubr.bf16.mxu0 0
    %6173 = vmatmul.mubr.bf16.gmra.mxu0 %v6010
    %v6174 = vpop.f32.mrf.mxu0
    %v6175 = vadd.f32 %v6034, %v6174
    %v6176 = vpop.f32.mrf.mxu0
    %v6177 = vpop.f32.mrf.mxu0
    %v6178 = vadd.f32 %v6034, %v6177
    %v6179 = vpop.f32.mrf.mxu0
    %6180 = vdwg.mxu0
    %v6181 = vadd.f32 %v5433, %v6119
    %v6182 = vadd.f32 %v5434, %v6122
    %v6183 = vadd.f32 %v5435, %v6127
    %v6184 = vadd.f32 %v5436, %v6130
    %v6185 = vadd.f32 %v5437, %v6135
    %v6186 = vadd.f32 %v5438, %v6138
    %v6187 = vadd.f32 %v5439, %v6143
    %v6188 = vadd.f32 %v5440, %v6146
    %v6189 = vadd.f32 %v5441, %v6151
    %v6190 = vadd.f32 %v5442, %v6154
    %v6191 = vadd.f32 %v5443, %v6159
    %v6192 = vadd.f32 %v5444, %v6162
    %v6193 = vadd.f32 %v5445, %v6167
    %v6194 = vadd.f32 %v5446, %v6170
    %v6195 = vadd.f32 %v5447, %v6175
    %v6196 = vadd.f32 %v5448, %v6178
    %6197 = vst.msk [vmem:[%s14] sm:$0xff] %vm171, %v6181
    %6198 = vst.msk [vmem:[%s14 + $0x8] sm:$0xff] %vm171, %v6182
    %6199 = vst.msk [vmem:[%s14 + $0x10] sm:$0xff] %vm171, %v6183
    %6200 = vst.msk [vmem:[%s14 + $0x18] sm:$0xff] %vm171, %v6184
    %6201 = vst.msk [vmem:[%s14 + $0x20] sm:$0xff] %vm171, %v6185
    %6202 = vst.msk [vmem:[%s14 + $0x28] sm:$0xff] %vm171, %v6186
    %6203 = vst.msk [vmem:[%s14 + $0x30] sm:$0xff] %vm171, %v6187
    %6204 = vst.msk [vmem:[%s14 + $0x38] sm:$0xff] %vm171, %v6188
    %6205 = vst.msk [vmem:[%s14 + $0x40] sm:$0xff] %vm171, %v6189
    %6206 = vst.msk [vmem:[%s14 + $0x48] sm:$0xff] %vm171, %v6190
    %6207 = vst.msk [vmem:[%s14 + $0x50] sm:$0xff] %vm171, %v6191
    %6208 = vst.msk [vmem:[%s14 + $0x58] sm:$0xff] %vm171, %v6192
    %6209 = vst.msk [vmem:[%s14 + $0x60] sm:$0xff] %vm171, %v6193
    %6210 = vst.msk [vmem:[%s14 + $0x68] sm:$0xff] %vm171, %v6194
    %6211 = vst.msk [vmem:[%s14 + $0x70] sm:$0xff] %vm171, %v6195
    %6212 = vst.msk [vmem:[%s14 + $0x78] sm:$0xff] %vm171, %v6196
    // Predicated region
    $region70: #{basic_layer_forward.1} parent=1 // pred_check
      _
    $region71: #{basic_layer_forward.1} parent=1 // pred_check_branch
      %6214 = sbr.rel (0) target = $region73
    $region72: #{basic_layer_forward.1} parent=1 // pred_region
      _
    $region73: #{basic_layer_forward.1} parent=1 // pred_fallthru
      _
    // Predicated region
    $region74: #{basic_layer_forward.1} parent=1 // pred_check
      _
    $region75: #{basic_layer_forward.1} parent=1 // pred_check_branch
      %6216 = sbr.rel (0) target = $region77
    $region76: #{basic_layer_forward.1} parent=1 // pred_region
      _
    $region77: #{basic_layer_forward.1} parent=1 // pred_fallthru
      _
    %6217 = vsyncpa [#allocation3], 1
    %6218 = vsyncpa [#allocation5], 1

</llo_original>
